<compile_context>
chip_gen: v5e
topology: v5e:2x2
jax: 0.10.0
libtpu: 0.0.40
codegen_flags: <defaults>
</compile_context>

<pallas_src>
import numpy as np
import jax
import jax.numpy as jnp
from jax.experimental import pallas as pl
from jax.experimental.pallas import tpu as pltpu

N_QUBITS = 2
INV_SQRT2 = float(1.0 / np.sqrt(2.0))


# ----------------------------------------------------------------------------
# Pallas kernel: full PennyHAE forward for one batch tile.
# ----------------------------------------------------------------------------
def pennyhae_kernel(x_ref, w1_ref, b1_ref, w2_ref, b2_ref, w3t_ref, b3_ref,
                    w4t_ref, b4_ref, w5_ref, b5_ref, w6_ref, b6_ref, out_ref):
    x = x_ref[...]                                            # (TB, D)

    # ---- encoder ----
    e1 = jnp.dot(x, w1_ref[...], preferred_element_type=jnp.float32) + b1_ref[...]
    e1 = jnp.maximum(e1, 0.0)                                 # (TB, D/2)
    e2 = jnp.dot(e1, w2_ref[...], preferred_element_type=jnp.float32) + b2_ref[...]
    e2 = jnp.maximum(e2, 0.0)                                 # (TB, D/4)
    # last encoder Linear has out-dim 2 -> keep it on the VPU (lane reductions)
    a = jnp.sum(e2 * w3t_ref[0:1, :], axis=1, keepdims=True) + b3_ref[:, 0:1]   # (TB, 1)
    b = jnp.sum(e2 * w3t_ref[1:2, :], axis=1, keepdims=True) + b3_ref[:, 1:2]   # (TB, 1)

    # ---- quantum layer (closed form; PhaseShift(theta) cancels in both expvals) ----
    ca = jnp.cos(a)
    z0 = ca                                                   # <Z on wire 0>
    z1 = (jnp.sin(b) + ca * jnp.cos(b)) * INV_SQRT2           # <Hadamard on wire 1>

    # ---- decoder ----
    # first decoder Linear has in-dim 2 -> broadcast FMA instead of a tiny matmul
    d1 = z0 * w4t_ref[0:1, :] + z1 * w4t_ref[1:2, :] + b4_ref[...]              # (TB, D/4)
    d1 = jnp.maximum(d1, 0.0)
    d2 = jnp.dot(d1, w5_ref[...], preferred_element_type=jnp.float32) + b5_ref[...]
    d2 = jnp.maximum(d2, 0.0)                                 # (TB, D/2)
    out_ref[...] = (jnp.dot(d2, w6_ref[...], preferred_element_type=jnp.float32)
                    + b6_ref[...])                            # (TB, D)


def pennyhae_forward(x, params, *, tile_b=128):
    """x: (B, D) float32.  params: feature-last weights, see __main__."""
    (w1, b1, w2, b2, w3t, b3, w4t, b4, w5, b5, w6, b6) = params
    bsz, d = x.shape
    tile_b = min(tile_b, bsz)
    assert bsz % tile_b == 0, "batch must be divisible by tile_b"
    grid = (pl.cdiv(bsz, tile_b),)

    def resident(arr):   # weights/biases: same block every grid step -> stay resident
        return pl.BlockSpec(arr.shape, lambda i: (0, 0))

    in_specs = [
        pl.BlockSpec((tile_b, d), lambda i: (i, 0)),   # x: tiled over the batch
        resident(w1), resident(b1),
        resident(w2), resident(b2),
        resident(w3t), resident(b3),
        resident(w4t), resident(b4),
        resident(w5), resident(b5),
        resident(w6), resident(b6),
    ]
    return pl.pallas_call(
        pennyhae_kernel,
        out_shape=jax.ShapeDtypeStruct((bsz, d), jnp.float32),
        grid=grid,
        in_specs=in_specs,
        out_specs=pl.BlockSpec((tile_b, d), lambda i: (i, 0)),
        compiler_params=pltpu.CompilerParams(
            dimension_semantics=("parallel",),
        ),
    )(x, w1, b1, w2, b2, w3t, b3, w4t, b4, w5, b5, w6, b6)


# ----------------------------------------------------------------------------
# Pure numpy reference (gate-by-gate statevector sim, including PhaseShift(theta)).
# ----------------------------------------------------------------------------
_I2 = np.eye(2, dtype=np.complex128)
_PAULI_X = np.array([[0, 1], [1, 0]], dtype=np.complex128)
_PAULI_Z = np.array([[1, 0], [0, -1]], dtype=np.complex128)
_HADAMARD = (_PAULI_X + _PAULI_Z) / np.sqrt(2.0)
# basis |q0 q1>, index = 2*q0 + q1; CNOT control 0 target 1
_CNOT_01 = np.array([[1, 0, 0, 0], [0, 1, 0, 0], [0, 0, 0, 1], [0, 0, 1, 0]],
                    dtype=np.complex128)


def _rx(t):
    c, s = np.cos(t / 2.0), np.sin(t / 2.0)
    return np.array([[c, -1j * s], [-1j * s, c]], dtype=np.complex128)


def _ry(t):
    c, s = np.cos(t / 2.0), np.sin(t / 2.0)
    return np.array([[c, -s], [s, c]], dtype=np.complex128)


def _pshift(t):
    return np.array([[1.0, 0.0], [0.0, np.exp(1j * t)]], dtype=np.complex128)


def reference_forward(x, torch_params, theta):
    (w1, b1, w2, b2, w3, b3, w4, b4, w5, b5, w6, b6) = [
        np.asarray(p, np.float64) for p in torch_params]
    x = np.asarray(x, np.float64)
    h = np.maximum(x @ w1.T + b1, 0.0)
    h = np.maximum(h @ w2.T + b2, 0.0)
    ab = h @ w3.T + b3                                    # (B, 2)

    obs_z0 = np.kron(_PAULI_Z, _I2)
    obs_h1 = np.kron(_I2, _HADAMARD)
    z = np.zeros((x.shape[0], 2), np.float64)
    for i in range(x.shape[0]):
        psi = np.zeros(4, dtype=np.complex128)
        psi[0] = 1.0
        psi = np.kron(_rx(ab[i, 0]), _I2) @ psi           # RX(a) on wire 0
        psi = np.kron(_I2, _ry(ab[i, 1])) @ psi           # RY(b) on wire 1
        psi = _CNOT_01 @ psi                              # CNOT(0 -> 1)
        psi = np.kron(_pshift(theta), _I2) @ psi          # PhaseShift(theta) on wire 0
        z[i, 0] = np.real(psi.conj() @ (obs_z0 @ psi))
        z[i, 1] = np.real(psi.conj() @ (obs_h1 @ psi))

    d = np.maximum(z @ w4.T + b4, 0.0)
    d = np.maximum(d @ w5.T + b5, 0.0)
    return d @ w6.T + b6


# ----------------------------------------------------------------------------
if __name__ == "__main__":
    B, D = 256, 128            # batch, input_size (lane-dense output: D == 128)
    D2, D4 = D // 2, D // 4    # 64, 32
    TILE_B = 128

    key = jax.random.PRNGKey(0)
    (kx, k1w, k1b, k2w, k2b, k3w, k3b,
     k4w, k4b, k5w, k5b, k6w, k6b, kth) = jax.random.split(key, 14)

    def linear_init(kw, kb, fan_in, fan_out):
        bound = 1.0 / np.sqrt(fan_in)
        w = jax.random.uniform(kw, (fan_out, fan_in), jnp.float32, -bound, bound)
        b = jax.random.uniform(kb, (fan_out,), jnp.float32, -bound, bound)
        return w, b

    x = jax.random.normal(kx, (B, D), dtype=jnp.float32)
    W1, B1 = linear_init(k1w, k1b, D, D2)       # encoder
    W2, B2 = linear_init(k2w, k2b, D2, D4)
    W3, B3 = linear_init(k3w, k3b, D4, N_QUBITS)
    W4, B4 = linear_init(k4w, k4b, N_QUBITS, D4)  # decoder
    W5, B5 = linear_init(k5w, k5b, D4, D2)
    W6, B6 = linear_init(k6w, k6b, D2, D)
    # TorchLayer trainable 'theta' — provably inert in this circuit's expvals;
    # still drawn and used in the reference sim to verify that fact.
    theta = float(jax.random.uniform(kth, (), jnp.float32, 0.0, 2.0 * np.pi))

    kernel_params = (
        W1.T, B1.reshape(1, -1),     # (D, D/2), (1, D/2)
        W2.T, B2.reshape(1, -1),     # (D/2, D/4), (1, D/4)
        W3,   B3.reshape(1, -1),     # (2, D/4) already feature-last, (1, 2)
        W4.T, B4.reshape(1, -1),     # (2, D/4), (1, D/4)
        W5.T, B5.reshape(1, -1),     # (D/4, D/2), (1, D/2)
        W6.T, B6.reshape(1, -1),     # (D/2, D), (1, D)
    )

    out = pennyhae_forward(x, kernel_params, tile_b=TILE_B)
    out = jax.block_until_ready(out)

    ref = reference_forward(
        np.asarray(x),
        (W1, B1, W2, B2, W3, B3, W4, B4, W5, B5, W6, B6),
        theta,
    )
    assert out.shape == (B, D)
    assert np.allclose(np.asarray(out), ref, atol=2e-3), "Pallas kernel mismatch vs reference"
    print("KERNEL_OK")
</pallas_src>

<mosaic_0001>
module attributes {stable_mosaic.version = 11 : i64} {
  func.func @pennyhae_kernel(%arg0: i32, %arg1: memref<128x128xf32, #tpu.memory_space<vmem>>, %arg2: memref<128x64xf32, #tpu.memory_space<vmem>>, %arg3: memref<1x64xf32, #tpu.memory_space<vmem>>, %arg4: memref<64x32xf32, #tpu.memory_space<vmem>>, %arg5: memref<1x32xf32, #tpu.memory_space<vmem>>, %arg6: memref<2x32xf32, #tpu.memory_space<vmem>>, %arg7: memref<1x2xf32, #tpu.memory_space<vmem>>, %arg8: memref<2x32xf32, #tpu.memory_space<vmem>>, %arg9: memref<1x32xf32, #tpu.memory_space<vmem>>, %arg10: memref<32x64xf32, #tpu.memory_space<vmem>>, %arg11: memref<1x64xf32, #tpu.memory_space<vmem>>, %arg12: memref<64x128xf32, #tpu.memory_space<vmem>>, %arg13: memref<1x128xf32, #tpu.memory_space<vmem>>, %arg14: memref<128x128xf32, #tpu.memory_space<vmem>>) attributes {dimension_semantics = [#tpu.dimension_semantics<parallel>], iteration_bounds = array<i64: 2>, scalar_prefetch = 0 : i64, scratch_operands = 0 : i64, tpu.core_type = #tpu.core_type<tc>, window_params = [{transform_indices = @transform_0, window_bounds = array<i64: 128, 128>}, {pipeline_mode = #tpu.pipeline_mode<synchronous>, transform_indices = @transform_1, window_bounds = array<i64: 128, 64>}, {pipeline_mode = #tpu.pipeline_mode<synchronous>, transform_indices = @transform_2, window_bounds = array<i64: 1, 64>}, {pipeline_mode = #tpu.pipeline_mode<synchronous>, transform_indices = @transform_3, window_bounds = array<i64: 64, 32>}, {pipeline_mode = #tpu.pipeline_mode<synchronous>, transform_indices = @transform_4, window_bounds = array<i64: 1, 32>}, {pipeline_mode = #tpu.pipeline_mode<synchronous>, transform_indices = @transform_5, window_bounds = array<i64: 2, 32>}, {pipeline_mode = #tpu.pipeline_mode<synchronous>, transform_indices = @transform_6, window_bounds = array<i64: 1, 2>}, {pipeline_mode = #tpu.pipeline_mode<synchronous>, transform_indices = @transform_7, window_bounds = array<i64: 2, 32>}, {pipeline_mode = #tpu.pipeline_mode<synchronous>, transform_indices = @transform_8, window_bounds = array<i64: 1, 32>}, {pipeline_mode = #tpu.pipeline_mode<synchronous>, transform_indices = @transform_9, window_bounds = array<i64: 32, 64>}, {pipeline_mode = #tpu.pipeline_mode<synchronous>, transform_indices = @transform_10, window_bounds = array<i64: 1, 64>}, {pipeline_mode = #tpu.pipeline_mode<synchronous>, transform_indices = @transform_11, window_bounds = array<i64: 64, 128>}, {pipeline_mode = #tpu.pipeline_mode<synchronous>, transform_indices = @transform_12, window_bounds = array<i64: 1, 128>}, {transform_indices = @transform_13, window_bounds = array<i64: 128, 128>}]} {
    %c0 = arith.constant 0 : index
    %c0_0 = arith.constant 0 : index
    %0 = vector.load %arg1[%c0, %c0_0] : memref<128x128xf32, #tpu.memory_space<vmem>>, vector<128x128xf32>
    %c0_1 = arith.constant 0 : index
    %c0_2 = arith.constant 0 : index
    %1 = vector.load %arg2[%c0_1, %c0_2] : memref<128x64xf32, #tpu.memory_space<vmem>>, vector<128x64xf32>
    %cst = arith.constant dense<0.000000e+00> : vector<128x64xf32>
    %2 = tpu.matmul %0, %1, %cst {dimension_numbers = #tpu.dot_dimension_numbers<[1], [0], [0], [1], [0, 0, 1, 1], [], []>} : vector<128x128xf32>, vector<128x64xf32>, vector<128x64xf32> -> vector<128x64xf32>
    %c0_3 = arith.constant 0 : index
    %c0_4 = arith.constant 0 : index
    %3 = vector.load %arg3[%c0_3, %c0_4] : memref<1x64xf32, #tpu.memory_space<vmem>>, vector<1x64xf32>
    %4 = vector.broadcast %3 : vector<1x64xf32> to vector<128x64xf32>
    %5 = arith.addf %2, %4 : vector<128x64xf32>
    %cst_5 = arith.constant 0.000000e+00 : f32
    %6 = vector.broadcast %cst_5 : f32 to vector<128x64xf32>
    %7 = arith.maximumf %5, %6 : vector<128x64xf32>
    %c0_6 = arith.constant 0 : index
    %c0_7 = arith.constant 0 : index
    %8 = vector.load %arg4[%c0_6, %c0_7] : memref<64x32xf32, #tpu.memory_space<vmem>>, vector<64x32xf32>
    %cst_8 = arith.constant dense<0.000000e+00> : vector<128x32xf32>
    %9 = tpu.matmul %7, %8, %cst_8 {dimension_numbers = #tpu.dot_dimension_numbers<[1], [0], [0], [1], [0, 0, 1, 1], [], []>} : vector<128x64xf32>, vector<64x32xf32>, vector<128x32xf32> -> vector<128x32xf32>
    %c0_9 = arith.constant 0 : index
    %c0_10 = arith.constant 0 : index
    %10 = vector.load %arg5[%c0_9, %c0_10] : memref<1x32xf32, #tpu.memory_space<vmem>>, vector<1x32xf32>
    %11 = vector.broadcast %10 : vector<1x32xf32> to vector<128x32xf32>
    %12 = arith.addf %9, %11 : vector<128x32xf32>
    %cst_11 = arith.constant 0.000000e+00 : f32
    %13 = vector.broadcast %cst_11 : f32 to vector<128x32xf32>
    %14 = arith.maximumf %12, %13 : vector<128x32xf32>
    %c0_12 = arith.constant 0 : index
    %c0_13 = arith.constant 0 : index
    %15 = vector.load %arg6[%c0_12, %c0_13] : memref<2x32xf32, #tpu.memory_space<vmem>>, vector<1x32xf32>
    %16 = vector.broadcast %15 : vector<1x32xf32> to vector<128x32xf32>
    %17 = arith.mulf %14, %16 : vector<128x32xf32>
    %cst_14 = arith.constant dense<0.000000e+00> : vector<128xf32>
    %18 = vector.multi_reduction <add>, %17, %cst_14 [1] : vector<128x32xf32> to vector<128xf32>
    %19 = vector.shape_cast %18 : vector<128xf32> to vector<128x1xf32>
    %c0_15 = arith.constant 0 : index
    %c0_16 = arith.constant 0 : index
    %20 = vector.load %arg7[%c0_15, %c0_16] : memref<1x2xf32, #tpu.memory_space<vmem>>, vector<1x1xf32>
    %21 = vector.broadcast %20 : vector<1x1xf32> to vector<128x1xf32>
    %22 = arith.addf %19, %21 : vector<128x1xf32>
    %c1 = arith.constant 1 : index
    %c0_17 = arith.constant 0 : index
    %23 = vector.load %arg6[%c1, %c0_17] : memref<2x32xf32, #tpu.memory_space<vmem>>, vector<1x32xf32>
    %24 = vector.broadcast %23 : vector<1x32xf32> to vector<128x32xf32>
    %25 = arith.mulf %14, %24 : vector<128x32xf32>
    %cst_18 = arith.constant dense<0.000000e+00> : vector<128xf32>
    %26 = vector.multi_reduction <add>, %25, %cst_18 [1] : vector<128x32xf32> to vector<128xf32>
    %27 = vector.shape_cast %26 : vector<128xf32> to vector<128x1xf32>
    %c0_19 = arith.constant 0 : index
    %c1_20 = arith.constant 1 : index
    %28 = vector.load %arg7[%c0_19, %c1_20] : memref<1x2xf32, #tpu.memory_space<vmem>>, vector<1x1xf32>
    %29 = vector.broadcast %28 : vector<1x1xf32> to vector<128x1xf32>
    %30 = arith.addf %27, %29 : vector<128x1xf32>
    %31 = math.cos %22 : vector<128x1xf32>
    %32 = math.sin %30 : vector<128x1xf32>
    %33 = math.cos %30 : vector<128x1xf32>
    %34 = arith.mulf %31, %33 : vector<128x1xf32>
    %35 = arith.addf %32, %34 : vector<128x1xf32>
    %cst_21 = arith.constant 0.707106769 : f32
    %36 = vector.broadcast %cst_21 : f32 to vector<128x1xf32>
    %37 = arith.mulf %35, %36 : vector<128x1xf32>
    %c0_22 = arith.constant 0 : index
    %c0_23 = arith.constant 0 : index
    %38 = vector.load %arg8[%c0_22, %c0_23] : memref<2x32xf32, #tpu.memory_space<vmem>>, vector<1x32xf32>
    %39 = vector.broadcast %31 : vector<128x1xf32> to vector<128x32xf32>
    %40 = vector.broadcast %38 : vector<1x32xf32> to vector<128x32xf32>
    %41 = arith.mulf %39, %40 : vector<128x32xf32>
    %c1_24 = arith.constant 1 : index
    %c0_25 = arith.constant 0 : index
    %42 = vector.load %arg8[%c1_24, %c0_25] : memref<2x32xf32, #tpu.memory_space<vmem>>, vector<1x32xf32>
    %43 = vector.broadcast %37 : vector<128x1xf32> to vector<128x32xf32>
    %44 = vector.broadcast %42 : vector<1x32xf32> to vector<128x32xf32>
    %45 = arith.mulf %43, %44 : vector<128x32xf32>
    %46 = arith.addf %41, %45 : vector<128x32xf32>
    %c0_26 = arith.constant 0 : index
    %c0_27 = arith.constant 0 : index
    %47 = vector.load %arg9[%c0_26, %c0_27] : memref<1x32xf32, #tpu.memory_space<vmem>>, vector<1x32xf32>
    %48 = vector.broadcast %47 : vector<1x32xf32> to vector<128x32xf32>
    %49 = arith.addf %46, %48 : vector<128x32xf32>
    %cst_28 = arith.constant 0.000000e+00 : f32
    %50 = vector.broadcast %cst_28 : f32 to vector<128x32xf32>
    %51 = arith.maximumf %49, %50 : vector<128x32xf32>
    %c0_29 = arith.constant 0 : index
    %c0_30 = arith.constant 0 : index
    %52 = vector.load %arg10[%c0_29, %c0_30] : memref<32x64xf32, #tpu.memory_space<vmem>>, vector<32x64xf32>
    %cst_31 = arith.constant dense<0.000000e+00> : vector<128x64xf32>
    %53 = tpu.matmul %51, %52, %cst_31 {dimension_numbers = #tpu.dot_dimension_numbers<[1], [0], [0], [1], [0, 0, 1, 1], [], []>} : vector<128x32xf32>, vector<32x64xf32>, vector<128x64xf32> -> vector<128x64xf32>
    %c0_32 = arith.constant 0 : index
    %c0_33 = arith.constant 0 : index
    %54 = vector.load %arg11[%c0_32, %c0_33] : memref<1x64xf32, #tpu.memory_space<vmem>>, vector<1x64xf32>
    %55 = vector.broadcast %54 : vector<1x64xf32> to vector<128x64xf32>
    %56 = arith.addf %53, %55 : vector<128x64xf32>
    %cst_34 = arith.constant 0.000000e+00 : f32
    %57 = vector.broadcast %cst_34 : f32 to vector<128x64xf32>
    %58 = arith.maximumf %56, %57 : vector<128x64xf32>
    %c0_35 = arith.constant 0 : index
    %c0_36 = arith.constant 0 : index
    %59 = vector.load %arg12[%c0_35, %c0_36] : memref<64x128xf32, #tpu.memory_space<vmem>>, vector<64x128xf32>
    %cst_37 = arith.constant dense<0.000000e+00> : vector<128x128xf32>
    %60 = tpu.matmul %58, %59, %cst_37 {dimension_numbers = #tpu.dot_dimension_numbers<[1], [0], [0], [1], [0, 0, 1, 1], [], []>} : vector<128x64xf32>, vector<64x128xf32>, vector<128x128xf32> -> vector<128x128xf32>
    %c0_38 = arith.constant 0 : index
    %c0_39 = arith.constant 0 : index
    %61 = vector.load %arg13[%c0_38, %c0_39] : memref<1x128xf32, #tpu.memory_space<vmem>>, vector<1x128xf32>
    %62 = vector.broadcast %61 : vector<1x128xf32> to vector<128x128xf32>
    %63 = arith.addf %60, %62 : vector<128x128xf32>
    %c0_40 = arith.constant 0 : index
    %c0_41 = arith.constant 0 : index
    %64 = vector.load %arg14[%c0_40, %c0_41] : memref<128x128xf32, #tpu.memory_space<vmem>>, vector<128x128xf32>
    tpu.vector_store %arg14[%c0_40, %c0_41], %63 {strides = array<i32>} : memref<128x128xf32, #tpu.memory_space<vmem>>, vector<128x128xf32>,
    return
  }
  func.func @transform_0(%arg0: i32) -> (i32, i32) {
    %c0_i32 = arith.constant 0 : i32
    %c0_i32_0 = arith.constant 0 : i32
    return %arg0, %c0_i32 : i32, i32
  }
  func.func @transform_1(%arg0: i32) -> (i32, i32) {
    %c0_i32 = arith.constant 0 : i32
    %c0_i32_0 = arith.constant 0 : i32
    %c0_i32_1 = arith.constant 0 : i32
    return %c0_i32, %c0_i32_0 : i32, i32
  }
  func.func @transform_2(%arg0: i32) -> (i32, i32) {
    %c0_i32 = arith.constant 0 : i32
    %c0_i32_0 = arith.constant 0 : i32
    %c0_i32_1 = arith.constant 0 : i32
    return %c0_i32, %c0_i32_0 : i32, i32
  }
  func.func @transform_3(%arg0: i32) -> (i32, i32) {
    %c0_i32 = arith.constant 0 : i32
    %c0_i32_0 = arith.constant 0 : i32
    %c0_i32_1 = arith.constant 0 : i32
    return %c0_i32, %c0_i32_0 : i32, i32
  }
  func.func @transform_4(%arg0: i32) -> (i32, i32) {
    %c0_i32 = arith.constant 0 : i32
    %c0_i32_0 = arith.constant 0 : i32
    %c0_i32_1 = arith.constant 0 : i32
    return %c0_i32, %c0_i32_0 : i32, i32
  }
  func.func @transform_5(%arg0: i32) -> (i32, i32) {
    %c0_i32 = arith.constant 0 : i32
    %c0_i32_0 = arith.constant 0 : i32
    %c0_i32_1 = arith.constant 0 : i32
    return %c0_i32, %c0_i32_0 : i32, i32
  }
  func.func @transform_6(%arg0: i32) -> (i32, i32) {
    %c0_i32 = arith.constant 0 : i32
    %c0_i32_0 = arith.constant 0 : i32
    %c0_i32_1 = arith.constant 0 : i32
    return %c0_i32, %c0_i32_0 : i32, i32
  }
  func.func @transform_7(%arg0: i32) -> (i32, i32) {
    %c0_i32 = arith.constant 0 : i32
    %c0_i32_0 = arith.constant 0 : i32
    %c0_i32_1 = arith.constant 0 : i32
    return %c0_i32, %c0_i32_0 : i32, i32
  }
  func.func @transform_8(%arg0: i32) -> (i32, i32) {
    %c0_i32 = arith.constant 0 : i32
    %c0_i32_0 = arith.constant 0 : i32
    %c0_i32_1 = arith.constant 0 : i32
    return %c0_i32, %c0_i32_0 : i32, i32
  }
  func.func @transform_9(%arg0: i32) -> (i32, i32) {
    %c0_i32 = arith.constant 0 : i32
    %c0_i32_0 = arith.constant 0 : i32
    %c0_i32_1 = arith.constant 0 : i32
    return %c0_i32, %c0_i32_0 : i32, i32
  }
  func.func @transform_10(%arg0: i32) -> (i32, i32) {
    %c0_i32 = arith.constant 0 : i32
    %c0_i32_0 = arith.constant 0 : i32
    %c0_i32_1 = arith.constant 0 : i32
    return %c0_i32, %c0_i32_0 : i32, i32
  }
  func.func @transform_11(%arg0: i32) -> (i32, i32) {
    %c0_i32 = arith.constant 0 : i32
    %c0_i32_0 = arith.constant 0 : i32
    %c0_i32_1 = arith.constant 0 : i32
    return %c0_i32, %c0_i32_0 : i32, i32
  }
  func.func @transform_12(%arg0: i32) -> (i32, i32) {
    %c0_i32 = arith.constant 0 : i32
    %c0_i32_0 = arith.constant 0 : i32
    %c0_i32_1 = arith.constant 0 : i32
    return %c0_i32, %c0_i32_0 : i32, i32
  }
  func.func @transform_13(%arg0: i32) -> (i32, i32) {
    %c0_i32 = arith.constant 0 : i32
    %c0_i32_0 = arith.constant 0 : i32
    return %arg0, %c0_i32 : i32, i32
  }
}

</mosaic_0001>

<llo_original>
// kernel: tpu_custom_call.1
$region0: #{tpu_custom_call.1}
  #allocation0 [shape = 'u32[]', space=smem, size = 0x4, offset = 0x4, fixed_abs, tag = 'smem constant byte address 0x4 - core index']
  #allocation1 [shape = 'u32[72,128]{1,0:T(1,128)}', space=vmem, size = 0x9000, scoped, tag = 'internal scratch']
  %s0 = inlined_call_operand.hbm [shape: f32[256,128], index: 0, kind: input, shape index: {}]
  %s1 = inlined_call_operand.vmem [shape: f32[128,64], index: 1, kind: input, shape index: {}]
  %s2 = inlined_call_operand.vmem [shape: f32[1,64], index: 2, kind: input, shape index: {}]
  %s3 = inlined_call_operand.vmem [shape: f32[64,32], index: 3, kind: input, shape index: {}]
  %s4 = inlined_call_operand.vmem [shape: f32[1,32], index: 4, kind: input, shape index: {}]
  %s5 = inlined_call_operand.vmem [shape: f32[2,32], index: 5, kind: input, shape index: {}]
  %s6 = inlined_call_operand.vmem [shape: f32[1,2], index: 6, kind: input, shape index: {}]
  %s7 = inlined_call_operand.vmem [shape: f32[2,32], index: 7, kind: input, shape index: {}]
  %s8 = inlined_call_operand.vmem [shape: f32[1,32], index: 8, kind: input, shape index: {}]
  %s9 = inlined_call_operand.vmem [shape: f32[32,64], index: 9, kind: input, shape index: {}]
  %s10 = inlined_call_operand.vmem [shape: f32[1,64], index: 10, kind: input, shape index: {}]
  %s11 = inlined_call_operand.vmem [shape: f32[64,128], index: 11, kind: input, shape index: {}]
  %s12 = inlined_call_operand.vmem [shape: f32[1,128], index: 12, kind: input, shape index: {}]
  %s13 = inlined_call_operand.hbm [shape: f32[256,128], index: 13, kind: output, shape index: {}]
  %s14 = sld [smem:[#allocation0]]
  $region89: #{tpu_custom_call.1} parent=0
    _
  %s16 = ssub.s32 1, %s14
  %s17 = scalar_select 0, %s16, %s14
  $region1: #{tpu_custom_call.1} parent=0
    #allocation2 [shape = 'u8[131072]{0}', space=vmem, size = 0x20000, scoped, tag = 'input window, operand 0']
    #allocation3 [shape = 's32[2]{0}', space=sflag, size = 0x8, scoped, tag = 'scoped memory for tpu_custom_call.1']
    #allocation4 [shape = 's32[2]{0}', space=sflag, size = 0x8, scoped, tag = 'scoped memory for tpu_custom_call.1']
    #allocation5 [shape = 'u8[131072]{0}', space=vmem, size = 0x20000, scoped, tag = 'output window, operand 0']
    %18 = vsyncpa [#allocation3], 0
    %s19 = scalar_lea.sflag [#allocation3], 1
    %20 = vsyncpa %s19, 0
    %21 = vsyncpa [#allocation4], 0
    %s22 = scalar_lea.sflag [#allocation4], 1
    %23 = vsyncpa %s22, 0
    loop: start=0, step=1, limit=4
    $region2: #{tpu_custom_call.1} parent=1 // loop_pre_header
      _
    $region3: #{tpu_custom_call.1} parent=1 // loop_header
      %s25 = sphi 0, %s29
      %p26 = scmp.ge.s32.totalorder %s25, 4
      %s35 = sphi 0, %s37
      %s38 = sphi 0, %s35
      %s39 = sphi 0, %s38
      %s55 = sphi 0, %s39
      %s59 = sphi 0, %s59
      %s61 = sphi 0, %s59
      %s62 = sphi 0, %s61
      %s76 = sphi 0, %s62
      %s80 = sphi 0, %s80
      %s82 = sphi 0, %s80
      %s83 = sphi 0, %s82
      %s97 = sphi 0, %s83
      %s101 = sphi 0, %s101
      %s103 = sphi 0, %s101
      %s104 = sphi 0, %s103
      %s118 = sphi 0, %s104
      %s122 = sphi 0, %s122
      %s124 = sphi 0, %s122
      %s125 = sphi 0, %s124
      %s139 = sphi 0, %s125
      %s143 = sphi 0, %s143
      %s145 = sphi 0, %s143
      %s146 = sphi 0, %s145
      %s160 = sphi 0, %s146
      %s164 = sphi 0, %s164
      %s166 = sphi 0, %s164
      %s167 = sphi 0, %s166
      %s181 = sphi 0, %s167
      %s185 = sphi 0, %s185
      %s187 = sphi 0, %s185
      %s188 = sphi 0, %s187
      %s202 = sphi 0, %s188
      %s206 = sphi 0, %s206
      %s208 = sphi 0, %s206
      %s209 = sphi 0, %s208
      %s223 = sphi 0, %s209
      %s227 = sphi 0, %s227
      %s229 = sphi 0, %s227
      %s230 = sphi 0, %s229
      %s244 = sphi 0, %s230
      %s248 = sphi 0, %s248
      %s250 = sphi 0, %s248
      %s251 = sphi 0, %s250
      %s265 = sphi 0, %s251
      %s269 = sphi 0, %s269
      %s271 = sphi 0, %s269
      %s272 = sphi 0, %s271
      %s286 = sphi 0, %s272
      %s290 = sphi 0, %s290
      %s292 = sphi 0, %s290
      %s293 = sphi 0, %s292
      %s307 = sphi 0, %s293
      %s313 = sphi 0, %s315
      %s316 = sphi 0, %s313
      %s317 = sphi 0, %s316
      %s333 = sphi 0, %s317
    $region4: #{tpu_custom_call.1} parent=1 // loop_header_branch
      %28 = sbr.rel (%p26) target = $region8
    $region5: #{tpu_custom_call.1} parent=1 // loop_body
      %s30 = ssub.s32 %s25, 1
      %s31 = ssub.s32 %s25, 2
      %s32 = sadd.s32 %s25, 1
      %s33 = ssub.s32 %s25, %s32
      %p34 = scmp.eq.s32.totalorder %s33, 0
      %s36 = sadd.s32 %s35, 1
      %s37 = scalar_select %p34, %s35, %s36
      %p40 = pneg %p34
      %p41 = scmp.eq.s32.totalorder %s25, 1
      %p42 = por %p40, %p41
      %p43 = scmp.ne.s32.totalorder %s35, %s38
      %p44 = scmp.eq.s32.totalorder %s25, 0
      %p45 = por %p43, %p44
      %p46 = scmp.ne.s32.totalorder %s35, %s38
      %p47 = scmp.eq.s32.totalorder %s30, 1
      %p48 = por %p46, %p47
      %p49 = scmp.ne.s32.totalorder %s38, %s39
      %p50 = scmp.eq.s32.totalorder %s30, 0
      %p51 = por %p49, %p50
      %p52 = scmp.ne.s32.totalorder %s38, %s39
      %p53 = scmp.eq.s32.totalorder %s31, 1
      %p54 = por %p52, %p53
      %p56 = scmp.ne.s32.totalorder %s39, %s55
      %p57 = scmp.eq.s32.totalorder %s31, 0
      %p58 = por %p56, %p57
      %s60 = sadd.s32 %s59, 1
      %p63 = scmp.eq.s32.totalorder %s25, 1
      %p64 = scmp.ne.s32.totalorder %s59, %s61
      %p65 = scmp.eq.s32.totalorder %s25, 0
      %p66 = por %p64, %p65
      %p67 = scmp.ne.s32.totalorder %s59, %s61
      %p68 = scmp.eq.s32.totalorder %s30, 1
      %p69 = por %p67, %p68
      %p70 = scmp.ne.s32.totalorder %s61, %s62
      %p71 = scmp.eq.s32.totalorder %s30, 0
      %p72 = por %p70, %p71
      %p73 = scmp.ne.s32.totalorder %s61, %s62
      %p74 = scmp.eq.s32.totalorder %s31, 1
      %p75 = por %p73, %p74
      %p77 = scmp.ne.s32.totalorder %s62, %s76
      %p78 = scmp.eq.s32.totalorder %s31, 0
      %p79 = por %p77, %p78
      %s81 = sadd.s32 %s80, 1
      %p84 = scmp.eq.s32.totalorder %s25, 1
      %p85 = scmp.ne.s32.totalorder %s80, %s82
      %p86 = scmp.eq.s32.totalorder %s25, 0
      %p87 = por %p85, %p86
      %p88 = scmp.ne.s32.totalorder %s80, %s82
      %p89 = scmp.eq.s32.totalorder %s30, 1
      %p90 = por %p88, %p89
      %p91 = scmp.ne.s32.totalorder %s82, %s83
      %p92 = scmp.eq.s32.totalorder %s30, 0
      %p93 = por %p91, %p92
      %p94 = scmp.ne.s32.totalorder %s82, %s83
      %p95 = scmp.eq.s32.totalorder %s31, 1
      %p96 = por %p94, %p95
      %p98 = scmp.ne.s32.totalorder %s83, %s97
      %p99 = scmp.eq.s32.totalorder %s31, 0
      %p100 = por %p98, %p99
      %s102 = sadd.s32 %s101, 1
      %p105 = scmp.eq.s32.totalorder %s25, 1
      %p106 = scmp.ne.s32.totalorder %s101, %s103
      %p107 = scmp.eq.s32.totalorder %s25, 0
      %p108 = por %p106, %p107
      %p109 = scmp.ne.s32.totalorder %s101, %s103
      %p110 = scmp.eq.s32.totalorder %s30, 1
      %p111 = por %p109, %p110
      %p112 = scmp.ne.s32.totalorder %s103, %s104
      %p113 = scmp.eq.s32.totalorder %s30, 0
      %p114 = por %p112, %p113
      %p115 = scmp.ne.s32.totalorder %s103, %s104
      %p116 = scmp.eq.s32.totalorder %s31, 1
      %p117 = por %p115, %p116
      %p119 = scmp.ne.s32.totalorder %s104, %s118
      %p120 = scmp.eq.s32.totalorder %s31, 0
      %p121 = por %p119, %p120
      %s123 = sadd.s32 %s122, 1
      %p126 = scmp.eq.s32.totalorder %s25, 1
      %p127 = scmp.ne.s32.totalorder %s122, %s124
      %p128 = scmp.eq.s32.totalorder %s25, 0
      %p129 = por %p127, %p128
      %p130 = scmp.ne.s32.totalorder %s122, %s124
      %p131 = scmp.eq.s32.totalorder %s30, 1
      %p132 = por %p130, %p131
      %p133 = scmp.ne.s32.totalorder %s124, %s125
      %p134 = scmp.eq.s32.totalorder %s30, 0
      %p135 = por %p133, %p134
      %p136 = scmp.ne.s32.totalorder %s124, %s125
      %p137 = scmp.eq.s32.totalorder %s31, 1
      %p138 = por %p136, %p137
      %p140 = scmp.ne.s32.totalorder %s125, %s139
      %p141 = scmp.eq.s32.totalorder %s31, 0
      %p142 = por %p140, %p141
      %s144 = sadd.s32 %s143, 1
      %p147 = scmp.eq.s32.totalorder %s25, 1
      %p148 = scmp.ne.s32.totalorder %s143, %s145
      %p149 = scmp.eq.s32.totalorder %s25, 0
      %p150 = por %p148, %p149
      %p151 = scmp.ne.s32.totalorder %s143, %s145
      %p152 = scmp.eq.s32.totalorder %s30, 1
      %p153 = por %p151, %p152
      %p154 = scmp.ne.s32.totalorder %s145, %s146
      %p155 = scmp.eq.s32.totalorder %s30, 0
      %p156 = por %p154, %p155
      %p157 = scmp.ne.s32.totalorder %s145, %s146
      %p158 = scmp.eq.s32.totalorder %s31, 1
      %p159 = por %p157, %p158
      %p161 = scmp.ne.s32.totalorder %s146, %s160
      %p162 = scmp.eq.s32.totalorder %s31, 0
      %p163 = por %p161, %p162
      %s165 = sadd.s32 %s164, 1
      %p168 = scmp.eq.s32.totalorder %s25, 1
      %p169 = scmp.ne.s32.totalorder %s164, %s166
      %p170 = scmp.eq.s32.totalorder %s25, 0
      %p171 = por %p169, %p170
      %p172 = scmp.ne.s32.totalorder %s164, %s166
      %p173 = scmp.eq.s32.totalorder %s30, 1
      %p174 = por %p172, %p173
      %p175 = scmp.ne.s32.totalorder %s166, %s167
      %p176 = scmp.eq.s32.totalorder %s30, 0
      %p177 = por %p175, %p176
      %p178 = scmp.ne.s32.totalorder %s166, %s167
      %p179 = scmp.eq.s32.totalorder %s31, 1
      %p180 = por %p178, %p179
      %p182 = scmp.ne.s32.totalorder %s167, %s181
      %p183 = scmp.eq.s32.totalorder %s31, 0
      %p184 = por %p182, %p183
      %s186 = sadd.s32 %s185, 1
      %p189 = scmp.eq.s32.totalorder %s25, 1
      %p190 = scmp.ne.s32.totalorder %s185, %s187
      %p191 = scmp.eq.s32.totalorder %s25, 0
      %p192 = por %p190, %p191
      %p193 = scmp.ne.s32.totalorder %s185, %s187
      %p194 = scmp.eq.s32.totalorder %s30, 1
      %p195 = por %p193, %p194
      %p196 = scmp.ne.s32.totalorder %s187, %s188
      %p197 = scmp.eq.s32.totalorder %s30, 0
      %p198 = por %p196, %p197
      %p199 = scmp.ne.s32.totalorder %s187, %s188
      %p200 = scmp.eq.s32.totalorder %s31, 1
      %p201 = por %p199, %p200
      %p203 = scmp.ne.s32.totalorder %s188, %s202
      %p204 = scmp.eq.s32.totalorder %s31, 0
      %p205 = por %p203, %p204
      %s207 = sadd.s32 %s206, 1
      %p210 = scmp.eq.s32.totalorder %s25, 1
      %p211 = scmp.ne.s32.totalorder %s206, %s208
      %p212 = scmp.eq.s32.totalorder %s25, 0
      %p213 = por %p211, %p212
      %p214 = scmp.ne.s32.totalorder %s206, %s208
      %p215 = scmp.eq.s32.totalorder %s30, 1
      %p216 = por %p214, %p215
      %p217 = scmp.ne.s32.totalorder %s208, %s209
      %p218 = scmp.eq.s32.totalorder %s30, 0
      %p219 = por %p217, %p218
      %p220 = scmp.ne.s32.totalorder %s208, %s209
      %p221 = scmp.eq.s32.totalorder %s31, 1
      %p222 = por %p220, %p221
      %p224 = scmp.ne.s32.totalorder %s209, %s223
      %p225 = scmp.eq.s32.totalorder %s31, 0
      %p226 = por %p224, %p225
      %s228 = sadd.s32 %s227, 1
      %p231 = scmp.eq.s32.totalorder %s25, 1
      %p232 = scmp.ne.s32.totalorder %s227, %s229
      %p233 = scmp.eq.s32.totalorder %s25, 0
      %p234 = por %p232, %p233
      %p235 = scmp.ne.s32.totalorder %s227, %s229
      %p236 = scmp.eq.s32.totalorder %s30, 1
      %p237 = por %p235, %p236
      %p238 = scmp.ne.s32.totalorder %s229, %s230
      %p239 = scmp.eq.s32.totalorder %s30, 0
      %p240 = por %p238, %p239
      %p241 = scmp.ne.s32.totalorder %s229, %s230
      %p242 = scmp.eq.s32.totalorder %s31, 1
      %p243 = por %p241, %p242
      %p245 = scmp.ne.s32.totalorder %s230, %s244
      %p246 = scmp.eq.s32.totalorder %s31, 0
      %p247 = por %p245, %p246
      %s249 = sadd.s32 %s248, 1
      %p252 = scmp.eq.s32.totalorder %s25, 1
      %p253 = scmp.ne.s32.totalorder %s248, %s250
      %p254 = scmp.eq.s32.totalorder %s25, 0
      %p255 = por %p253, %p254
      %p256 = scmp.ne.s32.totalorder %s248, %s250
      %p257 = scmp.eq.s32.totalorder %s30, 1
      %p258 = por %p256, %p257
      %p259 = scmp.ne.s32.totalorder %s250, %s251
      %p260 = scmp.eq.s32.totalorder %s30, 0
      %p261 = por %p259, %p260
      %p262 = scmp.ne.s32.totalorder %s250, %s251
      %p263 = scmp.eq.s32.totalorder %s31, 1
      %p264 = por %p262, %p263
      %p266 = scmp.ne.s32.totalorder %s251, %s265
      %p267 = scmp.eq.s32.totalorder %s31, 0
      %p268 = por %p266, %p267
      %s270 = sadd.s32 %s269, 1
      %p273 = scmp.eq.s32.totalorder %s25, 1
      %p274 = scmp.ne.s32.totalorder %s269, %s271
      %p275 = scmp.eq.s32.totalorder %s25, 0
      %p276 = por %p274, %p275
      %p277 = scmp.ne.s32.totalorder %s269, %s271
      %p278 = scmp.eq.s32.totalorder %s30, 1
      %p279 = por %p277, %p278
      %p280 = scmp.ne.s32.totalorder %s271, %s272
      %p281 = scmp.eq.s32.totalorder %s30, 0
      %p282 = por %p280, %p281
      %p283 = scmp.ne.s32.totalorder %s271, %s272
      %p284 = scmp.eq.s32.totalorder %s31, 1
      %p285 = por %p283, %p284
      %p287 = scmp.ne.s32.totalorder %s272, %s286
      %p288 = scmp.eq.s32.totalorder %s31, 0
      %p289 = por %p287, %p288
      %s291 = sadd.s32 %s290, 1
      %p294 = scmp.eq.s32.totalorder %s25, 1
      %p295 = scmp.ne.s32.totalorder %s290, %s292
      %p296 = scmp.eq.s32.totalorder %s25, 0
      %p297 = por %p295, %p296
      %p298 = scmp.ne.s32.totalorder %s290, %s292
      %p299 = scmp.eq.s32.totalorder %s30, 1
      %p300 = por %p298, %p299
      %p301 = scmp.ne.s32.totalorder %s292, %s293
      %p302 = scmp.eq.s32.totalorder %s30, 0
      %p303 = por %p301, %p302
      %p304 = scmp.ne.s32.totalorder %s292, %s293
      %p305 = scmp.eq.s32.totalorder %s31, 1
      %p306 = por %p304, %p305
      %p308 = scmp.ne.s32.totalorder %s293, %s307
      %p309 = scmp.eq.s32.totalorder %s31, 0
      %p310 = por %p308, %p309
      %s311 = ssub.s32 %s25, %s32
      %p312 = scmp.eq.s32.totalorder %s311, 0
      %s314 = sadd.s32 %s313, 1
      %s315 = scalar_select %p312, %s313, %s314
      %p318 = pneg %p312
      %p319 = scmp.eq.s32.totalorder %s25, 1
      %p320 = por %p318, %p319
      %p321 = scmp.ne.s32.totalorder %s313, %s316
      %p322 = scmp.eq.s32.totalorder %s25, 0
      %p323 = por %p321, %p322
      %p324 = scmp.ne.s32.totalorder %s313, %s316
      %p325 = scmp.eq.s32.totalorder %s30, 1
      %p326 = por %p324, %p325
      %p327 = scmp.ne.s32.totalorder %s316, %s317
      %p328 = scmp.eq.s32.totalorder %s30, 0
      %p329 = por %p327, %p328
      %p330 = scmp.ne.s32.totalorder %s316, %s317
      %p331 = scmp.eq.s32.totalorder %s31, 1
      %p332 = por %p330, %p331
      %p334 = scmp.ne.s32.totalorder %s317, %s333
      %p335 = scmp.eq.s32.totalorder %s31, 0
      %p336 = por %p334, %p335
      %p337 = scmp.le.s32.totalorder 1, %s25
      %p338 = scmp.lt.s32.totalorder %s25, 3
      %p339 = pnand %p337, %p338
      %p340 = pneg %p339
      // Predicated region
      $region9: #{tpu_custom_call.1} parent=5 // pred_check
        _
      $region10: #{tpu_custom_call.1} parent=5 // pred_check_branch
        %342 = sbr.rel (%p339) target = $region12
      $region11: #{tpu_custom_call.1} parent=5 // pred_region
        %s343 = ssub.s32 %s25, 1
        // Predicated region
        $region13: #{tpu_custom_call.1} parent=11 // pred_check
          %p344 = pneg %p72
        $region14: #{tpu_custom_call.1} parent=11 // pred_check_branch
          %346 = sbr.rel (%p344) target = $region16
        $region15: #{tpu_custom_call.1} parent=11 // pred_region
          _
        $region16: #{tpu_custom_call.1} parent=11 // pred_fallthru
          _
        // Predicated region
        $region17: #{tpu_custom_call.1} parent=11 // pred_check
          %p347 = pneg %p93
        $region18: #{tpu_custom_call.1} parent=11 // pred_check_branch
          %349 = sbr.rel (%p347) target = $region20
        $region19: #{tpu_custom_call.1} parent=11 // pred_region
          _
        $region20: #{tpu_custom_call.1} parent=11 // pred_fallthru
          _
        // Predicated region
        $region21: #{tpu_custom_call.1} parent=11 // pred_check
          %p350 = pneg %p114
        $region22: #{tpu_custom_call.1} parent=11 // pred_check_branch
          %352 = sbr.rel (%p350) target = $region24
        $region23: #{tpu_custom_call.1} parent=11 // pred_region
          _
        $region24: #{tpu_custom_call.1} parent=11 // pred_fallthru
          _
        // Predicated region
        $region25: #{tpu_custom_call.1} parent=11 // pred_check
          %p353 = pneg %p135
        $region26: #{tpu_custom_call.1} parent=11 // pred_check_branch
          %355 = sbr.rel (%p353) target = $region28
        $region27: #{tpu_custom_call.1} parent=11 // pred_region
          _
        $region28: #{tpu_custom_call.1} parent=11 // pred_fallthru
          _
        // Predicated region
        $region29: #{tpu_custom_call.1} parent=11 // pred_check
          %p356 = pneg %p156
        $region30: #{tpu_custom_call.1} parent=11 // pred_check_branch
          %358 = sbr.rel (%p356) target = $region32
        $region31: #{tpu_custom_call.1} parent=11 // pred_region
          _
        $region32: #{tpu_custom_call.1} parent=11 // pred_fallthru
          _
        // Predicated region
        $region33: #{tpu_custom_call.1} parent=11 // pred_check
          %p359 = pneg %p177
        $region34: #{tpu_custom_call.1} parent=11 // pred_check_branch
          %361 = sbr.rel (%p359) target = $region36
        $region35: #{tpu_custom_call.1} parent=11 // pred_region
          _
        $region36: #{tpu_custom_call.1} parent=11 // pred_fallthru
          _
        // Predicated region
        $region37: #{tpu_custom_call.1} parent=11 // pred_check
          %p362 = pneg %p198
        $region38: #{tpu_custom_call.1} parent=11 // pred_check_branch
          %364 = sbr.rel (%p362) target = $region40
        $region39: #{tpu_custom_call.1} parent=11 // pred_region
          _
        $region40: #{tpu_custom_call.1} parent=11 // pred_fallthru
          _
        // Predicated region
        $region41: #{tpu_custom_call.1} parent=11 // pred_check
          %p365 = pneg %p219
        $region42: #{tpu_custom_call.1} parent=11 // pred_check_branch
          %367 = sbr.rel (%p365) target = $region44
        $region43: #{tpu_custom_call.1} parent=11 // pred_region
          _
        $region44: #{tpu_custom_call.1} parent=11 // pred_fallthru
          _
        // Predicated region
        $region45: #{tpu_custom_call.1} parent=11 // pred_check
          %p368 = pneg %p240
        $region46: #{tpu_custom_call.1} parent=11 // pred_check_branch
          %370 = sbr.rel (%p368) target = $region48
        $region47: #{tpu_custom_call.1} parent=11 // pred_region
          _
        $region48: #{tpu_custom_call.1} parent=11 // pred_fallthru
          _
        // Predicated region
        $region49: #{tpu_custom_call.1} parent=11 // pred_check
          %p371 = pneg %p261
        $region50: #{tpu_custom_call.1} parent=11 // pred_check_branch
          %373 = sbr.rel (%p371) target = $region52
        $region51: #{tpu_custom_call.1} parent=11 // pred_region
          _
        $region52: #{tpu_custom_call.1} parent=11 // pred_fallthru
          _
        // Predicated region
        $region53: #{tpu_custom_call.1} parent=11 // pred_check
          %p374 = pneg %p282
        $region54: #{tpu_custom_call.1} parent=11 // pred_check_branch
          %376 = sbr.rel (%p374) target = $region56
        $region55: #{tpu_custom_call.1} parent=11 // pred_region
          _
        $region56: #{tpu_custom_call.1} parent=11 // pred_fallthru
          _
        // Predicated region
        $region57: #{tpu_custom_call.1} parent=11 // pred_check
          %p377 = pneg %p303
        $region58: #{tpu_custom_call.1} parent=11 // pred_check_branch
          %379 = sbr.rel (%p377) target = $region60
        $region59: #{tpu_custom_call.1} parent=11 // pred_region
          _
        $region60: #{tpu_custom_call.1} parent=11 // pred_fallthru
          _
      $region12: #{tpu_custom_call.1} parent=5 // pred_fallthru
        _
      %p380 = scmp.lt.s32.totalorder %s25, 2
      // Predicated region
      $region61: #{tpu_custom_call.1} parent=5 // pred_check
        %p381 = pneg %p380
      $region62: #{tpu_custom_call.1} parent=5 // pred_check_branch
        %383 = sbr.rel (%p381) target = $region64
      $region63: #{tpu_custom_call.1} parent=5 // pred_region
        // Predicated region
        $region65: #{tpu_custom_call.1} parent=63 // pred_check
          %p384 = pneg %p45
        $region66: #{tpu_custom_call.1} parent=63 // pred_check_branch
          %386 = sbr.rel (%p384) target = $region68
        $region67: #{tpu_custom_call.1} parent=63 // pred_region
          %s387 = sand.u32 %s35, 1
          %s388 = scalar_lea.sflag [#allocation3], %s387
          %s389 = sand.u32 %s35, 1
          %s390 = smul.addr %s389, 128
          %s391 = scalar_lea.vmem [#allocation2], %s390
          %s392 = smul.u32 16, %s25
          %394 = vsyncadd %s388, 0
          %s395 = smul.addr %s392, 8
          %s396 = scalar_lea.hbm %s0, %s395
          %s397 = sshll.u32 %s396, 4
          %s398 = int_to_ptr.hbm [resolvable:$true] %s397
          %s399 = sshll.u32 %s391, 4
          %s400 = int_to_ptr.vmem [resolvable:$true] %s399
          %405 = dma.hbm_to_vmem [thread:$0]  %s398, 2048, %s400, %s388, 128, 128, 8
        $region68: #{tpu_custom_call.1} parent=63 // pred_fallthru
          _
      $region64: #{tpu_custom_call.1} parent=5 // pred_fallthru
        _
      %p406 = scmp.le.s32.totalorder 1, %s25
      %p407 = scmp.lt.s32.totalorder %s25, 3
      %p408 = pnand %p406, %p407
      %p409 = pneg %p408
      // Predicated region
      $region69: #{tpu_custom_call.1} parent=5 // pred_check
        _
      $region70: #{tpu_custom_call.1} parent=5 // pred_check_branch
        %411 = sbr.rel (%p408) target = $region72
      $region71: #{tpu_custom_call.1} parent=5 // pred_region
        %s412 = ssub.s32 %s25, 1
        %s413 = sand.u32 %s38, 1
        %s414 = scalar_lea.sflag [#allocation3], %s413
        %s415 = sand.u32 %s38, 1
        %s416 = smul.addr %s415, 128
        %s417 = scalar_lea.vmem [#allocation2], %s416
        // Predicated region
        $region73: #{tpu_custom_call.1} parent=71 // pred_check
          %p418 = pneg %p51
        $region74: #{tpu_custom_call.1} parent=71 // pred_check_branch
          %420 = sbr.rel (%p418) target = $region76
        $region75: #{tpu_custom_call.1} parent=71 // pred_region
          %422 = dma.done %s414, 2048
        $region76: #{tpu_custom_call.1} parent=71 // pred_fallthru
          _
        %s423 = sand.u32 %s38, 1
        %s424 = scalar_lea.sflag [#allocation3], %s423
        %s425 = sand.u32 %s38, 1
        %s426 = smul.addr %s425, 128
        %s427 = scalar_lea.vmem [#allocation2], %s426
        %p428 = pneg %p51
        %p429 = pneg %p48
        %p430 = pneg %p72
        %p431 = pneg %p69
        %p432 = pneg %p93
        %p433 = pneg %p90
        %p434 = pneg %p114
        %p435 = pneg %p111
        %p436 = pneg %p135
        %p437 = pneg %p132
        %p438 = pneg %p156
        %p439 = pneg %p153
        %p440 = pneg %p177
        %p441 = pneg %p174
        %p442 = pneg %p198
        %p443 = pneg %p195
        %p444 = pneg %p219
        %p445 = pneg %p216
        %p446 = pneg %p240
        %p447 = pneg %p237
        %p448 = pneg %p261
        %p449 = pneg %p258
        %p450 = pneg %p282
        %p451 = pneg %p279
        %p452 = pneg %p303
        %p453 = pneg %p300
        %p454 = pneg %p329
        %p455 = pneg %p326
        %s456 = sand.u32 %s316, 1
        %s457 = scalar_lea.sflag [#allocation4], %s456
        %s458 = sand.u32 %s316, 1
        %s459 = smul.addr %s458, 128
        %s460 = scalar_lea.vmem [#allocation5], %s459
        %s461 = smul.u32 16, %s30
        %s462 = smul.u32 16, %s30
        %v463 = vld [vmem:[%s417] sm:$0xff]
        %v464 = vld [vmem:[%s417 + $0x8] sm:$0xff]
        %v465 = vld [vmem:[%s417 + $0x10] sm:$0xff]
        %v466 = vld [vmem:[%s417 + $0x18] sm:$0xff]
        %v467 = vld [vmem:[%s417 + $0x20] sm:$0xff]
        %v468 = vld [vmem:[%s417 + $0x28] sm:$0xff]
        %v469 = vld [vmem:[%s417 + $0x30] sm:$0xff]
        %v470 = vld [vmem:[%s417 + $0x38] sm:$0xff]
        %v471 = vld [vmem:[%s417 + $0x40] sm:$0xff]
        %v472 = vld [vmem:[%s417 + $0x48] sm:$0xff]
        %v473 = vld [vmem:[%s417 + $0x50] sm:$0xff]
        %v474 = vld [vmem:[%s417 + $0x58] sm:$0xff]
        %v475 = vld [vmem:[%s417 + $0x60] sm:$0xff]
        %v476 = vld [vmem:[%s417 + $0x68] sm:$0xff]
        %v477 = vld [vmem:[%s417 + $0x70] sm:$0xff]
        %v478 = vld [vmem:[%s417 + $0x78] sm:$0xff]
        %v479 = vld [vmem:[%s1] sm:$0xff]
        %v480 = vld [vmem:[%s1 + $0x8] sm:$0xff]
        %v481 = vld [vmem:[%s1 + $0x10] sm:$0xff]
        %v482 = vld [vmem:[%s1 + $0x18] sm:$0xff]
        %v483 = vld [vmem:[%s1 + $0x20] sm:$0xff]
        %v484 = vld [vmem:[%s1 + $0x28] sm:$0xff]
        %v485 = vld [vmem:[%s1 + $0x30] sm:$0xff]
        %v486 = vld [vmem:[%s1 + $0x38] sm:$0xff]
        %v487 = vld [vmem:[%s1 + $0x40] sm:$0xff]
        %v488 = vld [vmem:[%s1 + $0x48] sm:$0xff]
        %v489 = vld [vmem:[%s1 + $0x50] sm:$0xff]
        %v490 = vld [vmem:[%s1 + $0x58] sm:$0xff]
        %v491 = vld [vmem:[%s1 + $0x60] sm:$0xff]
        %v492 = vld [vmem:[%s1 + $0x68] sm:$0xff]
        %v493 = vld [vmem:[%s1 + $0x70] sm:$0xff]
        %v494 = vld [vmem:[%s1 + $0x78] sm:$0xff]
        %v495 = vld [vmem:[%s2] sm:$0x1]
        %v497 = vperm.slane %v495, 0
        %499 = vmatpush.msra.mxu0 %v494
        %500 = vmatpush.msra.mxu0 %v493
        %501 = vmatpush.msra.mxu0 %v492
        %502 = vmatpush.msra.mxu0 %v491
        %503 = vmatpush.msra.mxu0 %v490
        %504 = vmatpush.msra.mxu0 %v489
        %505 = vmatpush.msra.mxu0 %v488
        %506 = vmatpush.msra.mxu0 %v487
        %507 = vmatpush.msra.mxu0 %v486
        %508 = vmatpush.msra.mxu0 %v485
        %509 = vmatpush.msra.mxu0 %v484
        %510 = vmatpush.msra.mxu0 %v483
        %511 = vmatpush.msra.mxu0 %v482
        %512 = vmatpush.msra.mxu0 %v481
        %513 = vmatpush.msra.mxu0 %v480
        %514 = vmatpush.msra.mxu0 %v479
        %515 = vmatmul.f32.gmra.mxu0 %v463
        %v516 = vpop.f32.mrf.mxu0
        %v517 = vadd.f32 %v497, %v516
        %518 = vmatmul.f32.gmra.mxu0 %v464
        %v519 = vpop.f32.mrf.mxu0
        %v520 = vadd.f32 %v497, %v519
        %521 = vmatmul.f32.gmra.mxu0 %v465
        %v522 = vpop.f32.mrf.mxu0
        %v523 = vadd.f32 %v497, %v522
        %524 = vmatmul.f32.gmra.mxu0 %v466
        %v525 = vpop.f32.mrf.mxu0
        %v526 = vadd.f32 %v497, %v525
        %527 = vmatmul.f32.gmra.mxu0 %v467
        %v528 = vpop.f32.mrf.mxu0
        %v529 = vadd.f32 %v497, %v528
        %530 = vmatmul.f32.gmra.mxu0 %v468
        %v531 = vpop.f32.mrf.mxu0
        %v532 = vadd.f32 %v497, %v531
        %533 = vmatmul.f32.gmra.mxu0 %v469
        %v534 = vpop.f32.mrf.mxu0
        %v535 = vadd.f32 %v497, %v534
        %536 = vmatmul.f32.gmra.mxu0 %v470
        %v537 = vpop.f32.mrf.mxu0
        %v538 = vadd.f32 %v497, %v537
        %539 = vmatmul.f32.gmra.mxu0 %v471
        %v540 = vpop.f32.mrf.mxu0
        %v541 = vadd.f32 %v497, %v540
        %542 = vmatmul.f32.gmra.mxu0 %v472
        %v543 = vpop.f32.mrf.mxu0
        %v544 = vadd.f32 %v497, %v543
        %545 = vmatmul.f32.gmra.mxu0 %v473
        %v546 = vpop.f32.mrf.mxu0
        %v547 = vadd.f32 %v497, %v546
        %548 = vmatmul.f32.gmra.mxu0 %v474
        %v549 = vpop.f32.mrf.mxu0
        %v550 = vadd.f32 %v497, %v549
        %551 = vmatmul.f32.gmra.mxu0 %v475
        %v552 = vpop.f32.mrf.mxu0
        %v553 = vadd.f32 %v497, %v552
        %554 = vmatmul.f32.gmra.mxu0 %v476
        %v555 = vpop.f32.mrf.mxu0
        %v556 = vadd.f32 %v497, %v555
        %557 = vmatmul.f32.gmra.mxu0 %v477
        %v558 = vpop.f32.mrf.mxu0
        %v559 = vadd.f32 %v497, %v558
        %560 = vmatmul.f32.gmra.mxu0 %v478
        %v561 = vpop.f32.mrf.mxu0
        %v562 = vadd.f32 %v497, %v561
        %563 = vdwg.mxu0
        %v564 = vmax.f32 %v517, 0.0
        %v565 = vmax.f32 %v520, 0.0
        %v566 = vmax.f32 %v523, 0.0
        %v567 = vmax.f32 %v526, 0.0
        %v568 = vmax.f32 %v529, 0.0
        %v569 = vmax.f32 %v532, 0.0
        %v570 = vmax.f32 %v535, 0.0
        %v571 = vmax.f32 %v538, 0.0
        %v572 = vmax.f32 %v541, 0.0
        %v573 = vmax.f32 %v544, 0.0
        %v574 = vmax.f32 %v547, 0.0
        %v575 = vmax.f32 %v550, 0.0
        %v576 = vmax.f32 %v553, 0.0
        %v577 = vmax.f32 %v556, 0.0
        %v578 = vmax.f32 %v559, 0.0
        %v579 = vmax.f32 %v562, 0.0
        %v580 = vld [vmem:[%s3] sm:$0xff]
        %v581 = vld [vmem:[%s3 + $0x8] sm:$0xff]
        %v582 = vld [vmem:[%s3 + $0x10] sm:$0xff]
        %v583 = vld [vmem:[%s3 + $0x18] sm:$0xff]
        %v584 = vld [vmem:[%s3 + $0x20] sm:$0xff]
        %v585 = vld [vmem:[%s3 + $0x28] sm:$0xff]
        %v586 = vld [vmem:[%s3 + $0x30] sm:$0xff]
        %v587 = vld [vmem:[%s3 + $0x38] sm:$0xff]
        %v588 = vld [vmem:[%s4] sm:$0x1]
        %v590 = vperm.slane %v588, 0
        %vm592 = vcmask 523264
        %v594 = vsel %vm592, %v564, 0
        %v597 = vsel %vm592, %v565, 0
        %v600 = vsel %vm592, %v566, 0
        %v603 = vsel %vm592, %v567, 0
        %v606 = vsel %vm592, %v568, 0
        %v609 = vsel %vm592, %v569, 0
        %v612 = vsel %vm592, %v570, 0
        %v615 = vsel %vm592, %v571, 0
        %v618 = vsel %vm592, %v572, 0
        %v621 = vsel %vm592, %v573, 0
        %v624 = vsel %vm592, %v574, 0
        %v627 = vsel %vm592, %v575, 0
        %v630 = vsel %vm592, %v576, 0
        %v633 = vsel %vm592, %v577, 0
        %v636 = vsel %vm592, %v578, 0
        %v639 = vsel %vm592, %v579, 0
        %641 = vmatpush.msra.mxu0 0.0
        %642 = vmatpush.msra.mxu0 0.0
        %643 = vmatpush.msra.mxu0 0.0
        %644 = vmatpush.msra.mxu0 0.0
        %645 = vmatpush.msra.mxu0 0.0
        %646 = vmatpush.msra.mxu0 0.0
        %647 = vmatpush.msra.mxu0 0.0
        %648 = vmatpush.msra.mxu0 0.0
        %649 = vmatpush.msra.mxu0 %v587
        %650 = vmatpush.msra.mxu0 %v586
        %651 = vmatpush.msra.mxu0 %v585
        %652 = vmatpush.msra.mxu0 %v584
        %653 = vmatpush.msra.mxu0 %v583
        %654 = vmatpush.msra.mxu0 %v582
        %655 = vmatpush.msra.mxu0 %v581
        %656 = vmatpush.msra.mxu0 %v580
        %657 = vmatmul.f32.gmra.mxu0 %v594
        %v658 = vpop.f32.mrf.mxu0
        %v659 = vadd.f32 %v590, %v658
        %660 = vmatmul.f32.gmra.mxu0 %v597
        %v661 = vpop.f32.mrf.mxu0
        %v662 = vadd.f32 %v590, %v661
        %663 = vmatmul.f32.gmra.mxu0 %v600
        %v664 = vpop.f32.mrf.mxu0
        %v665 = vadd.f32 %v590, %v664
        %666 = vmatmul.f32.gmra.mxu0 %v603
        %v667 = vpop.f32.mrf.mxu0
        %v668 = vadd.f32 %v590, %v667
        %669 = vmatmul.f32.gmra.mxu0 %v606
        %v670 = vpop.f32.mrf.mxu0
        %v671 = vadd.f32 %v590, %v670
        %672 = vmatmul.f32.gmra.mxu0 %v609
        %v673 = vpop.f32.mrf.mxu0
        %v674 = vadd.f32 %v590, %v673
        %675 = vmatmul.f32.gmra.mxu0 %v612
        %v676 = vpop.f32.mrf.mxu0
        %v677 = vadd.f32 %v590, %v676
        %678 = vmatmul.f32.gmra.mxu0 %v615
        %v679 = vpop.f32.mrf.mxu0
        %v680 = vadd.f32 %v590, %v679
        %681 = vmatmul.f32.gmra.mxu0 %v618
        %v682 = vpop.f32.mrf.mxu0
        %v683 = vadd.f32 %v590, %v682
        %684 = vmatmul.f32.gmra.mxu0 %v621
        %v685 = vpop.f32.mrf.mxu0
        %v686 = vadd.f32 %v590, %v685
        %687 = vmatmul.f32.gmra.mxu0 %v624
        %v688 = vpop.f32.mrf.mxu0
        %v689 = vadd.f32 %v590, %v688
        %690 = vmatmul.f32.gmra.mxu0 %v627
        %v691 = vpop.f32.mrf.mxu0
        %v692 = vadd.f32 %v590, %v691
        %693 = vmatmul.f32.gmra.mxu0 %v630
        %v694 = vpop.f32.mrf.mxu0
        %v695 = vadd.f32 %v590, %v694
        %696 = vmatmul.f32.gmra.mxu0 %v633
        %v697 = vpop.f32.mrf.mxu0
        %v698 = vadd.f32 %v590, %v697
        %699 = vmatmul.f32.gmra.mxu0 %v636
        %v700 = vpop.f32.mrf.mxu0
        %v701 = vadd.f32 %v590, %v700
        %702 = vmatmul.f32.gmra.mxu0 %v639
        %v703 = vpop.f32.mrf.mxu0
        %v704 = vadd.f32 %v590, %v703
        %705 = vdwg.mxu0
        %v706 = vmax.f32 %v659, 0.0
        %v707 = vmax.f32 %v662, 0.0
        %v708 = vmax.f32 %v665, 0.0
        %v709 = vmax.f32 %v668, 0.0
        %v710 = vmax.f32 %v671, 0.0
        %v711 = vmax.f32 %v674, 0.0
        %v712 = vmax.f32 %v677, 0.0
        %v713 = vmax.f32 %v680, 0.0
        %v714 = vmax.f32 %v683, 0.0
        %v715 = vmax.f32 %v686, 0.0
        %v716 = vmax.f32 %v689, 0.0
        %v717 = vmax.f32 %v692, 0.0
        %v718 = vmax.f32 %v695, 0.0
        %v719 = vmax.f32 %v698, 0.0
        %v720 = vmax.f32 %v701, 0.0
        %v721 = vmax.f32 %v704, 0.0
        %v722 = vld [vmem:[%s5] sm:$0x1]
        %v723 = vperm.slane %v722, 0
        %v724 = vmul.f32 %v706, %v723
        %v725 = vmul.f32 %v707, %v723
        %v726 = vmul.f32 %v708, %v723
        %v727 = vmul.f32 %v709, %v723
        %v728 = vmul.f32 %v710, %v723
        %v729 = vmul.f32 %v711, %v723
        %v730 = vmul.f32 %v712, %v723
        %v731 = vmul.f32 %v713, %v723
        %v732 = vmul.f32 %v714, %v723
        %v733 = vmul.f32 %v715, %v723
        %v734 = vmul.f32 %v716, %v723
        %v735 = vmul.f32 %v717, %v723
        %v736 = vmul.f32 %v718, %v723
        %v737 = vmul.f32 %v719, %v723
        %v738 = vmul.f32 %v720, %v723
        %v739 = vmul.f32 %v721, %v723
        %vm740 = vcmask 261120
        %v741 = vsel %vm740, %v724, 0.0
        %742 = vadd.xlane.f32.xlu0 %v741
        %v743 = vpop.xlane.xlu0 %742
        %v744 = vsel %vm740, %v725, 0.0
        %745 = vadd.xlane.f32.xlu0 %v744
        %v746 = vpop.xlane.xlu0 %745
        %v747 = vsel %vm740, %v726, 0.0
        %748 = vadd.xlane.f32.xlu0 %v747
        %v749 = vpop.xlane.xlu0 %748
        %v750 = vsel %vm740, %v727, 0.0
        %751 = vadd.xlane.f32.xlu0 %v750
        %v752 = vpop.xlane.xlu0 %751
        %v753 = vsel %vm740, %v728, 0.0
        %754 = vadd.xlane.f32.xlu0 %v753
        %v755 = vpop.xlane.xlu0 %754
        %v756 = vsel %vm740, %v729, 0.0
        %757 = vadd.xlane.f32.xlu0 %v756
        %v758 = vpop.xlane.xlu0 %757
        %v759 = vsel %vm740, %v730, 0.0
        %760 = vadd.xlane.f32.xlu0 %v759
        %v761 = vpop.xlane.xlu0 %760
        %v762 = vsel %vm740, %v731, 0.0
        %763 = vadd.xlane.f32.xlu0 %v762
        %v764 = vpop.xlane.xlu0 %763
        %v765 = vsel %vm740, %v732, 0.0
        %766 = vadd.xlane.f32.xlu0 %v765
        %v767 = vpop.xlane.xlu0 %766
        %v768 = vsel %vm740, %v733, 0.0
        %769 = vadd.xlane.f32.xlu0 %v768
        %v770 = vpop.xlane.xlu0 %769
        %v771 = vsel %vm740, %v734, 0.0
        %772 = vadd.xlane.f32.xlu0 %v771
        %v773 = vpop.xlane.xlu0 %772
        %v774 = vsel %vm740, %v735, 0.0
        %775 = vadd.xlane.f32.xlu0 %v774
        %v776 = vpop.xlane.xlu0 %775
        %v777 = vsel %vm740, %v736, 0.0
        %778 = vadd.xlane.f32.xlu0 %v777
        %v779 = vpop.xlane.xlu0 %778
        %v780 = vsel %vm740, %v737, 0.0
        %781 = vadd.xlane.f32.xlu0 %v780
        %v782 = vpop.xlane.xlu0 %781
        %v783 = vsel %vm740, %v738, 0.0
        %784 = vadd.xlane.f32.xlu0 %v783
        %v785 = vpop.xlane.xlu0 %784
        %v786 = vsel %vm740, %v739, 0.0
        %787 = vadd.xlane.f32.xlu0 %v786
        %v788 = vpop.xlane.xlu0 %787
        %v789 = vld [vmem:[%s6] sm:$0x1]
        %v791 = vperm.slane %v789, 0
        %v793 = vadd.f32 %v743, %v791
        %v794 = vadd.f32 %v746, %v791
        %v795 = vadd.f32 %v749, %v791
        %v796 = vadd.f32 %v752, %v791
        %v797 = vadd.f32 %v755, %v791
        %v798 = vadd.f32 %v758, %v791
        %v799 = vadd.f32 %v761, %v791
        %v800 = vadd.f32 %v764, %v791
        %v801 = vadd.f32 %v767, %v791
        %v802 = vadd.f32 %v770, %v791
        %v803 = vadd.f32 %v773, %v791
        %v804 = vadd.f32 %v776, %v791
        %v805 = vadd.f32 %v779, %v791
        %v806 = vadd.f32 %v782, %v791
        %v807 = vadd.f32 %v785, %v791
        %v808 = vadd.f32 %v788, %v791
        %v809 = vld [vmem:[%s5 + $0x1] sm:$0x1]
        %v810 = vperm.slane %v809, 0
        %v811 = vmul.f32 %v706, %v810
        %v812 = vmul.f32 %v707, %v810
        %v813 = vmul.f32 %v708, %v810
        %v814 = vmul.f32 %v709, %v810
        %v815 = vmul.f32 %v710, %v810
        %v816 = vmul.f32 %v711, %v810
        %v817 = vmul.f32 %v712, %v810
        %v818 = vmul.f32 %v713, %v810
        %v819 = vmul.f32 %v714, %v810
        %v820 = vmul.f32 %v715, %v810
        %v821 = vmul.f32 %v716, %v810
        %v822 = vmul.f32 %v717, %v810
        %v823 = vmul.f32 %v718, %v810
        %v824 = vmul.f32 %v719, %v810
        %v825 = vmul.f32 %v720, %v810
        %v826 = vmul.f32 %v721, %v810
        %v827 = vsel %vm740, %v811, 0.0
        %828 = vadd.xlane.f32.xlu0 %v827
        %v829 = vpop.xlane.xlu0 %828
        %v830 = vsel %vm740, %v812, 0.0
        %831 = vadd.xlane.f32.xlu0 %v830
        %v832 = vpop.xlane.xlu0 %831
        %v833 = vsel %vm740, %v813, 0.0
        %834 = vadd.xlane.f32.xlu0 %v833
        %v835 = vpop.xlane.xlu0 %834
        %v836 = vsel %vm740, %v814, 0.0
        %837 = vadd.xlane.f32.xlu0 %v836
        %v838 = vpop.xlane.xlu0 %837
        %v839 = vsel %vm740, %v815, 0.0
        %840 = vadd.xlane.f32.xlu0 %v839
        %v841 = vpop.xlane.xlu0 %840
        %v842 = vsel %vm740, %v816, 0.0
        %843 = vadd.xlane.f32.xlu0 %v842
        %v844 = vpop.xlane.xlu0 %843
        %v845 = vsel %vm740, %v817, 0.0
        %846 = vadd.xlane.f32.xlu0 %v845
        %v847 = vpop.xlane.xlu0 %846
        %v848 = vsel %vm740, %v818, 0.0
        %849 = vadd.xlane.f32.xlu0 %v848
        %v850 = vpop.xlane.xlu0 %849
        %v851 = vsel %vm740, %v819, 0.0
        %852 = vadd.xlane.f32.xlu0 %v851
        %v853 = vpop.xlane.xlu0 %852
        %v854 = vsel %vm740, %v820, 0.0
        %855 = vadd.xlane.f32.xlu0 %v854
        %v856 = vpop.xlane.xlu0 %855
        %v857 = vsel %vm740, %v821, 0.0
        %858 = vadd.xlane.f32.xlu0 %v857
        %v859 = vpop.xlane.xlu0 %858
        %v860 = vsel %vm740, %v822, 0.0
        %861 = vadd.xlane.f32.xlu0 %v860
        %v862 = vpop.xlane.xlu0 %861
        %v863 = vsel %vm740, %v823, 0.0
        %864 = vadd.xlane.f32.xlu0 %v863
        %v865 = vpop.xlane.xlu0 %864
        %v866 = vsel %vm740, %v824, 0.0
        %867 = vadd.xlane.f32.xlu0 %v866
        %v868 = vpop.xlane.xlu0 %867
        %v869 = vsel %vm740, %v825, 0.0
        %870 = vadd.xlane.f32.xlu0 %v869
        %v871 = vpop.xlane.xlu0 %870
        %v872 = vsel %vm740, %v826, 0.0
        %873 = vadd.xlane.f32.xlu0 %v872
        %v874 = vpop.xlane.xlu0 %873
        %v875 = vadd.f32 %v829, %v791
        %v876 = vadd.f32 %v832, %v791
        %v877 = vadd.f32 %v835, %v791
        %v878 = vadd.f32 %v838, %v791
        %v879 = vadd.f32 %v841, %v791
        %v880 = vadd.f32 %v844, %v791
        %v881 = vadd.f32 %v847, %v791
        %v882 = vadd.f32 %v850, %v791
        %v883 = vadd.f32 %v853, %v791
        %v884 = vadd.f32 %v856, %v791
        %v885 = vadd.f32 %v859, %v791
        %v886 = vadd.f32 %v862, %v791
        %v887 = vadd.f32 %v865, %v791
        %v888 = vadd.f32 %v868, %v791
        %v889 = vadd.f32 %v871, %v791
        %v890 = vadd.f32 %v874, %v791
        %v891 = vand.u32 2147483647, %v793
        %vm892 = vcmp.le.f32.partialorder %v891, 0.7853982
        %vm893 = vcmp.lt.s32.totalorder %v793, 0
        %v894 = vand.u32 %v793, 2139095040
        %v895 = vshrl.u32 %v894, 23
        %v896 = vsub.s32 %v895, 127
        %v897 = vand.u32 2147483647, %v793
        %v898 = vand.u32 %v897, 8388607
        %v899 = vor.u32 %v898, 8388608
        %v900 = vsub.s32 0, %v899
        %v901 = vadd.s32 %v896, 1
        %vm902 = vcmp.gt.s32.totalorder %v901, 0
        %v903 = vsel %vm902, %v901, 0
        %v904 = vshrl.u32 %v903, 5
        %v905 = vand.u32 %v903, 31
        %v906 = vsub.s32 32, %v905
        %v907 = vshrl.u32 683565275, %v906
        %v908 = vshll.u32 683565275, %v905
        %v909 = vshrl.u32 2475754826, %v906
        %v910 = vor.u32 %v908, %v909
        %v911 = vshll.u32 2475754826, %v905
        %v912 = vshrl.u32 2131351028, %v906
        %v913 = vor.u32 %v911, %v912
        %v914 = vshll.u32 2131351028, %v905
        %v915 = vshrl.u32 2102212464, %v906
        %v916 = vor.u32 %v914, %v915
        %v917 = vshll.u32 2102212464, %v905
        %v918 = vshrl.u32 920167782, %v906
        %v919 = vor.u32 %v917, %v918
        %v920 = vshll.u32 920167782, %v905
        %v921 = vshrl.u32 1326507024, %v906
        %v922 = vor.u32 %v920, %v921
        %vm923 = vcmp.lt.s32.totalorder %v904, 1
        %vm924 = vcmp.lt.s32.totalorder %v904, 2
        %vm925 = vcmp.lt.s32.totalorder %v904, 3
        %vm926 = vcmp.lt.s32.totalorder %v904, 4
        %v927 = vsel %vm923, %v907, %v910
        %v928 = vsel %vm926, %v916, 2102212464
        %v929 = vsel %vm925, %v913, %v928
        %v930 = vsel %vm924, %v927, %v929
        %v931 = vsel %vm923, %v910, %v913
        %v932 = vsel %vm926, %v919, 920167782
        %v933 = vsel %vm925, %v916, %v932
        %v934 = vsel %vm924, %v931, %v933
        %v935 = vsel %vm923, %v913, %v916
        %v936 = vsel %vm926, %v922, 1326507024
        %v937 = vsel %vm925, %v919, %v936
        %v938 = vsel %vm924, %v935, %v937
        %v939 = vshll.u32 %v899, 8
        %v940 = vand.u32 %v939, 65535
        %v941 = vshrl.u32 %v939, 16
        %v942 = vand.u32 %v938, 65535
        %v943 = vshrl.u32 %v938, 16
        %v944 = vmul.u32 %v940, %v942
        %v945 = vmul.u32 %v940, %v943
        %v946 = vmul.u32 %v941, %v942
        %v947 = vmul.u32 %v941, %v943
        %v948 = vshll.u32 %v945, 16
        %v949 = vshrl.u32 %v945, 16
        %v950 = vshll.u32 %v946, 16
        %v951 = vshrl.u32 %v946, 16
        %vm952 = vc.u32 %v944, %v948
        %v953 = vsel %vm952, 1, 0
        %v954 = vadd.s32 %v944, %v948
        %v955 = vadd.s32 %v947, %v953
        %vm956 = vc.u32 %v954, %v950
        %v957 = vsel %vm956, 1, 0
        %v958 = vadd.s32 %v954, %v950
        %v959 = vadd.s32 %v955, %v957
        %v960 = vadd.s32 %v959, %v949
        %v961 = vadd.s32 %v960, %v951
        %v962 = vand.u32 %v939, 65535
        %v963 = vshrl.u32 %v939, 16
        %v964 = vand.u32 %v934, 65535
        %v965 = vshrl.u32 %v934, 16
        %v966 = vmul.u32 %v962, %v964
        %v967 = vmul.u32 %v962, %v965
        %v968 = vmul.u32 %v963, %v964
        %v969 = vmul.u32 %v963, %v965
        %v970 = vshll.u32 %v967, 16
        %v971 = vshrl.u32 %v967, 16
        %v972 = vshll.u32 %v968, 16
        %v973 = vshrl.u32 %v968, 16
        %vm974 = vc.u32 %v966, %v970
        %v975 = vsel %vm974, 1, 0
        %v976 = vadd.s32 %v966, %v970
        %v977 = vadd.s32 %v969, %v975
        %vm978 = vc.u32 %v976, %v972
        %v979 = vsel %vm978, 1, 0
        %v980 = vadd.s32 %v976, %v972
        %v981 = vadd.s32 %v977, %v979
        %v982 = vadd.s32 %v981, %v971
        %v983 = vadd.s32 %v982, %v973
        %v984 = vmul.u32 %v939, %v930
        %v985 = vadd.s32 %v961, %v980
        %vm986 = vc.u32 %v961, %v980
        %v987 = vadd.s32 %v983, 1
        %v988 = vsel %vm986, %v987, %v983
        %v989 = vadd.s32 %v984, %v988
        %v990 = vadd.s32 %v989, 536870912
        %v991 = vshrl.u32 %v990, 30
        %v992 = vshll.u32 %v991, 30
        %v993 = vsub.s32 %v989, %v992
        %vm994 = vcmp.lt.s32.totalorder %v993, 0
        %v995 = vsub.s32 0, %v993
        %v996 = vsel %vm994, %v995, %v993
        %v997 = vclz %v996
        %v998 = vsub.s32 %v997, 2
        %vm999 = vcmp.gt.s32.totalorder 0, %v998
        %v1000 = vsel %vm999, 0, %v998
        %v1001 = vsub.s32 32, %v1000
        %v1002 = vshll.u32 %v993, %v1000
        %v1003 = vshrl.u32 %v985, %v1001
        %v1004 = vor.u32 %v1002, %v1003
        %v1005 = vsub.s32 4294967266, %v1000
        %v1006 = vadd.s32 %v1005, 127
        %v1007 = vshll.u32 %v1006, 23
        %v1008 = vor.u32 4788187, %v1007
        %v1009 = vand.u32 2147483647, %v1008
        %v1011 = vcvt.s32.f32 %v1004
        %v1012 = vmul.f32 %v1011, %v1009
        %v1013 = vxor.u32 %v1012, 2147483648
        %v1014 = vsel %vm893, %v1013, %v1012
        %v1015 = vsub.s32 4, %v991
        %v1016 = vsel %vm893, %v1015, %v991
        %v1017 = vsel %vm892, %v793, %v1014
        %v1018 = vsel %vm892, 0, %v1016
        %v1019 = vmul.f32 %v1017, %v1017
        %v1020 = vmul.f32 %v1019, -0.001358992
        %v1021 = vadd.f32 %v1020, 0.041655596
        %v1022 = vmul.f32 %v1019, %v1021
        %v1023 = vadd.f32 %v1022, -0.4999988
        %v1024 = vmul.f32 %v1019, %v1023
        %v1025 = vadd.f32 1.0, %v1024
        %v1026 = vmul.f32 %v1017, %v1017
        %v1027 = vmul.f32 %v1026, -0.00019511016
        %v1028 = vadd.f32 %v1027, 0.008332121
        %v1029 = vmul.f32 %v1026, %v1028
        %v1030 = vadd.f32 %v1029, -0.16666654
        %v1031 = vmul.f32 %v1026, %v1030
        %v1032 = vadd.f32 %v1031, 1.0
        %v1033 = vmul.f32 %v1032, %v1017
        %vm1034 = vweird.f32 %v793
        %v1035 = vand.u32 %v1018, 3
        %vm1036 = vcmp.lt.s32.totalorder %v1035, 2
        %vm1037 = vcmp.eq.s32.totalorder %v1035, 0
        %v1038 = vxor.u32 %v1033, 2147483648
        %v1039 = vsel %vm1037, %v1025, %v1038
        %vm1040 = vcmp.eq.s32.totalorder %v1035, 2
        %v1041 = vxor.u32 %v1025, 2147483648
        %v1042 = vsel %vm1040, %v1041, %v1033
        %v1043 = vsel %vm1036, %v1039, %v1042
        %v1044 = vsel %vm1034, nan, %v1043
        %v1045 = vand.u32 2147483647, %v794
        %vm1046 = vcmp.le.f32.partialorder %v1045, 0.7853982
        %vm1047 = vcmp.lt.s32.totalorder %v794, 0
        %v1048 = vand.u32 %v794, 2139095040
        %v1049 = vshrl.u32 %v1048, 23
        %v1050 = vsub.s32 %v1049, 127
        %v1051 = vand.u32 2147483647, %v794
        %v1052 = vand.u32 %v1051, 8388607
        %v1053 = vor.u32 %v1052, 8388608
        %v1054 = vsub.s32 0, %v1053
        %v1055 = vadd.s32 %v1050, 1
        %vm1056 = vcmp.gt.s32.totalorder %v1055, 0
        %v1057 = vsel %vm1056, %v1055, 0
        %v1058 = vshrl.u32 %v1057, 5
        %v1059 = vand.u32 %v1057, 31
        %v1060 = vsub.s32 32, %v1059
        %v1061 = vshrl.u32 683565275, %v1060
        %v1062 = vshll.u32 683565275, %v1059
        %v1063 = vshrl.u32 2475754826, %v1060
        %v1064 = vor.u32 %v1062, %v1063
        %v1065 = vshll.u32 2475754826, %v1059
        %v1066 = vshrl.u32 2131351028, %v1060
        %v1067 = vor.u32 %v1065, %v1066
        %v1068 = vshll.u32 2131351028, %v1059
        %v1069 = vshrl.u32 2102212464, %v1060
        %v1070 = vor.u32 %v1068, %v1069
        %v1071 = vshll.u32 2102212464, %v1059
        %v1072 = vshrl.u32 920167782, %v1060
        %v1073 = vor.u32 %v1071, %v1072
        %v1074 = vshll.u32 920167782, %v1059
        %v1075 = vshrl.u32 1326507024, %v1060
        %v1076 = vor.u32 %v1074, %v1075
        %vm1077 = vcmp.lt.s32.totalorder %v1058, 1
        %vm1078 = vcmp.lt.s32.totalorder %v1058, 2
        %vm1079 = vcmp.lt.s32.totalorder %v1058, 3
        %vm1080 = vcmp.lt.s32.totalorder %v1058, 4
        %v1081 = vsel %vm1077, %v1061, %v1064
        %v1082 = vsel %vm1080, %v1070, 2102212464
        %v1083 = vsel %vm1079, %v1067, %v1082
        %v1084 = vsel %vm1078, %v1081, %v1083
        %v1085 = vsel %vm1077, %v1064, %v1067
        %v1086 = vsel %vm1080, %v1073, 920167782
        %v1087 = vsel %vm1079, %v1070, %v1086
        %v1088 = vsel %vm1078, %v1085, %v1087
        %v1089 = vsel %vm1077, %v1067, %v1070
        %v1090 = vsel %vm1080, %v1076, 1326507024
        %v1091 = vsel %vm1079, %v1073, %v1090
        %v1092 = vsel %vm1078, %v1089, %v1091
        %v1093 = vshll.u32 %v1053, 8
        %v1094 = vand.u32 %v1093, 65535
        %v1095 = vshrl.u32 %v1093, 16
        %v1096 = vand.u32 %v1092, 65535
        %v1097 = vshrl.u32 %v1092, 16
        %v1098 = vmul.u32 %v1094, %v1096
        %v1099 = vmul.u32 %v1094, %v1097
        %v1100 = vmul.u32 %v1095, %v1096
        %v1101 = vmul.u32 %v1095, %v1097
        %v1102 = vshll.u32 %v1099, 16
        %v1103 = vshrl.u32 %v1099, 16
        %v1104 = vshll.u32 %v1100, 16
        %v1105 = vshrl.u32 %v1100, 16
        %vm1106 = vc.u32 %v1098, %v1102
        %v1107 = vsel %vm1106, 1, 0
        %v1108 = vadd.s32 %v1098, %v1102
        %v1109 = vadd.s32 %v1101, %v1107
        %vm1110 = vc.u32 %v1108, %v1104
        %v1111 = vsel %vm1110, 1, 0
        %v1112 = vadd.s32 %v1108, %v1104
        %v1113 = vadd.s32 %v1109, %v1111
        %v1114 = vadd.s32 %v1113, %v1103
        %v1115 = vadd.s32 %v1114, %v1105
        %v1116 = vand.u32 %v1093, 65535
        %v1117 = vshrl.u32 %v1093, 16
        %v1118 = vand.u32 %v1088, 65535
        %v1119 = vshrl.u32 %v1088, 16
        %v1120 = vmul.u32 %v1116, %v1118
        %v1121 = vmul.u32 %v1116, %v1119
        %v1122 = vmul.u32 %v1117, %v1118
        %v1123 = vmul.u32 %v1117, %v1119
        %v1124 = vshll.u32 %v1121, 16
        %v1125 = vshrl.u32 %v1121, 16
        %v1126 = vshll.u32 %v1122, 16
        %v1127 = vshrl.u32 %v1122, 16
        %vm1128 = vc.u32 %v1120, %v1124
        %v1129 = vsel %vm1128, 1, 0
        %v1130 = vadd.s32 %v1120, %v1124
        %v1131 = vadd.s32 %v1123, %v1129
        %vm1132 = vc.u32 %v1130, %v1126
        %v1133 = vsel %vm1132, 1, 0
        %v1134 = vadd.s32 %v1130, %v1126
        %v1135 = vadd.s32 %v1131, %v1133
        %v1136 = vadd.s32 %v1135, %v1125
        %v1137 = vadd.s32 %v1136, %v1127
        %v1138 = vmul.u32 %v1093, %v1084
        %v1139 = vadd.s32 %v1115, %v1134
        %vm1140 = vc.u32 %v1115, %v1134
        %v1141 = vadd.s32 %v1137, 1
        %v1142 = vsel %vm1140, %v1141, %v1137
        %v1143 = vadd.s32 %v1138, %v1142
        %v1144 = vadd.s32 %v1143, 536870912
        %v1145 = vshrl.u32 %v1144, 30
        %v1146 = vshll.u32 %v1145, 30
        %v1147 = vsub.s32 %v1143, %v1146
        %vm1148 = vcmp.lt.s32.totalorder %v1147, 0
        %v1149 = vsub.s32 0, %v1147
        %v1150 = vsel %vm1148, %v1149, %v1147
        %v1151 = vclz %v1150
        %v1152 = vsub.s32 %v1151, 2
        %vm1153 = vcmp.gt.s32.totalorder 0, %v1152
        %v1154 = vsel %vm1153, 0, %v1152
        %v1155 = vsub.s32 32, %v1154
        %v1156 = vshll.u32 %v1147, %v1154
        %v1157 = vshrl.u32 %v1139, %v1155
        %v1158 = vor.u32 %v1156, %v1157
        %v1159 = vsub.s32 4294967266, %v1154
        %v1160 = vadd.s32 %v1159, 127
        %v1161 = vshll.u32 %v1160, 23
        %v1162 = vor.u32 4788187, %v1161
        %v1163 = vand.u32 2147483647, %v1162
        %v1165 = vcvt.s32.f32 %v1158
        %v1166 = vmul.f32 %v1165, %v1163
        %v1167 = vxor.u32 %v1166, 2147483648
        %v1168 = vsel %vm1047, %v1167, %v1166
        %v1169 = vsub.s32 4, %v1145
        %v1170 = vsel %vm1047, %v1169, %v1145
        %v1171 = vsel %vm1046, %v794, %v1168
        %v1172 = vsel %vm1046, 0, %v1170
        %v1173 = vmul.f32 %v1171, %v1171
        %v1174 = vmul.f32 %v1173, -0.001358992
        %v1175 = vadd.f32 %v1174, 0.041655596
        %v1176 = vmul.f32 %v1173, %v1175
        %v1177 = vadd.f32 %v1176, -0.4999988
        %v1178 = vmul.f32 %v1173, %v1177
        %v1179 = vadd.f32 1.0, %v1178
        %v1180 = vmul.f32 %v1171, %v1171
        %v1181 = vmul.f32 %v1180, -0.00019511016
        %v1182 = vadd.f32 %v1181, 0.008332121
        %v1183 = vmul.f32 %v1180, %v1182
        %v1184 = vadd.f32 %v1183, -0.16666654
        %v1185 = vmul.f32 %v1180, %v1184
        %v1186 = vadd.f32 %v1185, 1.0
        %v1187 = vmul.f32 %v1186, %v1171
        %vm1188 = vweird.f32 %v794
        %v1189 = vand.u32 %v1172, 3
        %vm1190 = vcmp.lt.s32.totalorder %v1189, 2
        %vm1191 = vcmp.eq.s32.totalorder %v1189, 0
        %v1192 = vxor.u32 %v1187, 2147483648
        %v1193 = vsel %vm1191, %v1179, %v1192
        %vm1194 = vcmp.eq.s32.totalorder %v1189, 2
        %v1195 = vxor.u32 %v1179, 2147483648
        %v1196 = vsel %vm1194, %v1195, %v1187
        %v1197 = vsel %vm1190, %v1193, %v1196
        %v1198 = vsel %vm1188, nan, %v1197
        %v1199 = vand.u32 2147483647, %v795
        %vm1200 = vcmp.le.f32.partialorder %v1199, 0.7853982
        %vm1201 = vcmp.lt.s32.totalorder %v795, 0
        %v1202 = vand.u32 %v795, 2139095040
        %v1203 = vshrl.u32 %v1202, 23
        %v1204 = vsub.s32 %v1203, 127
        %v1205 = vand.u32 2147483647, %v795
        %v1206 = vand.u32 %v1205, 8388607
        %v1207 = vor.u32 %v1206, 8388608
        %v1208 = vsub.s32 0, %v1207
        %v1209 = vadd.s32 %v1204, 1
        %vm1210 = vcmp.gt.s32.totalorder %v1209, 0
        %v1211 = vsel %vm1210, %v1209, 0
        %v1212 = vshrl.u32 %v1211, 5
        %v1213 = vand.u32 %v1211, 31
        %v1214 = vsub.s32 32, %v1213
        %v1215 = vshrl.u32 683565275, %v1214
        %v1216 = vshll.u32 683565275, %v1213
        %v1217 = vshrl.u32 2475754826, %v1214
        %v1218 = vor.u32 %v1216, %v1217
        %v1219 = vshll.u32 2475754826, %v1213
        %v1220 = vshrl.u32 2131351028, %v1214
        %v1221 = vor.u32 %v1219, %v1220
        %v1222 = vshll.u32 2131351028, %v1213
        %v1223 = vshrl.u32 2102212464, %v1214
        %v1224 = vor.u32 %v1222, %v1223
        %v1225 = vshll.u32 2102212464, %v1213
        %v1226 = vshrl.u32 920167782, %v1214
        %v1227 = vor.u32 %v1225, %v1226
        %v1228 = vshll.u32 920167782, %v1213
        %v1229 = vshrl.u32 1326507024, %v1214
        %v1230 = vor.u32 %v1228, %v1229
        %vm1231 = vcmp.lt.s32.totalorder %v1212, 1
        %vm1232 = vcmp.lt.s32.totalorder %v1212, 2
        %vm1233 = vcmp.lt.s32.totalorder %v1212, 3
        %vm1234 = vcmp.lt.s32.totalorder %v1212, 4
        %v1235 = vsel %vm1231, %v1215, %v1218
        %v1236 = vsel %vm1234, %v1224, 2102212464
        %v1237 = vsel %vm1233, %v1221, %v1236
        %v1238 = vsel %vm1232, %v1235, %v1237
        %v1239 = vsel %vm1231, %v1218, %v1221
        %v1240 = vsel %vm1234, %v1227, 920167782
        %v1241 = vsel %vm1233, %v1224, %v1240
        %v1242 = vsel %vm1232, %v1239, %v1241
        %v1243 = vsel %vm1231, %v1221, %v1224
        %v1244 = vsel %vm1234, %v1230, 1326507024
        %v1245 = vsel %vm1233, %v1227, %v1244
        %v1246 = vsel %vm1232, %v1243, %v1245
        %v1247 = vshll.u32 %v1207, 8
        %v1248 = vand.u32 %v1247, 65535
        %v1249 = vshrl.u32 %v1247, 16
        %v1250 = vand.u32 %v1246, 65535
        %v1251 = vshrl.u32 %v1246, 16
        %v1252 = vmul.u32 %v1248, %v1250
        %v1253 = vmul.u32 %v1248, %v1251
        %v1254 = vmul.u32 %v1249, %v1250
        %v1255 = vmul.u32 %v1249, %v1251
        %v1256 = vshll.u32 %v1253, 16
        %v1257 = vshrl.u32 %v1253, 16
        %v1258 = vshll.u32 %v1254, 16
        %v1259 = vshrl.u32 %v1254, 16
        %vm1260 = vc.u32 %v1252, %v1256
        %v1261 = vsel %vm1260, 1, 0
        %v1262 = vadd.s32 %v1252, %v1256
        %v1263 = vadd.s32 %v1255, %v1261
        %vm1264 = vc.u32 %v1262, %v1258
        %v1265 = vsel %vm1264, 1, 0
        %v1266 = vadd.s32 %v1262, %v1258
        %v1267 = vadd.s32 %v1263, %v1265
        %v1268 = vadd.s32 %v1267, %v1257
        %v1269 = vadd.s32 %v1268, %v1259
        %v1270 = vand.u32 %v1247, 65535
        %v1271 = vshrl.u32 %v1247, 16
        %v1272 = vand.u32 %v1242, 65535
        %v1273 = vshrl.u32 %v1242, 16
        %v1274 = vmul.u32 %v1270, %v1272
        %v1275 = vmul.u32 %v1270, %v1273
        %v1276 = vmul.u32 %v1271, %v1272
        %v1277 = vmul.u32 %v1271, %v1273
        %v1278 = vshll.u32 %v1275, 16
        %v1279 = vshrl.u32 %v1275, 16
        %v1280 = vshll.u32 %v1276, 16
        %v1281 = vshrl.u32 %v1276, 16
        %vm1282 = vc.u32 %v1274, %v1278
        %v1283 = vsel %vm1282, 1, 0
        %v1284 = vadd.s32 %v1274, %v1278
        %v1285 = vadd.s32 %v1277, %v1283
        %vm1286 = vc.u32 %v1284, %v1280
        %v1287 = vsel %vm1286, 1, 0
        %v1288 = vadd.s32 %v1284, %v1280
        %v1289 = vadd.s32 %v1285, %v1287
        %v1290 = vadd.s32 %v1289, %v1279
        %v1291 = vadd.s32 %v1290, %v1281
        %v1292 = vmul.u32 %v1247, %v1238
        %v1293 = vadd.s32 %v1269, %v1288
        %vm1294 = vc.u32 %v1269, %v1288
        %v1295 = vadd.s32 %v1291, 1
        %v1296 = vsel %vm1294, %v1295, %v1291
        %v1297 = vadd.s32 %v1292, %v1296
        %v1298 = vadd.s32 %v1297, 536870912
        %v1299 = vshrl.u32 %v1298, 30
        %v1300 = vshll.u32 %v1299, 30
        %v1301 = vsub.s32 %v1297, %v1300
        %vm1302 = vcmp.lt.s32.totalorder %v1301, 0
        %v1303 = vsub.s32 0, %v1301
        %v1304 = vsel %vm1302, %v1303, %v1301
        %v1305 = vclz %v1304
        %v1306 = vsub.s32 %v1305, 2
        %vm1307 = vcmp.gt.s32.totalorder 0, %v1306
        %v1308 = vsel %vm1307, 0, %v1306
        %v1309 = vsub.s32 32, %v1308
        %v1310 = vshll.u32 %v1301, %v1308
        %v1311 = vshrl.u32 %v1293, %v1309
        %v1312 = vor.u32 %v1310, %v1311
        %v1313 = vsub.s32 4294967266, %v1308
        %v1314 = vadd.s32 %v1313, 127
        %v1315 = vshll.u32 %v1314, 23
        %v1316 = vor.u32 4788187, %v1315
        %v1317 = vand.u32 2147483647, %v1316
        %v1319 = vcvt.s32.f32 %v1312
        %v1320 = vmul.f32 %v1319, %v1317
        %v1321 = vxor.u32 %v1320, 2147483648
        %v1322 = vsel %vm1201, %v1321, %v1320
        %v1323 = vsub.s32 4, %v1299
        %v1324 = vsel %vm1201, %v1323, %v1299
        %v1325 = vsel %vm1200, %v795, %v1322
        %v1326 = vsel %vm1200, 0, %v1324
        %v1327 = vmul.f32 %v1325, %v1325
        %v1328 = vmul.f32 %v1327, -0.001358992
        %v1329 = vadd.f32 %v1328, 0.041655596
        %v1330 = vmul.f32 %v1327, %v1329
        %v1331 = vadd.f32 %v1330, -0.4999988
        %v1332 = vmul.f32 %v1327, %v1331
        %v1333 = vadd.f32 1.0, %v1332
        %v1334 = vmul.f32 %v1325, %v1325
        %v1335 = vmul.f32 %v1334, -0.00019511016
        %v1336 = vadd.f32 %v1335, 0.008332121
        %v1337 = vmul.f32 %v1334, %v1336
        %v1338 = vadd.f32 %v1337, -0.16666654
        %v1339 = vmul.f32 %v1334, %v1338
        %v1340 = vadd.f32 %v1339, 1.0
        %v1341 = vmul.f32 %v1340, %v1325
        %vm1342 = vweird.f32 %v795
        %v1343 = vand.u32 %v1326, 3
        %vm1344 = vcmp.lt.s32.totalorder %v1343, 2
        %vm1345 = vcmp.eq.s32.totalorder %v1343, 0
        %v1346 = vxor.u32 %v1341, 2147483648
        %v1347 = vsel %vm1345, %v1333, %v1346
        %vm1348 = vcmp.eq.s32.totalorder %v1343, 2
        %v1349 = vxor.u32 %v1333, 2147483648
        %v1350 = vsel %vm1348, %v1349, %v1341
        %v1351 = vsel %vm1344, %v1347, %v1350
        %v1352 = vsel %vm1342, nan, %v1351
        %v1353 = vand.u32 2147483647, %v796
        %vm1354 = vcmp.le.f32.partialorder %v1353, 0.7853982
        %vm1355 = vcmp.lt.s32.totalorder %v796, 0
        %v1356 = vand.u32 %v796, 2139095040
        %v1357 = vshrl.u32 %v1356, 23
        %v1358 = vsub.s32 %v1357, 127
        %v1359 = vand.u32 2147483647, %v796
        %v1360 = vand.u32 %v1359, 8388607
        %v1361 = vor.u32 %v1360, 8388608
        %v1362 = vsub.s32 0, %v1361
        %v1363 = vadd.s32 %v1358, 1
        %vm1364 = vcmp.gt.s32.totalorder %v1363, 0
        %v1365 = vsel %vm1364, %v1363, 0
        %v1366 = vshrl.u32 %v1365, 5
        %v1367 = vand.u32 %v1365, 31
        %v1368 = vsub.s32 32, %v1367
        %v1369 = vshrl.u32 683565275, %v1368
        %v1370 = vshll.u32 683565275, %v1367
        %v1371 = vshrl.u32 2475754826, %v1368
        %v1372 = vor.u32 %v1370, %v1371
        %v1373 = vshll.u32 2475754826, %v1367
        %v1374 = vshrl.u32 2131351028, %v1368
        %v1375 = vor.u32 %v1373, %v1374
        %v1376 = vshll.u32 2131351028, %v1367
        %v1377 = vshrl.u32 2102212464, %v1368
        %v1378 = vor.u32 %v1376, %v1377
        %v1379 = vshll.u32 2102212464, %v1367
        %v1380 = vshrl.u32 920167782, %v1368
        %v1381 = vor.u32 %v1379, %v1380
        %v1382 = vshll.u32 920167782, %v1367
        %v1383 = vshrl.u32 1326507024, %v1368
        %v1384 = vor.u32 %v1382, %v1383
        %vm1385 = vcmp.lt.s32.totalorder %v1366, 1
        %vm1386 = vcmp.lt.s32.totalorder %v1366, 2
        %vm1387 = vcmp.lt.s32.totalorder %v1366, 3
        %vm1388 = vcmp.lt.s32.totalorder %v1366, 4
        %v1389 = vsel %vm1385, %v1369, %v1372
        %v1390 = vsel %vm1388, %v1378, 2102212464
        %v1391 = vsel %vm1387, %v1375, %v1390
        %v1392 = vsel %vm1386, %v1389, %v1391
        %v1393 = vsel %vm1385, %v1372, %v1375
        %v1394 = vsel %vm1388, %v1381, 920167782
        %v1395 = vsel %vm1387, %v1378, %v1394
        %v1396 = vsel %vm1386, %v1393, %v1395
        %v1397 = vsel %vm1385, %v1375, %v1378
        %v1398 = vsel %vm1388, %v1384, 1326507024
        %v1399 = vsel %vm1387, %v1381, %v1398
        %v1400 = vsel %vm1386, %v1397, %v1399
        %v1401 = vshll.u32 %v1361, 8
        %v1402 = vand.u32 %v1401, 65535
        %v1403 = vshrl.u32 %v1401, 16
        %v1404 = vand.u32 %v1400, 65535
        %v1405 = vshrl.u32 %v1400, 16
        %v1406 = vmul.u32 %v1402, %v1404
        %v1407 = vmul.u32 %v1402, %v1405
        %v1408 = vmul.u32 %v1403, %v1404
        %v1409 = vmul.u32 %v1403, %v1405
        %v1410 = vshll.u32 %v1407, 16
        %v1411 = vshrl.u32 %v1407, 16
        %v1412 = vshll.u32 %v1408, 16
        %v1413 = vshrl.u32 %v1408, 16
        %vm1414 = vc.u32 %v1406, %v1410
        %v1415 = vsel %vm1414, 1, 0
        %v1416 = vadd.s32 %v1406, %v1410
        %v1417 = vadd.s32 %v1409, %v1415
        %vm1418 = vc.u32 %v1416, %v1412
        %v1419 = vsel %vm1418, 1, 0
        %v1420 = vadd.s32 %v1416, %v1412
        %v1421 = vadd.s32 %v1417, %v1419
        %v1422 = vadd.s32 %v1421, %v1411
        %v1423 = vadd.s32 %v1422, %v1413
        %v1424 = vand.u32 %v1401, 65535
        %v1425 = vshrl.u32 %v1401, 16
        %v1426 = vand.u32 %v1396, 65535
        %v1427 = vshrl.u32 %v1396, 16
        %v1428 = vmul.u32 %v1424, %v1426
        %v1429 = vmul.u32 %v1424, %v1427
        %v1430 = vmul.u32 %v1425, %v1426
        %v1431 = vmul.u32 %v1425, %v1427
        %v1432 = vshll.u32 %v1429, 16
        %v1433 = vshrl.u32 %v1429, 16
        %v1434 = vshll.u32 %v1430, 16
        %v1435 = vshrl.u32 %v1430, 16
        %vm1436 = vc.u32 %v1428, %v1432
        %v1437 = vsel %vm1436, 1, 0
        %v1438 = vadd.s32 %v1428, %v1432
        %v1439 = vadd.s32 %v1431, %v1437
        %vm1440 = vc.u32 %v1438, %v1434
        %v1441 = vsel %vm1440, 1, 0
        %v1442 = vadd.s32 %v1438, %v1434
        %v1443 = vadd.s32 %v1439, %v1441
        %v1444 = vadd.s32 %v1443, %v1433
        %v1445 = vadd.s32 %v1444, %v1435
        %v1446 = vmul.u32 %v1401, %v1392
        %v1447 = vadd.s32 %v1423, %v1442
        %vm1448 = vc.u32 %v1423, %v1442
        %v1449 = vadd.s32 %v1445, 1
        %v1450 = vsel %vm1448, %v1449, %v1445
        %v1451 = vadd.s32 %v1446, %v1450
        %v1452 = vadd.s32 %v1451, 536870912
        %v1453 = vshrl.u32 %v1452, 30
        %v1454 = vshll.u32 %v1453, 30
        %v1455 = vsub.s32 %v1451, %v1454
        %vm1456 = vcmp.lt.s32.totalorder %v1455, 0
        %v1457 = vsub.s32 0, %v1455
        %v1458 = vsel %vm1456, %v1457, %v1455
        %v1459 = vclz %v1458
        %v1460 = vsub.s32 %v1459, 2
        %vm1461 = vcmp.gt.s32.totalorder 0, %v1460
        %v1462 = vsel %vm1461, 0, %v1460
        %v1463 = vsub.s32 32, %v1462
        %v1464 = vshll.u32 %v1455, %v1462
        %v1465 = vshrl.u32 %v1447, %v1463
        %v1466 = vor.u32 %v1464, %v1465
        %v1467 = vsub.s32 4294967266, %v1462
        %v1468 = vadd.s32 %v1467, 127
        %v1469 = vshll.u32 %v1468, 23
        %v1470 = vor.u32 4788187, %v1469
        %v1471 = vand.u32 2147483647, %v1470
        %v1473 = vcvt.s32.f32 %v1466
        %v1474 = vmul.f32 %v1473, %v1471
        %v1475 = vxor.u32 %v1474, 2147483648
        %v1476 = vsel %vm1355, %v1475, %v1474
        %v1477 = vsub.s32 4, %v1453
        %v1478 = vsel %vm1355, %v1477, %v1453
        %v1479 = vsel %vm1354, %v796, %v1476
        %v1480 = vsel %vm1354, 0, %v1478
        %v1481 = vmul.f32 %v1479, %v1479
        %v1482 = vmul.f32 %v1481, -0.001358992
        %v1483 = vadd.f32 %v1482, 0.041655596
        %v1484 = vmul.f32 %v1481, %v1483
        %v1485 = vadd.f32 %v1484, -0.4999988
        %v1486 = vmul.f32 %v1481, %v1485
        %v1487 = vadd.f32 1.0, %v1486
        %v1488 = vmul.f32 %v1479, %v1479
        %v1489 = vmul.f32 %v1488, -0.00019511016
        %v1490 = vadd.f32 %v1489, 0.008332121
        %v1491 = vmul.f32 %v1488, %v1490
        %v1492 = vadd.f32 %v1491, -0.16666654
        %v1493 = vmul.f32 %v1488, %v1492
        %v1494 = vadd.f32 %v1493, 1.0
        %v1495 = vmul.f32 %v1494, %v1479
        %vm1496 = vweird.f32 %v796
        %v1497 = vand.u32 %v1480, 3
        %vm1498 = vcmp.lt.s32.totalorder %v1497, 2
        %vm1499 = vcmp.eq.s32.totalorder %v1497, 0
        %v1500 = vxor.u32 %v1495, 2147483648
        %v1501 = vsel %vm1499, %v1487, %v1500
        %vm1502 = vcmp.eq.s32.totalorder %v1497, 2
        %v1503 = vxor.u32 %v1487, 2147483648
        %v1504 = vsel %vm1502, %v1503, %v1495
        %v1505 = vsel %vm1498, %v1501, %v1504
        %v1506 = vsel %vm1496, nan, %v1505
        %v1507 = vand.u32 2147483647, %v797
        %vm1508 = vcmp.le.f32.partialorder %v1507, 0.7853982
        %vm1509 = vcmp.lt.s32.totalorder %v797, 0
        %v1510 = vand.u32 %v797, 2139095040
        %v1511 = vshrl.u32 %v1510, 23
        %v1512 = vsub.s32 %v1511, 127
        %v1513 = vand.u32 2147483647, %v797
        %v1514 = vand.u32 %v1513, 8388607
        %v1515 = vor.u32 %v1514, 8388608
        %v1516 = vsub.s32 0, %v1515
        %v1517 = vadd.s32 %v1512, 1
        %vm1518 = vcmp.gt.s32.totalorder %v1517, 0
        %v1519 = vsel %vm1518, %v1517, 0
        %v1520 = vshrl.u32 %v1519, 5
        %v1521 = vand.u32 %v1519, 31
        %v1522 = vsub.s32 32, %v1521
        %v1523 = vshrl.u32 683565275, %v1522
        %v1524 = vshll.u32 683565275, %v1521
        %v1525 = vshrl.u32 2475754826, %v1522
        %v1526 = vor.u32 %v1524, %v1525
        %v1527 = vshll.u32 2475754826, %v1521
        %v1528 = vshrl.u32 2131351028, %v1522
        %v1529 = vor.u32 %v1527, %v1528
        %v1530 = vshll.u32 2131351028, %v1521
        %v1531 = vshrl.u32 2102212464, %v1522
        %v1532 = vor.u32 %v1530, %v1531
        %v1533 = vshll.u32 2102212464, %v1521
        %v1534 = vshrl.u32 920167782, %v1522
        %v1535 = vor.u32 %v1533, %v1534
        %v1536 = vshll.u32 920167782, %v1521
        %v1537 = vshrl.u32 1326507024, %v1522
        %v1538 = vor.u32 %v1536, %v1537
        %vm1539 = vcmp.lt.s32.totalorder %v1520, 1
        %vm1540 = vcmp.lt.s32.totalorder %v1520, 2
        %vm1541 = vcmp.lt.s32.totalorder %v1520, 3
        %vm1542 = vcmp.lt.s32.totalorder %v1520, 4
        %v1543 = vsel %vm1539, %v1523, %v1526
        %v1544 = vsel %vm1542, %v1532, 2102212464
        %v1545 = vsel %vm1541, %v1529, %v1544
        %v1546 = vsel %vm1540, %v1543, %v1545
        %v1547 = vsel %vm1539, %v1526, %v1529
        %v1548 = vsel %vm1542, %v1535, 920167782
        %v1549 = vsel %vm1541, %v1532, %v1548
        %v1550 = vsel %vm1540, %v1547, %v1549
        %v1551 = vsel %vm1539, %v1529, %v1532
        %v1552 = vsel %vm1542, %v1538, 1326507024
        %v1553 = vsel %vm1541, %v1535, %v1552
        %v1554 = vsel %vm1540, %v1551, %v1553
        %v1555 = vshll.u32 %v1515, 8
        %v1556 = vand.u32 %v1555, 65535
        %v1557 = vshrl.u32 %v1555, 16
        %v1558 = vand.u32 %v1554, 65535
        %v1559 = vshrl.u32 %v1554, 16
        %v1560 = vmul.u32 %v1556, %v1558
        %v1561 = vmul.u32 %v1556, %v1559
        %v1562 = vmul.u32 %v1557, %v1558
        %v1563 = vmul.u32 %v1557, %v1559
        %v1564 = vshll.u32 %v1561, 16
        %v1565 = vshrl.u32 %v1561, 16
        %v1566 = vshll.u32 %v1562, 16
        %v1567 = vshrl.u32 %v1562, 16
        %vm1568 = vc.u32 %v1560, %v1564
        %v1569 = vsel %vm1568, 1, 0
        %v1570 = vadd.s32 %v1560, %v1564
        %v1571 = vadd.s32 %v1563, %v1569
        %vm1572 = vc.u32 %v1570, %v1566
        %v1573 = vsel %vm1572, 1, 0
        %v1574 = vadd.s32 %v1570, %v1566
        %v1575 = vadd.s32 %v1571, %v1573
        %v1576 = vadd.s32 %v1575, %v1565
        %v1577 = vadd.s32 %v1576, %v1567
        %v1578 = vand.u32 %v1555, 65535
        %v1579 = vshrl.u32 %v1555, 16
        %v1580 = vand.u32 %v1550, 65535
        %v1581 = vshrl.u32 %v1550, 16
        %v1582 = vmul.u32 %v1578, %v1580
        %v1583 = vmul.u32 %v1578, %v1581
        %v1584 = vmul.u32 %v1579, %v1580
        %v1585 = vmul.u32 %v1579, %v1581
        %v1586 = vshll.u32 %v1583, 16
        %v1587 = vshrl.u32 %v1583, 16
        %v1588 = vshll.u32 %v1584, 16
        %v1589 = vshrl.u32 %v1584, 16
        %vm1590 = vc.u32 %v1582, %v1586
        %v1591 = vsel %vm1590, 1, 0
        %v1592 = vadd.s32 %v1582, %v1586
        %v1593 = vadd.s32 %v1585, %v1591
        %vm1594 = vc.u32 %v1592, %v1588
        %v1595 = vsel %vm1594, 1, 0
        %v1596 = vadd.s32 %v1592, %v1588
        %v1597 = vadd.s32 %v1593, %v1595
        %v1598 = vadd.s32 %v1597, %v1587
        %v1599 = vadd.s32 %v1598, %v1589
        %v1600 = vmul.u32 %v1555, %v1546
        %v1601 = vadd.s32 %v1577, %v1596
        %vm1602 = vc.u32 %v1577, %v1596
        %v1603 = vadd.s32 %v1599, 1
        %v1604 = vsel %vm1602, %v1603, %v1599
        %v1605 = vadd.s32 %v1600, %v1604
        %v1606 = vadd.s32 %v1605, 536870912
        %v1607 = vshrl.u32 %v1606, 30
        %v1608 = vshll.u32 %v1607, 30
        %v1609 = vsub.s32 %v1605, %v1608
        %vm1610 = vcmp.lt.s32.totalorder %v1609, 0
        %v1611 = vsub.s32 0, %v1609
        %v1612 = vsel %vm1610, %v1611, %v1609
        %v1613 = vclz %v1612
        %v1614 = vsub.s32 %v1613, 2
        %vm1615 = vcmp.gt.s32.totalorder 0, %v1614
        %v1616 = vsel %vm1615, 0, %v1614
        %v1617 = vsub.s32 32, %v1616
        %v1618 = vshll.u32 %v1609, %v1616
        %v1619 = vshrl.u32 %v1601, %v1617
        %v1620 = vor.u32 %v1618, %v1619
        %v1621 = vsub.s32 4294967266, %v1616
        %v1622 = vadd.s32 %v1621, 127
        %v1623 = vshll.u32 %v1622, 23
        %v1624 = vor.u32 4788187, %v1623
        %v1625 = vand.u32 2147483647, %v1624
        %v1627 = vcvt.s32.f32 %v1620
        %v1628 = vmul.f32 %v1627, %v1625
        %v1629 = vxor.u32 %v1628, 2147483648
        %v1630 = vsel %vm1509, %v1629, %v1628
        %v1631 = vsub.s32 4, %v1607
        %v1632 = vsel %vm1509, %v1631, %v1607
        %v1633 = vsel %vm1508, %v797, %v1630
        %v1634 = vsel %vm1508, 0, %v1632
        %v1635 = vmul.f32 %v1633, %v1633
        %v1636 = vmul.f32 %v1635, -0.001358992
        %v1637 = vadd.f32 %v1636, 0.041655596
        %v1638 = vmul.f32 %v1635, %v1637
        %v1639 = vadd.f32 %v1638, -0.4999988
        %v1640 = vmul.f32 %v1635, %v1639
        %v1641 = vadd.f32 1.0, %v1640
        %v1642 = vmul.f32 %v1633, %v1633
        %v1643 = vmul.f32 %v1642, -0.00019511016
        %v1644 = vadd.f32 %v1643, 0.008332121
        %v1645 = vmul.f32 %v1642, %v1644
        %v1646 = vadd.f32 %v1645, -0.16666654
        %v1647 = vmul.f32 %v1642, %v1646
        %v1648 = vadd.f32 %v1647, 1.0
        %v1649 = vmul.f32 %v1648, %v1633
        %vm1650 = vweird.f32 %v797
        %v1651 = vand.u32 %v1634, 3
        %vm1652 = vcmp.lt.s32.totalorder %v1651, 2
        %vm1653 = vcmp.eq.s32.totalorder %v1651, 0
        %v1654 = vxor.u32 %v1649, 2147483648
        %v1655 = vsel %vm1653, %v1641, %v1654
        %vm1656 = vcmp.eq.s32.totalorder %v1651, 2
        %v1657 = vxor.u32 %v1641, 2147483648
        %v1658 = vsel %vm1656, %v1657, %v1649
        %v1659 = vsel %vm1652, %v1655, %v1658
        %v1660 = vsel %vm1650, nan, %v1659
        %v1661 = vand.u32 2147483647, %v798
        %vm1662 = vcmp.le.f32.partialorder %v1661, 0.7853982
        %vm1663 = vcmp.lt.s32.totalorder %v798, 0
        %v1664 = vand.u32 %v798, 2139095040
        %v1665 = vshrl.u32 %v1664, 23
        %v1666 = vsub.s32 %v1665, 127
        %v1667 = vand.u32 2147483647, %v798
        %v1668 = vand.u32 %v1667, 8388607
        %v1669 = vor.u32 %v1668, 8388608
        %v1670 = vsub.s32 0, %v1669
        %v1671 = vadd.s32 %v1666, 1
        %vm1672 = vcmp.gt.s32.totalorder %v1671, 0
        %v1673 = vsel %vm1672, %v1671, 0
        %v1674 = vshrl.u32 %v1673, 5
        %v1675 = vand.u32 %v1673, 31
        %v1676 = vsub.s32 32, %v1675
        %v1677 = vshrl.u32 683565275, %v1676
        %v1678 = vshll.u32 683565275, %v1675
        %v1679 = vshrl.u32 2475754826, %v1676
        %v1680 = vor.u32 %v1678, %v1679
        %v1681 = vshll.u32 2475754826, %v1675
        %v1682 = vshrl.u32 2131351028, %v1676
        %v1683 = vor.u32 %v1681, %v1682
        %v1684 = vshll.u32 2131351028, %v1675
        %v1685 = vshrl.u32 2102212464, %v1676
        %v1686 = vor.u32 %v1684, %v1685
        %v1687 = vshll.u32 2102212464, %v1675
        %v1688 = vshrl.u32 920167782, %v1676
        %v1689 = vor.u32 %v1687, %v1688
        %v1690 = vshll.u32 920167782, %v1675
        %v1691 = vshrl.u32 1326507024, %v1676
        %v1692 = vor.u32 %v1690, %v1691
        %vm1693 = vcmp.lt.s32.totalorder %v1674, 1
        %vm1694 = vcmp.lt.s32.totalorder %v1674, 2
        %vm1695 = vcmp.lt.s32.totalorder %v1674, 3
        %vm1696 = vcmp.lt.s32.totalorder %v1674, 4
        %v1697 = vsel %vm1693, %v1677, %v1680
        %v1698 = vsel %vm1696, %v1686, 2102212464
        %v1699 = vsel %vm1695, %v1683, %v1698
        %v1700 = vsel %vm1694, %v1697, %v1699
        %v1701 = vsel %vm1693, %v1680, %v1683
        %v1702 = vsel %vm1696, %v1689, 920167782
        %v1703 = vsel %vm1695, %v1686, %v1702
        %v1704 = vsel %vm1694, %v1701, %v1703
        %v1705 = vsel %vm1693, %v1683, %v1686
        %v1706 = vsel %vm1696, %v1692, 1326507024
        %v1707 = vsel %vm1695, %v1689, %v1706
        %v1708 = vsel %vm1694, %v1705, %v1707
        %v1709 = vshll.u32 %v1669, 8
        %v1710 = vand.u32 %v1709, 65535
        %v1711 = vshrl.u32 %v1709, 16
        %v1712 = vand.u32 %v1708, 65535
        %v1713 = vshrl.u32 %v1708, 16
        %v1714 = vmul.u32 %v1710, %v1712
        %v1715 = vmul.u32 %v1710, %v1713
        %v1716 = vmul.u32 %v1711, %v1712
        %v1717 = vmul.u32 %v1711, %v1713
        %v1718 = vshll.u32 %v1715, 16
        %v1719 = vshrl.u32 %v1715, 16
        %v1720 = vshll.u32 %v1716, 16
        %v1721 = vshrl.u32 %v1716, 16
        %vm1722 = vc.u32 %v1714, %v1718
        %v1723 = vsel %vm1722, 1, 0
        %v1724 = vadd.s32 %v1714, %v1718
        %v1725 = vadd.s32 %v1717, %v1723
        %vm1726 = vc.u32 %v1724, %v1720
        %v1727 = vsel %vm1726, 1, 0
        %v1728 = vadd.s32 %v1724, %v1720
        %v1729 = vadd.s32 %v1725, %v1727
        %v1730 = vadd.s32 %v1729, %v1719
        %v1731 = vadd.s32 %v1730, %v1721
        %v1732 = vand.u32 %v1709, 65535
        %v1733 = vshrl.u32 %v1709, 16
        %v1734 = vand.u32 %v1704, 65535
        %v1735 = vshrl.u32 %v1704, 16
        %v1736 = vmul.u32 %v1732, %v1734
        %v1737 = vmul.u32 %v1732, %v1735
        %v1738 = vmul.u32 %v1733, %v1734
        %v1739 = vmul.u32 %v1733, %v1735
        %v1740 = vshll.u32 %v1737, 16
        %v1741 = vshrl.u32 %v1737, 16
        %v1742 = vshll.u32 %v1738, 16
        %v1743 = vshrl.u32 %v1738, 16
        %vm1744 = vc.u32 %v1736, %v1740
        %v1745 = vsel %vm1744, 1, 0
        %v1746 = vadd.s32 %v1736, %v1740
        %v1747 = vadd.s32 %v1739, %v1745
        %vm1748 = vc.u32 %v1746, %v1742
        %v1749 = vsel %vm1748, 1, 0
        %v1750 = vadd.s32 %v1746, %v1742
        %v1751 = vadd.s32 %v1747, %v1749
        %v1752 = vadd.s32 %v1751, %v1741
        %v1753 = vadd.s32 %v1752, %v1743
        %v1754 = vmul.u32 %v1709, %v1700
        %v1755 = vadd.s32 %v1731, %v1750
        %vm1756 = vc.u32 %v1731, %v1750
        %v1757 = vadd.s32 %v1753, 1
        %v1758 = vsel %vm1756, %v1757, %v1753
        %v1759 = vadd.s32 %v1754, %v1758
        %v1760 = vadd.s32 %v1759, 536870912
        %v1761 = vshrl.u32 %v1760, 30
        %v1762 = vshll.u32 %v1761, 30
        %v1763 = vsub.s32 %v1759, %v1762
        %vm1764 = vcmp.lt.s32.totalorder %v1763, 0
        %v1765 = vsub.s32 0, %v1763
        %v1766 = vsel %vm1764, %v1765, %v1763
        %v1767 = vclz %v1766
        %v1768 = vsub.s32 %v1767, 2
        %vm1769 = vcmp.gt.s32.totalorder 0, %v1768
        %v1770 = vsel %vm1769, 0, %v1768
        %v1771 = vsub.s32 32, %v1770
        %v1772 = vshll.u32 %v1763, %v1770
        %v1773 = vshrl.u32 %v1755, %v1771
        %v1774 = vor.u32 %v1772, %v1773
        %v1775 = vsub.s32 4294967266, %v1770
        %v1776 = vadd.s32 %v1775, 127
        %v1777 = vshll.u32 %v1776, 23
        %v1778 = vor.u32 4788187, %v1777
        %v1779 = vand.u32 2147483647, %v1778
        %v1781 = vcvt.s32.f32 %v1774
        %v1782 = vmul.f32 %v1781, %v1779
        %v1783 = vxor.u32 %v1782, 2147483648
        %v1784 = vsel %vm1663, %v1783, %v1782
        %v1785 = vsub.s32 4, %v1761
        %v1786 = vsel %vm1663, %v1785, %v1761
        %v1787 = vsel %vm1662, %v798, %v1784
        %v1788 = vsel %vm1662, 0, %v1786
        %v1789 = vmul.f32 %v1787, %v1787
        %v1790 = vmul.f32 %v1789, -0.001358992
        %v1791 = vadd.f32 %v1790, 0.041655596
        %v1792 = vmul.f32 %v1789, %v1791
        %v1793 = vadd.f32 %v1792, -0.4999988
        %v1794 = vmul.f32 %v1789, %v1793
        %v1795 = vadd.f32 1.0, %v1794
        %v1796 = vmul.f32 %v1787, %v1787
        %v1797 = vmul.f32 %v1796, -0.00019511016
        %v1798 = vadd.f32 %v1797, 0.008332121
        %v1799 = vmul.f32 %v1796, %v1798
        %v1800 = vadd.f32 %v1799, -0.16666654
        %v1801 = vmul.f32 %v1796, %v1800
        %v1802 = vadd.f32 %v1801, 1.0
        %v1803 = vmul.f32 %v1802, %v1787
        %vm1804 = vweird.f32 %v798
        %v1805 = vand.u32 %v1788, 3
        %vm1806 = vcmp.lt.s32.totalorder %v1805, 2
        %vm1807 = vcmp.eq.s32.totalorder %v1805, 0
        %v1808 = vxor.u32 %v1803, 2147483648
        %v1809 = vsel %vm1807, %v1795, %v1808
        %vm1810 = vcmp.eq.s32.totalorder %v1805, 2
        %v1811 = vxor.u32 %v1795, 2147483648
        %v1812 = vsel %vm1810, %v1811, %v1803
        %v1813 = vsel %vm1806, %v1809, %v1812
        %v1814 = vsel %vm1804, nan, %v1813
        %v1815 = vand.u32 2147483647, %v799
        %vm1816 = vcmp.le.f32.partialorder %v1815, 0.7853982
        %vm1817 = vcmp.lt.s32.totalorder %v799, 0
        %v1818 = vand.u32 %v799, 2139095040
        %v1819 = vshrl.u32 %v1818, 23
        %v1820 = vsub.s32 %v1819, 127
        %v1821 = vand.u32 2147483647, %v799
        %v1822 = vand.u32 %v1821, 8388607
        %v1823 = vor.u32 %v1822, 8388608
        %v1824 = vsub.s32 0, %v1823
        %v1825 = vadd.s32 %v1820, 1
        %vm1826 = vcmp.gt.s32.totalorder %v1825, 0
        %v1827 = vsel %vm1826, %v1825, 0
        %v1828 = vshrl.u32 %v1827, 5
        %v1829 = vand.u32 %v1827, 31
        %v1830 = vsub.s32 32, %v1829
        %v1831 = vshrl.u32 683565275, %v1830
        %v1832 = vshll.u32 683565275, %v1829
        %v1833 = vshrl.u32 2475754826, %v1830
        %v1834 = vor.u32 %v1832, %v1833
        %v1835 = vshll.u32 2475754826, %v1829
        %v1836 = vshrl.u32 2131351028, %v1830
        %v1837 = vor.u32 %v1835, %v1836
        %v1838 = vshll.u32 2131351028, %v1829
        %v1839 = vshrl.u32 2102212464, %v1830
        %v1840 = vor.u32 %v1838, %v1839
        %v1841 = vshll.u32 2102212464, %v1829
        %v1842 = vshrl.u32 920167782, %v1830
        %v1843 = vor.u32 %v1841, %v1842
        %v1844 = vshll.u32 920167782, %v1829
        %v1845 = vshrl.u32 1326507024, %v1830
        %v1846 = vor.u32 %v1844, %v1845
        %vm1847 = vcmp.lt.s32.totalorder %v1828, 1
        %vm1848 = vcmp.lt.s32.totalorder %v1828, 2
        %vm1849 = vcmp.lt.s32.totalorder %v1828, 3
        %vm1850 = vcmp.lt.s32.totalorder %v1828, 4
        %v1851 = vsel %vm1847, %v1831, %v1834
        %v1852 = vsel %vm1850, %v1840, 2102212464
        %v1853 = vsel %vm1849, %v1837, %v1852
        %v1854 = vsel %vm1848, %v1851, %v1853
        %v1855 = vsel %vm1847, %v1834, %v1837
        %v1856 = vsel %vm1850, %v1843, 920167782
        %v1857 = vsel %vm1849, %v1840, %v1856
        %v1858 = vsel %vm1848, %v1855, %v1857
        %v1859 = vsel %vm1847, %v1837, %v1840
        %v1860 = vsel %vm1850, %v1846, 1326507024
        %v1861 = vsel %vm1849, %v1843, %v1860
        %v1862 = vsel %vm1848, %v1859, %v1861
        %v1863 = vshll.u32 %v1823, 8
        %v1864 = vand.u32 %v1863, 65535
        %v1865 = vshrl.u32 %v1863, 16
        %v1866 = vand.u32 %v1862, 65535
        %v1867 = vshrl.u32 %v1862, 16
        %v1868 = vmul.u32 %v1864, %v1866
        %v1869 = vmul.u32 %v1864, %v1867
        %v1870 = vmul.u32 %v1865, %v1866
        %v1871 = vmul.u32 %v1865, %v1867
        %v1872 = vshll.u32 %v1869, 16
        %v1873 = vshrl.u32 %v1869, 16
        %v1874 = vshll.u32 %v1870, 16
        %v1875 = vshrl.u32 %v1870, 16
        %vm1876 = vc.u32 %v1868, %v1872
        %v1877 = vsel %vm1876, 1, 0
        %v1878 = vadd.s32 %v1868, %v1872
        %v1879 = vadd.s32 %v1871, %v1877
        %vm1880 = vc.u32 %v1878, %v1874
        %v1881 = vsel %vm1880, 1, 0
        %v1882 = vadd.s32 %v1878, %v1874
        %v1883 = vadd.s32 %v1879, %v1881
        %v1884 = vadd.s32 %v1883, %v1873
        %v1885 = vadd.s32 %v1884, %v1875
        %v1886 = vand.u32 %v1863, 65535
        %v1887 = vshrl.u32 %v1863, 16
        %v1888 = vand.u32 %v1858, 65535
        %v1889 = vshrl.u32 %v1858, 16
        %v1890 = vmul.u32 %v1886, %v1888
        %v1891 = vmul.u32 %v1886, %v1889
        %v1892 = vmul.u32 %v1887, %v1888
        %v1893 = vmul.u32 %v1887, %v1889
        %v1894 = vshll.u32 %v1891, 16
        %v1895 = vshrl.u32 %v1891, 16
        %v1896 = vshll.u32 %v1892, 16
        %v1897 = vshrl.u32 %v1892, 16
        %vm1898 = vc.u32 %v1890, %v1894
        %v1899 = vsel %vm1898, 1, 0
        %v1900 = vadd.s32 %v1890, %v1894
        %v1901 = vadd.s32 %v1893, %v1899
        %vm1902 = vc.u32 %v1900, %v1896
        %v1903 = vsel %vm1902, 1, 0
        %v1904 = vadd.s32 %v1900, %v1896
        %v1905 = vadd.s32 %v1901, %v1903
        %v1906 = vadd.s32 %v1905, %v1895
        %v1907 = vadd.s32 %v1906, %v1897
        %v1908 = vmul.u32 %v1863, %v1854
        %v1909 = vadd.s32 %v1885, %v1904
        %vm1910 = vc.u32 %v1885, %v1904
        %v1911 = vadd.s32 %v1907, 1
        %v1912 = vsel %vm1910, %v1911, %v1907
        %v1913 = vadd.s32 %v1908, %v1912
        %v1914 = vadd.s32 %v1913, 536870912
        %v1915 = vshrl.u32 %v1914, 30
        %v1916 = vshll.u32 %v1915, 30
        %v1917 = vsub.s32 %v1913, %v1916
        %vm1918 = vcmp.lt.s32.totalorder %v1917, 0
        %v1919 = vsub.s32 0, %v1917
        %v1920 = vsel %vm1918, %v1919, %v1917
        %v1921 = vclz %v1920
        %v1922 = vsub.s32 %v1921, 2
        %vm1923 = vcmp.gt.s32.totalorder 0, %v1922
        %v1924 = vsel %vm1923, 0, %v1922
        %v1925 = vsub.s32 32, %v1924
        %v1926 = vshll.u32 %v1917, %v1924
        %v1927 = vshrl.u32 %v1909, %v1925
        %v1928 = vor.u32 %v1926, %v1927
        %v1929 = vsub.s32 4294967266, %v1924
        %v1930 = vadd.s32 %v1929, 127
        %v1931 = vshll.u32 %v1930, 23
        %v1932 = vor.u32 4788187, %v1931
        %v1933 = vand.u32 2147483647, %v1932
        %v1935 = vcvt.s32.f32 %v1928
        %v1936 = vmul.f32 %v1935, %v1933
        %v1937 = vxor.u32 %v1936, 2147483648
        %v1938 = vsel %vm1817, %v1937, %v1936
        %v1939 = vsub.s32 4, %v1915
        %v1940 = vsel %vm1817, %v1939, %v1915
        %v1941 = vsel %vm1816, %v799, %v1938
        %v1942 = vsel %vm1816, 0, %v1940
        %v1943 = vmul.f32 %v1941, %v1941
        %v1944 = vmul.f32 %v1943, -0.001358992
        %v1945 = vadd.f32 %v1944, 0.041655596
        %v1946 = vmul.f32 %v1943, %v1945
        %v1947 = vadd.f32 %v1946, -0.4999988
        %v1948 = vmul.f32 %v1943, %v1947
        %v1949 = vadd.f32 1.0, %v1948
        %v1950 = vmul.f32 %v1941, %v1941
        %v1951 = vmul.f32 %v1950, -0.00019511016
        %v1952 = vadd.f32 %v1951, 0.008332121
        %v1953 = vmul.f32 %v1950, %v1952
        %v1954 = vadd.f32 %v1953, -0.16666654
        %v1955 = vmul.f32 %v1950, %v1954
        %v1956 = vadd.f32 %v1955, 1.0
        %v1957 = vmul.f32 %v1956, %v1941
        %vm1958 = vweird.f32 %v799
        %v1959 = vand.u32 %v1942, 3
        %vm1960 = vcmp.lt.s32.totalorder %v1959, 2
        %vm1961 = vcmp.eq.s32.totalorder %v1959, 0
        %v1962 = vxor.u32 %v1957, 2147483648
        %v1963 = vsel %vm1961, %v1949, %v1962
        %vm1964 = vcmp.eq.s32.totalorder %v1959, 2
        %v1965 = vxor.u32 %v1949, 2147483648
        %v1966 = vsel %vm1964, %v1965, %v1957
        %v1967 = vsel %vm1960, %v1963, %v1966
        %v1968 = vsel %vm1958, nan, %v1967
        %v1969 = vand.u32 2147483647, %v800
        %vm1970 = vcmp.le.f32.partialorder %v1969, 0.7853982
        %vm1971 = vcmp.lt.s32.totalorder %v800, 0
        %v1972 = vand.u32 %v800, 2139095040
        %v1973 = vshrl.u32 %v1972, 23
        %v1974 = vsub.s32 %v1973, 127
        %v1975 = vand.u32 2147483647, %v800
        %v1976 = vand.u32 %v1975, 8388607
        %v1977 = vor.u32 %v1976, 8388608
        %v1978 = vsub.s32 0, %v1977
        %v1979 = vadd.s32 %v1974, 1
        %vm1980 = vcmp.gt.s32.totalorder %v1979, 0
        %v1981 = vsel %vm1980, %v1979, 0
        %v1982 = vshrl.u32 %v1981, 5
        %v1983 = vand.u32 %v1981, 31
        %v1984 = vsub.s32 32, %v1983
        %v1985 = vshrl.u32 683565275, %v1984
        %v1986 = vshll.u32 683565275, %v1983
        %v1987 = vshrl.u32 2475754826, %v1984
        %v1988 = vor.u32 %v1986, %v1987
        %v1989 = vshll.u32 2475754826, %v1983
        %v1990 = vshrl.u32 2131351028, %v1984
        %v1991 = vor.u32 %v1989, %v1990
        %v1992 = vshll.u32 2131351028, %v1983
        %v1993 = vshrl.u32 2102212464, %v1984
        %v1994 = vor.u32 %v1992, %v1993
        %v1995 = vshll.u32 2102212464, %v1983
        %v1996 = vshrl.u32 920167782, %v1984
        %v1997 = vor.u32 %v1995, %v1996
        %v1998 = vshll.u32 920167782, %v1983
        %v1999 = vshrl.u32 1326507024, %v1984
        %v2000 = vor.u32 %v1998, %v1999
        %vm2001 = vcmp.lt.s32.totalorder %v1982, 1
        %vm2002 = vcmp.lt.s32.totalorder %v1982, 2
        %vm2003 = vcmp.lt.s32.totalorder %v1982, 3
        %vm2004 = vcmp.lt.s32.totalorder %v1982, 4
        %v2005 = vsel %vm2001, %v1985, %v1988
        %v2006 = vsel %vm2004, %v1994, 2102212464
        %v2007 = vsel %vm2003, %v1991, %v2006
        %v2008 = vsel %vm2002, %v2005, %v2007
        %v2009 = vsel %vm2001, %v1988, %v1991
        %v2010 = vsel %vm2004, %v1997, 920167782
        %v2011 = vsel %vm2003, %v1994, %v2010
        %v2012 = vsel %vm2002, %v2009, %v2011
        %v2013 = vsel %vm2001, %v1991, %v1994
        %v2014 = vsel %vm2004, %v2000, 1326507024
        %v2015 = vsel %vm2003, %v1997, %v2014
        %v2016 = vsel %vm2002, %v2013, %v2015
        %v2017 = vshll.u32 %v1977, 8
        %v2018 = vand.u32 %v2017, 65535
        %v2019 = vshrl.u32 %v2017, 16
        %v2020 = vand.u32 %v2016, 65535
        %v2021 = vshrl.u32 %v2016, 16
        %v2022 = vmul.u32 %v2018, %v2020
        %v2023 = vmul.u32 %v2018, %v2021
        %v2024 = vmul.u32 %v2019, %v2020
        %v2025 = vmul.u32 %v2019, %v2021
        %v2026 = vshll.u32 %v2023, 16
        %v2027 = vshrl.u32 %v2023, 16
        %v2028 = vshll.u32 %v2024, 16
        %v2029 = vshrl.u32 %v2024, 16
        %vm2030 = vc.u32 %v2022, %v2026
        %v2031 = vsel %vm2030, 1, 0
        %v2032 = vadd.s32 %v2022, %v2026
        %v2033 = vadd.s32 %v2025, %v2031
        %vm2034 = vc.u32 %v2032, %v2028
        %v2035 = vsel %vm2034, 1, 0
        %v2036 = vadd.s32 %v2032, %v2028
        %v2037 = vadd.s32 %v2033, %v2035
        %v2038 = vadd.s32 %v2037, %v2027
        %v2039 = vadd.s32 %v2038, %v2029
        %v2040 = vand.u32 %v2017, 65535
        %v2041 = vshrl.u32 %v2017, 16
        %v2042 = vand.u32 %v2012, 65535
        %v2043 = vshrl.u32 %v2012, 16
        %v2044 = vmul.u32 %v2040, %v2042
        %v2045 = vmul.u32 %v2040, %v2043
        %v2046 = vmul.u32 %v2041, %v2042
        %v2047 = vmul.u32 %v2041, %v2043
        %v2048 = vshll.u32 %v2045, 16
        %v2049 = vshrl.u32 %v2045, 16
        %v2050 = vshll.u32 %v2046, 16
        %v2051 = vshrl.u32 %v2046, 16
        %vm2052 = vc.u32 %v2044, %v2048
        %v2053 = vsel %vm2052, 1, 0
        %v2054 = vadd.s32 %v2044, %v2048
        %v2055 = vadd.s32 %v2047, %v2053
        %vm2056 = vc.u32 %v2054, %v2050
        %v2057 = vsel %vm2056, 1, 0
        %v2058 = vadd.s32 %v2054, %v2050
        %v2059 = vadd.s32 %v2055, %v2057
        %v2060 = vadd.s32 %v2059, %v2049
        %v2061 = vadd.s32 %v2060, %v2051
        %v2062 = vmul.u32 %v2017, %v2008
        %v2063 = vadd.s32 %v2039, %v2058
        %vm2064 = vc.u32 %v2039, %v2058
        %v2065 = vadd.s32 %v2061, 1
        %v2066 = vsel %vm2064, %v2065, %v2061
        %v2067 = vadd.s32 %v2062, %v2066
        %v2068 = vadd.s32 %v2067, 536870912
        %v2069 = vshrl.u32 %v2068, 30
        %v2070 = vshll.u32 %v2069, 30
        %v2071 = vsub.s32 %v2067, %v2070
        %vm2072 = vcmp.lt.s32.totalorder %v2071, 0
        %v2073 = vsub.s32 0, %v2071
        %v2074 = vsel %vm2072, %v2073, %v2071
        %v2075 = vclz %v2074
        %v2076 = vsub.s32 %v2075, 2
        %vm2077 = vcmp.gt.s32.totalorder 0, %v2076
        %v2078 = vsel %vm2077, 0, %v2076
        %v2079 = vsub.s32 32, %v2078
        %v2080 = vshll.u32 %v2071, %v2078
        %v2081 = vshrl.u32 %v2063, %v2079
        %v2082 = vor.u32 %v2080, %v2081
        %v2083 = vsub.s32 4294967266, %v2078
        %v2084 = vadd.s32 %v2083, 127
        %v2085 = vshll.u32 %v2084, 23
        %v2086 = vor.u32 4788187, %v2085
        %v2087 = vand.u32 2147483647, %v2086
        %v2089 = vcvt.s32.f32 %v2082
        %v2090 = vmul.f32 %v2089, %v2087
        %v2091 = vxor.u32 %v2090, 2147483648
        %v2092 = vsel %vm1971, %v2091, %v2090
        %v2093 = vsub.s32 4, %v2069
        %v2094 = vsel %vm1971, %v2093, %v2069
        %v2095 = vsel %vm1970, %v800, %v2092
        %v2096 = vsel %vm1970, 0, %v2094
        %v2097 = vmul.f32 %v2095, %v2095
        %v2098 = vmul.f32 %v2097, -0.001358992
        %v2099 = vadd.f32 %v2098, 0.041655596
        %v2100 = vmul.f32 %v2097, %v2099
        %v2101 = vadd.f32 %v2100, -0.4999988
        %v2102 = vmul.f32 %v2097, %v2101
        %v2103 = vadd.f32 1.0, %v2102
        %v2104 = vmul.f32 %v2095, %v2095
        %v2105 = vmul.f32 %v2104, -0.00019511016
        %v2106 = vadd.f32 %v2105, 0.008332121
        %v2107 = vmul.f32 %v2104, %v2106
        %v2108 = vadd.f32 %v2107, -0.16666654
        %v2109 = vmul.f32 %v2104, %v2108
        %v2110 = vadd.f32 %v2109, 1.0
        %v2111 = vmul.f32 %v2110, %v2095
        %vm2112 = vweird.f32 %v800
        %v2113 = vand.u32 %v2096, 3
        %vm2114 = vcmp.lt.s32.totalorder %v2113, 2
        %vm2115 = vcmp.eq.s32.totalorder %v2113, 0
        %v2116 = vxor.u32 %v2111, 2147483648
        %v2117 = vsel %vm2115, %v2103, %v2116
        %vm2118 = vcmp.eq.s32.totalorder %v2113, 2
        %v2119 = vxor.u32 %v2103, 2147483648
        %v2120 = vsel %vm2118, %v2119, %v2111
        %v2121 = vsel %vm2114, %v2117, %v2120
        %v2122 = vsel %vm2112, nan, %v2121
        %v2123 = vand.u32 2147483647, %v801
        %vm2124 = vcmp.le.f32.partialorder %v2123, 0.7853982
        %vm2125 = vcmp.lt.s32.totalorder %v801, 0
        %v2126 = vand.u32 %v801, 2139095040
        %v2127 = vshrl.u32 %v2126, 23
        %v2128 = vsub.s32 %v2127, 127
        %v2129 = vand.u32 2147483647, %v801
        %v2130 = vand.u32 %v2129, 8388607
        %v2131 = vor.u32 %v2130, 8388608
        %v2132 = vsub.s32 0, %v2131
        %v2133 = vadd.s32 %v2128, 1
        %vm2134 = vcmp.gt.s32.totalorder %v2133, 0
        %v2135 = vsel %vm2134, %v2133, 0
        %v2136 = vshrl.u32 %v2135, 5
        %v2137 = vand.u32 %v2135, 31
        %v2138 = vsub.s32 32, %v2137
        %v2139 = vshrl.u32 683565275, %v2138
        %v2140 = vshll.u32 683565275, %v2137
        %v2141 = vshrl.u32 2475754826, %v2138
        %v2142 = vor.u32 %v2140, %v2141
        %v2143 = vshll.u32 2475754826, %v2137
        %v2144 = vshrl.u32 2131351028, %v2138
        %v2145 = vor.u32 %v2143, %v2144
        %v2146 = vshll.u32 2131351028, %v2137
        %v2147 = vshrl.u32 2102212464, %v2138
        %v2148 = vor.u32 %v2146, %v2147
        %v2149 = vshll.u32 2102212464, %v2137
        %v2150 = vshrl.u32 920167782, %v2138
        %v2151 = vor.u32 %v2149, %v2150
        %v2152 = vshll.u32 920167782, %v2137
        %v2153 = vshrl.u32 1326507024, %v2138
        %v2154 = vor.u32 %v2152, %v2153
        %vm2155 = vcmp.lt.s32.totalorder %v2136, 1
        %vm2156 = vcmp.lt.s32.totalorder %v2136, 2
        %vm2157 = vcmp.lt.s32.totalorder %v2136, 3
        %vm2158 = vcmp.lt.s32.totalorder %v2136, 4
        %v2159 = vsel %vm2155, %v2139, %v2142
        %v2160 = vsel %vm2158, %v2148, 2102212464
        %v2161 = vsel %vm2157, %v2145, %v2160
        %v2162 = vsel %vm2156, %v2159, %v2161
        %v2163 = vsel %vm2155, %v2142, %v2145
        %v2164 = vsel %vm2158, %v2151, 920167782
        %v2165 = vsel %vm2157, %v2148, %v2164
        %v2166 = vsel %vm2156, %v2163, %v2165
        %v2167 = vsel %vm2155, %v2145, %v2148
        %v2168 = vsel %vm2158, %v2154, 1326507024
        %v2169 = vsel %vm2157, %v2151, %v2168
        %v2170 = vsel %vm2156, %v2167, %v2169
        %v2171 = vshll.u32 %v2131, 8
        %v2172 = vand.u32 %v2171, 65535
        %v2173 = vshrl.u32 %v2171, 16
        %v2174 = vand.u32 %v2170, 65535
        %v2175 = vshrl.u32 %v2170, 16
        %v2176 = vmul.u32 %v2172, %v2174
        %v2177 = vmul.u32 %v2172, %v2175
        %v2178 = vmul.u32 %v2173, %v2174
        %v2179 = vmul.u32 %v2173, %v2175
        %v2180 = vshll.u32 %v2177, 16
        %v2181 = vshrl.u32 %v2177, 16
        %v2182 = vshll.u32 %v2178, 16
        %v2183 = vshrl.u32 %v2178, 16
        %vm2184 = vc.u32 %v2176, %v2180
        %v2185 = vsel %vm2184, 1, 0
        %v2186 = vadd.s32 %v2176, %v2180
        %v2187 = vadd.s32 %v2179, %v2185
        %vm2188 = vc.u32 %v2186, %v2182
        %v2189 = vsel %vm2188, 1, 0
        %v2190 = vadd.s32 %v2186, %v2182
        %v2191 = vadd.s32 %v2187, %v2189
        %v2192 = vadd.s32 %v2191, %v2181
        %v2193 = vadd.s32 %v2192, %v2183
        %v2194 = vand.u32 %v2171, 65535
        %v2195 = vshrl.u32 %v2171, 16
        %v2196 = vand.u32 %v2166, 65535
        %v2197 = vshrl.u32 %v2166, 16
        %v2198 = vmul.u32 %v2194, %v2196
        %v2199 = vmul.u32 %v2194, %v2197
        %v2200 = vmul.u32 %v2195, %v2196
        %v2201 = vmul.u32 %v2195, %v2197
        %v2202 = vshll.u32 %v2199, 16
        %v2203 = vshrl.u32 %v2199, 16
        %v2204 = vshll.u32 %v2200, 16
        %v2205 = vshrl.u32 %v2200, 16
        %vm2206 = vc.u32 %v2198, %v2202
        %v2207 = vsel %vm2206, 1, 0
        %v2208 = vadd.s32 %v2198, %v2202
        %v2209 = vadd.s32 %v2201, %v2207
        %vm2210 = vc.u32 %v2208, %v2204
        %v2211 = vsel %vm2210, 1, 0
        %v2212 = vadd.s32 %v2208, %v2204
        %v2213 = vadd.s32 %v2209, %v2211
        %v2214 = vadd.s32 %v2213, %v2203
        %v2215 = vadd.s32 %v2214, %v2205
        %v2216 = vmul.u32 %v2171, %v2162
        %v2217 = vadd.s32 %v2193, %v2212
        %vm2218 = vc.u32 %v2193, %v2212
        %v2219 = vadd.s32 %v2215, 1
        %v2220 = vsel %vm2218, %v2219, %v2215
        %v2221 = vadd.s32 %v2216, %v2220
        %v2222 = vadd.s32 %v2221, 536870912
        %v2223 = vshrl.u32 %v2222, 30
        %v2224 = vshll.u32 %v2223, 30
        %v2225 = vsub.s32 %v2221, %v2224
        %vm2226 = vcmp.lt.s32.totalorder %v2225, 0
        %v2227 = vsub.s32 0, %v2225
        %v2228 = vsel %vm2226, %v2227, %v2225
        %v2229 = vclz %v2228
        %v2230 = vsub.s32 %v2229, 2
        %vm2231 = vcmp.gt.s32.totalorder 0, %v2230
        %v2232 = vsel %vm2231, 0, %v2230
        %v2233 = vsub.s32 32, %v2232
        %v2234 = vshll.u32 %v2225, %v2232
        %v2235 = vshrl.u32 %v2217, %v2233
        %v2236 = vor.u32 %v2234, %v2235
        %v2237 = vsub.s32 4294967266, %v2232
        %v2238 = vadd.s32 %v2237, 127
        %v2239 = vshll.u32 %v2238, 23
        %v2240 = vor.u32 4788187, %v2239
        %v2241 = vand.u32 2147483647, %v2240
        %v2243 = vcvt.s32.f32 %v2236
        %v2244 = vmul.f32 %v2243, %v2241
        %v2245 = vxor.u32 %v2244, 2147483648
        %v2246 = vsel %vm2125, %v2245, %v2244
        %v2247 = vsub.s32 4, %v2223
        %v2248 = vsel %vm2125, %v2247, %v2223
        %v2249 = vsel %vm2124, %v801, %v2246
        %v2250 = vsel %vm2124, 0, %v2248
        %v2251 = vmul.f32 %v2249, %v2249
        %v2252 = vmul.f32 %v2251, -0.001358992
        %v2253 = vadd.f32 %v2252, 0.041655596
        %v2254 = vmul.f32 %v2251, %v2253
        %v2255 = vadd.f32 %v2254, -0.4999988
        %v2256 = vmul.f32 %v2251, %v2255
        %v2257 = vadd.f32 1.0, %v2256
        %v2258 = vmul.f32 %v2249, %v2249
        %v2259 = vmul.f32 %v2258, -0.00019511016
        %v2260 = vadd.f32 %v2259, 0.008332121
        %v2261 = vmul.f32 %v2258, %v2260
        %v2262 = vadd.f32 %v2261, -0.16666654
        %v2263 = vmul.f32 %v2258, %v2262
        %v2264 = vadd.f32 %v2263, 1.0
        %v2265 = vmul.f32 %v2264, %v2249
        %vm2266 = vweird.f32 %v801
        %v2267 = vand.u32 %v2250, 3
        %vm2268 = vcmp.lt.s32.totalorder %v2267, 2
        %vm2269 = vcmp.eq.s32.totalorder %v2267, 0
        %v2270 = vxor.u32 %v2265, 2147483648
        %v2271 = vsel %vm2269, %v2257, %v2270
        %vm2272 = vcmp.eq.s32.totalorder %v2267, 2
        %v2273 = vxor.u32 %v2257, 2147483648
        %v2274 = vsel %vm2272, %v2273, %v2265
        %v2275 = vsel %vm2268, %v2271, %v2274
        %v2276 = vsel %vm2266, nan, %v2275
        %v2277 = vand.u32 2147483647, %v802
        %vm2278 = vcmp.le.f32.partialorder %v2277, 0.7853982
        %vm2279 = vcmp.lt.s32.totalorder %v802, 0
        %v2280 = vand.u32 %v802, 2139095040
        %v2281 = vshrl.u32 %v2280, 23
        %v2282 = vsub.s32 %v2281, 127
        %v2283 = vand.u32 2147483647, %v802
        %v2284 = vand.u32 %v2283, 8388607
        %v2285 = vor.u32 %v2284, 8388608
        %v2286 = vsub.s32 0, %v2285
        %v2287 = vadd.s32 %v2282, 1
        %vm2288 = vcmp.gt.s32.totalorder %v2287, 0
        %v2289 = vsel %vm2288, %v2287, 0
        %v2290 = vshrl.u32 %v2289, 5
        %v2291 = vand.u32 %v2289, 31
        %v2292 = vsub.s32 32, %v2291
        %v2293 = vshrl.u32 683565275, %v2292
        %v2294 = vshll.u32 683565275, %v2291
        %v2295 = vshrl.u32 2475754826, %v2292
        %v2296 = vor.u32 %v2294, %v2295
        %v2297 = vshll.u32 2475754826, %v2291
        %v2298 = vshrl.u32 2131351028, %v2292
        %v2299 = vor.u32 %v2297, %v2298
        %v2300 = vshll.u32 2131351028, %v2291
        %v2301 = vshrl.u32 2102212464, %v2292
        %v2302 = vor.u32 %v2300, %v2301
        %v2303 = vshll.u32 2102212464, %v2291
        %v2304 = vshrl.u32 920167782, %v2292
        %v2305 = vor.u32 %v2303, %v2304
        %v2306 = vshll.u32 920167782, %v2291
        %v2307 = vshrl.u32 1326507024, %v2292
        %v2308 = vor.u32 %v2306, %v2307
        %vm2309 = vcmp.lt.s32.totalorder %v2290, 1
        %vm2310 = vcmp.lt.s32.totalorder %v2290, 2
        %vm2311 = vcmp.lt.s32.totalorder %v2290, 3
        %vm2312 = vcmp.lt.s32.totalorder %v2290, 4
        %v2313 = vsel %vm2309, %v2293, %v2296
        %v2314 = vsel %vm2312, %v2302, 2102212464
        %v2315 = vsel %vm2311, %v2299, %v2314
        %v2316 = vsel %vm2310, %v2313, %v2315
        %v2317 = vsel %vm2309, %v2296, %v2299
        %v2318 = vsel %vm2312, %v2305, 920167782
        %v2319 = vsel %vm2311, %v2302, %v2318
        %v2320 = vsel %vm2310, %v2317, %v2319
        %v2321 = vsel %vm2309, %v2299, %v2302
        %v2322 = vsel %vm2312, %v2308, 1326507024
        %v2323 = vsel %vm2311, %v2305, %v2322
        %v2324 = vsel %vm2310, %v2321, %v2323
        %v2325 = vshll.u32 %v2285, 8
        %v2326 = vand.u32 %v2325, 65535
        %v2327 = vshrl.u32 %v2325, 16
        %v2328 = vand.u32 %v2324, 65535
        %v2329 = vshrl.u32 %v2324, 16
        %v2330 = vmul.u32 %v2326, %v2328
        %v2331 = vmul.u32 %v2326, %v2329
        %v2332 = vmul.u32 %v2327, %v2328
        %v2333 = vmul.u32 %v2327, %v2329
        %v2334 = vshll.u32 %v2331, 16
        %v2335 = vshrl.u32 %v2331, 16
        %v2336 = vshll.u32 %v2332, 16
        %v2337 = vshrl.u32 %v2332, 16
        %vm2338 = vc.u32 %v2330, %v2334
        %v2339 = vsel %vm2338, 1, 0
        %v2340 = vadd.s32 %v2330, %v2334
        %v2341 = vadd.s32 %v2333, %v2339
        %vm2342 = vc.u32 %v2340, %v2336
        %v2343 = vsel %vm2342, 1, 0
        %v2344 = vadd.s32 %v2340, %v2336
        %v2345 = vadd.s32 %v2341, %v2343
        %v2346 = vadd.s32 %v2345, %v2335
        %v2347 = vadd.s32 %v2346, %v2337
        %v2348 = vand.u32 %v2325, 65535
        %v2349 = vshrl.u32 %v2325, 16
        %v2350 = vand.u32 %v2320, 65535
        %v2351 = vshrl.u32 %v2320, 16
        %v2352 = vmul.u32 %v2348, %v2350
        %v2353 = vmul.u32 %v2348, %v2351
        %v2354 = vmul.u32 %v2349, %v2350
        %v2355 = vmul.u32 %v2349, %v2351
        %v2356 = vshll.u32 %v2353, 16
        %v2357 = vshrl.u32 %v2353, 16
        %v2358 = vshll.u32 %v2354, 16
        %v2359 = vshrl.u32 %v2354, 16
        %vm2360 = vc.u32 %v2352, %v2356
        %v2361 = vsel %vm2360, 1, 0
        %v2362 = vadd.s32 %v2352, %v2356
        %v2363 = vadd.s32 %v2355, %v2361
        %vm2364 = vc.u32 %v2362, %v2358
        %v2365 = vsel %vm2364, 1, 0
        %v2366 = vadd.s32 %v2362, %v2358
        %v2367 = vadd.s32 %v2363, %v2365
        %v2368 = vadd.s32 %v2367, %v2357
        %v2369 = vadd.s32 %v2368, %v2359
        %v2370 = vmul.u32 %v2325, %v2316
        %v2371 = vadd.s32 %v2347, %v2366
        %vm2372 = vc.u32 %v2347, %v2366
        %v2373 = vadd.s32 %v2369, 1
        %v2374 = vsel %vm2372, %v2373, %v2369
        %v2375 = vadd.s32 %v2370, %v2374
        %v2376 = vadd.s32 %v2375, 536870912
        %v2377 = vshrl.u32 %v2376, 30
        %v2378 = vshll.u32 %v2377, 30
        %v2379 = vsub.s32 %v2375, %v2378
        %vm2380 = vcmp.lt.s32.totalorder %v2379, 0
        %v2381 = vsub.s32 0, %v2379
        %v2382 = vsel %vm2380, %v2381, %v2379
        %v2383 = vclz %v2382
        %v2384 = vsub.s32 %v2383, 2
        %vm2385 = vcmp.gt.s32.totalorder 0, %v2384
        %v2386 = vsel %vm2385, 0, %v2384
        %v2387 = vsub.s32 32, %v2386
        %v2388 = vshll.u32 %v2379, %v2386
        %v2389 = vshrl.u32 %v2371, %v2387
        %v2390 = vor.u32 %v2388, %v2389
        %v2391 = vsub.s32 4294967266, %v2386
        %v2392 = vadd.s32 %v2391, 127
        %v2393 = vshll.u32 %v2392, 23
        %v2394 = vor.u32 4788187, %v2393
        %v2395 = vand.u32 2147483647, %v2394
        %v2397 = vcvt.s32.f32 %v2390
        %v2398 = vmul.f32 %v2397, %v2395
        %v2399 = vxor.u32 %v2398, 2147483648
        %v2400 = vsel %vm2279, %v2399, %v2398
        %v2401 = vsub.s32 4, %v2377
        %v2402 = vsel %vm2279, %v2401, %v2377
        %v2403 = vsel %vm2278, %v802, %v2400
        %v2404 = vsel %vm2278, 0, %v2402
        %v2405 = vmul.f32 %v2403, %v2403
        %v2406 = vmul.f32 %v2405, -0.001358992
        %v2407 = vadd.f32 %v2406, 0.041655596
        %v2408 = vmul.f32 %v2405, %v2407
        %v2409 = vadd.f32 %v2408, -0.4999988
        %v2410 = vmul.f32 %v2405, %v2409
        %v2411 = vadd.f32 1.0, %v2410
        %v2412 = vmul.f32 %v2403, %v2403
        %v2413 = vmul.f32 %v2412, -0.00019511016
        %v2414 = vadd.f32 %v2413, 0.008332121
        %v2415 = vmul.f32 %v2412, %v2414
        %v2416 = vadd.f32 %v2415, -0.16666654
        %v2417 = vmul.f32 %v2412, %v2416
        %v2418 = vadd.f32 %v2417, 1.0
        %v2419 = vmul.f32 %v2418, %v2403
        %vm2420 = vweird.f32 %v802
        %v2421 = vand.u32 %v2404, 3
        %vm2422 = vcmp.lt.s32.totalorder %v2421, 2
        %vm2423 = vcmp.eq.s32.totalorder %v2421, 0
        %v2424 = vxor.u32 %v2419, 2147483648
        %v2425 = vsel %vm2423, %v2411, %v2424
        %vm2426 = vcmp.eq.s32.totalorder %v2421, 2
        %v2427 = vxor.u32 %v2411, 2147483648
        %v2428 = vsel %vm2426, %v2427, %v2419
        %v2429 = vsel %vm2422, %v2425, %v2428
        %v2430 = vsel %vm2420, nan, %v2429
        %v2431 = vand.u32 2147483647, %v803
        %vm2432 = vcmp.le.f32.partialorder %v2431, 0.7853982
        %vm2433 = vcmp.lt.s32.totalorder %v803, 0
        %v2434 = vand.u32 %v803, 2139095040
        %v2435 = vshrl.u32 %v2434, 23
        %v2436 = vsub.s32 %v2435, 127
        %v2437 = vand.u32 2147483647, %v803
        %v2438 = vand.u32 %v2437, 8388607
        %v2439 = vor.u32 %v2438, 8388608
        %v2440 = vsub.s32 0, %v2439
        %v2441 = vadd.s32 %v2436, 1
        %vm2442 = vcmp.gt.s32.totalorder %v2441, 0
        %v2443 = vsel %vm2442, %v2441, 0
        %v2444 = vshrl.u32 %v2443, 5
        %v2445 = vand.u32 %v2443, 31
        %v2446 = vsub.s32 32, %v2445
        %v2447 = vshrl.u32 683565275, %v2446
        %v2448 = vshll.u32 683565275, %v2445
        %v2449 = vshrl.u32 2475754826, %v2446
        %v2450 = vor.u32 %v2448, %v2449
        %v2451 = vshll.u32 2475754826, %v2445
        %v2452 = vshrl.u32 2131351028, %v2446
        %v2453 = vor.u32 %v2451, %v2452
        %v2454 = vshll.u32 2131351028, %v2445
        %v2455 = vshrl.u32 2102212464, %v2446
        %v2456 = vor.u32 %v2454, %v2455
        %v2457 = vshll.u32 2102212464, %v2445
        %v2458 = vshrl.u32 920167782, %v2446
        %v2459 = vor.u32 %v2457, %v2458
        %v2460 = vshll.u32 920167782, %v2445
        %v2461 = vshrl.u32 1326507024, %v2446
        %v2462 = vor.u32 %v2460, %v2461
        %vm2463 = vcmp.lt.s32.totalorder %v2444, 1
        %vm2464 = vcmp.lt.s32.totalorder %v2444, 2
        %vm2465 = vcmp.lt.s32.totalorder %v2444, 3
        %vm2466 = vcmp.lt.s32.totalorder %v2444, 4
        %v2467 = vsel %vm2463, %v2447, %v2450
        %v2468 = vsel %vm2466, %v2456, 2102212464
        %v2469 = vsel %vm2465, %v2453, %v2468
        %v2470 = vsel %vm2464, %v2467, %v2469
        %v2471 = vsel %vm2463, %v2450, %v2453
        %v2472 = vsel %vm2466, %v2459, 920167782
        %v2473 = vsel %vm2465, %v2456, %v2472
        %v2474 = vsel %vm2464, %v2471, %v2473
        %v2475 = vsel %vm2463, %v2453, %v2456
        %v2476 = vsel %vm2466, %v2462, 1326507024
        %v2477 = vsel %vm2465, %v2459, %v2476
        %v2478 = vsel %vm2464, %v2475, %v2477
        %v2479 = vshll.u32 %v2439, 8
        %v2480 = vand.u32 %v2479, 65535
        %v2481 = vshrl.u32 %v2479, 16
        %v2482 = vand.u32 %v2478, 65535
        %v2483 = vshrl.u32 %v2478, 16
        %v2484 = vmul.u32 %v2480, %v2482
        %v2485 = vmul.u32 %v2480, %v2483
        %v2486 = vmul.u32 %v2481, %v2482
        %v2487 = vmul.u32 %v2481, %v2483
        %v2488 = vshll.u32 %v2485, 16
        %v2489 = vshrl.u32 %v2485, 16
        %v2490 = vshll.u32 %v2486, 16
        %v2491 = vshrl.u32 %v2486, 16
        %vm2492 = vc.u32 %v2484, %v2488
        %v2493 = vsel %vm2492, 1, 0
        %v2494 = vadd.s32 %v2484, %v2488
        %v2495 = vadd.s32 %v2487, %v2493
        %vm2496 = vc.u32 %v2494, %v2490
        %v2497 = vsel %vm2496, 1, 0
        %v2498 = vadd.s32 %v2494, %v2490
        %v2499 = vadd.s32 %v2495, %v2497
        %v2500 = vadd.s32 %v2499, %v2489
        %v2501 = vadd.s32 %v2500, %v2491
        %v2502 = vand.u32 %v2479, 65535
        %v2503 = vshrl.u32 %v2479, 16
        %v2504 = vand.u32 %v2474, 65535
        %v2505 = vshrl.u32 %v2474, 16
        %v2506 = vmul.u32 %v2502, %v2504
        %v2507 = vmul.u32 %v2502, %v2505
        %v2508 = vmul.u32 %v2503, %v2504
        %v2509 = vmul.u32 %v2503, %v2505
        %v2510 = vshll.u32 %v2507, 16
        %v2511 = vshrl.u32 %v2507, 16
        %v2512 = vshll.u32 %v2508, 16
        %v2513 = vshrl.u32 %v2508, 16
        %vm2514 = vc.u32 %v2506, %v2510
        %v2515 = vsel %vm2514, 1, 0
        %v2516 = vadd.s32 %v2506, %v2510
        %v2517 = vadd.s32 %v2509, %v2515
        %vm2518 = vc.u32 %v2516, %v2512
        %v2519 = vsel %vm2518, 1, 0
        %v2520 = vadd.s32 %v2516, %v2512
        %v2521 = vadd.s32 %v2517, %v2519
        %v2522 = vadd.s32 %v2521, %v2511
        %v2523 = vadd.s32 %v2522, %v2513
        %v2524 = vmul.u32 %v2479, %v2470
        %v2525 = vadd.s32 %v2501, %v2520
        %vm2526 = vc.u32 %v2501, %v2520
        %v2527 = vadd.s32 %v2523, 1
        %v2528 = vsel %vm2526, %v2527, %v2523
        %v2529 = vadd.s32 %v2524, %v2528
        %v2530 = vadd.s32 %v2529, 536870912
        %v2531 = vshrl.u32 %v2530, 30
        %v2532 = vshll.u32 %v2531, 30
        %v2533 = vsub.s32 %v2529, %v2532
        %vm2534 = vcmp.lt.s32.totalorder %v2533, 0
        %v2535 = vsub.s32 0, %v2533
        %v2536 = vsel %vm2534, %v2535, %v2533
        %v2537 = vclz %v2536
        %v2538 = vsub.s32 %v2537, 2
        %vm2539 = vcmp.gt.s32.totalorder 0, %v2538
        %v2540 = vsel %vm2539, 0, %v2538
        %v2541 = vsub.s32 32, %v2540
        %v2542 = vshll.u32 %v2533, %v2540
        %v2543 = vshrl.u32 %v2525, %v2541
        %v2544 = vor.u32 %v2542, %v2543
        %v2545 = vsub.s32 4294967266, %v2540
        %v2546 = vadd.s32 %v2545, 127
        %v2547 = vshll.u32 %v2546, 23
        %v2548 = vor.u32 4788187, %v2547
        %v2549 = vand.u32 2147483647, %v2548
        %v2551 = vcvt.s32.f32 %v2544
        %v2552 = vmul.f32 %v2551, %v2549
        %v2553 = vxor.u32 %v2552, 2147483648
        %v2554 = vsel %vm2433, %v2553, %v2552
        %v2555 = vsub.s32 4, %v2531
        %v2556 = vsel %vm2433, %v2555, %v2531
        %v2557 = vsel %vm2432, %v803, %v2554
        %v2558 = vsel %vm2432, 0, %v2556
        %v2559 = vmul.f32 %v2557, %v2557
        %v2560 = vmul.f32 %v2559, -0.001358992
        %v2561 = vadd.f32 %v2560, 0.041655596
        %v2562 = vmul.f32 %v2559, %v2561
        %v2563 = vadd.f32 %v2562, -0.4999988
        %v2564 = vmul.f32 %v2559, %v2563
        %v2565 = vadd.f32 1.0, %v2564
        %v2566 = vmul.f32 %v2557, %v2557
        %v2567 = vmul.f32 %v2566, -0.00019511016
        %v2568 = vadd.f32 %v2567, 0.008332121
        %v2569 = vmul.f32 %v2566, %v2568
        %v2570 = vadd.f32 %v2569, -0.16666654
        %v2571 = vmul.f32 %v2566, %v2570
        %v2572 = vadd.f32 %v2571, 1.0
        %v2573 = vmul.f32 %v2572, %v2557
        %vm2574 = vweird.f32 %v803
        %v2575 = vand.u32 %v2558, 3
        %vm2576 = vcmp.lt.s32.totalorder %v2575, 2
        %vm2577 = vcmp.eq.s32.totalorder %v2575, 0
        %v2578 = vxor.u32 %v2573, 2147483648
        %v2579 = vsel %vm2577, %v2565, %v2578
        %vm2580 = vcmp.eq.s32.totalorder %v2575, 2
        %v2581 = vxor.u32 %v2565, 2147483648
        %v2582 = vsel %vm2580, %v2581, %v2573
        %v2583 = vsel %vm2576, %v2579, %v2582
        %v2584 = vsel %vm2574, nan, %v2583
        %v2585 = vand.u32 2147483647, %v804
        %vm2586 = vcmp.le.f32.partialorder %v2585, 0.7853982
        %vm2587 = vcmp.lt.s32.totalorder %v804, 0
        %v2588 = vand.u32 %v804, 2139095040
        %v2589 = vshrl.u32 %v2588, 23
        %v2590 = vsub.s32 %v2589, 127
        %v2591 = vand.u32 2147483647, %v804
        %v2592 = vand.u32 %v2591, 8388607
        %v2593 = vor.u32 %v2592, 8388608
        %v2594 = vsub.s32 0, %v2593
        %v2595 = vadd.s32 %v2590, 1
        %vm2596 = vcmp.gt.s32.totalorder %v2595, 0
        %v2597 = vsel %vm2596, %v2595, 0
        %v2598 = vshrl.u32 %v2597, 5
        %v2599 = vand.u32 %v2597, 31
        %v2600 = vsub.s32 32, %v2599
        %v2601 = vshrl.u32 683565275, %v2600
        %v2602 = vshll.u32 683565275, %v2599
        %v2603 = vshrl.u32 2475754826, %v2600
        %v2604 = vor.u32 %v2602, %v2603
        %v2605 = vshll.u32 2475754826, %v2599
        %v2606 = vshrl.u32 2131351028, %v2600
        %v2607 = vor.u32 %v2605, %v2606
        %v2608 = vshll.u32 2131351028, %v2599
        %v2609 = vshrl.u32 2102212464, %v2600
        %v2610 = vor.u32 %v2608, %v2609
        %v2611 = vshll.u32 2102212464, %v2599
        %v2612 = vshrl.u32 920167782, %v2600
        %v2613 = vor.u32 %v2611, %v2612
        %v2614 = vshll.u32 920167782, %v2599
        %v2615 = vshrl.u32 1326507024, %v2600
        %v2616 = vor.u32 %v2614, %v2615
        %vm2617 = vcmp.lt.s32.totalorder %v2598, 1
        %vm2618 = vcmp.lt.s32.totalorder %v2598, 2
        %vm2619 = vcmp.lt.s32.totalorder %v2598, 3
        %vm2620 = vcmp.lt.s32.totalorder %v2598, 4
        %v2621 = vsel %vm2617, %v2601, %v2604
        %v2622 = vsel %vm2620, %v2610, 2102212464
        %v2623 = vsel %vm2619, %v2607, %v2622
        %v2624 = vsel %vm2618, %v2621, %v2623
        %v2625 = vsel %vm2617, %v2604, %v2607
        %v2626 = vsel %vm2620, %v2613, 920167782
        %v2627 = vsel %vm2619, %v2610, %v2626
        %v2628 = vsel %vm2618, %v2625, %v2627
        %v2629 = vsel %vm2617, %v2607, %v2610
        %v2630 = vsel %vm2620, %v2616, 1326507024
        %v2631 = vsel %vm2619, %v2613, %v2630
        %v2632 = vsel %vm2618, %v2629, %v2631
        %v2633 = vshll.u32 %v2593, 8
        %v2634 = vand.u32 %v2633, 65535
        %v2635 = vshrl.u32 %v2633, 16
        %v2636 = vand.u32 %v2632, 65535
        %v2637 = vshrl.u32 %v2632, 16
        %v2638 = vmul.u32 %v2634, %v2636
        %v2639 = vmul.u32 %v2634, %v2637
        %v2640 = vmul.u32 %v2635, %v2636
        %v2641 = vmul.u32 %v2635, %v2637
        %v2642 = vshll.u32 %v2639, 16
        %v2643 = vshrl.u32 %v2639, 16
        %v2644 = vshll.u32 %v2640, 16
        %v2645 = vshrl.u32 %v2640, 16
        %vm2646 = vc.u32 %v2638, %v2642
        %v2647 = vsel %vm2646, 1, 0
        %v2648 = vadd.s32 %v2638, %v2642
        %v2649 = vadd.s32 %v2641, %v2647
        %vm2650 = vc.u32 %v2648, %v2644
        %v2651 = vsel %vm2650, 1, 0
        %v2652 = vadd.s32 %v2648, %v2644
        %v2653 = vadd.s32 %v2649, %v2651
        %v2654 = vadd.s32 %v2653, %v2643
        %v2655 = vadd.s32 %v2654, %v2645
        %v2656 = vand.u32 %v2633, 65535
        %v2657 = vshrl.u32 %v2633, 16
        %v2658 = vand.u32 %v2628, 65535
        %v2659 = vshrl.u32 %v2628, 16
        %v2660 = vmul.u32 %v2656, %v2658
        %v2661 = vmul.u32 %v2656, %v2659
        %v2662 = vmul.u32 %v2657, %v2658
        %v2663 = vmul.u32 %v2657, %v2659
        %v2664 = vshll.u32 %v2661, 16
        %v2665 = vshrl.u32 %v2661, 16
        %v2666 = vshll.u32 %v2662, 16
        %v2667 = vshrl.u32 %v2662, 16
        %vm2668 = vc.u32 %v2660, %v2664
        %v2669 = vsel %vm2668, 1, 0
        %v2670 = vadd.s32 %v2660, %v2664
        %v2671 = vadd.s32 %v2663, %v2669
        %vm2672 = vc.u32 %v2670, %v2666
        %v2673 = vsel %vm2672, 1, 0
        %v2674 = vadd.s32 %v2670, %v2666
        %v2675 = vadd.s32 %v2671, %v2673
        %v2676 = vadd.s32 %v2675, %v2665
        %v2677 = vadd.s32 %v2676, %v2667
        %v2678 = vmul.u32 %v2633, %v2624
        %v2679 = vadd.s32 %v2655, %v2674
        %vm2680 = vc.u32 %v2655, %v2674
        %v2681 = vadd.s32 %v2677, 1
        %v2682 = vsel %vm2680, %v2681, %v2677
        %v2683 = vadd.s32 %v2678, %v2682
        %v2684 = vadd.s32 %v2683, 536870912
        %v2685 = vshrl.u32 %v2684, 30
        %v2686 = vshll.u32 %v2685, 30
        %v2687 = vsub.s32 %v2683, %v2686
        %vm2688 = vcmp.lt.s32.totalorder %v2687, 0
        %v2689 = vsub.s32 0, %v2687
        %v2690 = vsel %vm2688, %v2689, %v2687
        %v2691 = vclz %v2690
        %v2692 = vsub.s32 %v2691, 2
        %vm2693 = vcmp.gt.s32.totalorder 0, %v2692
        %v2694 = vsel %vm2693, 0, %v2692
        %v2695 = vsub.s32 32, %v2694
        %v2696 = vshll.u32 %v2687, %v2694
        %v2697 = vshrl.u32 %v2679, %v2695
        %v2698 = vor.u32 %v2696, %v2697
        %v2699 = vsub.s32 4294967266, %v2694
        %v2700 = vadd.s32 %v2699, 127
        %v2701 = vshll.u32 %v2700, 23
        %v2702 = vor.u32 4788187, %v2701
        %v2703 = vand.u32 2147483647, %v2702
        %v2705 = vcvt.s32.f32 %v2698
        %v2706 = vmul.f32 %v2705, %v2703
        %v2707 = vxor.u32 %v2706, 2147483648
        %v2708 = vsel %vm2587, %v2707, %v2706
        %v2709 = vsub.s32 4, %v2685
        %v2710 = vsel %vm2587, %v2709, %v2685
        %v2711 = vsel %vm2586, %v804, %v2708
        %v2712 = vsel %vm2586, 0, %v2710
        %v2713 = vmul.f32 %v2711, %v2711
        %v2714 = vmul.f32 %v2713, -0.001358992
        %v2715 = vadd.f32 %v2714, 0.041655596
        %v2716 = vmul.f32 %v2713, %v2715
        %v2717 = vadd.f32 %v2716, -0.4999988
        %v2718 = vmul.f32 %v2713, %v2717
        %v2719 = vadd.f32 1.0, %v2718
        %v2720 = vmul.f32 %v2711, %v2711
        %v2721 = vmul.f32 %v2720, -0.00019511016
        %v2722 = vadd.f32 %v2721, 0.008332121
        %v2723 = vmul.f32 %v2720, %v2722
        %v2724 = vadd.f32 %v2723, -0.16666654
        %v2725 = vmul.f32 %v2720, %v2724
        %v2726 = vadd.f32 %v2725, 1.0
        %v2727 = vmul.f32 %v2726, %v2711
        %vm2728 = vweird.f32 %v804
        %v2729 = vand.u32 %v2712, 3
        %vm2730 = vcmp.lt.s32.totalorder %v2729, 2
        %vm2731 = vcmp.eq.s32.totalorder %v2729, 0
        %v2732 = vxor.u32 %v2727, 2147483648
        %v2733 = vsel %vm2731, %v2719, %v2732
        %vm2734 = vcmp.eq.s32.totalorder %v2729, 2
        %v2735 = vxor.u32 %v2719, 2147483648
        %v2736 = vsel %vm2734, %v2735, %v2727
        %v2737 = vsel %vm2730, %v2733, %v2736
        %v2738 = vsel %vm2728, nan, %v2737
        %v2739 = vand.u32 2147483647, %v805
        %vm2740 = vcmp.le.f32.partialorder %v2739, 0.7853982
        %vm2741 = vcmp.lt.s32.totalorder %v805, 0
        %v2742 = vand.u32 %v805, 2139095040
        %v2743 = vshrl.u32 %v2742, 23
        %v2744 = vsub.s32 %v2743, 127
        %v2745 = vand.u32 2147483647, %v805
        %v2746 = vand.u32 %v2745, 8388607
        %v2747 = vor.u32 %v2746, 8388608
        %v2748 = vsub.s32 0, %v2747
        %v2749 = vadd.s32 %v2744, 1
        %vm2750 = vcmp.gt.s32.totalorder %v2749, 0
        %v2751 = vsel %vm2750, %v2749, 0
        %v2752 = vshrl.u32 %v2751, 5
        %v2753 = vand.u32 %v2751, 31
        %v2754 = vsub.s32 32, %v2753
        %v2755 = vshrl.u32 683565275, %v2754
        %v2756 = vshll.u32 683565275, %v2753
        %v2757 = vshrl.u32 2475754826, %v2754
        %v2758 = vor.u32 %v2756, %v2757
        %v2759 = vshll.u32 2475754826, %v2753
        %v2760 = vshrl.u32 2131351028, %v2754
        %v2761 = vor.u32 %v2759, %v2760
        %v2762 = vshll.u32 2131351028, %v2753
        %v2763 = vshrl.u32 2102212464, %v2754
        %v2764 = vor.u32 %v2762, %v2763
        %v2765 = vshll.u32 2102212464, %v2753
        %v2766 = vshrl.u32 920167782, %v2754
        %v2767 = vor.u32 %v2765, %v2766
        %v2768 = vshll.u32 920167782, %v2753
        %v2769 = vshrl.u32 1326507024, %v2754
        %v2770 = vor.u32 %v2768, %v2769
        %vm2771 = vcmp.lt.s32.totalorder %v2752, 1
        %vm2772 = vcmp.lt.s32.totalorder %v2752, 2
        %vm2773 = vcmp.lt.s32.totalorder %v2752, 3
        %vm2774 = vcmp.lt.s32.totalorder %v2752, 4
        %v2775 = vsel %vm2771, %v2755, %v2758
        %v2776 = vsel %vm2774, %v2764, 2102212464
        %v2777 = vsel %vm2773, %v2761, %v2776
        %v2778 = vsel %vm2772, %v2775, %v2777
        %v2779 = vsel %vm2771, %v2758, %v2761
        %v2780 = vsel %vm2774, %v2767, 920167782
        %v2781 = vsel %vm2773, %v2764, %v2780
        %v2782 = vsel %vm2772, %v2779, %v2781
        %v2783 = vsel %vm2771, %v2761, %v2764
        %v2784 = vsel %vm2774, %v2770, 1326507024
        %v2785 = vsel %vm2773, %v2767, %v2784
        %v2786 = vsel %vm2772, %v2783, %v2785
        %v2787 = vshll.u32 %v2747, 8
        %v2788 = vand.u32 %v2787, 65535
        %v2789 = vshrl.u32 %v2787, 16
        %v2790 = vand.u32 %v2786, 65535
        %v2791 = vshrl.u32 %v2786, 16
        %v2792 = vmul.u32 %v2788, %v2790
        %v2793 = vmul.u32 %v2788, %v2791
        %v2794 = vmul.u32 %v2789, %v2790
        %v2795 = vmul.u32 %v2789, %v2791
        %v2796 = vshll.u32 %v2793, 16
        %v2797 = vshrl.u32 %v2793, 16
        %v2798 = vshll.u32 %v2794, 16
        %v2799 = vshrl.u32 %v2794, 16
        %vm2800 = vc.u32 %v2792, %v2796
        %v2801 = vsel %vm2800, 1, 0
        %v2802 = vadd.s32 %v2792, %v2796
        %v2803 = vadd.s32 %v2795, %v2801
        %vm2804 = vc.u32 %v2802, %v2798
        %v2805 = vsel %vm2804, 1, 0
        %v2806 = vadd.s32 %v2802, %v2798
        %v2807 = vadd.s32 %v2803, %v2805
        %v2808 = vadd.s32 %v2807, %v2797
        %v2809 = vadd.s32 %v2808, %v2799
        %v2810 = vand.u32 %v2787, 65535
        %v2811 = vshrl.u32 %v2787, 16
        %v2812 = vand.u32 %v2782, 65535
        %v2813 = vshrl.u32 %v2782, 16
        %v2814 = vmul.u32 %v2810, %v2812
        %v2815 = vmul.u32 %v2810, %v2813
        %v2816 = vmul.u32 %v2811, %v2812
        %v2817 = vmul.u32 %v2811, %v2813
        %v2818 = vshll.u32 %v2815, 16
        %v2819 = vshrl.u32 %v2815, 16
        %v2820 = vshll.u32 %v2816, 16
        %v2821 = vshrl.u32 %v2816, 16
        %vm2822 = vc.u32 %v2814, %v2818
        %v2823 = vsel %vm2822, 1, 0
        %v2824 = vadd.s32 %v2814, %v2818
        %v2825 = vadd.s32 %v2817, %v2823
        %vm2826 = vc.u32 %v2824, %v2820
        %v2827 = vsel %vm2826, 1, 0
        %v2828 = vadd.s32 %v2824, %v2820
        %v2829 = vadd.s32 %v2825, %v2827
        %v2830 = vadd.s32 %v2829, %v2819
        %v2831 = vadd.s32 %v2830, %v2821
        %v2832 = vmul.u32 %v2787, %v2778
        %v2833 = vadd.s32 %v2809, %v2828
        %vm2834 = vc.u32 %v2809, %v2828
        %v2835 = vadd.s32 %v2831, 1
        %v2836 = vsel %vm2834, %v2835, %v2831
        %v2837 = vadd.s32 %v2832, %v2836
        %v2838 = vadd.s32 %v2837, 536870912
        %v2839 = vshrl.u32 %v2838, 30
        %v2840 = vshll.u32 %v2839, 30
        %v2841 = vsub.s32 %v2837, %v2840
        %vm2842 = vcmp.lt.s32.totalorder %v2841, 0
        %v2843 = vsub.s32 0, %v2841
        %v2844 = vsel %vm2842, %v2843, %v2841
        %v2845 = vclz %v2844
        %v2846 = vsub.s32 %v2845, 2
        %vm2847 = vcmp.gt.s32.totalorder 0, %v2846
        %v2848 = vsel %vm2847, 0, %v2846
        %v2849 = vsub.s32 32, %v2848
        %v2850 = vshll.u32 %v2841, %v2848
        %v2851 = vshrl.u32 %v2833, %v2849
        %v2852 = vor.u32 %v2850, %v2851
        %v2853 = vsub.s32 4294967266, %v2848
        %v2854 = vadd.s32 %v2853, 127
        %v2855 = vshll.u32 %v2854, 23
        %v2856 = vor.u32 4788187, %v2855
        %v2857 = vand.u32 2147483647, %v2856
        %v2859 = vcvt.s32.f32 %v2852
        %v2860 = vmul.f32 %v2859, %v2857
        %v2861 = vxor.u32 %v2860, 2147483648
        %v2862 = vsel %vm2741, %v2861, %v2860
        %v2863 = vsub.s32 4, %v2839
        %v2864 = vsel %vm2741, %v2863, %v2839
        %v2865 = vsel %vm2740, %v805, %v2862
        %v2866 = vsel %vm2740, 0, %v2864
        %v2867 = vmul.f32 %v2865, %v2865
        %v2868 = vmul.f32 %v2867, -0.001358992
        %v2869 = vadd.f32 %v2868, 0.041655596
        %v2870 = vmul.f32 %v2867, %v2869
        %v2871 = vadd.f32 %v2870, -0.4999988
        %v2872 = vmul.f32 %v2867, %v2871
        %v2873 = vadd.f32 1.0, %v2872
        %v2874 = vmul.f32 %v2865, %v2865
        %v2875 = vmul.f32 %v2874, -0.00019511016
        %v2876 = vadd.f32 %v2875, 0.008332121
        %v2877 = vmul.f32 %v2874, %v2876
        %v2878 = vadd.f32 %v2877, -0.16666654
        %v2879 = vmul.f32 %v2874, %v2878
        %v2880 = vadd.f32 %v2879, 1.0
        %v2881 = vmul.f32 %v2880, %v2865
        %vm2882 = vweird.f32 %v805
        %v2883 = vand.u32 %v2866, 3
        %vm2884 = vcmp.lt.s32.totalorder %v2883, 2
        %vm2885 = vcmp.eq.s32.totalorder %v2883, 0
        %v2886 = vxor.u32 %v2881, 2147483648
        %v2887 = vsel %vm2885, %v2873, %v2886
        %vm2888 = vcmp.eq.s32.totalorder %v2883, 2
        %v2889 = vxor.u32 %v2873, 2147483648
        %v2890 = vsel %vm2888, %v2889, %v2881
        %v2891 = vsel %vm2884, %v2887, %v2890
        %v2892 = vsel %vm2882, nan, %v2891
        %v2893 = vand.u32 2147483647, %v806
        %vm2894 = vcmp.le.f32.partialorder %v2893, 0.7853982
        %vm2895 = vcmp.lt.s32.totalorder %v806, 0
        %v2896 = vand.u32 %v806, 2139095040
        %v2897 = vshrl.u32 %v2896, 23
        %v2898 = vsub.s32 %v2897, 127
        %v2899 = vand.u32 2147483647, %v806
        %v2900 = vand.u32 %v2899, 8388607
        %v2901 = vor.u32 %v2900, 8388608
        %v2902 = vsub.s32 0, %v2901
        %v2903 = vadd.s32 %v2898, 1
        %vm2904 = vcmp.gt.s32.totalorder %v2903, 0
        %v2905 = vsel %vm2904, %v2903, 0
        %v2906 = vshrl.u32 %v2905, 5
        %v2907 = vand.u32 %v2905, 31
        %v2908 = vsub.s32 32, %v2907
        %v2909 = vshrl.u32 683565275, %v2908
        %v2910 = vshll.u32 683565275, %v2907
        %v2911 = vshrl.u32 2475754826, %v2908
        %v2912 = vor.u32 %v2910, %v2911
        %v2913 = vshll.u32 2475754826, %v2907
        %v2914 = vshrl.u32 2131351028, %v2908
        %v2915 = vor.u32 %v2913, %v2914
        %v2916 = vshll.u32 2131351028, %v2907
        %v2917 = vshrl.u32 2102212464, %v2908
        %v2918 = vor.u32 %v2916, %v2917
        %v2919 = vshll.u32 2102212464, %v2907
        %v2920 = vshrl.u32 920167782, %v2908
        %v2921 = vor.u32 %v2919, %v2920
        %v2922 = vshll.u32 920167782, %v2907
        %v2923 = vshrl.u32 1326507024, %v2908
        %v2924 = vor.u32 %v2922, %v2923
        %vm2925 = vcmp.lt.s32.totalorder %v2906, 1
        %vm2926 = vcmp.lt.s32.totalorder %v2906, 2
        %vm2927 = vcmp.lt.s32.totalorder %v2906, 3
        %vm2928 = vcmp.lt.s32.totalorder %v2906, 4
        %v2929 = vsel %vm2925, %v2909, %v2912
        %v2930 = vsel %vm2928, %v2918, 2102212464
        %v2931 = vsel %vm2927, %v2915, %v2930
        %v2932 = vsel %vm2926, %v2929, %v2931
        %v2933 = vsel %vm2925, %v2912, %v2915
        %v2934 = vsel %vm2928, %v2921, 920167782
        %v2935 = vsel %vm2927, %v2918, %v2934
        %v2936 = vsel %vm2926, %v2933, %v2935
        %v2937 = vsel %vm2925, %v2915, %v2918
        %v2938 = vsel %vm2928, %v2924, 1326507024
        %v2939 = vsel %vm2927, %v2921, %v2938
        %v2940 = vsel %vm2926, %v2937, %v2939
        %v2941 = vshll.u32 %v2901, 8
        %v2942 = vand.u32 %v2941, 65535
        %v2943 = vshrl.u32 %v2941, 16
        %v2944 = vand.u32 %v2940, 65535
        %v2945 = vshrl.u32 %v2940, 16
        %v2946 = vmul.u32 %v2942, %v2944
        %v2947 = vmul.u32 %v2942, %v2945
        %v2948 = vmul.u32 %v2943, %v2944
        %v2949 = vmul.u32 %v2943, %v2945
        %v2950 = vshll.u32 %v2947, 16
        %v2951 = vshrl.u32 %v2947, 16
        %v2952 = vshll.u32 %v2948, 16
        %v2953 = vshrl.u32 %v2948, 16
        %vm2954 = vc.u32 %v2946, %v2950
        %v2955 = vsel %vm2954, 1, 0
        %v2956 = vadd.s32 %v2946, %v2950
        %v2957 = vadd.s32 %v2949, %v2955
        %vm2958 = vc.u32 %v2956, %v2952
        %v2959 = vsel %vm2958, 1, 0
        %v2960 = vadd.s32 %v2956, %v2952
        %v2961 = vadd.s32 %v2957, %v2959
        %v2962 = vadd.s32 %v2961, %v2951
        %v2963 = vadd.s32 %v2962, %v2953
        %v2964 = vand.u32 %v2941, 65535
        %v2965 = vshrl.u32 %v2941, 16
        %v2966 = vand.u32 %v2936, 65535
        %v2967 = vshrl.u32 %v2936, 16
        %v2968 = vmul.u32 %v2964, %v2966
        %v2969 = vmul.u32 %v2964, %v2967
        %v2970 = vmul.u32 %v2965, %v2966
        %v2971 = vmul.u32 %v2965, %v2967
        %v2972 = vshll.u32 %v2969, 16
        %v2973 = vshrl.u32 %v2969, 16
        %v2974 = vshll.u32 %v2970, 16
        %v2975 = vshrl.u32 %v2970, 16
        %vm2976 = vc.u32 %v2968, %v2972
        %v2977 = vsel %vm2976, 1, 0
        %v2978 = vadd.s32 %v2968, %v2972
        %v2979 = vadd.s32 %v2971, %v2977
        %vm2980 = vc.u32 %v2978, %v2974
        %v2981 = vsel %vm2980, 1, 0
        %v2982 = vadd.s32 %v2978, %v2974
        %v2983 = vadd.s32 %v2979, %v2981
        %v2984 = vadd.s32 %v2983, %v2973
        %v2985 = vadd.s32 %v2984, %v2975
        %v2986 = vmul.u32 %v2941, %v2932
        %v2987 = vadd.s32 %v2963, %v2982
        %vm2988 = vc.u32 %v2963, %v2982
        %v2989 = vadd.s32 %v2985, 1
        %v2990 = vsel %vm2988, %v2989, %v2985
        %v2991 = vadd.s32 %v2986, %v2990
        %v2992 = vadd.s32 %v2991, 536870912
        %v2993 = vshrl.u32 %v2992, 30
        %v2994 = vshll.u32 %v2993, 30
        %v2995 = vsub.s32 %v2991, %v2994
        %vm2996 = vcmp.lt.s32.totalorder %v2995, 0
        %v2997 = vsub.s32 0, %v2995
        %v2998 = vsel %vm2996, %v2997, %v2995
        %v2999 = vclz %v2998
        %v3000 = vsub.s32 %v2999, 2
        %vm3001 = vcmp.gt.s32.totalorder 0, %v3000
        %v3002 = vsel %vm3001, 0, %v3000
        %v3003 = vsub.s32 32, %v3002
        %v3004 = vshll.u32 %v2995, %v3002
        %v3005 = vshrl.u32 %v2987, %v3003
        %v3006 = vor.u32 %v3004, %v3005
        %v3007 = vsub.s32 4294967266, %v3002
        %v3008 = vadd.s32 %v3007, 127
        %v3009 = vshll.u32 %v3008, 23
        %v3010 = vor.u32 4788187, %v3009
        %v3011 = vand.u32 2147483647, %v3010
        %v3013 = vcvt.s32.f32 %v3006
        %v3014 = vmul.f32 %v3013, %v3011
        %v3015 = vxor.u32 %v3014, 2147483648
        %v3016 = vsel %vm2895, %v3015, %v3014
        %v3017 = vsub.s32 4, %v2993
        %v3018 = vsel %vm2895, %v3017, %v2993
        %v3019 = vsel %vm2894, %v806, %v3016
        %v3020 = vsel %vm2894, 0, %v3018
        %v3021 = vmul.f32 %v3019, %v3019
        %v3022 = vmul.f32 %v3021, -0.001358992
        %v3023 = vadd.f32 %v3022, 0.041655596
        %v3024 = vmul.f32 %v3021, %v3023
        %v3025 = vadd.f32 %v3024, -0.4999988
        %v3026 = vmul.f32 %v3021, %v3025
        %v3027 = vadd.f32 1.0, %v3026
        %v3028 = vmul.f32 %v3019, %v3019
        %v3029 = vmul.f32 %v3028, -0.00019511016
        %v3030 = vadd.f32 %v3029, 0.008332121
        %v3031 = vmul.f32 %v3028, %v3030
        %v3032 = vadd.f32 %v3031, -0.16666654
        %v3033 = vmul.f32 %v3028, %v3032
        %v3034 = vadd.f32 %v3033, 1.0
        %v3035 = vmul.f32 %v3034, %v3019
        %vm3036 = vweird.f32 %v806
        %v3037 = vand.u32 %v3020, 3
        %vm3038 = vcmp.lt.s32.totalorder %v3037, 2
        %vm3039 = vcmp.eq.s32.totalorder %v3037, 0
        %v3040 = vxor.u32 %v3035, 2147483648
        %v3041 = vsel %vm3039, %v3027, %v3040
        %vm3042 = vcmp.eq.s32.totalorder %v3037, 2
        %v3043 = vxor.u32 %v3027, 2147483648
        %v3044 = vsel %vm3042, %v3043, %v3035
        %v3045 = vsel %vm3038, %v3041, %v3044
        %v3046 = vsel %vm3036, nan, %v3045
        %v3047 = vand.u32 2147483647, %v807
        %vm3048 = vcmp.le.f32.partialorder %v3047, 0.7853982
        %vm3049 = vcmp.lt.s32.totalorder %v807, 0
        %v3050 = vand.u32 %v807, 2139095040
        %v3051 = vshrl.u32 %v3050, 23
        %v3052 = vsub.s32 %v3051, 127
        %v3053 = vand.u32 2147483647, %v807
        %v3054 = vand.u32 %v3053, 8388607
        %v3055 = vor.u32 %v3054, 8388608
        %v3056 = vsub.s32 0, %v3055
        %v3057 = vadd.s32 %v3052, 1
        %vm3058 = vcmp.gt.s32.totalorder %v3057, 0
        %v3059 = vsel %vm3058, %v3057, 0
        %v3060 = vshrl.u32 %v3059, 5
        %v3061 = vand.u32 %v3059, 31
        %v3062 = vsub.s32 32, %v3061
        %v3063 = vshrl.u32 683565275, %v3062
        %v3064 = vshll.u32 683565275, %v3061
        %v3065 = vshrl.u32 2475754826, %v3062
        %v3066 = vor.u32 %v3064, %v3065
        %v3067 = vshll.u32 2475754826, %v3061
        %v3068 = vshrl.u32 2131351028, %v3062
        %v3069 = vor.u32 %v3067, %v3068
        %v3070 = vshll.u32 2131351028, %v3061
        %v3071 = vshrl.u32 2102212464, %v3062
        %v3072 = vor.u32 %v3070, %v3071
        %v3073 = vshll.u32 2102212464, %v3061
        %v3074 = vshrl.u32 920167782, %v3062
        %v3075 = vor.u32 %v3073, %v3074
        %v3076 = vshll.u32 920167782, %v3061
        %v3077 = vshrl.u32 1326507024, %v3062
        %v3078 = vor.u32 %v3076, %v3077
        %vm3079 = vcmp.lt.s32.totalorder %v3060, 1
        %vm3080 = vcmp.lt.s32.totalorder %v3060, 2
        %vm3081 = vcmp.lt.s32.totalorder %v3060, 3
        %vm3082 = vcmp.lt.s32.totalorder %v3060, 4
        %v3083 = vsel %vm3079, %v3063, %v3066
        %v3084 = vsel %vm3082, %v3072, 2102212464
        %v3085 = vsel %vm3081, %v3069, %v3084
        %v3086 = vsel %vm3080, %v3083, %v3085
        %v3087 = vsel %vm3079, %v3066, %v3069
        %v3088 = vsel %vm3082, %v3075, 920167782
        %v3089 = vsel %vm3081, %v3072, %v3088
        %v3090 = vsel %vm3080, %v3087, %v3089
        %v3091 = vsel %vm3079, %v3069, %v3072
        %v3092 = vsel %vm3082, %v3078, 1326507024
        %v3093 = vsel %vm3081, %v3075, %v3092
        %v3094 = vsel %vm3080, %v3091, %v3093
        %v3095 = vshll.u32 %v3055, 8
        %v3096 = vand.u32 %v3095, 65535
        %v3097 = vshrl.u32 %v3095, 16
        %v3098 = vand.u32 %v3094, 65535
        %v3099 = vshrl.u32 %v3094, 16
        %v3100 = vmul.u32 %v3096, %v3098
        %v3101 = vmul.u32 %v3096, %v3099
        %v3102 = vmul.u32 %v3097, %v3098
        %v3103 = vmul.u32 %v3097, %v3099
        %v3104 = vshll.u32 %v3101, 16
        %v3105 = vshrl.u32 %v3101, 16
        %v3106 = vshll.u32 %v3102, 16
        %v3107 = vshrl.u32 %v3102, 16
        %vm3108 = vc.u32 %v3100, %v3104
        %v3109 = vsel %vm3108, 1, 0
        %v3110 = vadd.s32 %v3100, %v3104
        %v3111 = vadd.s32 %v3103, %v3109
        %vm3112 = vc.u32 %v3110, %v3106
        %v3113 = vsel %vm3112, 1, 0
        %v3114 = vadd.s32 %v3110, %v3106
        %v3115 = vadd.s32 %v3111, %v3113
        %v3116 = vadd.s32 %v3115, %v3105
        %v3117 = vadd.s32 %v3116, %v3107
        %v3118 = vand.u32 %v3095, 65535
        %v3119 = vshrl.u32 %v3095, 16
        %v3120 = vand.u32 %v3090, 65535
        %v3121 = vshrl.u32 %v3090, 16
        %v3122 = vmul.u32 %v3118, %v3120
        %v3123 = vmul.u32 %v3118, %v3121
        %v3124 = vmul.u32 %v3119, %v3120
        %v3125 = vmul.u32 %v3119, %v3121
        %v3126 = vshll.u32 %v3123, 16
        %v3127 = vshrl.u32 %v3123, 16
        %v3128 = vshll.u32 %v3124, 16
        %v3129 = vshrl.u32 %v3124, 16
        %vm3130 = vc.u32 %v3122, %v3126
        %v3131 = vsel %vm3130, 1, 0
        %v3132 = vadd.s32 %v3122, %v3126
        %v3133 = vadd.s32 %v3125, %v3131
        %vm3134 = vc.u32 %v3132, %v3128
        %v3135 = vsel %vm3134, 1, 0
        %v3136 = vadd.s32 %v3132, %v3128
        %v3137 = vadd.s32 %v3133, %v3135
        %v3138 = vadd.s32 %v3137, %v3127
        %v3139 = vadd.s32 %v3138, %v3129
        %v3140 = vmul.u32 %v3095, %v3086
        %v3141 = vadd.s32 %v3117, %v3136
        %vm3142 = vc.u32 %v3117, %v3136
        %v3143 = vadd.s32 %v3139, 1
        %v3144 = vsel %vm3142, %v3143, %v3139
        %v3145 = vadd.s32 %v3140, %v3144
        %v3146 = vadd.s32 %v3145, 536870912
        %v3147 = vshrl.u32 %v3146, 30
        %v3148 = vshll.u32 %v3147, 30
        %v3149 = vsub.s32 %v3145, %v3148
        %vm3150 = vcmp.lt.s32.totalorder %v3149, 0
        %v3151 = vsub.s32 0, %v3149
        %v3152 = vsel %vm3150, %v3151, %v3149
        %v3153 = vclz %v3152
        %v3154 = vsub.s32 %v3153, 2
        %vm3155 = vcmp.gt.s32.totalorder 0, %v3154
        %v3156 = vsel %vm3155, 0, %v3154
        %v3157 = vsub.s32 32, %v3156
        %v3158 = vshll.u32 %v3149, %v3156
        %v3159 = vshrl.u32 %v3141, %v3157
        %v3160 = vor.u32 %v3158, %v3159
        %v3161 = vsub.s32 4294967266, %v3156
        %v3162 = vadd.s32 %v3161, 127
        %v3163 = vshll.u32 %v3162, 23
        %v3164 = vor.u32 4788187, %v3163
        %v3165 = vand.u32 2147483647, %v3164
        %v3167 = vcvt.s32.f32 %v3160
        %v3168 = vmul.f32 %v3167, %v3165
        %v3169 = vxor.u32 %v3168, 2147483648
        %v3170 = vsel %vm3049, %v3169, %v3168
        %v3171 = vsub.s32 4, %v3147
        %v3172 = vsel %vm3049, %v3171, %v3147
        %v3173 = vsel %vm3048, %v807, %v3170
        %v3174 = vsel %vm3048, 0, %v3172
        %v3175 = vmul.f32 %v3173, %v3173
        %v3176 = vmul.f32 %v3175, -0.001358992
        %v3177 = vadd.f32 %v3176, 0.041655596
        %v3178 = vmul.f32 %v3175, %v3177
        %v3179 = vadd.f32 %v3178, -0.4999988
        %v3180 = vmul.f32 %v3175, %v3179
        %v3181 = vadd.f32 1.0, %v3180
        %v3182 = vmul.f32 %v3173, %v3173
        %v3183 = vmul.f32 %v3182, -0.00019511016
        %v3184 = vadd.f32 %v3183, 0.008332121
        %v3185 = vmul.f32 %v3182, %v3184
        %v3186 = vadd.f32 %v3185, -0.16666654
        %v3187 = vmul.f32 %v3182, %v3186
        %v3188 = vadd.f32 %v3187, 1.0
        %v3189 = vmul.f32 %v3188, %v3173
        %vm3190 = vweird.f32 %v807
        %v3191 = vand.u32 %v3174, 3
        %vm3192 = vcmp.lt.s32.totalorder %v3191, 2
        %vm3193 = vcmp.eq.s32.totalorder %v3191, 0
        %v3194 = vxor.u32 %v3189, 2147483648
        %v3195 = vsel %vm3193, %v3181, %v3194
        %vm3196 = vcmp.eq.s32.totalorder %v3191, 2
        %v3197 = vxor.u32 %v3181, 2147483648
        %v3198 = vsel %vm3196, %v3197, %v3189
        %v3199 = vsel %vm3192, %v3195, %v3198
        %v3200 = vsel %vm3190, nan, %v3199
        %v3201 = vand.u32 2147483647, %v808
        %vm3202 = vcmp.le.f32.partialorder %v3201, 0.7853982
        %vm3203 = vcmp.lt.s32.totalorder %v808, 0
        %v3204 = vand.u32 %v808, 2139095040
        %v3205 = vshrl.u32 %v3204, 23
        %v3206 = vsub.s32 %v3205, 127
        %v3207 = vand.u32 2147483647, %v808
        %v3208 = vand.u32 %v3207, 8388607
        %v3209 = vor.u32 %v3208, 8388608
        %v3210 = vsub.s32 0, %v3209
        %v3211 = vadd.s32 %v3206, 1
        %vm3212 = vcmp.gt.s32.totalorder %v3211, 0
        %v3213 = vsel %vm3212, %v3211, 0
        %v3214 = vshrl.u32 %v3213, 5
        %v3215 = vand.u32 %v3213, 31
        %v3216 = vsub.s32 32, %v3215
        %v3217 = vshrl.u32 683565275, %v3216
        %v3218 = vshll.u32 683565275, %v3215
        %v3219 = vshrl.u32 2475754826, %v3216
        %v3220 = vor.u32 %v3218, %v3219
        %v3221 = vshll.u32 2475754826, %v3215
        %v3222 = vshrl.u32 2131351028, %v3216
        %v3223 = vor.u32 %v3221, %v3222
        %v3224 = vshll.u32 2131351028, %v3215
        %v3225 = vshrl.u32 2102212464, %v3216
        %v3226 = vor.u32 %v3224, %v3225
        %v3227 = vshll.u32 2102212464, %v3215
        %v3228 = vshrl.u32 920167782, %v3216
        %v3229 = vor.u32 %v3227, %v3228
        %v3230 = vshll.u32 920167782, %v3215
        %v3231 = vshrl.u32 1326507024, %v3216
        %v3232 = vor.u32 %v3230, %v3231
        %vm3233 = vcmp.lt.s32.totalorder %v3214, 1
        %vm3234 = vcmp.lt.s32.totalorder %v3214, 2
        %vm3235 = vcmp.lt.s32.totalorder %v3214, 3
        %vm3236 = vcmp.lt.s32.totalorder %v3214, 4
        %v3237 = vsel %vm3233, %v3217, %v3220
        %v3238 = vsel %vm3236, %v3226, 2102212464
        %v3239 = vsel %vm3235, %v3223, %v3238
        %v3240 = vsel %vm3234, %v3237, %v3239
        %v3241 = vsel %vm3233, %v3220, %v3223
        %v3242 = vsel %vm3236, %v3229, 920167782
        %v3243 = vsel %vm3235, %v3226, %v3242
        %v3244 = vsel %vm3234, %v3241, %v3243
        %v3245 = vsel %vm3233, %v3223, %v3226
        %v3246 = vsel %vm3236, %v3232, 1326507024
        %v3247 = vsel %vm3235, %v3229, %v3246
        %v3248 = vsel %vm3234, %v3245, %v3247
        %v3249 = vshll.u32 %v3209, 8
        %v3250 = vand.u32 %v3249, 65535
        %v3251 = vshrl.u32 %v3249, 16
        %v3252 = vand.u32 %v3248, 65535
        %v3253 = vshrl.u32 %v3248, 16
        %v3254 = vmul.u32 %v3250, %v3252
        %v3255 = vmul.u32 %v3250, %v3253
        %v3256 = vmul.u32 %v3251, %v3252
        %v3257 = vmul.u32 %v3251, %v3253
        %v3258 = vshll.u32 %v3255, 16
        %v3259 = vshrl.u32 %v3255, 16
        %v3260 = vshll.u32 %v3256, 16
        %v3261 = vshrl.u32 %v3256, 16
        %vm3262 = vc.u32 %v3254, %v3258
        %v3263 = vsel %vm3262, 1, 0
        %v3264 = vadd.s32 %v3254, %v3258
        %v3265 = vadd.s32 %v3257, %v3263
        %vm3266 = vc.u32 %v3264, %v3260
        %v3267 = vsel %vm3266, 1, 0
        %v3268 = vadd.s32 %v3264, %v3260
        %v3269 = vadd.s32 %v3265, %v3267
        %v3270 = vadd.s32 %v3269, %v3259
        %v3271 = vadd.s32 %v3270, %v3261
        %v3272 = vand.u32 %v3249, 65535
        %v3273 = vshrl.u32 %v3249, 16
        %v3274 = vand.u32 %v3244, 65535
        %v3275 = vshrl.u32 %v3244, 16
        %v3276 = vmul.u32 %v3272, %v3274
        %v3277 = vmul.u32 %v3272, %v3275
        %v3278 = vmul.u32 %v3273, %v3274
        %v3279 = vmul.u32 %v3273, %v3275
        %v3280 = vshll.u32 %v3277, 16
        %v3281 = vshrl.u32 %v3277, 16
        %v3282 = vshll.u32 %v3278, 16
        %v3283 = vshrl.u32 %v3278, 16
        %vm3284 = vc.u32 %v3276, %v3280
        %v3285 = vsel %vm3284, 1, 0
        %v3286 = vadd.s32 %v3276, %v3280
        %v3287 = vadd.s32 %v3279, %v3285
        %vm3288 = vc.u32 %v3286, %v3282
        %v3289 = vsel %vm3288, 1, 0
        %v3290 = vadd.s32 %v3286, %v3282
        %v3291 = vadd.s32 %v3287, %v3289
        %v3292 = vadd.s32 %v3291, %v3281
        %v3293 = vadd.s32 %v3292, %v3283
        %v3294 = vmul.u32 %v3249, %v3240
        %v3295 = vadd.s32 %v3271, %v3290
        %vm3296 = vc.u32 %v3271, %v3290
        %v3297 = vadd.s32 %v3293, 1
        %v3298 = vsel %vm3296, %v3297, %v3293
        %v3299 = vadd.s32 %v3294, %v3298
        %v3300 = vadd.s32 %v3299, 536870912
        %v3301 = vshrl.u32 %v3300, 30
        %v3302 = vshll.u32 %v3301, 30
        %v3303 = vsub.s32 %v3299, %v3302
        %vm3304 = vcmp.lt.s32.totalorder %v3303, 0
        %v3305 = vsub.s32 0, %v3303
        %v3306 = vsel %vm3304, %v3305, %v3303
        %v3307 = vclz %v3306
        %v3308 = vsub.s32 %v3307, 2
        %vm3309 = vcmp.gt.s32.totalorder 0, %v3308
        %v3310 = vsel %vm3309, 0, %v3308
        %v3311 = vsub.s32 32, %v3310
        %v3312 = vshll.u32 %v3303, %v3310
        %v3313 = vshrl.u32 %v3295, %v3311
        %v3314 = vor.u32 %v3312, %v3313
        %v3315 = vsub.s32 4294967266, %v3310
        %v3316 = vadd.s32 %v3315, 127
        %v3317 = vshll.u32 %v3316, 23
        %v3318 = vor.u32 4788187, %v3317
        %v3319 = vand.u32 2147483647, %v3318
        %v3321 = vcvt.s32.f32 %v3314
        %v3322 = vmul.f32 %v3321, %v3319
        %v3323 = vxor.u32 %v3322, 2147483648
        %v3324 = vsel %vm3203, %v3323, %v3322
        %v3325 = vsub.s32 4, %v3301
        %v3326 = vsel %vm3203, %v3325, %v3301
        %v3327 = vsel %vm3202, %v808, %v3324
        %v3328 = vsel %vm3202, 0, %v3326
        %v3329 = vmul.f32 %v3327, %v3327
        %v3330 = vmul.f32 %v3329, -0.001358992
        %v3331 = vadd.f32 %v3330, 0.041655596
        %v3332 = vmul.f32 %v3329, %v3331
        %v3333 = vadd.f32 %v3332, -0.4999988
        %v3334 = vmul.f32 %v3329, %v3333
        %v3335 = vadd.f32 1.0, %v3334
        %v3336 = vmul.f32 %v3327, %v3327
        %v3337 = vmul.f32 %v3336, -0.00019511016
        %v3338 = vadd.f32 %v3337, 0.008332121
        %v3339 = vmul.f32 %v3336, %v3338
        %v3340 = vadd.f32 %v3339, -0.16666654
        %v3341 = vmul.f32 %v3336, %v3340
        %v3342 = vadd.f32 %v3341, 1.0
        %v3343 = vmul.f32 %v3342, %v3327
        %vm3344 = vweird.f32 %v808
        %v3345 = vand.u32 %v3328, 3
        %vm3346 = vcmp.lt.s32.totalorder %v3345, 2
        %vm3347 = vcmp.eq.s32.totalorder %v3345, 0
        %v3348 = vxor.u32 %v3343, 2147483648
        %v3349 = vsel %vm3347, %v3335, %v3348
        %vm3350 = vcmp.eq.s32.totalorder %v3345, 2
        %v3351 = vxor.u32 %v3335, 2147483648
        %v3352 = vsel %vm3350, %v3351, %v3343
        %v3353 = vsel %vm3346, %v3349, %v3352
        %v3354 = vsel %vm3344, nan, %v3353
        %v3355 = vand.u32 2147483647, %v875
        %vm3356 = vcmp.le.f32.partialorder %v3355, 0.7853982
        %vm3357 = vcmp.lt.s32.totalorder %v875, 0
        %v3358 = vand.u32 %v875, 2139095040
        %v3359 = vshrl.u32 %v3358, 23
        %v3360 = vsub.s32 %v3359, 127
        %v3361 = vand.u32 2147483647, %v875
        %v3362 = vand.u32 %v3361, 8388607
        %v3363 = vor.u32 %v3362, 8388608
        %v3364 = vsub.s32 0, %v3363
        %v3365 = vadd.s32 %v3360, 1
        %vm3366 = vcmp.gt.s32.totalorder %v3365, 0
        %v3367 = vsel %vm3366, %v3365, 0
        %v3368 = vshrl.u32 %v3367, 5
        %v3369 = vand.u32 %v3367, 31
        %v3370 = vsub.s32 32, %v3369
        %v3371 = vshrl.u32 683565275, %v3370
        %v3372 = vshll.u32 683565275, %v3369
        %v3373 = vshrl.u32 2475754826, %v3370
        %v3374 = vor.u32 %v3372, %v3373
        %v3375 = vshll.u32 2475754826, %v3369
        %v3376 = vshrl.u32 2131351028, %v3370
        %v3377 = vor.u32 %v3375, %v3376
        %v3378 = vshll.u32 2131351028, %v3369
        %v3379 = vshrl.u32 2102212464, %v3370
        %v3380 = vor.u32 %v3378, %v3379
        %v3381 = vshll.u32 2102212464, %v3369
        %v3382 = vshrl.u32 920167782, %v3370
        %v3383 = vor.u32 %v3381, %v3382
        %v3384 = vshll.u32 920167782, %v3369
        %v3385 = vshrl.u32 1326507024, %v3370
        %v3386 = vor.u32 %v3384, %v3385
        %vm3387 = vcmp.lt.s32.totalorder %v3368, 1
        %vm3388 = vcmp.lt.s32.totalorder %v3368, 2
        %vm3389 = vcmp.lt.s32.totalorder %v3368, 3
        %vm3390 = vcmp.lt.s32.totalorder %v3368, 4
        %v3391 = vsel %vm3387, %v3371, %v3374
        %v3392 = vsel %vm3390, %v3380, 2102212464
        %v3393 = vsel %vm3389, %v3377, %v3392
        %v3394 = vsel %vm3388, %v3391, %v3393
        %v3395 = vsel %vm3387, %v3374, %v3377
        %v3396 = vsel %vm3390, %v3383, 920167782
        %v3397 = vsel %vm3389, %v3380, %v3396
        %v3398 = vsel %vm3388, %v3395, %v3397
        %v3399 = vsel %vm3387, %v3377, %v3380
        %v3400 = vsel %vm3390, %v3386, 1326507024
        %v3401 = vsel %vm3389, %v3383, %v3400
        %v3402 = vsel %vm3388, %v3399, %v3401
        %v3403 = vshll.u32 %v3363, 8
        %v3404 = vand.u32 %v3403, 65535
        %v3405 = vshrl.u32 %v3403, 16
        %v3406 = vand.u32 %v3402, 65535
        %v3407 = vshrl.u32 %v3402, 16
        %v3408 = vmul.u32 %v3404, %v3406
        %v3409 = vmul.u32 %v3404, %v3407
        %v3410 = vmul.u32 %v3405, %v3406
        %v3411 = vmul.u32 %v3405, %v3407
        %v3412 = vshll.u32 %v3409, 16
        %v3413 = vshrl.u32 %v3409, 16
        %v3414 = vshll.u32 %v3410, 16
        %v3415 = vshrl.u32 %v3410, 16
        %vm3416 = vc.u32 %v3408, %v3412
        %v3417 = vsel %vm3416, 1, 0
        %v3418 = vadd.s32 %v3408, %v3412
        %v3419 = vadd.s32 %v3411, %v3417
        %vm3420 = vc.u32 %v3418, %v3414
        %v3421 = vsel %vm3420, 1, 0
        %v3422 = vadd.s32 %v3418, %v3414
        %v3423 = vadd.s32 %v3419, %v3421
        %v3424 = vadd.s32 %v3423, %v3413
        %v3425 = vadd.s32 %v3424, %v3415
        %v3426 = vand.u32 %v3403, 65535
        %v3427 = vshrl.u32 %v3403, 16
        %v3428 = vand.u32 %v3398, 65535
        %v3429 = vshrl.u32 %v3398, 16
        %v3430 = vmul.u32 %v3426, %v3428
        %v3431 = vmul.u32 %v3426, %v3429
        %v3432 = vmul.u32 %v3427, %v3428
        %v3433 = vmul.u32 %v3427, %v3429
        %v3434 = vshll.u32 %v3431, 16
        %v3435 = vshrl.u32 %v3431, 16
        %v3436 = vshll.u32 %v3432, 16
        %v3437 = vshrl.u32 %v3432, 16
        %vm3438 = vc.u32 %v3430, %v3434
        %v3439 = vsel %vm3438, 1, 0
        %v3440 = vadd.s32 %v3430, %v3434
        %v3441 = vadd.s32 %v3433, %v3439
        %vm3442 = vc.u32 %v3440, %v3436
        %v3443 = vsel %vm3442, 1, 0
        %v3444 = vadd.s32 %v3440, %v3436
        %v3445 = vadd.s32 %v3441, %v3443
        %v3446 = vadd.s32 %v3445, %v3435
        %v3447 = vadd.s32 %v3446, %v3437
        %v3448 = vmul.u32 %v3403, %v3394
        %v3449 = vadd.s32 %v3425, %v3444
        %vm3450 = vc.u32 %v3425, %v3444
        %v3451 = vadd.s32 %v3447, 1
        %v3452 = vsel %vm3450, %v3451, %v3447
        %v3453 = vadd.s32 %v3448, %v3452
        %v3454 = vadd.s32 %v3453, 536870912
        %v3455 = vshrl.u32 %v3454, 30
        %v3456 = vshll.u32 %v3455, 30
        %v3457 = vsub.s32 %v3453, %v3456
        %vm3458 = vcmp.lt.s32.totalorder %v3457, 0
        %v3459 = vsub.s32 0, %v3457
        %v3460 = vsel %vm3458, %v3459, %v3457
        %v3461 = vclz %v3460
        %v3462 = vsub.s32 %v3461, 2
        %vm3463 = vcmp.gt.s32.totalorder 0, %v3462
        %v3464 = vsel %vm3463, 0, %v3462
        %v3465 = vsub.s32 32, %v3464
        %v3466 = vshll.u32 %v3457, %v3464
        %v3467 = vshrl.u32 %v3449, %v3465
        %v3468 = vor.u32 %v3466, %v3467
        %v3469 = vsub.s32 4294967266, %v3464
        %v3470 = vadd.s32 %v3469, 127
        %v3471 = vshll.u32 %v3470, 23
        %v3472 = vor.u32 4788187, %v3471
        %v3473 = vand.u32 2147483647, %v3472
        %v3475 = vcvt.s32.f32 %v3468
        %v3476 = vmul.f32 %v3475, %v3473
        %v3477 = vxor.u32 %v3476, 2147483648
        %v3478 = vsel %vm3357, %v3477, %v3476
        %v3479 = vsub.s32 4, %v3455
        %v3480 = vsel %vm3357, %v3479, %v3455
        %v3481 = vsel %vm3356, %v875, %v3478
        %v3482 = vsel %vm3356, 0, %v3480
        %v3483 = vmul.f32 %v3481, %v3481
        %v3484 = vmul.f32 %v3483, -0.001358992
        %v3485 = vadd.f32 %v3484, 0.041655596
        %v3486 = vmul.f32 %v3483, %v3485
        %v3487 = vadd.f32 %v3486, -0.4999988
        %v3488 = vmul.f32 %v3483, %v3487
        %v3489 = vadd.f32 1.0, %v3488
        %v3490 = vmul.f32 %v3481, %v3481
        %v3491 = vmul.f32 %v3490, -0.00019511016
        %v3492 = vadd.f32 %v3491, 0.008332121
        %v3493 = vmul.f32 %v3490, %v3492
        %v3494 = vadd.f32 %v3493, -0.16666654
        %v3495 = vmul.f32 %v3490, %v3494
        %v3496 = vadd.f32 %v3495, 1.0
        %v3497 = vmul.f32 %v3496, %v3481
        %vm3498 = vweird.f32 %v875
        %v3499 = vadd.s32 %v3482, 3
        %v3500 = vand.u32 %v3499, 3
        %vm3501 = vcmp.lt.s32.totalorder %v3500, 2
        %vm3502 = vcmp.eq.s32.totalorder %v3500, 0
        %v3503 = vxor.u32 %v3497, 2147483648
        %v3504 = vsel %vm3502, %v3489, %v3503
        %vm3505 = vcmp.eq.s32.totalorder %v3500, 2
        %v3506 = vxor.u32 %v3489, 2147483648
        %v3507 = vsel %vm3505, %v3506, %v3497
        %v3508 = vsel %vm3501, %v3504, %v3507
        %v3509 = vsel %vm3498, nan, %v3508
        %v3510 = vand.u32 2147483647, %v876
        %vm3511 = vcmp.le.f32.partialorder %v3510, 0.7853982
        %vm3512 = vcmp.lt.s32.totalorder %v876, 0
        %v3513 = vand.u32 %v876, 2139095040
        %v3514 = vshrl.u32 %v3513, 23
        %v3515 = vsub.s32 %v3514, 127
        %v3516 = vand.u32 2147483647, %v876
        %v3517 = vand.u32 %v3516, 8388607
        %v3518 = vor.u32 %v3517, 8388608
        %v3519 = vsub.s32 0, %v3518
        %v3520 = vadd.s32 %v3515, 1
        %vm3521 = vcmp.gt.s32.totalorder %v3520, 0
        %v3522 = vsel %vm3521, %v3520, 0
        %v3523 = vshrl.u32 %v3522, 5
        %v3524 = vand.u32 %v3522, 31
        %v3525 = vsub.s32 32, %v3524
        %v3526 = vshrl.u32 683565275, %v3525
        %v3527 = vshll.u32 683565275, %v3524
        %v3528 = vshrl.u32 2475754826, %v3525
        %v3529 = vor.u32 %v3527, %v3528
        %v3530 = vshll.u32 2475754826, %v3524
        %v3531 = vshrl.u32 2131351028, %v3525
        %v3532 = vor.u32 %v3530, %v3531
        %v3533 = vshll.u32 2131351028, %v3524
        %v3534 = vshrl.u32 2102212464, %v3525
        %v3535 = vor.u32 %v3533, %v3534
        %v3536 = vshll.u32 2102212464, %v3524
        %v3537 = vshrl.u32 920167782, %v3525
        %v3538 = vor.u32 %v3536, %v3537
        %v3539 = vshll.u32 920167782, %v3524
        %v3540 = vshrl.u32 1326507024, %v3525
        %v3541 = vor.u32 %v3539, %v3540
        %vm3542 = vcmp.lt.s32.totalorder %v3523, 1
        %vm3543 = vcmp.lt.s32.totalorder %v3523, 2
        %vm3544 = vcmp.lt.s32.totalorder %v3523, 3
        %vm3545 = vcmp.lt.s32.totalorder %v3523, 4
        %v3546 = vsel %vm3542, %v3526, %v3529
        %v3547 = vsel %vm3545, %v3535, 2102212464
        %v3548 = vsel %vm3544, %v3532, %v3547
        %v3549 = vsel %vm3543, %v3546, %v3548
        %v3550 = vsel %vm3542, %v3529, %v3532
        %v3551 = vsel %vm3545, %v3538, 920167782
        %v3552 = vsel %vm3544, %v3535, %v3551
        %v3553 = vsel %vm3543, %v3550, %v3552
        %v3554 = vsel %vm3542, %v3532, %v3535
        %v3555 = vsel %vm3545, %v3541, 1326507024
        %v3556 = vsel %vm3544, %v3538, %v3555
        %v3557 = vsel %vm3543, %v3554, %v3556
        %v3558 = vshll.u32 %v3518, 8
        %v3559 = vand.u32 %v3558, 65535
        %v3560 = vshrl.u32 %v3558, 16
        %v3561 = vand.u32 %v3557, 65535
        %v3562 = vshrl.u32 %v3557, 16
        %v3563 = vmul.u32 %v3559, %v3561
        %v3564 = vmul.u32 %v3559, %v3562
        %v3565 = vmul.u32 %v3560, %v3561
        %v3566 = vmul.u32 %v3560, %v3562
        %v3567 = vshll.u32 %v3564, 16
        %v3568 = vshrl.u32 %v3564, 16
        %v3569 = vshll.u32 %v3565, 16
        %v3570 = vshrl.u32 %v3565, 16
        %vm3571 = vc.u32 %v3563, %v3567
        %v3572 = vsel %vm3571, 1, 0
        %v3573 = vadd.s32 %v3563, %v3567
        %v3574 = vadd.s32 %v3566, %v3572
        %vm3575 = vc.u32 %v3573, %v3569
        %v3576 = vsel %vm3575, 1, 0
        %v3577 = vadd.s32 %v3573, %v3569
        %v3578 = vadd.s32 %v3574, %v3576
        %v3579 = vadd.s32 %v3578, %v3568
        %v3580 = vadd.s32 %v3579, %v3570
        %v3581 = vand.u32 %v3558, 65535
        %v3582 = vshrl.u32 %v3558, 16
        %v3583 = vand.u32 %v3553, 65535
        %v3584 = vshrl.u32 %v3553, 16
        %v3585 = vmul.u32 %v3581, %v3583
        %v3586 = vmul.u32 %v3581, %v3584
        %v3587 = vmul.u32 %v3582, %v3583
        %v3588 = vmul.u32 %v3582, %v3584
        %v3589 = vshll.u32 %v3586, 16
        %v3590 = vshrl.u32 %v3586, 16
        %v3591 = vshll.u32 %v3587, 16
        %v3592 = vshrl.u32 %v3587, 16
        %vm3593 = vc.u32 %v3585, %v3589
        %v3594 = vsel %vm3593, 1, 0
        %v3595 = vadd.s32 %v3585, %v3589
        %v3596 = vadd.s32 %v3588, %v3594
        %vm3597 = vc.u32 %v3595, %v3591
        %v3598 = vsel %vm3597, 1, 0
        %v3599 = vadd.s32 %v3595, %v3591
        %v3600 = vadd.s32 %v3596, %v3598
        %v3601 = vadd.s32 %v3600, %v3590
        %v3602 = vadd.s32 %v3601, %v3592
        %v3603 = vmul.u32 %v3558, %v3549
        %v3604 = vadd.s32 %v3580, %v3599
        %vm3605 = vc.u32 %v3580, %v3599
        %v3606 = vadd.s32 %v3602, 1
        %v3607 = vsel %vm3605, %v3606, %v3602
        %v3608 = vadd.s32 %v3603, %v3607
        %v3609 = vadd.s32 %v3608, 536870912
        %v3610 = vshrl.u32 %v3609, 30
        %v3611 = vshll.u32 %v3610, 30
        %v3612 = vsub.s32 %v3608, %v3611
        %vm3613 = vcmp.lt.s32.totalorder %v3612, 0
        %v3614 = vsub.s32 0, %v3612
        %v3615 = vsel %vm3613, %v3614, %v3612
        %v3616 = vclz %v3615
        %v3617 = vsub.s32 %v3616, 2
        %vm3618 = vcmp.gt.s32.totalorder 0, %v3617
        %v3619 = vsel %vm3618, 0, %v3617
        %v3620 = vsub.s32 32, %v3619
        %v3621 = vshll.u32 %v3612, %v3619
        %v3622 = vshrl.u32 %v3604, %v3620
        %v3623 = vor.u32 %v3621, %v3622
        %v3624 = vsub.s32 4294967266, %v3619
        %v3625 = vadd.s32 %v3624, 127
        %v3626 = vshll.u32 %v3625, 23
        %v3627 = vor.u32 4788187, %v3626
        %v3628 = vand.u32 2147483647, %v3627
        %v3630 = vcvt.s32.f32 %v3623
        %v3631 = vmul.f32 %v3630, %v3628
        %v3632 = vxor.u32 %v3631, 2147483648
        %v3633 = vsel %vm3512, %v3632, %v3631
        %v3634 = vsub.s32 4, %v3610
        %v3635 = vsel %vm3512, %v3634, %v3610
        %v3636 = vsel %vm3511, %v876, %v3633
        %v3637 = vsel %vm3511, 0, %v3635
        %v3638 = vmul.f32 %v3636, %v3636
        %v3639 = vmul.f32 %v3638, -0.001358992
        %v3640 = vadd.f32 %v3639, 0.041655596
        %v3641 = vmul.f32 %v3638, %v3640
        %v3642 = vadd.f32 %v3641, -0.4999988
        %v3643 = vmul.f32 %v3638, %v3642
        %v3644 = vadd.f32 1.0, %v3643
        %v3645 = vmul.f32 %v3636, %v3636
        %v3646 = vmul.f32 %v3645, -0.00019511016
        %v3647 = vadd.f32 %v3646, 0.008332121
        %v3648 = vmul.f32 %v3645, %v3647
        %v3649 = vadd.f32 %v3648, -0.16666654
        %v3650 = vmul.f32 %v3645, %v3649
        %v3651 = vadd.f32 %v3650, 1.0
        %v3652 = vmul.f32 %v3651, %v3636
        %vm3653 = vweird.f32 %v876
        %v3654 = vadd.s32 %v3637, 3
        %v3655 = vand.u32 %v3654, 3
        %vm3656 = vcmp.lt.s32.totalorder %v3655, 2
        %vm3657 = vcmp.eq.s32.totalorder %v3655, 0
        %v3658 = vxor.u32 %v3652, 2147483648
        %v3659 = vsel %vm3657, %v3644, %v3658
        %vm3660 = vcmp.eq.s32.totalorder %v3655, 2
        %v3661 = vxor.u32 %v3644, 2147483648
        %v3662 = vsel %vm3660, %v3661, %v3652
        %v3663 = vsel %vm3656, %v3659, %v3662
        %v3664 = vsel %vm3653, nan, %v3663
        %v3665 = vand.u32 2147483647, %v877
        %vm3666 = vcmp.le.f32.partialorder %v3665, 0.7853982
        %vm3667 = vcmp.lt.s32.totalorder %v877, 0
        %v3668 = vand.u32 %v877, 2139095040
        %v3669 = vshrl.u32 %v3668, 23
        %v3670 = vsub.s32 %v3669, 127
        %v3671 = vand.u32 2147483647, %v877
        %v3672 = vand.u32 %v3671, 8388607
        %v3673 = vor.u32 %v3672, 8388608
        %v3674 = vsub.s32 0, %v3673
        %v3675 = vadd.s32 %v3670, 1
        %vm3676 = vcmp.gt.s32.totalorder %v3675, 0
        %v3677 = vsel %vm3676, %v3675, 0
        %v3678 = vshrl.u32 %v3677, 5
        %v3679 = vand.u32 %v3677, 31
        %v3680 = vsub.s32 32, %v3679
        %v3681 = vshrl.u32 683565275, %v3680
        %v3682 = vshll.u32 683565275, %v3679
        %v3683 = vshrl.u32 2475754826, %v3680
        %v3684 = vor.u32 %v3682, %v3683
        %v3685 = vshll.u32 2475754826, %v3679
        %v3686 = vshrl.u32 2131351028, %v3680
        %v3687 = vor.u32 %v3685, %v3686
        %v3688 = vshll.u32 2131351028, %v3679
        %v3689 = vshrl.u32 2102212464, %v3680
        %v3690 = vor.u32 %v3688, %v3689
        %v3691 = vshll.u32 2102212464, %v3679
        %v3692 = vshrl.u32 920167782, %v3680
        %v3693 = vor.u32 %v3691, %v3692
        %v3694 = vshll.u32 920167782, %v3679
        %v3695 = vshrl.u32 1326507024, %v3680
        %v3696 = vor.u32 %v3694, %v3695
        %vm3697 = vcmp.lt.s32.totalorder %v3678, 1
        %vm3698 = vcmp.lt.s32.totalorder %v3678, 2
        %vm3699 = vcmp.lt.s32.totalorder %v3678, 3
        %vm3700 = vcmp.lt.s32.totalorder %v3678, 4
        %v3701 = vsel %vm3697, %v3681, %v3684
        %v3702 = vsel %vm3700, %v3690, 2102212464
        %v3703 = vsel %vm3699, %v3687, %v3702
        %v3704 = vsel %vm3698, %v3701, %v3703
        %v3705 = vsel %vm3697, %v3684, %v3687
        %v3706 = vsel %vm3700, %v3693, 920167782
        %v3707 = vsel %vm3699, %v3690, %v3706
        %v3708 = vsel %vm3698, %v3705, %v3707
        %v3709 = vsel %vm3697, %v3687, %v3690
        %v3710 = vsel %vm3700, %v3696, 1326507024
        %v3711 = vsel %vm3699, %v3693, %v3710
        %v3712 = vsel %vm3698, %v3709, %v3711
        %v3713 = vshll.u32 %v3673, 8
        %v3714 = vand.u32 %v3713, 65535
        %v3715 = vshrl.u32 %v3713, 16
        %v3716 = vand.u32 %v3712, 65535
        %v3717 = vshrl.u32 %v3712, 16
        %v3718 = vmul.u32 %v3714, %v3716
        %v3719 = vmul.u32 %v3714, %v3717
        %v3720 = vmul.u32 %v3715, %v3716
        %v3721 = vmul.u32 %v3715, %v3717
        %v3722 = vshll.u32 %v3719, 16
        %v3723 = vshrl.u32 %v3719, 16
        %v3724 = vshll.u32 %v3720, 16
        %v3725 = vshrl.u32 %v3720, 16
        %vm3726 = vc.u32 %v3718, %v3722
        %v3727 = vsel %vm3726, 1, 0
        %v3728 = vadd.s32 %v3718, %v3722
        %v3729 = vadd.s32 %v3721, %v3727
        %vm3730 = vc.u32 %v3728, %v3724
        %v3731 = vsel %vm3730, 1, 0
        %v3732 = vadd.s32 %v3728, %v3724
        %v3733 = vadd.s32 %v3729, %v3731
        %v3734 = vadd.s32 %v3733, %v3723
        %v3735 = vadd.s32 %v3734, %v3725
        %v3736 = vand.u32 %v3713, 65535
        %v3737 = vshrl.u32 %v3713, 16
        %v3738 = vand.u32 %v3708, 65535
        %v3739 = vshrl.u32 %v3708, 16
        %v3740 = vmul.u32 %v3736, %v3738
        %v3741 = vmul.u32 %v3736, %v3739
        %v3742 = vmul.u32 %v3737, %v3738
        %v3743 = vmul.u32 %v3737, %v3739
        %v3744 = vshll.u32 %v3741, 16
        %v3745 = vshrl.u32 %v3741, 16
        %v3746 = vshll.u32 %v3742, 16
        %v3747 = vshrl.u32 %v3742, 16
        %vm3748 = vc.u32 %v3740, %v3744
        %v3749 = vsel %vm3748, 1, 0
        %v3750 = vadd.s32 %v3740, %v3744
        %v3751 = vadd.s32 %v3743, %v3749
        %vm3752 = vc.u32 %v3750, %v3746
        %v3753 = vsel %vm3752, 1, 0
        %v3754 = vadd.s32 %v3750, %v3746
        %v3755 = vadd.s32 %v3751, %v3753
        %v3756 = vadd.s32 %v3755, %v3745
        %v3757 = vadd.s32 %v3756, %v3747
        %v3758 = vmul.u32 %v3713, %v3704
        %v3759 = vadd.s32 %v3735, %v3754
        %vm3760 = vc.u32 %v3735, %v3754
        %v3761 = vadd.s32 %v3757, 1
        %v3762 = vsel %vm3760, %v3761, %v3757
        %v3763 = vadd.s32 %v3758, %v3762
        %v3764 = vadd.s32 %v3763, 536870912
        %v3765 = vshrl.u32 %v3764, 30
        %v3766 = vshll.u32 %v3765, 30
        %v3767 = vsub.s32 %v3763, %v3766
        %vm3768 = vcmp.lt.s32.totalorder %v3767, 0
        %v3769 = vsub.s32 0, %v3767
        %v3770 = vsel %vm3768, %v3769, %v3767
        %v3771 = vclz %v3770
        %v3772 = vsub.s32 %v3771, 2
        %vm3773 = vcmp.gt.s32.totalorder 0, %v3772
        %v3774 = vsel %vm3773, 0, %v3772
        %v3775 = vsub.s32 32, %v3774
        %v3776 = vshll.u32 %v3767, %v3774
        %v3777 = vshrl.u32 %v3759, %v3775
        %v3778 = vor.u32 %v3776, %v3777
        %v3779 = vsub.s32 4294967266, %v3774
        %v3780 = vadd.s32 %v3779, 127
        %v3781 = vshll.u32 %v3780, 23
        %v3782 = vor.u32 4788187, %v3781
        %v3783 = vand.u32 2147483647, %v3782
        %v3785 = vcvt.s32.f32 %v3778
        %v3786 = vmul.f32 %v3785, %v3783
        %v3787 = vxor.u32 %v3786, 2147483648
        %v3788 = vsel %vm3667, %v3787, %v3786
        %v3789 = vsub.s32 4, %v3765
        %v3790 = vsel %vm3667, %v3789, %v3765
        %v3791 = vsel %vm3666, %v877, %v3788
        %v3792 = vsel %vm3666, 0, %v3790
        %v3793 = vmul.f32 %v3791, %v3791
        %v3794 = vmul.f32 %v3793, -0.001358992
        %v3795 = vadd.f32 %v3794, 0.041655596
        %v3796 = vmul.f32 %v3793, %v3795
        %v3797 = vadd.f32 %v3796, -0.4999988
        %v3798 = vmul.f32 %v3793, %v3797
        %v3799 = vadd.f32 1.0, %v3798
        %v3800 = vmul.f32 %v3791, %v3791
        %v3801 = vmul.f32 %v3800, -0.00019511016
        %v3802 = vadd.f32 %v3801, 0.008332121
        %v3803 = vmul.f32 %v3800, %v3802
        %v3804 = vadd.f32 %v3803, -0.16666654
        %v3805 = vmul.f32 %v3800, %v3804
        %v3806 = vadd.f32 %v3805, 1.0
        %v3807 = vmul.f32 %v3806, %v3791
        %vm3808 = vweird.f32 %v877
        %v3809 = vadd.s32 %v3792, 3
        %v3810 = vand.u32 %v3809, 3
        %vm3811 = vcmp.lt.s32.totalorder %v3810, 2
        %vm3812 = vcmp.eq.s32.totalorder %v3810, 0
        %v3813 = vxor.u32 %v3807, 2147483648
        %v3814 = vsel %vm3812, %v3799, %v3813
        %vm3815 = vcmp.eq.s32.totalorder %v3810, 2
        %v3816 = vxor.u32 %v3799, 2147483648
        %v3817 = vsel %vm3815, %v3816, %v3807
        %v3818 = vsel %vm3811, %v3814, %v3817
        %v3819 = vsel %vm3808, nan, %v3818
        %v3820 = vand.u32 2147483647, %v878
        %vm3821 = vcmp.le.f32.partialorder %v3820, 0.7853982
        %vm3822 = vcmp.lt.s32.totalorder %v878, 0
        %v3823 = vand.u32 %v878, 2139095040
        %v3824 = vshrl.u32 %v3823, 23
        %v3825 = vsub.s32 %v3824, 127
        %v3826 = vand.u32 2147483647, %v878
        %v3827 = vand.u32 %v3826, 8388607
        %v3828 = vor.u32 %v3827, 8388608
        %v3829 = vsub.s32 0, %v3828
        %v3830 = vadd.s32 %v3825, 1
        %vm3831 = vcmp.gt.s32.totalorder %v3830, 0
        %v3832 = vsel %vm3831, %v3830, 0
        %v3833 = vshrl.u32 %v3832, 5
        %v3834 = vand.u32 %v3832, 31
        %v3835 = vsub.s32 32, %v3834
        %v3836 = vshrl.u32 683565275, %v3835
        %v3837 = vshll.u32 683565275, %v3834
        %v3838 = vshrl.u32 2475754826, %v3835
        %v3839 = vor.u32 %v3837, %v3838
        %v3840 = vshll.u32 2475754826, %v3834
        %v3841 = vshrl.u32 2131351028, %v3835
        %v3842 = vor.u32 %v3840, %v3841
        %v3843 = vshll.u32 2131351028, %v3834
        %v3844 = vshrl.u32 2102212464, %v3835
        %v3845 = vor.u32 %v3843, %v3844
        %v3846 = vshll.u32 2102212464, %v3834
        %v3847 = vshrl.u32 920167782, %v3835
        %v3848 = vor.u32 %v3846, %v3847
        %v3849 = vshll.u32 920167782, %v3834
        %v3850 = vshrl.u32 1326507024, %v3835
        %v3851 = vor.u32 %v3849, %v3850
        %vm3852 = vcmp.lt.s32.totalorder %v3833, 1
        %vm3853 = vcmp.lt.s32.totalorder %v3833, 2
        %vm3854 = vcmp.lt.s32.totalorder %v3833, 3
        %vm3855 = vcmp.lt.s32.totalorder %v3833, 4
        %v3856 = vsel %vm3852, %v3836, %v3839
        %v3857 = vsel %vm3855, %v3845, 2102212464
        %v3858 = vsel %vm3854, %v3842, %v3857
        %v3859 = vsel %vm3853, %v3856, %v3858
        %v3860 = vsel %vm3852, %v3839, %v3842
        %v3861 = vsel %vm3855, %v3848, 920167782
        %v3862 = vsel %vm3854, %v3845, %v3861
        %v3863 = vsel %vm3853, %v3860, %v3862
        %v3864 = vsel %vm3852, %v3842, %v3845
        %v3865 = vsel %vm3855, %v3851, 1326507024
        %v3866 = vsel %vm3854, %v3848, %v3865
        %v3867 = vsel %vm3853, %v3864, %v3866
        %v3868 = vshll.u32 %v3828, 8
        %v3869 = vand.u32 %v3868, 65535
        %v3870 = vshrl.u32 %v3868, 16
        %v3871 = vand.u32 %v3867, 65535
        %v3872 = vshrl.u32 %v3867, 16
        %v3873 = vmul.u32 %v3869, %v3871
        %v3874 = vmul.u32 %v3869, %v3872
        %v3875 = vmul.u32 %v3870, %v3871
        %v3876 = vmul.u32 %v3870, %v3872
        %v3877 = vshll.u32 %v3874, 16
        %v3878 = vshrl.u32 %v3874, 16
        %v3879 = vshll.u32 %v3875, 16
        %v3880 = vshrl.u32 %v3875, 16
        %vm3881 = vc.u32 %v3873, %v3877
        %v3882 = vsel %vm3881, 1, 0
        %v3883 = vadd.s32 %v3873, %v3877
        %v3884 = vadd.s32 %v3876, %v3882
        %vm3885 = vc.u32 %v3883, %v3879
        %v3886 = vsel %vm3885, 1, 0
        %v3887 = vadd.s32 %v3883, %v3879
        %v3888 = vadd.s32 %v3884, %v3886
        %v3889 = vadd.s32 %v3888, %v3878
        %v3890 = vadd.s32 %v3889, %v3880
        %v3891 = vand.u32 %v3868, 65535
        %v3892 = vshrl.u32 %v3868, 16
        %v3893 = vand.u32 %v3863, 65535
        %v3894 = vshrl.u32 %v3863, 16
        %v3895 = vmul.u32 %v3891, %v3893
        %v3896 = vmul.u32 %v3891, %v3894
        %v3897 = vmul.u32 %v3892, %v3893
        %v3898 = vmul.u32 %v3892, %v3894
        %v3899 = vshll.u32 %v3896, 16
        %v3900 = vshrl.u32 %v3896, 16
        %v3901 = vshll.u32 %v3897, 16
        %v3902 = vshrl.u32 %v3897, 16
        %vm3903 = vc.u32 %v3895, %v3899
        %v3904 = vsel %vm3903, 1, 0
        %v3905 = vadd.s32 %v3895, %v3899
        %v3906 = vadd.s32 %v3898, %v3904
        %vm3907 = vc.u32 %v3905, %v3901
        %v3908 = vsel %vm3907, 1, 0
        %v3909 = vadd.s32 %v3905, %v3901
        %v3910 = vadd.s32 %v3906, %v3908
        %v3911 = vadd.s32 %v3910, %v3900
        %v3912 = vadd.s32 %v3911, %v3902
        %v3913 = vmul.u32 %v3868, %v3859
        %v3914 = vadd.s32 %v3890, %v3909
        %vm3915 = vc.u32 %v3890, %v3909
        %v3916 = vadd.s32 %v3912, 1
        %v3917 = vsel %vm3915, %v3916, %v3912
        %v3918 = vadd.s32 %v3913, %v3917
        %v3919 = vadd.s32 %v3918, 536870912
        %v3920 = vshrl.u32 %v3919, 30
        %v3921 = vshll.u32 %v3920, 30
        %v3922 = vsub.s32 %v3918, %v3921
        %vm3923 = vcmp.lt.s32.totalorder %v3922, 0
        %v3924 = vsub.s32 0, %v3922
        %v3925 = vsel %vm3923, %v3924, %v3922
        %v3926 = vclz %v3925
        %v3927 = vsub.s32 %v3926, 2
        %vm3928 = vcmp.gt.s32.totalorder 0, %v3927
        %v3929 = vsel %vm3928, 0, %v3927
        %v3930 = vsub.s32 32, %v3929
        %v3931 = vshll.u32 %v3922, %v3929
        %v3932 = vshrl.u32 %v3914, %v3930
        %v3933 = vor.u32 %v3931, %v3932
        %v3934 = vsub.s32 4294967266, %v3929
        %v3935 = vadd.s32 %v3934, 127
        %v3936 = vshll.u32 %v3935, 23
        %v3937 = vor.u32 4788187, %v3936
        %v3938 = vand.u32 2147483647, %v3937
        %v3940 = vcvt.s32.f32 %v3933
        %v3941 = vmul.f32 %v3940, %v3938
        %v3942 = vxor.u32 %v3941, 2147483648
        %v3943 = vsel %vm3822, %v3942, %v3941
        %v3944 = vsub.s32 4, %v3920
        %v3945 = vsel %vm3822, %v3944, %v3920
        %v3946 = vsel %vm3821, %v878, %v3943
        %v3947 = vsel %vm3821, 0, %v3945
        %v3948 = vmul.f32 %v3946, %v3946
        %v3949 = vmul.f32 %v3948, -0.001358992
        %v3950 = vadd.f32 %v3949, 0.041655596
        %v3951 = vmul.f32 %v3948, %v3950
        %v3952 = vadd.f32 %v3951, -0.4999988
        %v3953 = vmul.f32 %v3948, %v3952
        %v3954 = vadd.f32 1.0, %v3953
        %v3955 = vmul.f32 %v3946, %v3946
        %v3956 = vmul.f32 %v3955, -0.00019511016
        %v3957 = vadd.f32 %v3956, 0.008332121
        %v3958 = vmul.f32 %v3955, %v3957
        %v3959 = vadd.f32 %v3958, -0.16666654
        %v3960 = vmul.f32 %v3955, %v3959
        %v3961 = vadd.f32 %v3960, 1.0
        %v3962 = vmul.f32 %v3961, %v3946
        %vm3963 = vweird.f32 %v878
        %v3964 = vadd.s32 %v3947, 3
        %v3965 = vand.u32 %v3964, 3
        %vm3966 = vcmp.lt.s32.totalorder %v3965, 2
        %vm3967 = vcmp.eq.s32.totalorder %v3965, 0
        %v3968 = vxor.u32 %v3962, 2147483648
        %v3969 = vsel %vm3967, %v3954, %v3968
        %vm3970 = vcmp.eq.s32.totalorder %v3965, 2
        %v3971 = vxor.u32 %v3954, 2147483648
        %v3972 = vsel %vm3970, %v3971, %v3962
        %v3973 = vsel %vm3966, %v3969, %v3972
        %v3974 = vsel %vm3963, nan, %v3973
        %v3975 = vand.u32 2147483647, %v879
        %vm3976 = vcmp.le.f32.partialorder %v3975, 0.7853982
        %vm3977 = vcmp.lt.s32.totalorder %v879, 0
        %v3978 = vand.u32 %v879, 2139095040
        %v3979 = vshrl.u32 %v3978, 23
        %v3980 = vsub.s32 %v3979, 127
        %v3981 = vand.u32 2147483647, %v879
        %v3982 = vand.u32 %v3981, 8388607
        %v3983 = vor.u32 %v3982, 8388608
        %v3984 = vsub.s32 0, %v3983
        %v3985 = vadd.s32 %v3980, 1
        %vm3986 = vcmp.gt.s32.totalorder %v3985, 0
        %v3987 = vsel %vm3986, %v3985, 0
        %v3988 = vshrl.u32 %v3987, 5
        %v3989 = vand.u32 %v3987, 31
        %v3990 = vsub.s32 32, %v3989
        %v3991 = vshrl.u32 683565275, %v3990
        %v3992 = vshll.u32 683565275, %v3989
        %v3993 = vshrl.u32 2475754826, %v3990
        %v3994 = vor.u32 %v3992, %v3993
        %v3995 = vshll.u32 2475754826, %v3989
        %v3996 = vshrl.u32 2131351028, %v3990
        %v3997 = vor.u32 %v3995, %v3996
        %v3998 = vshll.u32 2131351028, %v3989
        %v3999 = vshrl.u32 2102212464, %v3990
        %v4000 = vor.u32 %v3998, %v3999
        %v4001 = vshll.u32 2102212464, %v3989
        %v4002 = vshrl.u32 920167782, %v3990
        %v4003 = vor.u32 %v4001, %v4002
        %v4004 = vshll.u32 920167782, %v3989
        %v4005 = vshrl.u32 1326507024, %v3990
        %v4006 = vor.u32 %v4004, %v4005
        %vm4007 = vcmp.lt.s32.totalorder %v3988, 1
        %vm4008 = vcmp.lt.s32.totalorder %v3988, 2
        %vm4009 = vcmp.lt.s32.totalorder %v3988, 3
        %vm4010 = vcmp.lt.s32.totalorder %v3988, 4
        %v4011 = vsel %vm4007, %v3991, %v3994
        %v4012 = vsel %vm4010, %v4000, 2102212464
        %v4013 = vsel %vm4009, %v3997, %v4012
        %v4014 = vsel %vm4008, %v4011, %v4013
        %v4015 = vsel %vm4007, %v3994, %v3997
        %v4016 = vsel %vm4010, %v4003, 920167782
        %v4017 = vsel %vm4009, %v4000, %v4016
        %v4018 = vsel %vm4008, %v4015, %v4017
        %v4019 = vsel %vm4007, %v3997, %v4000
        %v4020 = vsel %vm4010, %v4006, 1326507024
        %v4021 = vsel %vm4009, %v4003, %v4020
        %v4022 = vsel %vm4008, %v4019, %v4021
        %v4023 = vshll.u32 %v3983, 8
        %v4024 = vand.u32 %v4023, 65535
        %v4025 = vshrl.u32 %v4023, 16
        %v4026 = vand.u32 %v4022, 65535
        %v4027 = vshrl.u32 %v4022, 16
        %v4028 = vmul.u32 %v4024, %v4026
        %v4029 = vmul.u32 %v4024, %v4027
        %v4030 = vmul.u32 %v4025, %v4026
        %v4031 = vmul.u32 %v4025, %v4027
        %v4032 = vshll.u32 %v4029, 16
        %v4033 = vshrl.u32 %v4029, 16
        %v4034 = vshll.u32 %v4030, 16
        %v4035 = vshrl.u32 %v4030, 16
        %vm4036 = vc.u32 %v4028, %v4032
        %v4037 = vsel %vm4036, 1, 0
        %v4038 = vadd.s32 %v4028, %v4032
        %v4039 = vadd.s32 %v4031, %v4037
        %vm4040 = vc.u32 %v4038, %v4034
        %v4041 = vsel %vm4040, 1, 0
        %v4042 = vadd.s32 %v4038, %v4034
        %v4043 = vadd.s32 %v4039, %v4041
        %v4044 = vadd.s32 %v4043, %v4033
        %v4045 = vadd.s32 %v4044, %v4035
        %v4046 = vand.u32 %v4023, 65535
        %v4047 = vshrl.u32 %v4023, 16
        %v4048 = vand.u32 %v4018, 65535
        %v4049 = vshrl.u32 %v4018, 16
        %v4050 = vmul.u32 %v4046, %v4048
        %v4051 = vmul.u32 %v4046, %v4049
        %v4052 = vmul.u32 %v4047, %v4048
        %v4053 = vmul.u32 %v4047, %v4049
        %v4054 = vshll.u32 %v4051, 16
        %v4055 = vshrl.u32 %v4051, 16
        %v4056 = vshll.u32 %v4052, 16
        %v4057 = vshrl.u32 %v4052, 16
        %vm4058 = vc.u32 %v4050, %v4054
        %v4059 = vsel %vm4058, 1, 0
        %v4060 = vadd.s32 %v4050, %v4054
        %v4061 = vadd.s32 %v4053, %v4059
        %vm4062 = vc.u32 %v4060, %v4056
        %v4063 = vsel %vm4062, 1, 0
        %v4064 = vadd.s32 %v4060, %v4056
        %v4065 = vadd.s32 %v4061, %v4063
        %v4066 = vadd.s32 %v4065, %v4055
        %v4067 = vadd.s32 %v4066, %v4057
        %v4068 = vmul.u32 %v4023, %v4014
        %v4069 = vadd.s32 %v4045, %v4064
        %vm4070 = vc.u32 %v4045, %v4064
        %v4071 = vadd.s32 %v4067, 1
        %v4072 = vsel %vm4070, %v4071, %v4067
        %v4073 = vadd.s32 %v4068, %v4072
        %v4074 = vadd.s32 %v4073, 536870912
        %v4075 = vshrl.u32 %v4074, 30
        %v4076 = vshll.u32 %v4075, 30
        %v4077 = vsub.s32 %v4073, %v4076
        %vm4078 = vcmp.lt.s32.totalorder %v4077, 0
        %v4079 = vsub.s32 0, %v4077
        %v4080 = vsel %vm4078, %v4079, %v4077
        %v4081 = vclz %v4080
        %v4082 = vsub.s32 %v4081, 2
        %vm4083 = vcmp.gt.s32.totalorder 0, %v4082
        %v4084 = vsel %vm4083, 0, %v4082
        %v4085 = vsub.s32 32, %v4084
        %v4086 = vshll.u32 %v4077, %v4084
        %v4087 = vshrl.u32 %v4069, %v4085
        %v4088 = vor.u32 %v4086, %v4087
        %v4089 = vsub.s32 4294967266, %v4084
        %v4090 = vadd.s32 %v4089, 127
        %v4091 = vshll.u32 %v4090, 23
        %v4092 = vor.u32 4788187, %v4091
        %v4093 = vand.u32 2147483647, %v4092
        %v4095 = vcvt.s32.f32 %v4088
        %v4096 = vmul.f32 %v4095, %v4093
        %v4097 = vxor.u32 %v4096, 2147483648
        %v4098 = vsel %vm3977, %v4097, %v4096
        %v4099 = vsub.s32 4, %v4075
        %v4100 = vsel %vm3977, %v4099, %v4075
        %v4101 = vsel %vm3976, %v879, %v4098
        %v4102 = vsel %vm3976, 0, %v4100
        %v4103 = vmul.f32 %v4101, %v4101
        %v4104 = vmul.f32 %v4103, -0.001358992
        %v4105 = vadd.f32 %v4104, 0.041655596
        %v4106 = vmul.f32 %v4103, %v4105
        %v4107 = vadd.f32 %v4106, -0.4999988
        %v4108 = vmul.f32 %v4103, %v4107
        %v4109 = vadd.f32 1.0, %v4108
        %v4110 = vmul.f32 %v4101, %v4101
        %v4111 = vmul.f32 %v4110, -0.00019511016
        %v4112 = vadd.f32 %v4111, 0.008332121
        %v4113 = vmul.f32 %v4110, %v4112
        %v4114 = vadd.f32 %v4113, -0.16666654
        %v4115 = vmul.f32 %v4110, %v4114
        %v4116 = vadd.f32 %v4115, 1.0
        %v4117 = vmul.f32 %v4116, %v4101
        %vm4118 = vweird.f32 %v879
        %v4119 = vadd.s32 %v4102, 3
        %v4120 = vand.u32 %v4119, 3
        %vm4121 = vcmp.lt.s32.totalorder %v4120, 2
        %vm4122 = vcmp.eq.s32.totalorder %v4120, 0
        %v4123 = vxor.u32 %v4117, 2147483648
        %v4124 = vsel %vm4122, %v4109, %v4123
        %vm4125 = vcmp.eq.s32.totalorder %v4120, 2
        %v4126 = vxor.u32 %v4109, 2147483648
        %v4127 = vsel %vm4125, %v4126, %v4117
        %v4128 = vsel %vm4121, %v4124, %v4127
        %v4129 = vsel %vm4118, nan, %v4128
        %v4130 = vand.u32 2147483647, %v880
        %vm4131 = vcmp.le.f32.partialorder %v4130, 0.7853982
        %vm4132 = vcmp.lt.s32.totalorder %v880, 0
        %v4133 = vand.u32 %v880, 2139095040
        %v4134 = vshrl.u32 %v4133, 23
        %v4135 = vsub.s32 %v4134, 127
        %v4136 = vand.u32 2147483647, %v880
        %v4137 = vand.u32 %v4136, 8388607
        %v4138 = vor.u32 %v4137, 8388608
        %v4139 = vsub.s32 0, %v4138
        %v4140 = vadd.s32 %v4135, 1
        %vm4141 = vcmp.gt.s32.totalorder %v4140, 0
        %v4142 = vsel %vm4141, %v4140, 0
        %v4143 = vshrl.u32 %v4142, 5
        %v4144 = vand.u32 %v4142, 31
        %v4145 = vsub.s32 32, %v4144
        %v4146 = vshrl.u32 683565275, %v4145
        %v4147 = vshll.u32 683565275, %v4144
        %v4148 = vshrl.u32 2475754826, %v4145
        %v4149 = vor.u32 %v4147, %v4148
        %v4150 = vshll.u32 2475754826, %v4144
        %v4151 = vshrl.u32 2131351028, %v4145
        %v4152 = vor.u32 %v4150, %v4151
        %v4153 = vshll.u32 2131351028, %v4144
        %v4154 = vshrl.u32 2102212464, %v4145
        %v4155 = vor.u32 %v4153, %v4154
        %v4156 = vshll.u32 2102212464, %v4144
        %v4157 = vshrl.u32 920167782, %v4145
        %v4158 = vor.u32 %v4156, %v4157
        %v4159 = vshll.u32 920167782, %v4144
        %v4160 = vshrl.u32 1326507024, %v4145
        %v4161 = vor.u32 %v4159, %v4160
        %vm4162 = vcmp.lt.s32.totalorder %v4143, 1
        %vm4163 = vcmp.lt.s32.totalorder %v4143, 2
        %vm4164 = vcmp.lt.s32.totalorder %v4143, 3
        %vm4165 = vcmp.lt.s32.totalorder %v4143, 4
        %v4166 = vsel %vm4162, %v4146, %v4149
        %v4167 = vsel %vm4165, %v4155, 2102212464
        %v4168 = vsel %vm4164, %v4152, %v4167
        %v4169 = vsel %vm4163, %v4166, %v4168
        %v4170 = vsel %vm4162, %v4149, %v4152
        %v4171 = vsel %vm4165, %v4158, 920167782
        %v4172 = vsel %vm4164, %v4155, %v4171
        %v4173 = vsel %vm4163, %v4170, %v4172
        %v4174 = vsel %vm4162, %v4152, %v4155
        %v4175 = vsel %vm4165, %v4161, 1326507024
        %v4176 = vsel %vm4164, %v4158, %v4175
        %v4177 = vsel %vm4163, %v4174, %v4176
        %v4178 = vshll.u32 %v4138, 8
        %v4179 = vand.u32 %v4178, 65535
        %v4180 = vshrl.u32 %v4178, 16
        %v4181 = vand.u32 %v4177, 65535
        %v4182 = vshrl.u32 %v4177, 16
        %v4183 = vmul.u32 %v4179, %v4181
        %v4184 = vmul.u32 %v4179, %v4182
        %v4185 = vmul.u32 %v4180, %v4181
        %v4186 = vmul.u32 %v4180, %v4182
        %v4187 = vshll.u32 %v4184, 16
        %v4188 = vshrl.u32 %v4184, 16
        %v4189 = vshll.u32 %v4185, 16
        %v4190 = vshrl.u32 %v4185, 16
        %vm4191 = vc.u32 %v4183, %v4187
        %v4192 = vsel %vm4191, 1, 0
        %v4193 = vadd.s32 %v4183, %v4187
        %v4194 = vadd.s32 %v4186, %v4192
        %vm4195 = vc.u32 %v4193, %v4189
        %v4196 = vsel %vm4195, 1, 0
        %v4197 = vadd.s32 %v4193, %v4189
        %v4198 = vadd.s32 %v4194, %v4196
        %v4199 = vadd.s32 %v4198, %v4188
        %v4200 = vadd.s32 %v4199, %v4190
        %v4201 = vand.u32 %v4178, 65535
        %v4202 = vshrl.u32 %v4178, 16
        %v4203 = vand.u32 %v4173, 65535
        %v4204 = vshrl.u32 %v4173, 16
        %v4205 = vmul.u32 %v4201, %v4203
        %v4206 = vmul.u32 %v4201, %v4204
        %v4207 = vmul.u32 %v4202, %v4203
        %v4208 = vmul.u32 %v4202, %v4204
        %v4209 = vshll.u32 %v4206, 16
        %v4210 = vshrl.u32 %v4206, 16
        %v4211 = vshll.u32 %v4207, 16
        %v4212 = vshrl.u32 %v4207, 16
        %vm4213 = vc.u32 %v4205, %v4209
        %v4214 = vsel %vm4213, 1, 0
        %v4215 = vadd.s32 %v4205, %v4209
        %v4216 = vadd.s32 %v4208, %v4214
        %vm4217 = vc.u32 %v4215, %v4211
        %v4218 = vsel %vm4217, 1, 0
        %v4219 = vadd.s32 %v4215, %v4211
        %v4220 = vadd.s32 %v4216, %v4218
        %v4221 = vadd.s32 %v4220, %v4210
        %v4222 = vadd.s32 %v4221, %v4212
        %v4223 = vmul.u32 %v4178, %v4169
        %v4224 = vadd.s32 %v4200, %v4219
        %vm4225 = vc.u32 %v4200, %v4219
        %v4226 = vadd.s32 %v4222, 1
        %v4227 = vsel %vm4225, %v4226, %v4222
        %v4228 = vadd.s32 %v4223, %v4227
        %v4229 = vadd.s32 %v4228, 536870912
        %v4230 = vshrl.u32 %v4229, 30
        %v4231 = vshll.u32 %v4230, 30
        %v4232 = vsub.s32 %v4228, %v4231
        %vm4233 = vcmp.lt.s32.totalorder %v4232, 0
        %v4234 = vsub.s32 0, %v4232
        %v4235 = vsel %vm4233, %v4234, %v4232
        %v4236 = vclz %v4235
        %v4237 = vsub.s32 %v4236, 2
        %vm4238 = vcmp.gt.s32.totalorder 0, %v4237
        %v4239 = vsel %vm4238, 0, %v4237
        %v4240 = vsub.s32 32, %v4239
        %v4241 = vshll.u32 %v4232, %v4239
        %v4242 = vshrl.u32 %v4224, %v4240
        %v4243 = vor.u32 %v4241, %v4242
        %v4244 = vsub.s32 4294967266, %v4239
        %v4245 = vadd.s32 %v4244, 127
        %v4246 = vshll.u32 %v4245, 23
        %v4247 = vor.u32 4788187, %v4246
        %v4248 = vand.u32 2147483647, %v4247
        %v4250 = vcvt.s32.f32 %v4243
        %v4251 = vmul.f32 %v4250, %v4248
        %v4252 = vxor.u32 %v4251, 2147483648
        %v4253 = vsel %vm4132, %v4252, %v4251
        %v4254 = vsub.s32 4, %v4230
        %v4255 = vsel %vm4132, %v4254, %v4230
        %v4256 = vsel %vm4131, %v880, %v4253
        %v4257 = vsel %vm4131, 0, %v4255
        %v4258 = vmul.f32 %v4256, %v4256
        %v4259 = vmul.f32 %v4258, -0.001358992
        %v4260 = vadd.f32 %v4259, 0.041655596
        %v4261 = vmul.f32 %v4258, %v4260
        %v4262 = vadd.f32 %v4261, -0.4999988
        %v4263 = vmul.f32 %v4258, %v4262
        %v4264 = vadd.f32 1.0, %v4263
        %v4265 = vmul.f32 %v4256, %v4256
        %v4266 = vmul.f32 %v4265, -0.00019511016
        %v4267 = vadd.f32 %v4266, 0.008332121
        %v4268 = vmul.f32 %v4265, %v4267
        %v4269 = vadd.f32 %v4268, -0.16666654
        %v4270 = vmul.f32 %v4265, %v4269
        %v4271 = vadd.f32 %v4270, 1.0
        %v4272 = vmul.f32 %v4271, %v4256
        %vm4273 = vweird.f32 %v880
        %v4274 = vadd.s32 %v4257, 3
        %v4275 = vand.u32 %v4274, 3
        %vm4276 = vcmp.lt.s32.totalorder %v4275, 2
        %vm4277 = vcmp.eq.s32.totalorder %v4275, 0
        %v4278 = vxor.u32 %v4272, 2147483648
        %v4279 = vsel %vm4277, %v4264, %v4278
        %vm4280 = vcmp.eq.s32.totalorder %v4275, 2
        %v4281 = vxor.u32 %v4264, 2147483648
        %v4282 = vsel %vm4280, %v4281, %v4272
        %v4283 = vsel %vm4276, %v4279, %v4282
        %v4284 = vsel %vm4273, nan, %v4283
        %v4285 = vand.u32 2147483647, %v881
        %vm4286 = vcmp.le.f32.partialorder %v4285, 0.7853982
        %vm4287 = vcmp.lt.s32.totalorder %v881, 0
        %v4288 = vand.u32 %v881, 2139095040
        %v4289 = vshrl.u32 %v4288, 23
        %v4290 = vsub.s32 %v4289, 127
        %v4291 = vand.u32 2147483647, %v881
        %v4292 = vand.u32 %v4291, 8388607
        %v4293 = vor.u32 %v4292, 8388608
        %v4294 = vsub.s32 0, %v4293
        %v4295 = vadd.s32 %v4290, 1
        %vm4296 = vcmp.gt.s32.totalorder %v4295, 0
        %v4297 = vsel %vm4296, %v4295, 0
        %v4298 = vshrl.u32 %v4297, 5
        %v4299 = vand.u32 %v4297, 31
        %v4300 = vsub.s32 32, %v4299
        %v4301 = vshrl.u32 683565275, %v4300
        %v4302 = vshll.u32 683565275, %v4299
        %v4303 = vshrl.u32 2475754826, %v4300
        %v4304 = vor.u32 %v4302, %v4303
        %v4305 = vshll.u32 2475754826, %v4299
        %v4306 = vshrl.u32 2131351028, %v4300
        %v4307 = vor.u32 %v4305, %v4306
        %v4308 = vshll.u32 2131351028, %v4299
        %v4309 = vshrl.u32 2102212464, %v4300
        %v4310 = vor.u32 %v4308, %v4309
        %v4311 = vshll.u32 2102212464, %v4299
        %v4312 = vshrl.u32 920167782, %v4300
        %v4313 = vor.u32 %v4311, %v4312
        %v4314 = vshll.u32 920167782, %v4299
        %v4315 = vshrl.u32 1326507024, %v4300
        %v4316 = vor.u32 %v4314, %v4315
        %vm4317 = vcmp.lt.s32.totalorder %v4298, 1
        %vm4318 = vcmp.lt.s32.totalorder %v4298, 2
        %vm4319 = vcmp.lt.s32.totalorder %v4298, 3
        %vm4320 = vcmp.lt.s32.totalorder %v4298, 4
        %v4321 = vsel %vm4317, %v4301, %v4304
        %v4322 = vsel %vm4320, %v4310, 2102212464
        %v4323 = vsel %vm4319, %v4307, %v4322
        %v4324 = vsel %vm4318, %v4321, %v4323
        %v4325 = vsel %vm4317, %v4304, %v4307
        %v4326 = vsel %vm4320, %v4313, 920167782
        %v4327 = vsel %vm4319, %v4310, %v4326
        %v4328 = vsel %vm4318, %v4325, %v4327
        %v4329 = vsel %vm4317, %v4307, %v4310
        %v4330 = vsel %vm4320, %v4316, 1326507024
        %v4331 = vsel %vm4319, %v4313, %v4330
        %v4332 = vsel %vm4318, %v4329, %v4331
        %v4333 = vshll.u32 %v4293, 8
        %v4334 = vand.u32 %v4333, 65535
        %v4335 = vshrl.u32 %v4333, 16
        %v4336 = vand.u32 %v4332, 65535
        %v4337 = vshrl.u32 %v4332, 16
        %v4338 = vmul.u32 %v4334, %v4336
        %v4339 = vmul.u32 %v4334, %v4337
        %v4340 = vmul.u32 %v4335, %v4336
        %v4341 = vmul.u32 %v4335, %v4337
        %v4342 = vshll.u32 %v4339, 16
        %v4343 = vshrl.u32 %v4339, 16
        %v4344 = vshll.u32 %v4340, 16
        %v4345 = vshrl.u32 %v4340, 16
        %vm4346 = vc.u32 %v4338, %v4342
        %v4347 = vsel %vm4346, 1, 0
        %v4348 = vadd.s32 %v4338, %v4342
        %v4349 = vadd.s32 %v4341, %v4347
        %vm4350 = vc.u32 %v4348, %v4344
        %v4351 = vsel %vm4350, 1, 0
        %v4352 = vadd.s32 %v4348, %v4344
        %v4353 = vadd.s32 %v4349, %v4351
        %v4354 = vadd.s32 %v4353, %v4343
        %v4355 = vadd.s32 %v4354, %v4345
        %v4356 = vand.u32 %v4333, 65535
        %v4357 = vshrl.u32 %v4333, 16
        %v4358 = vand.u32 %v4328, 65535
        %v4359 = vshrl.u32 %v4328, 16
        %v4360 = vmul.u32 %v4356, %v4358
        %v4361 = vmul.u32 %v4356, %v4359
        %v4362 = vmul.u32 %v4357, %v4358
        %v4363 = vmul.u32 %v4357, %v4359
        %v4364 = vshll.u32 %v4361, 16
        %v4365 = vshrl.u32 %v4361, 16
        %v4366 = vshll.u32 %v4362, 16
        %v4367 = vshrl.u32 %v4362, 16
        %vm4368 = vc.u32 %v4360, %v4364
        %v4369 = vsel %vm4368, 1, 0
        %v4370 = vadd.s32 %v4360, %v4364
        %v4371 = vadd.s32 %v4363, %v4369
        %vm4372 = vc.u32 %v4370, %v4366
        %v4373 = vsel %vm4372, 1, 0
        %v4374 = vadd.s32 %v4370, %v4366
        %v4375 = vadd.s32 %v4371, %v4373
        %v4376 = vadd.s32 %v4375, %v4365
        %v4377 = vadd.s32 %v4376, %v4367
        %v4378 = vmul.u32 %v4333, %v4324
        %v4379 = vadd.s32 %v4355, %v4374
        %vm4380 = vc.u32 %v4355, %v4374
        %v4381 = vadd.s32 %v4377, 1
        %v4382 = vsel %vm4380, %v4381, %v4377
        %v4383 = vadd.s32 %v4378, %v4382
        %v4384 = vadd.s32 %v4383, 536870912
        %v4385 = vshrl.u32 %v4384, 30
        %v4386 = vshll.u32 %v4385, 30
        %v4387 = vsub.s32 %v4383, %v4386
        %vm4388 = vcmp.lt.s32.totalorder %v4387, 0
        %v4389 = vsub.s32 0, %v4387
        %v4390 = vsel %vm4388, %v4389, %v4387
        %v4391 = vclz %v4390
        %v4392 = vsub.s32 %v4391, 2
        %vm4393 = vcmp.gt.s32.totalorder 0, %v4392
        %v4394 = vsel %vm4393, 0, %v4392
        %v4395 = vsub.s32 32, %v4394
        %v4396 = vshll.u32 %v4387, %v4394
        %v4397 = vshrl.u32 %v4379, %v4395
        %v4398 = vor.u32 %v4396, %v4397
        %v4399 = vsub.s32 4294967266, %v4394
        %v4400 = vadd.s32 %v4399, 127
        %v4401 = vshll.u32 %v4400, 23
        %v4402 = vor.u32 4788187, %v4401
        %v4403 = vand.u32 2147483647, %v4402
        %v4405 = vcvt.s32.f32 %v4398
        %v4406 = vmul.f32 %v4405, %v4403
        %v4407 = vxor.u32 %v4406, 2147483648
        %v4408 = vsel %vm4287, %v4407, %v4406
        %v4409 = vsub.s32 4, %v4385
        %v4410 = vsel %vm4287, %v4409, %v4385
        %v4411 = vsel %vm4286, %v881, %v4408
        %v4412 = vsel %vm4286, 0, %v4410
        %v4413 = vmul.f32 %v4411, %v4411
        %v4414 = vmul.f32 %v4413, -0.001358992
        %v4415 = vadd.f32 %v4414, 0.041655596
        %v4416 = vmul.f32 %v4413, %v4415
        %v4417 = vadd.f32 %v4416, -0.4999988
        %v4418 = vmul.f32 %v4413, %v4417
        %v4419 = vadd.f32 1.0, %v4418
        %v4420 = vmul.f32 %v4411, %v4411
        %v4421 = vmul.f32 %v4420, -0.00019511016
        %v4422 = vadd.f32 %v4421, 0.008332121
        %v4423 = vmul.f32 %v4420, %v4422
        %v4424 = vadd.f32 %v4423, -0.16666654
        %v4425 = vmul.f32 %v4420, %v4424
        %v4426 = vadd.f32 %v4425, 1.0
        %v4427 = vmul.f32 %v4426, %v4411
        %vm4428 = vweird.f32 %v881
        %v4429 = vadd.s32 %v4412, 3
        %v4430 = vand.u32 %v4429, 3
        %vm4431 = vcmp.lt.s32.totalorder %v4430, 2
        %vm4432 = vcmp.eq.s32.totalorder %v4430, 0
        %v4433 = vxor.u32 %v4427, 2147483648
        %v4434 = vsel %vm4432, %v4419, %v4433
        %vm4435 = vcmp.eq.s32.totalorder %v4430, 2
        %v4436 = vxor.u32 %v4419, 2147483648
        %v4437 = vsel %vm4435, %v4436, %v4427
        %v4438 = vsel %vm4431, %v4434, %v4437
        %v4439 = vsel %vm4428, nan, %v4438
        %v4440 = vand.u32 2147483647, %v882
        %vm4441 = vcmp.le.f32.partialorder %v4440, 0.7853982
        %vm4442 = vcmp.lt.s32.totalorder %v882, 0
        %v4443 = vand.u32 %v882, 2139095040
        %v4444 = vshrl.u32 %v4443, 23
        %v4445 = vsub.s32 %v4444, 127
        %v4446 = vand.u32 2147483647, %v882
        %v4447 = vand.u32 %v4446, 8388607
        %v4448 = vor.u32 %v4447, 8388608
        %v4449 = vsub.s32 0, %v4448
        %v4450 = vadd.s32 %v4445, 1
        %vm4451 = vcmp.gt.s32.totalorder %v4450, 0
        %v4452 = vsel %vm4451, %v4450, 0
        %v4453 = vshrl.u32 %v4452, 5
        %v4454 = vand.u32 %v4452, 31
        %v4455 = vsub.s32 32, %v4454
        %v4456 = vshrl.u32 683565275, %v4455
        %v4457 = vshll.u32 683565275, %v4454
        %v4458 = vshrl.u32 2475754826, %v4455
        %v4459 = vor.u32 %v4457, %v4458
        %v4460 = vshll.u32 2475754826, %v4454
        %v4461 = vshrl.u32 2131351028, %v4455
        %v4462 = vor.u32 %v4460, %v4461
        %v4463 = vshll.u32 2131351028, %v4454
        %v4464 = vshrl.u32 2102212464, %v4455
        %v4465 = vor.u32 %v4463, %v4464
        %v4466 = vshll.u32 2102212464, %v4454
        %v4467 = vshrl.u32 920167782, %v4455
        %v4468 = vor.u32 %v4466, %v4467
        %v4469 = vshll.u32 920167782, %v4454
        %v4470 = vshrl.u32 1326507024, %v4455
        %v4471 = vor.u32 %v4469, %v4470
        %vm4472 = vcmp.lt.s32.totalorder %v4453, 1
        %vm4473 = vcmp.lt.s32.totalorder %v4453, 2
        %vm4474 = vcmp.lt.s32.totalorder %v4453, 3
        %vm4475 = vcmp.lt.s32.totalorder %v4453, 4
        %v4476 = vsel %vm4472, %v4456, %v4459
        %v4477 = vsel %vm4475, %v4465, 2102212464
        %v4478 = vsel %vm4474, %v4462, %v4477
        %v4479 = vsel %vm4473, %v4476, %v4478
        %v4480 = vsel %vm4472, %v4459, %v4462
        %v4481 = vsel %vm4475, %v4468, 920167782
        %v4482 = vsel %vm4474, %v4465, %v4481
        %v4483 = vsel %vm4473, %v4480, %v4482
        %v4484 = vsel %vm4472, %v4462, %v4465
        %v4485 = vsel %vm4475, %v4471, 1326507024
        %v4486 = vsel %vm4474, %v4468, %v4485
        %v4487 = vsel %vm4473, %v4484, %v4486
        %v4488 = vshll.u32 %v4448, 8
        %v4489 = vand.u32 %v4488, 65535
        %v4490 = vshrl.u32 %v4488, 16
        %v4491 = vand.u32 %v4487, 65535
        %v4492 = vshrl.u32 %v4487, 16
        %v4493 = vmul.u32 %v4489, %v4491
        %v4494 = vmul.u32 %v4489, %v4492
        %v4495 = vmul.u32 %v4490, %v4491
        %v4496 = vmul.u32 %v4490, %v4492
        %v4497 = vshll.u32 %v4494, 16
        %v4498 = vshrl.u32 %v4494, 16
        %v4499 = vshll.u32 %v4495, 16
        %v4500 = vshrl.u32 %v4495, 16
        %vm4501 = vc.u32 %v4493, %v4497
        %v4502 = vsel %vm4501, 1, 0
        %v4503 = vadd.s32 %v4493, %v4497
        %v4504 = vadd.s32 %v4496, %v4502
        %vm4505 = vc.u32 %v4503, %v4499
        %v4506 = vsel %vm4505, 1, 0
        %v4507 = vadd.s32 %v4503, %v4499
        %v4508 = vadd.s32 %v4504, %v4506
        %v4509 = vadd.s32 %v4508, %v4498
        %v4510 = vadd.s32 %v4509, %v4500
        %v4511 = vand.u32 %v4488, 65535
        %v4512 = vshrl.u32 %v4488, 16
        %v4513 = vand.u32 %v4483, 65535
        %v4514 = vshrl.u32 %v4483, 16
        %v4515 = vmul.u32 %v4511, %v4513
        %v4516 = vmul.u32 %v4511, %v4514
        %v4517 = vmul.u32 %v4512, %v4513
        %v4518 = vmul.u32 %v4512, %v4514
        %v4519 = vshll.u32 %v4516, 16
        %v4520 = vshrl.u32 %v4516, 16
        %v4521 = vshll.u32 %v4517, 16
        %v4522 = vshrl.u32 %v4517, 16
        %vm4523 = vc.u32 %v4515, %v4519
        %v4524 = vsel %vm4523, 1, 0
        %v4525 = vadd.s32 %v4515, %v4519
        %v4526 = vadd.s32 %v4518, %v4524
        %vm4527 = vc.u32 %v4525, %v4521
        %v4528 = vsel %vm4527, 1, 0
        %v4529 = vadd.s32 %v4525, %v4521
        %v4530 = vadd.s32 %v4526, %v4528
        %v4531 = vadd.s32 %v4530, %v4520
        %v4532 = vadd.s32 %v4531, %v4522
        %v4533 = vmul.u32 %v4488, %v4479
        %v4534 = vadd.s32 %v4510, %v4529
        %vm4535 = vc.u32 %v4510, %v4529
        %v4536 = vadd.s32 %v4532, 1
        %v4537 = vsel %vm4535, %v4536, %v4532
        %v4538 = vadd.s32 %v4533, %v4537
        %v4539 = vadd.s32 %v4538, 536870912
        %v4540 = vshrl.u32 %v4539, 30
        %v4541 = vshll.u32 %v4540, 30
        %v4542 = vsub.s32 %v4538, %v4541
        %vm4543 = vcmp.lt.s32.totalorder %v4542, 0
        %v4544 = vsub.s32 0, %v4542
        %v4545 = vsel %vm4543, %v4544, %v4542
        %v4546 = vclz %v4545
        %v4547 = vsub.s32 %v4546, 2
        %vm4548 = vcmp.gt.s32.totalorder 0, %v4547
        %v4549 = vsel %vm4548, 0, %v4547
        %v4550 = vsub.s32 32, %v4549
        %v4551 = vshll.u32 %v4542, %v4549
        %v4552 = vshrl.u32 %v4534, %v4550
        %v4553 = vor.u32 %v4551, %v4552
        %v4554 = vsub.s32 4294967266, %v4549
        %v4555 = vadd.s32 %v4554, 127
        %v4556 = vshll.u32 %v4555, 23
        %v4557 = vor.u32 4788187, %v4556
        %v4558 = vand.u32 2147483647, %v4557
        %v4560 = vcvt.s32.f32 %v4553
        %v4561 = vmul.f32 %v4560, %v4558
        %v4562 = vxor.u32 %v4561, 2147483648
        %v4563 = vsel %vm4442, %v4562, %v4561
        %v4564 = vsub.s32 4, %v4540
        %v4565 = vsel %vm4442, %v4564, %v4540
        %v4566 = vsel %vm4441, %v882, %v4563
        %v4567 = vsel %vm4441, 0, %v4565
        %v4568 = vmul.f32 %v4566, %v4566
        %v4569 = vmul.f32 %v4568, -0.001358992
        %v4570 = vadd.f32 %v4569, 0.041655596
        %v4571 = vmul.f32 %v4568, %v4570
        %v4572 = vadd.f32 %v4571, -0.4999988
        %v4573 = vmul.f32 %v4568, %v4572
        %v4574 = vadd.f32 1.0, %v4573
        %v4575 = vmul.f32 %v4566, %v4566
        %v4576 = vmul.f32 %v4575, -0.00019511016
        %v4577 = vadd.f32 %v4576, 0.008332121
        %v4578 = vmul.f32 %v4575, %v4577
        %v4579 = vadd.f32 %v4578, -0.16666654
        %v4580 = vmul.f32 %v4575, %v4579
        %v4581 = vadd.f32 %v4580, 1.0
        %v4582 = vmul.f32 %v4581, %v4566
        %vm4583 = vweird.f32 %v882
        %v4584 = vadd.s32 %v4567, 3
        %v4585 = vand.u32 %v4584, 3
        %vm4586 = vcmp.lt.s32.totalorder %v4585, 2
        %vm4587 = vcmp.eq.s32.totalorder %v4585, 0
        %v4588 = vxor.u32 %v4582, 2147483648
        %v4589 = vsel %vm4587, %v4574, %v4588
        %vm4590 = vcmp.eq.s32.totalorder %v4585, 2
        %v4591 = vxor.u32 %v4574, 2147483648
        %v4592 = vsel %vm4590, %v4591, %v4582
        %v4593 = vsel %vm4586, %v4589, %v4592
        %v4594 = vsel %vm4583, nan, %v4593
        %v4595 = vand.u32 2147483647, %v883
        %vm4596 = vcmp.le.f32.partialorder %v4595, 0.7853982
        %vm4597 = vcmp.lt.s32.totalorder %v883, 0
        %v4598 = vand.u32 %v883, 2139095040
        %v4599 = vshrl.u32 %v4598, 23
        %v4600 = vsub.s32 %v4599, 127
        %v4601 = vand.u32 2147483647, %v883
        %v4602 = vand.u32 %v4601, 8388607
        %v4603 = vor.u32 %v4602, 8388608
        %v4604 = vsub.s32 0, %v4603
        %v4605 = vadd.s32 %v4600, 1
        %vm4606 = vcmp.gt.s32.totalorder %v4605, 0
        %v4607 = vsel %vm4606, %v4605, 0
        %v4608 = vshrl.u32 %v4607, 5
        %v4609 = vand.u32 %v4607, 31
        %v4610 = vsub.s32 32, %v4609
        %v4611 = vshrl.u32 683565275, %v4610
        %v4612 = vshll.u32 683565275, %v4609
        %v4613 = vshrl.u32 2475754826, %v4610
        %v4614 = vor.u32 %v4612, %v4613
        %v4615 = vshll.u32 2475754826, %v4609
        %v4616 = vshrl.u32 2131351028, %v4610
        %v4617 = vor.u32 %v4615, %v4616
        %v4618 = vshll.u32 2131351028, %v4609
        %v4619 = vshrl.u32 2102212464, %v4610
        %v4620 = vor.u32 %v4618, %v4619
        %v4621 = vshll.u32 2102212464, %v4609
        %v4622 = vshrl.u32 920167782, %v4610
        %v4623 = vor.u32 %v4621, %v4622
        %v4624 = vshll.u32 920167782, %v4609
        %v4625 = vshrl.u32 1326507024, %v4610
        %v4626 = vor.u32 %v4624, %v4625
        %vm4627 = vcmp.lt.s32.totalorder %v4608, 1
        %vm4628 = vcmp.lt.s32.totalorder %v4608, 2
        %vm4629 = vcmp.lt.s32.totalorder %v4608, 3
        %vm4630 = vcmp.lt.s32.totalorder %v4608, 4
        %v4631 = vsel %vm4627, %v4611, %v4614
        %v4632 = vsel %vm4630, %v4620, 2102212464
        %v4633 = vsel %vm4629, %v4617, %v4632
        %v4634 = vsel %vm4628, %v4631, %v4633
        %v4635 = vsel %vm4627, %v4614, %v4617
        %v4636 = vsel %vm4630, %v4623, 920167782
        %v4637 = vsel %vm4629, %v4620, %v4636
        %v4638 = vsel %vm4628, %v4635, %v4637
        %v4639 = vsel %vm4627, %v4617, %v4620
        %v4640 = vsel %vm4630, %v4626, 1326507024
        %v4641 = vsel %vm4629, %v4623, %v4640
        %v4642 = vsel %vm4628, %v4639, %v4641
        %v4643 = vshll.u32 %v4603, 8
        %v4644 = vand.u32 %v4643, 65535
        %v4645 = vshrl.u32 %v4643, 16
        %v4646 = vand.u32 %v4642, 65535
        %v4647 = vshrl.u32 %v4642, 16
        %v4648 = vmul.u32 %v4644, %v4646
        %v4649 = vmul.u32 %v4644, %v4647
        %v4650 = vmul.u32 %v4645, %v4646
        %v4651 = vmul.u32 %v4645, %v4647
        %v4652 = vshll.u32 %v4649, 16
        %v4653 = vshrl.u32 %v4649, 16
        %v4654 = vshll.u32 %v4650, 16
        %v4655 = vshrl.u32 %v4650, 16
        %vm4656 = vc.u32 %v4648, %v4652
        %v4657 = vsel %vm4656, 1, 0
        %v4658 = vadd.s32 %v4648, %v4652
        %v4659 = vadd.s32 %v4651, %v4657
        %vm4660 = vc.u32 %v4658, %v4654
        %v4661 = vsel %vm4660, 1, 0
        %v4662 = vadd.s32 %v4658, %v4654
        %v4663 = vadd.s32 %v4659, %v4661
        %v4664 = vadd.s32 %v4663, %v4653
        %v4665 = vadd.s32 %v4664, %v4655
        %v4666 = vand.u32 %v4643, 65535
        %v4667 = vshrl.u32 %v4643, 16
        %v4668 = vand.u32 %v4638, 65535
        %v4669 = vshrl.u32 %v4638, 16
        %v4670 = vmul.u32 %v4666, %v4668
        %v4671 = vmul.u32 %v4666, %v4669
        %v4672 = vmul.u32 %v4667, %v4668
        %v4673 = vmul.u32 %v4667, %v4669
        %v4674 = vshll.u32 %v4671, 16
        %v4675 = vshrl.u32 %v4671, 16
        %v4676 = vshll.u32 %v4672, 16
        %v4677 = vshrl.u32 %v4672, 16
        %vm4678 = vc.u32 %v4670, %v4674
        %v4679 = vsel %vm4678, 1, 0
        %v4680 = vadd.s32 %v4670, %v4674
        %v4681 = vadd.s32 %v4673, %v4679
        %vm4682 = vc.u32 %v4680, %v4676
        %v4683 = vsel %vm4682, 1, 0
        %v4684 = vadd.s32 %v4680, %v4676
        %v4685 = vadd.s32 %v4681, %v4683
        %v4686 = vadd.s32 %v4685, %v4675
        %v4687 = vadd.s32 %v4686, %v4677
        %v4688 = vmul.u32 %v4643, %v4634
        %v4689 = vadd.s32 %v4665, %v4684
        %vm4690 = vc.u32 %v4665, %v4684
        %v4691 = vadd.s32 %v4687, 1
        %v4692 = vsel %vm4690, %v4691, %v4687
        %v4693 = vadd.s32 %v4688, %v4692
        %v4694 = vadd.s32 %v4693, 536870912
        %v4695 = vshrl.u32 %v4694, 30
        %v4696 = vshll.u32 %v4695, 30
        %v4697 = vsub.s32 %v4693, %v4696
        %vm4698 = vcmp.lt.s32.totalorder %v4697, 0
        %v4699 = vsub.s32 0, %v4697
        %v4700 = vsel %vm4698, %v4699, %v4697
        %v4701 = vclz %v4700
        %v4702 = vsub.s32 %v4701, 2
        %vm4703 = vcmp.gt.s32.totalorder 0, %v4702
        %v4704 = vsel %vm4703, 0, %v4702
        %v4705 = vsub.s32 32, %v4704
        %v4706 = vshll.u32 %v4697, %v4704
        %v4707 = vshrl.u32 %v4689, %v4705
        %v4708 = vor.u32 %v4706, %v4707
        %v4709 = vsub.s32 4294967266, %v4704
        %v4710 = vadd.s32 %v4709, 127
        %v4711 = vshll.u32 %v4710, 23
        %v4712 = vor.u32 4788187, %v4711
        %v4713 = vand.u32 2147483647, %v4712
        %v4715 = vcvt.s32.f32 %v4708
        %v4716 = vmul.f32 %v4715, %v4713
        %v4717 = vxor.u32 %v4716, 2147483648
        %v4718 = vsel %vm4597, %v4717, %v4716
        %v4719 = vsub.s32 4, %v4695
        %v4720 = vsel %vm4597, %v4719, %v4695
        %v4721 = vsel %vm4596, %v883, %v4718
        %v4722 = vsel %vm4596, 0, %v4720
        %v4723 = vmul.f32 %v4721, %v4721
        %v4724 = vmul.f32 %v4723, -0.001358992
        %v4725 = vadd.f32 %v4724, 0.041655596
        %v4726 = vmul.f32 %v4723, %v4725
        %v4727 = vadd.f32 %v4726, -0.4999988
        %v4728 = vmul.f32 %v4723, %v4727
        %v4729 = vadd.f32 1.0, %v4728
        %v4730 = vmul.f32 %v4721, %v4721
        %v4731 = vmul.f32 %v4730, -0.00019511016
        %v4732 = vadd.f32 %v4731, 0.008332121
        %v4733 = vmul.f32 %v4730, %v4732
        %v4734 = vadd.f32 %v4733, -0.16666654
        %v4735 = vmul.f32 %v4730, %v4734
        %v4736 = vadd.f32 %v4735, 1.0
        %v4737 = vmul.f32 %v4736, %v4721
        %vm4738 = vweird.f32 %v883
        %v4739 = vadd.s32 %v4722, 3
        %v4740 = vand.u32 %v4739, 3
        %vm4741 = vcmp.lt.s32.totalorder %v4740, 2
        %vm4742 = vcmp.eq.s32.totalorder %v4740, 0
        %v4743 = vxor.u32 %v4737, 2147483648
        %v4744 = vsel %vm4742, %v4729, %v4743
        %vm4745 = vcmp.eq.s32.totalorder %v4740, 2
        %v4746 = vxor.u32 %v4729, 2147483648
        %v4747 = vsel %vm4745, %v4746, %v4737
        %v4748 = vsel %vm4741, %v4744, %v4747
        %v4749 = vsel %vm4738, nan, %v4748
        %v4750 = vand.u32 2147483647, %v884
        %vm4751 = vcmp.le.f32.partialorder %v4750, 0.7853982
        %vm4752 = vcmp.lt.s32.totalorder %v884, 0
        %v4753 = vand.u32 %v884, 2139095040
        %v4754 = vshrl.u32 %v4753, 23
        %v4755 = vsub.s32 %v4754, 127
        %v4756 = vand.u32 2147483647, %v884
        %v4757 = vand.u32 %v4756, 8388607
        %v4758 = vor.u32 %v4757, 8388608
        %v4759 = vsub.s32 0, %v4758
        %v4760 = vadd.s32 %v4755, 1
        %vm4761 = vcmp.gt.s32.totalorder %v4760, 0
        %v4762 = vsel %vm4761, %v4760, 0
        %v4763 = vshrl.u32 %v4762, 5
        %v4764 = vand.u32 %v4762, 31
        %v4765 = vsub.s32 32, %v4764
        %v4766 = vshrl.u32 683565275, %v4765
        %v4767 = vshll.u32 683565275, %v4764
        %v4768 = vshrl.u32 2475754826, %v4765
        %v4769 = vor.u32 %v4767, %v4768
        %v4770 = vshll.u32 2475754826, %v4764
        %v4771 = vshrl.u32 2131351028, %v4765
        %v4772 = vor.u32 %v4770, %v4771
        %v4773 = vshll.u32 2131351028, %v4764
        %v4774 = vshrl.u32 2102212464, %v4765
        %v4775 = vor.u32 %v4773, %v4774
        %v4776 = vshll.u32 2102212464, %v4764
        %v4777 = vshrl.u32 920167782, %v4765
        %v4778 = vor.u32 %v4776, %v4777
        %v4779 = vshll.u32 920167782, %v4764
        %v4780 = vshrl.u32 1326507024, %v4765
        %v4781 = vor.u32 %v4779, %v4780
        %vm4782 = vcmp.lt.s32.totalorder %v4763, 1
        %vm4783 = vcmp.lt.s32.totalorder %v4763, 2
        %vm4784 = vcmp.lt.s32.totalorder %v4763, 3
        %vm4785 = vcmp.lt.s32.totalorder %v4763, 4
        %v4786 = vsel %vm4782, %v4766, %v4769
        %v4787 = vsel %vm4785, %v4775, 2102212464
        %v4788 = vsel %vm4784, %v4772, %v4787
        %v4789 = vsel %vm4783, %v4786, %v4788
        %v4790 = vsel %vm4782, %v4769, %v4772
        %v4791 = vsel %vm4785, %v4778, 920167782
        %v4792 = vsel %vm4784, %v4775, %v4791
        %v4793 = vsel %vm4783, %v4790, %v4792
        %v4794 = vsel %vm4782, %v4772, %v4775
        %v4795 = vsel %vm4785, %v4781, 1326507024
        %v4796 = vsel %vm4784, %v4778, %v4795
        %v4797 = vsel %vm4783, %v4794, %v4796
        %v4798 = vshll.u32 %v4758, 8
        %v4799 = vand.u32 %v4798, 65535
        %v4800 = vshrl.u32 %v4798, 16
        %v4801 = vand.u32 %v4797, 65535
        %v4802 = vshrl.u32 %v4797, 16
        %v4803 = vmul.u32 %v4799, %v4801
        %v4804 = vmul.u32 %v4799, %v4802
        %v4805 = vmul.u32 %v4800, %v4801
        %v4806 = vmul.u32 %v4800, %v4802
        %v4807 = vshll.u32 %v4804, 16
        %v4808 = vshrl.u32 %v4804, 16
        %v4809 = vshll.u32 %v4805, 16
        %v4810 = vshrl.u32 %v4805, 16
        %vm4811 = vc.u32 %v4803, %v4807
        %v4812 = vsel %vm4811, 1, 0
        %v4813 = vadd.s32 %v4803, %v4807
        %v4814 = vadd.s32 %v4806, %v4812
        %vm4815 = vc.u32 %v4813, %v4809
        %v4816 = vsel %vm4815, 1, 0
        %v4817 = vadd.s32 %v4813, %v4809
        %v4818 = vadd.s32 %v4814, %v4816
        %v4819 = vadd.s32 %v4818, %v4808
        %v4820 = vadd.s32 %v4819, %v4810
        %v4821 = vand.u32 %v4798, 65535
        %v4822 = vshrl.u32 %v4798, 16
        %v4823 = vand.u32 %v4793, 65535
        %v4824 = vshrl.u32 %v4793, 16
        %v4825 = vmul.u32 %v4821, %v4823
        %v4826 = vmul.u32 %v4821, %v4824
        %v4827 = vmul.u32 %v4822, %v4823
        %v4828 = vmul.u32 %v4822, %v4824
        %v4829 = vshll.u32 %v4826, 16
        %v4830 = vshrl.u32 %v4826, 16
        %v4831 = vshll.u32 %v4827, 16
        %v4832 = vshrl.u32 %v4827, 16
        %vm4833 = vc.u32 %v4825, %v4829
        %v4834 = vsel %vm4833, 1, 0
        %v4835 = vadd.s32 %v4825, %v4829
        %v4836 = vadd.s32 %v4828, %v4834
        %vm4837 = vc.u32 %v4835, %v4831
        %v4838 = vsel %vm4837, 1, 0
        %v4839 = vadd.s32 %v4835, %v4831
        %v4840 = vadd.s32 %v4836, %v4838
        %v4841 = vadd.s32 %v4840, %v4830
        %v4842 = vadd.s32 %v4841, %v4832
        %v4843 = vmul.u32 %v4798, %v4789
        %v4844 = vadd.s32 %v4820, %v4839
        %vm4845 = vc.u32 %v4820, %v4839
        %v4846 = vadd.s32 %v4842, 1
        %v4847 = vsel %vm4845, %v4846, %v4842
        %v4848 = vadd.s32 %v4843, %v4847
        %v4849 = vadd.s32 %v4848, 536870912
        %v4850 = vshrl.u32 %v4849, 30
        %v4851 = vshll.u32 %v4850, 30
        %v4852 = vsub.s32 %v4848, %v4851
        %vm4853 = vcmp.lt.s32.totalorder %v4852, 0
        %v4854 = vsub.s32 0, %v4852
        %v4855 = vsel %vm4853, %v4854, %v4852
        %v4856 = vclz %v4855
        %v4857 = vsub.s32 %v4856, 2
        %vm4858 = vcmp.gt.s32.totalorder 0, %v4857
        %v4859 = vsel %vm4858, 0, %v4857
        %v4860 = vsub.s32 32, %v4859
        %v4861 = vshll.u32 %v4852, %v4859
        %v4862 = vshrl.u32 %v4844, %v4860
        %v4863 = vor.u32 %v4861, %v4862
        %v4864 = vsub.s32 4294967266, %v4859
        %v4865 = vadd.s32 %v4864, 127
        %v4866 = vshll.u32 %v4865, 23
        %v4867 = vor.u32 4788187, %v4866
        %v4868 = vand.u32 2147483647, %v4867
        %v4870 = vcvt.s32.f32 %v4863
        %v4871 = vmul.f32 %v4870, %v4868
        %v4872 = vxor.u32 %v4871, 2147483648
        %v4873 = vsel %vm4752, %v4872, %v4871
        %v4874 = vsub.s32 4, %v4850
        %v4875 = vsel %vm4752, %v4874, %v4850
        %v4876 = vsel %vm4751, %v884, %v4873
        %v4877 = vsel %vm4751, 0, %v4875
        %v4878 = vmul.f32 %v4876, %v4876
        %v4879 = vmul.f32 %v4878, -0.001358992
        %v4880 = vadd.f32 %v4879, 0.041655596
        %v4881 = vmul.f32 %v4878, %v4880
        %v4882 = vadd.f32 %v4881, -0.4999988
        %v4883 = vmul.f32 %v4878, %v4882
        %v4884 = vadd.f32 1.0, %v4883
        %v4885 = vmul.f32 %v4876, %v4876
        %v4886 = vmul.f32 %v4885, -0.00019511016
        %v4887 = vadd.f32 %v4886, 0.008332121
        %v4888 = vmul.f32 %v4885, %v4887
        %v4889 = vadd.f32 %v4888, -0.16666654
        %v4890 = vmul.f32 %v4885, %v4889
        %v4891 = vadd.f32 %v4890, 1.0
        %v4892 = vmul.f32 %v4891, %v4876
        %vm4893 = vweird.f32 %v884
        %v4894 = vadd.s32 %v4877, 3
        %v4895 = vand.u32 %v4894, 3
        %vm4896 = vcmp.lt.s32.totalorder %v4895, 2
        %vm4897 = vcmp.eq.s32.totalorder %v4895, 0
        %v4898 = vxor.u32 %v4892, 2147483648
        %v4899 = vsel %vm4897, %v4884, %v4898
        %vm4900 = vcmp.eq.s32.totalorder %v4895, 2
        %v4901 = vxor.u32 %v4884, 2147483648
        %v4902 = vsel %vm4900, %v4901, %v4892
        %v4903 = vsel %vm4896, %v4899, %v4902
        %v4904 = vsel %vm4893, nan, %v4903
        %v4905 = vand.u32 2147483647, %v885
        %vm4906 = vcmp.le.f32.partialorder %v4905, 0.7853982
        %vm4907 = vcmp.lt.s32.totalorder %v885, 0
        %v4908 = vand.u32 %v885, 2139095040
        %v4909 = vshrl.u32 %v4908, 23
        %v4910 = vsub.s32 %v4909, 127
        %v4911 = vand.u32 2147483647, %v885
        %v4912 = vand.u32 %v4911, 8388607
        %v4913 = vor.u32 %v4912, 8388608
        %v4914 = vsub.s32 0, %v4913
        %v4915 = vadd.s32 %v4910, 1
        %vm4916 = vcmp.gt.s32.totalorder %v4915, 0
        %v4917 = vsel %vm4916, %v4915, 0
        %v4918 = vshrl.u32 %v4917, 5
        %v4919 = vand.u32 %v4917, 31
        %v4920 = vsub.s32 32, %v4919
        %v4921 = vshrl.u32 683565275, %v4920
        %v4922 = vshll.u32 683565275, %v4919
        %v4923 = vshrl.u32 2475754826, %v4920
        %v4924 = vor.u32 %v4922, %v4923
        %v4925 = vshll.u32 2475754826, %v4919
        %v4926 = vshrl.u32 2131351028, %v4920
        %v4927 = vor.u32 %v4925, %v4926
        %v4928 = vshll.u32 2131351028, %v4919
        %v4929 = vshrl.u32 2102212464, %v4920
        %v4930 = vor.u32 %v4928, %v4929
        %v4931 = vshll.u32 2102212464, %v4919
        %v4932 = vshrl.u32 920167782, %v4920
        %v4933 = vor.u32 %v4931, %v4932
        %v4934 = vshll.u32 920167782, %v4919
        %v4935 = vshrl.u32 1326507024, %v4920
        %v4936 = vor.u32 %v4934, %v4935
        %vm4937 = vcmp.lt.s32.totalorder %v4918, 1
        %vm4938 = vcmp.lt.s32.totalorder %v4918, 2
        %vm4939 = vcmp.lt.s32.totalorder %v4918, 3
        %vm4940 = vcmp.lt.s32.totalorder %v4918, 4
        %v4941 = vsel %vm4937, %v4921, %v4924
        %v4942 = vsel %vm4940, %v4930, 2102212464
        %v4943 = vsel %vm4939, %v4927, %v4942
        %v4944 = vsel %vm4938, %v4941, %v4943
        %v4945 = vsel %vm4937, %v4924, %v4927
        %v4946 = vsel %vm4940, %v4933, 920167782
        %v4947 = vsel %vm4939, %v4930, %v4946
        %v4948 = vsel %vm4938, %v4945, %v4947
        %v4949 = vsel %vm4937, %v4927, %v4930
        %v4950 = vsel %vm4940, %v4936, 1326507024
        %v4951 = vsel %vm4939, %v4933, %v4950
        %v4952 = vsel %vm4938, %v4949, %v4951
        %v4953 = vshll.u32 %v4913, 8
        %v4954 = vand.u32 %v4953, 65535
        %v4955 = vshrl.u32 %v4953, 16
        %v4956 = vand.u32 %v4952, 65535
        %v4957 = vshrl.u32 %v4952, 16
        %v4958 = vmul.u32 %v4954, %v4956
        %v4959 = vmul.u32 %v4954, %v4957
        %v4960 = vmul.u32 %v4955, %v4956
        %v4961 = vmul.u32 %v4955, %v4957
        %v4962 = vshll.u32 %v4959, 16
        %v4963 = vshrl.u32 %v4959, 16
        %v4964 = vshll.u32 %v4960, 16
        %v4965 = vshrl.u32 %v4960, 16
        %vm4966 = vc.u32 %v4958, %v4962
        %v4967 = vsel %vm4966, 1, 0
        %v4968 = vadd.s32 %v4958, %v4962
        %v4969 = vadd.s32 %v4961, %v4967
        %vm4970 = vc.u32 %v4968, %v4964
        %v4971 = vsel %vm4970, 1, 0
        %v4972 = vadd.s32 %v4968, %v4964
        %v4973 = vadd.s32 %v4969, %v4971
        %v4974 = vadd.s32 %v4973, %v4963
        %v4975 = vadd.s32 %v4974, %v4965
        %v4976 = vand.u32 %v4953, 65535
        %v4977 = vshrl.u32 %v4953, 16
        %v4978 = vand.u32 %v4948, 65535
        %v4979 = vshrl.u32 %v4948, 16
        %v4980 = vmul.u32 %v4976, %v4978
        %v4981 = vmul.u32 %v4976, %v4979
        %v4982 = vmul.u32 %v4977, %v4978
        %v4983 = vmul.u32 %v4977, %v4979
        %v4984 = vshll.u32 %v4981, 16
        %v4985 = vshrl.u32 %v4981, 16
        %v4986 = vshll.u32 %v4982, 16
        %v4987 = vshrl.u32 %v4982, 16
        %vm4988 = vc.u32 %v4980, %v4984
        %v4989 = vsel %vm4988, 1, 0
        %v4990 = vadd.s32 %v4980, %v4984
        %v4991 = vadd.s32 %v4983, %v4989
        %vm4992 = vc.u32 %v4990, %v4986
        %v4993 = vsel %vm4992, 1, 0
        %v4994 = vadd.s32 %v4990, %v4986
        %v4995 = vadd.s32 %v4991, %v4993
        %v4996 = vadd.s32 %v4995, %v4985
        %v4997 = vadd.s32 %v4996, %v4987
        %v4998 = vmul.u32 %v4953, %v4944
        %v4999 = vadd.s32 %v4975, %v4994
        %vm5000 = vc.u32 %v4975, %v4994
        %v5001 = vadd.s32 %v4997, 1
        %v5002 = vsel %vm5000, %v5001, %v4997
        %v5003 = vadd.s32 %v4998, %v5002
        %v5004 = vadd.s32 %v5003, 536870912
        %v5005 = vshrl.u32 %v5004, 30
        %v5006 = vshll.u32 %v5005, 30
        %v5007 = vsub.s32 %v5003, %v5006
        %vm5008 = vcmp.lt.s32.totalorder %v5007, 0
        %v5009 = vsub.s32 0, %v5007
        %v5010 = vsel %vm5008, %v5009, %v5007
        %v5011 = vclz %v5010
        %v5012 = vsub.s32 %v5011, 2
        %vm5013 = vcmp.gt.s32.totalorder 0, %v5012
        %v5014 = vsel %vm5013, 0, %v5012
        %v5015 = vsub.s32 32, %v5014
        %v5016 = vshll.u32 %v5007, %v5014
        %v5017 = vshrl.u32 %v4999, %v5015
        %v5018 = vor.u32 %v5016, %v5017
        %v5019 = vsub.s32 4294967266, %v5014
        %v5020 = vadd.s32 %v5019, 127
        %v5021 = vshll.u32 %v5020, 23
        %v5022 = vor.u32 4788187, %v5021
        %v5023 = vand.u32 2147483647, %v5022
        %v5025 = vcvt.s32.f32 %v5018
        %v5026 = vmul.f32 %v5025, %v5023
        %v5027 = vxor.u32 %v5026, 2147483648
        %v5028 = vsel %vm4907, %v5027, %v5026
        %v5029 = vsub.s32 4, %v5005
        %v5030 = vsel %vm4907, %v5029, %v5005
        %v5031 = vsel %vm4906, %v885, %v5028
        %v5032 = vsel %vm4906, 0, %v5030
        %v5033 = vmul.f32 %v5031, %v5031
        %v5034 = vmul.f32 %v5033, -0.001358992
        %v5035 = vadd.f32 %v5034, 0.041655596
        %v5036 = vmul.f32 %v5033, %v5035
        %v5037 = vadd.f32 %v5036, -0.4999988
        %v5038 = vmul.f32 %v5033, %v5037
        %v5039 = vadd.f32 1.0, %v5038
        %v5040 = vmul.f32 %v5031, %v5031
        %v5041 = vmul.f32 %v5040, -0.00019511016
        %v5042 = vadd.f32 %v5041, 0.008332121
        %v5043 = vmul.f32 %v5040, %v5042
        %v5044 = vadd.f32 %v5043, -0.16666654
        %v5045 = vmul.f32 %v5040, %v5044
        %v5046 = vadd.f32 %v5045, 1.0
        %v5047 = vmul.f32 %v5046, %v5031
        %vm5048 = vweird.f32 %v885
        %v5049 = vadd.s32 %v5032, 3
        %v5050 = vand.u32 %v5049, 3
        %vm5051 = vcmp.lt.s32.totalorder %v5050, 2
        %vm5052 = vcmp.eq.s32.totalorder %v5050, 0
        %v5053 = vxor.u32 %v5047, 2147483648
        %v5054 = vsel %vm5052, %v5039, %v5053
        %vm5055 = vcmp.eq.s32.totalorder %v5050, 2
        %v5056 = vxor.u32 %v5039, 2147483648
        %v5057 = vsel %vm5055, %v5056, %v5047
        %v5058 = vsel %vm5051, %v5054, %v5057
        %v5059 = vsel %vm5048, nan, %v5058
        %v5060 = vand.u32 2147483647, %v886
        %vm5061 = vcmp.le.f32.partialorder %v5060, 0.7853982
        %vm5062 = vcmp.lt.s32.totalorder %v886, 0
        %v5063 = vand.u32 %v886, 2139095040
        %v5064 = vshrl.u32 %v5063, 23
        %v5065 = vsub.s32 %v5064, 127
        %v5066 = vand.u32 2147483647, %v886
        %v5067 = vand.u32 %v5066, 8388607
        %v5068 = vor.u32 %v5067, 8388608
        %v5069 = vsub.s32 0, %v5068
        %v5070 = vadd.s32 %v5065, 1
        %vm5071 = vcmp.gt.s32.totalorder %v5070, 0
        %v5072 = vsel %vm5071, %v5070, 0
        %v5073 = vshrl.u32 %v5072, 5
        %v5074 = vand.u32 %v5072, 31
        %v5075 = vsub.s32 32, %v5074
        %v5076 = vshrl.u32 683565275, %v5075
        %v5077 = vshll.u32 683565275, %v5074
        %v5078 = vshrl.u32 2475754826, %v5075
        %v5079 = vor.u32 %v5077, %v5078
        %v5080 = vshll.u32 2475754826, %v5074
        %v5081 = vshrl.u32 2131351028, %v5075
        %v5082 = vor.u32 %v5080, %v5081
        %v5083 = vshll.u32 2131351028, %v5074
        %v5084 = vshrl.u32 2102212464, %v5075
        %v5085 = vor.u32 %v5083, %v5084
        %v5086 = vshll.u32 2102212464, %v5074
        %v5087 = vshrl.u32 920167782, %v5075
        %v5088 = vor.u32 %v5086, %v5087
        %v5089 = vshll.u32 920167782, %v5074
        %v5090 = vshrl.u32 1326507024, %v5075
        %v5091 = vor.u32 %v5089, %v5090
        %vm5092 = vcmp.lt.s32.totalorder %v5073, 1
        %vm5093 = vcmp.lt.s32.totalorder %v5073, 2
        %vm5094 = vcmp.lt.s32.totalorder %v5073, 3
        %vm5095 = vcmp.lt.s32.totalorder %v5073, 4
        %v5096 = vsel %vm5092, %v5076, %v5079
        %v5097 = vsel %vm5095, %v5085, 2102212464
        %v5098 = vsel %vm5094, %v5082, %v5097
        %v5099 = vsel %vm5093, %v5096, %v5098
        %v5100 = vsel %vm5092, %v5079, %v5082
        %v5101 = vsel %vm5095, %v5088, 920167782
        %v5102 = vsel %vm5094, %v5085, %v5101
        %v5103 = vsel %vm5093, %v5100, %v5102
        %v5104 = vsel %vm5092, %v5082, %v5085
        %v5105 = vsel %vm5095, %v5091, 1326507024
        %v5106 = vsel %vm5094, %v5088, %v5105
        %v5107 = vsel %vm5093, %v5104, %v5106
        %v5108 = vshll.u32 %v5068, 8
        %v5109 = vand.u32 %v5108, 65535
        %v5110 = vshrl.u32 %v5108, 16
        %v5111 = vand.u32 %v5107, 65535
        %v5112 = vshrl.u32 %v5107, 16
        %v5113 = vmul.u32 %v5109, %v5111
        %v5114 = vmul.u32 %v5109, %v5112
        %v5115 = vmul.u32 %v5110, %v5111
        %v5116 = vmul.u32 %v5110, %v5112
        %v5117 = vshll.u32 %v5114, 16
        %v5118 = vshrl.u32 %v5114, 16
        %v5119 = vshll.u32 %v5115, 16
        %v5120 = vshrl.u32 %v5115, 16
        %vm5121 = vc.u32 %v5113, %v5117
        %v5122 = vsel %vm5121, 1, 0
        %v5123 = vadd.s32 %v5113, %v5117
        %v5124 = vadd.s32 %v5116, %v5122
        %vm5125 = vc.u32 %v5123, %v5119
        %v5126 = vsel %vm5125, 1, 0
        %v5127 = vadd.s32 %v5123, %v5119
        %v5128 = vadd.s32 %v5124, %v5126
        %v5129 = vadd.s32 %v5128, %v5118
        %v5130 = vadd.s32 %v5129, %v5120
        %v5131 = vand.u32 %v5108, 65535
        %v5132 = vshrl.u32 %v5108, 16
        %v5133 = vand.u32 %v5103, 65535
        %v5134 = vshrl.u32 %v5103, 16
        %v5135 = vmul.u32 %v5131, %v5133
        %v5136 = vmul.u32 %v5131, %v5134
        %v5137 = vmul.u32 %v5132, %v5133
        %v5138 = vmul.u32 %v5132, %v5134
        %v5139 = vshll.u32 %v5136, 16
        %v5140 = vshrl.u32 %v5136, 16
        %v5141 = vshll.u32 %v5137, 16
        %v5142 = vshrl.u32 %v5137, 16
        %vm5143 = vc.u32 %v5135, %v5139
        %v5144 = vsel %vm5143, 1, 0
        %v5145 = vadd.s32 %v5135, %v5139
        %v5146 = vadd.s32 %v5138, %v5144
        %vm5147 = vc.u32 %v5145, %v5141
        %v5148 = vsel %vm5147, 1, 0
        %v5149 = vadd.s32 %v5145, %v5141
        %v5150 = vadd.s32 %v5146, %v5148
        %v5151 = vadd.s32 %v5150, %v5140
        %v5152 = vadd.s32 %v5151, %v5142
        %v5153 = vmul.u32 %v5108, %v5099
        %v5154 = vadd.s32 %v5130, %v5149
        %vm5155 = vc.u32 %v5130, %v5149
        %v5156 = vadd.s32 %v5152, 1
        %v5157 = vsel %vm5155, %v5156, %v5152
        %v5158 = vadd.s32 %v5153, %v5157
        %v5159 = vadd.s32 %v5158, 536870912
        %v5160 = vshrl.u32 %v5159, 30
        %v5161 = vshll.u32 %v5160, 30
        %v5162 = vsub.s32 %v5158, %v5161
        %vm5163 = vcmp.lt.s32.totalorder %v5162, 0
        %v5164 = vsub.s32 0, %v5162
        %v5165 = vsel %vm5163, %v5164, %v5162
        %v5166 = vclz %v5165
        %v5167 = vsub.s32 %v5166, 2
        %vm5168 = vcmp.gt.s32.totalorder 0, %v5167
        %v5169 = vsel %vm5168, 0, %v5167
        %v5170 = vsub.s32 32, %v5169
        %v5171 = vshll.u32 %v5162, %v5169
        %v5172 = vshrl.u32 %v5154, %v5170
        %v5173 = vor.u32 %v5171, %v5172
        %v5174 = vsub.s32 4294967266, %v5169
        %v5175 = vadd.s32 %v5174, 127
        %v5176 = vshll.u32 %v5175, 23
        %v5177 = vor.u32 4788187, %v5176
        %v5178 = vand.u32 2147483647, %v5177
        %v5180 = vcvt.s32.f32 %v5173
        %v5181 = vmul.f32 %v5180, %v5178
        %v5182 = vxor.u32 %v5181, 2147483648
        %v5183 = vsel %vm5062, %v5182, %v5181
        %v5184 = vsub.s32 4, %v5160
        %v5185 = vsel %vm5062, %v5184, %v5160
        %v5186 = vsel %vm5061, %v886, %v5183
        %v5187 = vsel %vm5061, 0, %v5185
        %v5188 = vmul.f32 %v5186, %v5186
        %v5189 = vmul.f32 %v5188, -0.001358992
        %v5190 = vadd.f32 %v5189, 0.041655596
        %v5191 = vmul.f32 %v5188, %v5190
        %v5192 = vadd.f32 %v5191, -0.4999988
        %v5193 = vmul.f32 %v5188, %v5192
        %v5194 = vadd.f32 1.0, %v5193
        %v5195 = vmul.f32 %v5186, %v5186
        %v5196 = vmul.f32 %v5195, -0.00019511016
        %v5197 = vadd.f32 %v5196, 0.008332121
        %v5198 = vmul.f32 %v5195, %v5197
        %v5199 = vadd.f32 %v5198, -0.16666654
        %v5200 = vmul.f32 %v5195, %v5199
        %v5201 = vadd.f32 %v5200, 1.0
        %v5202 = vmul.f32 %v5201, %v5186
        %vm5203 = vweird.f32 %v886
        %v5204 = vadd.s32 %v5187, 3
        %v5205 = vand.u32 %v5204, 3
        %vm5206 = vcmp.lt.s32.totalorder %v5205, 2
        %vm5207 = vcmp.eq.s32.totalorder %v5205, 0
        %v5208 = vxor.u32 %v5202, 2147483648
        %v5209 = vsel %vm5207, %v5194, %v5208
        %vm5210 = vcmp.eq.s32.totalorder %v5205, 2
        %v5211 = vxor.u32 %v5194, 2147483648
        %v5212 = vsel %vm5210, %v5211, %v5202
        %v5213 = vsel %vm5206, %v5209, %v5212
        %v5214 = vsel %vm5203, nan, %v5213
        %v5215 = vand.u32 2147483647, %v887
        %vm5216 = vcmp.le.f32.partialorder %v5215, 0.7853982
        %vm5217 = vcmp.lt.s32.totalorder %v887, 0
        %v5218 = vand.u32 %v887, 2139095040
        %v5219 = vshrl.u32 %v5218, 23
        %v5220 = vsub.s32 %v5219, 127
        %v5221 = vand.u32 2147483647, %v887
        %v5222 = vand.u32 %v5221, 8388607
        %v5223 = vor.u32 %v5222, 8388608
        %v5224 = vsub.s32 0, %v5223
        %v5225 = vadd.s32 %v5220, 1
        %vm5226 = vcmp.gt.s32.totalorder %v5225, 0
        %v5227 = vsel %vm5226, %v5225, 0
        %v5228 = vshrl.u32 %v5227, 5
        %v5229 = vand.u32 %v5227, 31
        %v5230 = vsub.s32 32, %v5229
        %v5231 = vshrl.u32 683565275, %v5230
        %v5232 = vshll.u32 683565275, %v5229
        %v5233 = vshrl.u32 2475754826, %v5230
        %v5234 = vor.u32 %v5232, %v5233
        %v5235 = vshll.u32 2475754826, %v5229
        %v5236 = vshrl.u32 2131351028, %v5230
        %v5237 = vor.u32 %v5235, %v5236
        %v5238 = vshll.u32 2131351028, %v5229
        %v5239 = vshrl.u32 2102212464, %v5230
        %v5240 = vor.u32 %v5238, %v5239
        %v5241 = vshll.u32 2102212464, %v5229
        %v5242 = vshrl.u32 920167782, %v5230
        %v5243 = vor.u32 %v5241, %v5242
        %v5244 = vshll.u32 920167782, %v5229
        %v5245 = vshrl.u32 1326507024, %v5230
        %v5246 = vor.u32 %v5244, %v5245
        %vm5247 = vcmp.lt.s32.totalorder %v5228, 1
        %vm5248 = vcmp.lt.s32.totalorder %v5228, 2
        %vm5249 = vcmp.lt.s32.totalorder %v5228, 3
        %vm5250 = vcmp.lt.s32.totalorder %v5228, 4
        %v5251 = vsel %vm5247, %v5231, %v5234
        %v5252 = vsel %vm5250, %v5240, 2102212464
        %v5253 = vsel %vm5249, %v5237, %v5252
        %v5254 = vsel %vm5248, %v5251, %v5253
        %v5255 = vsel %vm5247, %v5234, %v5237
        %v5256 = vsel %vm5250, %v5243, 920167782
        %v5257 = vsel %vm5249, %v5240, %v5256
        %v5258 = vsel %vm5248, %v5255, %v5257
        %v5259 = vsel %vm5247, %v5237, %v5240
        %v5260 = vsel %vm5250, %v5246, 1326507024
        %v5261 = vsel %vm5249, %v5243, %v5260
        %v5262 = vsel %vm5248, %v5259, %v5261
        %v5263 = vshll.u32 %v5223, 8
        %v5264 = vand.u32 %v5263, 65535
        %v5265 = vshrl.u32 %v5263, 16
        %v5266 = vand.u32 %v5262, 65535
        %v5267 = vshrl.u32 %v5262, 16
        %v5268 = vmul.u32 %v5264, %v5266
        %v5269 = vmul.u32 %v5264, %v5267
        %v5270 = vmul.u32 %v5265, %v5266
        %v5271 = vmul.u32 %v5265, %v5267
        %v5272 = vshll.u32 %v5269, 16
        %v5273 = vshrl.u32 %v5269, 16
        %v5274 = vshll.u32 %v5270, 16
        %v5275 = vshrl.u32 %v5270, 16
        %vm5276 = vc.u32 %v5268, %v5272
        %v5277 = vsel %vm5276, 1, 0
        %v5278 = vadd.s32 %v5268, %v5272
        %v5279 = vadd.s32 %v5271, %v5277
        %vm5280 = vc.u32 %v5278, %v5274
        %v5281 = vsel %vm5280, 1, 0
        %v5282 = vadd.s32 %v5278, %v5274
        %v5283 = vadd.s32 %v5279, %v5281
        %v5284 = vadd.s32 %v5283, %v5273
        %v5285 = vadd.s32 %v5284, %v5275
        %v5286 = vand.u32 %v5263, 65535
        %v5287 = vshrl.u32 %v5263, 16
        %v5288 = vand.u32 %v5258, 65535
        %v5289 = vshrl.u32 %v5258, 16
        %v5290 = vmul.u32 %v5286, %v5288
        %v5291 = vmul.u32 %v5286, %v5289
        %v5292 = vmul.u32 %v5287, %v5288
        %v5293 = vmul.u32 %v5287, %v5289
        %v5294 = vshll.u32 %v5291, 16
        %v5295 = vshrl.u32 %v5291, 16
        %v5296 = vshll.u32 %v5292, 16
        %v5297 = vshrl.u32 %v5292, 16
        %vm5298 = vc.u32 %v5290, %v5294
        %v5299 = vsel %vm5298, 1, 0
        %v5300 = vadd.s32 %v5290, %v5294
        %v5301 = vadd.s32 %v5293, %v5299
        %vm5302 = vc.u32 %v5300, %v5296
        %v5303 = vsel %vm5302, 1, 0
        %v5304 = vadd.s32 %v5300, %v5296
        %v5305 = vadd.s32 %v5301, %v5303
        %v5306 = vadd.s32 %v5305, %v5295
        %v5307 = vadd.s32 %v5306, %v5297
        %v5308 = vmul.u32 %v5263, %v5254
        %v5309 = vadd.s32 %v5285, %v5304
        %vm5310 = vc.u32 %v5285, %v5304
        %v5311 = vadd.s32 %v5307, 1
        %v5312 = vsel %vm5310, %v5311, %v5307
        %v5313 = vadd.s32 %v5308, %v5312
        %v5314 = vadd.s32 %v5313, 536870912
        %v5315 = vshrl.u32 %v5314, 30
        %v5316 = vshll.u32 %v5315, 30
        %v5317 = vsub.s32 %v5313, %v5316
        %vm5318 = vcmp.lt.s32.totalorder %v5317, 0
        %v5319 = vsub.s32 0, %v5317
        %v5320 = vsel %vm5318, %v5319, %v5317
        %v5321 = vclz %v5320
        %v5322 = vsub.s32 %v5321, 2
        %vm5323 = vcmp.gt.s32.totalorder 0, %v5322
        %v5324 = vsel %vm5323, 0, %v5322
        %v5325 = vsub.s32 32, %v5324
        %v5326 = vshll.u32 %v5317, %v5324
        %v5327 = vshrl.u32 %v5309, %v5325
        %v5328 = vor.u32 %v5326, %v5327
        %v5329 = vsub.s32 4294967266, %v5324
        %v5330 = vadd.s32 %v5329, 127
        %v5331 = vshll.u32 %v5330, 23
        %v5332 = vor.u32 4788187, %v5331
        %v5333 = vand.u32 2147483647, %v5332
        %v5335 = vcvt.s32.f32 %v5328
        %v5336 = vmul.f32 %v5335, %v5333
        %v5337 = vxor.u32 %v5336, 2147483648
        %v5338 = vsel %vm5217, %v5337, %v5336
        %v5339 = vsub.s32 4, %v5315
        %v5340 = vsel %vm5217, %v5339, %v5315
        %v5341 = vsel %vm5216, %v887, %v5338
        %v5342 = vsel %vm5216, 0, %v5340
        %v5343 = vmul.f32 %v5341, %v5341
        %v5344 = vmul.f32 %v5343, -0.001358992
        %v5345 = vadd.f32 %v5344, 0.041655596
        %v5346 = vmul.f32 %v5343, %v5345
        %v5347 = vadd.f32 %v5346, -0.4999988
        %v5348 = vmul.f32 %v5343, %v5347
        %v5349 = vadd.f32 1.0, %v5348
        %v5350 = vmul.f32 %v5341, %v5341
        %v5351 = vmul.f32 %v5350, -0.00019511016
        %v5352 = vadd.f32 %v5351, 0.008332121
        %v5353 = vmul.f32 %v5350, %v5352
        %v5354 = vadd.f32 %v5353, -0.16666654
        %v5355 = vmul.f32 %v5350, %v5354
        %v5356 = vadd.f32 %v5355, 1.0
        %v5357 = vmul.f32 %v5356, %v5341
        %vm5358 = vweird.f32 %v887
        %v5359 = vadd.s32 %v5342, 3
        %v5360 = vand.u32 %v5359, 3
        %vm5361 = vcmp.lt.s32.totalorder %v5360, 2
        %vm5362 = vcmp.eq.s32.totalorder %v5360, 0
        %v5363 = vxor.u32 %v5357, 2147483648
        %v5364 = vsel %vm5362, %v5349, %v5363
        %vm5365 = vcmp.eq.s32.totalorder %v5360, 2
        %v5366 = vxor.u32 %v5349, 2147483648
        %v5367 = vsel %vm5365, %v5366, %v5357
        %v5368 = vsel %vm5361, %v5364, %v5367
        %v5369 = vsel %vm5358, nan, %v5368
        %v5370 = vand.u32 2147483647, %v888
        %vm5371 = vcmp.le.f32.partialorder %v5370, 0.7853982
        %vm5372 = vcmp.lt.s32.totalorder %v888, 0
        %v5373 = vand.u32 %v888, 2139095040
        %v5374 = vshrl.u32 %v5373, 23
        %v5375 = vsub.s32 %v5374, 127
        %v5376 = vand.u32 2147483647, %v888
        %v5377 = vand.u32 %v5376, 8388607
        %v5378 = vor.u32 %v5377, 8388608
        %v5379 = vsub.s32 0, %v5378
        %v5380 = vadd.s32 %v5375, 1
        %vm5381 = vcmp.gt.s32.totalorder %v5380, 0
        %v5382 = vsel %vm5381, %v5380, 0
        %v5383 = vshrl.u32 %v5382, 5
        %v5384 = vand.u32 %v5382, 31
        %v5385 = vsub.s32 32, %v5384
        %v5386 = vshrl.u32 683565275, %v5385
        %v5387 = vshll.u32 683565275, %v5384
        %v5388 = vshrl.u32 2475754826, %v5385
        %v5389 = vor.u32 %v5387, %v5388
        %v5390 = vshll.u32 2475754826, %v5384
        %v5391 = vshrl.u32 2131351028, %v5385
        %v5392 = vor.u32 %v5390, %v5391
        %v5393 = vshll.u32 2131351028, %v5384
        %v5394 = vshrl.u32 2102212464, %v5385
        %v5395 = vor.u32 %v5393, %v5394
        %v5396 = vshll.u32 2102212464, %v5384
        %v5397 = vshrl.u32 920167782, %v5385
        %v5398 = vor.u32 %v5396, %v5397
        %v5399 = vshll.u32 920167782, %v5384
        %v5400 = vshrl.u32 1326507024, %v5385
        %v5401 = vor.u32 %v5399, %v5400
        %vm5402 = vcmp.lt.s32.totalorder %v5383, 1
        %vm5403 = vcmp.lt.s32.totalorder %v5383, 2
        %vm5404 = vcmp.lt.s32.totalorder %v5383, 3
        %vm5405 = vcmp.lt.s32.totalorder %v5383, 4
        %v5406 = vsel %vm5402, %v5386, %v5389
        %v5407 = vsel %vm5405, %v5395, 2102212464
        %v5408 = vsel %vm5404, %v5392, %v5407
        %v5409 = vsel %vm5403, %v5406, %v5408
        %v5410 = vsel %vm5402, %v5389, %v5392
        %v5411 = vsel %vm5405, %v5398, 920167782
        %v5412 = vsel %vm5404, %v5395, %v5411
        %v5413 = vsel %vm5403, %v5410, %v5412
        %v5414 = vsel %vm5402, %v5392, %v5395
        %v5415 = vsel %vm5405, %v5401, 1326507024
        %v5416 = vsel %vm5404, %v5398, %v5415
        %v5417 = vsel %vm5403, %v5414, %v5416
        %v5418 = vshll.u32 %v5378, 8
        %v5419 = vand.u32 %v5418, 65535
        %v5420 = vshrl.u32 %v5418, 16
        %v5421 = vand.u32 %v5417, 65535
        %v5422 = vshrl.u32 %v5417, 16
        %v5423 = vmul.u32 %v5419, %v5421
        %v5424 = vmul.u32 %v5419, %v5422
        %v5425 = vmul.u32 %v5420, %v5421
        %v5426 = vmul.u32 %v5420, %v5422
        %v5427 = vshll.u32 %v5424, 16
        %v5428 = vshrl.u32 %v5424, 16
        %v5429 = vshll.u32 %v5425, 16
        %v5430 = vshrl.u32 %v5425, 16
        %vm5431 = vc.u32 %v5423, %v5427
        %v5432 = vsel %vm5431, 1, 0
        %v5433 = vadd.s32 %v5423, %v5427
        %v5434 = vadd.s32 %v5426, %v5432
        %vm5435 = vc.u32 %v5433, %v5429
        %v5436 = vsel %vm5435, 1, 0
        %v5437 = vadd.s32 %v5433, %v5429
        %v5438 = vadd.s32 %v5434, %v5436
        %v5439 = vadd.s32 %v5438, %v5428
        %v5440 = vadd.s32 %v5439, %v5430
        %v5441 = vand.u32 %v5418, 65535
        %v5442 = vshrl.u32 %v5418, 16
        %v5443 = vand.u32 %v5413, 65535
        %v5444 = vshrl.u32 %v5413, 16
        %v5445 = vmul.u32 %v5441, %v5443
        %v5446 = vmul.u32 %v5441, %v5444
        %v5447 = vmul.u32 %v5442, %v5443
        %v5448 = vmul.u32 %v5442, %v5444
        %v5449 = vshll.u32 %v5446, 16
        %v5450 = vshrl.u32 %v5446, 16
        %v5451 = vshll.u32 %v5447, 16
        %v5452 = vshrl.u32 %v5447, 16
        %vm5453 = vc.u32 %v5445, %v5449
        %v5454 = vsel %vm5453, 1, 0
        %v5455 = vadd.s32 %v5445, %v5449
        %v5456 = vadd.s32 %v5448, %v5454
        %vm5457 = vc.u32 %v5455, %v5451
        %v5458 = vsel %vm5457, 1, 0
        %v5459 = vadd.s32 %v5455, %v5451
        %v5460 = vadd.s32 %v5456, %v5458
        %v5461 = vadd.s32 %v5460, %v5450
        %v5462 = vadd.s32 %v5461, %v5452
        %v5463 = vmul.u32 %v5418, %v5409
        %v5464 = vadd.s32 %v5440, %v5459
        %vm5465 = vc.u32 %v5440, %v5459
        %v5466 = vadd.s32 %v5462, 1
        %v5467 = vsel %vm5465, %v5466, %v5462
        %v5468 = vadd.s32 %v5463, %v5467
        %v5469 = vadd.s32 %v5468, 536870912
        %v5470 = vshrl.u32 %v5469, 30
        %v5471 = vshll.u32 %v5470, 30
        %v5472 = vsub.s32 %v5468, %v5471
        %vm5473 = vcmp.lt.s32.totalorder %v5472, 0
        %v5474 = vsub.s32 0, %v5472
        %v5475 = vsel %vm5473, %v5474, %v5472
        %v5476 = vclz %v5475
        %v5477 = vsub.s32 %v5476, 2
        %vm5478 = vcmp.gt.s32.totalorder 0, %v5477
        %v5479 = vsel %vm5478, 0, %v5477
        %v5480 = vsub.s32 32, %v5479
        %v5481 = vshll.u32 %v5472, %v5479
        %v5482 = vshrl.u32 %v5464, %v5480
        %v5483 = vor.u32 %v5481, %v5482
        %v5484 = vsub.s32 4294967266, %v5479
        %v5485 = vadd.s32 %v5484, 127
        %v5486 = vshll.u32 %v5485, 23
        %v5487 = vor.u32 4788187, %v5486
        %v5488 = vand.u32 2147483647, %v5487
        %v5490 = vcvt.s32.f32 %v5483
        %v5491 = vmul.f32 %v5490, %v5488
        %v5492 = vxor.u32 %v5491, 2147483648
        %v5493 = vsel %vm5372, %v5492, %v5491
        %v5494 = vsub.s32 4, %v5470
        %v5495 = vsel %vm5372, %v5494, %v5470
        %v5496 = vsel %vm5371, %v888, %v5493
        %v5497 = vsel %vm5371, 0, %v5495
        %v5498 = vmul.f32 %v5496, %v5496
        %v5499 = vmul.f32 %v5498, -0.001358992
        %v5500 = vadd.f32 %v5499, 0.041655596
        %v5501 = vmul.f32 %v5498, %v5500
        %v5502 = vadd.f32 %v5501, -0.4999988
        %v5503 = vmul.f32 %v5498, %v5502
        %v5504 = vadd.f32 1.0, %v5503
        %v5505 = vmul.f32 %v5496, %v5496
        %v5506 = vmul.f32 %v5505, -0.00019511016
        %v5507 = vadd.f32 %v5506, 0.008332121
        %v5508 = vmul.f32 %v5505, %v5507
        %v5509 = vadd.f32 %v5508, -0.16666654
        %v5510 = vmul.f32 %v5505, %v5509
        %v5511 = vadd.f32 %v5510, 1.0
        %v5512 = vmul.f32 %v5511, %v5496
        %vm5513 = vweird.f32 %v888
        %v5514 = vadd.s32 %v5497, 3
        %v5515 = vand.u32 %v5514, 3
        %vm5516 = vcmp.lt.s32.totalorder %v5515, 2
        %vm5517 = vcmp.eq.s32.totalorder %v5515, 0
        %v5518 = vxor.u32 %v5512, 2147483648
        %v5519 = vsel %vm5517, %v5504, %v5518
        %vm5520 = vcmp.eq.s32.totalorder %v5515, 2
        %v5521 = vxor.u32 %v5504, 2147483648
        %v5522 = vsel %vm5520, %v5521, %v5512
        %v5523 = vsel %vm5516, %v5519, %v5522
        %v5524 = vsel %vm5513, nan, %v5523
        %v5525 = vand.u32 2147483647, %v889
        %vm5526 = vcmp.le.f32.partialorder %v5525, 0.7853982
        %vm5527 = vcmp.lt.s32.totalorder %v889, 0
        %v5528 = vand.u32 %v889, 2139095040
        %v5529 = vshrl.u32 %v5528, 23
        %v5530 = vsub.s32 %v5529, 127
        %v5531 = vand.u32 2147483647, %v889
        %v5532 = vand.u32 %v5531, 8388607
        %v5533 = vor.u32 %v5532, 8388608
        %v5534 = vsub.s32 0, %v5533
        %v5535 = vadd.s32 %v5530, 1
        %vm5536 = vcmp.gt.s32.totalorder %v5535, 0
        %v5537 = vsel %vm5536, %v5535, 0
        %v5538 = vshrl.u32 %v5537, 5
        %v5539 = vand.u32 %v5537, 31
        %v5540 = vsub.s32 32, %v5539
        %v5541 = vshrl.u32 683565275, %v5540
        %v5542 = vshll.u32 683565275, %v5539
        %v5543 = vshrl.u32 2475754826, %v5540
        %v5544 = vor.u32 %v5542, %v5543
        %v5545 = vshll.u32 2475754826, %v5539
        %v5546 = vshrl.u32 2131351028, %v5540
        %v5547 = vor.u32 %v5545, %v5546
        %v5548 = vshll.u32 2131351028, %v5539
        %v5549 = vshrl.u32 2102212464, %v5540
        %v5550 = vor.u32 %v5548, %v5549
        %v5551 = vshll.u32 2102212464, %v5539
        %v5552 = vshrl.u32 920167782, %v5540
        %v5553 = vor.u32 %v5551, %v5552
        %v5554 = vshll.u32 920167782, %v5539
        %v5555 = vshrl.u32 1326507024, %v5540
        %v5556 = vor.u32 %v5554, %v5555
        %vm5557 = vcmp.lt.s32.totalorder %v5538, 1
        %vm5558 = vcmp.lt.s32.totalorder %v5538, 2
        %vm5559 = vcmp.lt.s32.totalorder %v5538, 3
        %vm5560 = vcmp.lt.s32.totalorder %v5538, 4
        %v5561 = vsel %vm5557, %v5541, %v5544
        %v5562 = vsel %vm5560, %v5550, 2102212464
        %v5563 = vsel %vm5559, %v5547, %v5562
        %v5564 = vsel %vm5558, %v5561, %v5563
        %v5565 = vsel %vm5557, %v5544, %v5547
        %v5566 = vsel %vm5560, %v5553, 920167782
        %v5567 = vsel %vm5559, %v5550, %v5566
        %v5568 = vsel %vm5558, %v5565, %v5567
        %v5569 = vsel %vm5557, %v5547, %v5550
        %v5570 = vsel %vm5560, %v5556, 1326507024
        %v5571 = vsel %vm5559, %v5553, %v5570
        %v5572 = vsel %vm5558, %v5569, %v5571
        %v5573 = vshll.u32 %v5533, 8
        %v5574 = vand.u32 %v5573, 65535
        %v5575 = vshrl.u32 %v5573, 16
        %v5576 = vand.u32 %v5572, 65535
        %v5577 = vshrl.u32 %v5572, 16
        %v5578 = vmul.u32 %v5574, %v5576
        %v5579 = vmul.u32 %v5574, %v5577
        %v5580 = vmul.u32 %v5575, %v5576
        %v5581 = vmul.u32 %v5575, %v5577
        %v5582 = vshll.u32 %v5579, 16
        %v5583 = vshrl.u32 %v5579, 16
        %v5584 = vshll.u32 %v5580, 16
        %v5585 = vshrl.u32 %v5580, 16
        %vm5586 = vc.u32 %v5578, %v5582
        %v5587 = vsel %vm5586, 1, 0
        %v5588 = vadd.s32 %v5578, %v5582
        %v5589 = vadd.s32 %v5581, %v5587
        %vm5590 = vc.u32 %v5588, %v5584
        %v5591 = vsel %vm5590, 1, 0
        %v5592 = vadd.s32 %v5588, %v5584
        %v5593 = vadd.s32 %v5589, %v5591
        %v5594 = vadd.s32 %v5593, %v5583
        %v5595 = vadd.s32 %v5594, %v5585
        %v5596 = vand.u32 %v5573, 65535
        %v5597 = vshrl.u32 %v5573, 16
        %v5598 = vand.u32 %v5568, 65535
        %v5599 = vshrl.u32 %v5568, 16
        %v5600 = vmul.u32 %v5596, %v5598
        %v5601 = vmul.u32 %v5596, %v5599
        %v5602 = vmul.u32 %v5597, %v5598
        %v5603 = vmul.u32 %v5597, %v5599
        %v5604 = vshll.u32 %v5601, 16
        %v5605 = vshrl.u32 %v5601, 16
        %v5606 = vshll.u32 %v5602, 16
        %v5607 = vshrl.u32 %v5602, 16
        %vm5608 = vc.u32 %v5600, %v5604
        %v5609 = vsel %vm5608, 1, 0
        %v5610 = vadd.s32 %v5600, %v5604
        %v5611 = vadd.s32 %v5603, %v5609
        %vm5612 = vc.u32 %v5610, %v5606
        %v5613 = vsel %vm5612, 1, 0
        %v5614 = vadd.s32 %v5610, %v5606
        %v5615 = vadd.s32 %v5611, %v5613
        %v5616 = vadd.s32 %v5615, %v5605
        %v5617 = vadd.s32 %v5616, %v5607
        %v5618 = vmul.u32 %v5573, %v5564
        %v5619 = vadd.s32 %v5595, %v5614
        %vm5620 = vc.u32 %v5595, %v5614
        %v5621 = vadd.s32 %v5617, 1
        %v5622 = vsel %vm5620, %v5621, %v5617
        %v5623 = vadd.s32 %v5618, %v5622
        %v5624 = vadd.s32 %v5623, 536870912
        %v5625 = vshrl.u32 %v5624, 30
        %v5626 = vshll.u32 %v5625, 30
        %v5627 = vsub.s32 %v5623, %v5626
        %vm5628 = vcmp.lt.s32.totalorder %v5627, 0
        %v5629 = vsub.s32 0, %v5627
        %v5630 = vsel %vm5628, %v5629, %v5627
        %v5631 = vclz %v5630
        %v5632 = vsub.s32 %v5631, 2
        %vm5633 = vcmp.gt.s32.totalorder 0, %v5632
        %v5634 = vsel %vm5633, 0, %v5632
        %v5635 = vsub.s32 32, %v5634
        %v5636 = vshll.u32 %v5627, %v5634
        %v5637 = vshrl.u32 %v5619, %v5635
        %v5638 = vor.u32 %v5636, %v5637
        %v5639 = vsub.s32 4294967266, %v5634
        %v5640 = vadd.s32 %v5639, 127
        %v5641 = vshll.u32 %v5640, 23
        %v5642 = vor.u32 4788187, %v5641
        %v5643 = vand.u32 2147483647, %v5642
        %v5645 = vcvt.s32.f32 %v5638
        %v5646 = vmul.f32 %v5645, %v5643
        %v5647 = vxor.u32 %v5646, 2147483648
        %v5648 = vsel %vm5527, %v5647, %v5646
        %v5649 = vsub.s32 4, %v5625
        %v5650 = vsel %vm5527, %v5649, %v5625
        %v5651 = vsel %vm5526, %v889, %v5648
        %v5652 = vsel %vm5526, 0, %v5650
        %v5653 = vmul.f32 %v5651, %v5651
        %v5654 = vmul.f32 %v5653, -0.001358992
        %v5655 = vadd.f32 %v5654, 0.041655596
        %v5656 = vmul.f32 %v5653, %v5655
        %v5657 = vadd.f32 %v5656, -0.4999988
        %v5658 = vmul.f32 %v5653, %v5657
        %v5659 = vadd.f32 1.0, %v5658
        %v5660 = vmul.f32 %v5651, %v5651
        %v5661 = vmul.f32 %v5660, -0.00019511016
        %v5662 = vadd.f32 %v5661, 0.008332121
        %v5663 = vmul.f32 %v5660, %v5662
        %v5664 = vadd.f32 %v5663, -0.16666654
        %v5665 = vmul.f32 %v5660, %v5664
        %v5666 = vadd.f32 %v5665, 1.0
        %v5667 = vmul.f32 %v5666, %v5651
        %vm5668 = vweird.f32 %v889
        %v5669 = vadd.s32 %v5652, 3
        %v5670 = vand.u32 %v5669, 3
        %vm5671 = vcmp.lt.s32.totalorder %v5670, 2
        %vm5672 = vcmp.eq.s32.totalorder %v5670, 0
        %v5673 = vxor.u32 %v5667, 2147483648
        %v5674 = vsel %vm5672, %v5659, %v5673
        %vm5675 = vcmp.eq.s32.totalorder %v5670, 2
        %v5676 = vxor.u32 %v5659, 2147483648
        %v5677 = vsel %vm5675, %v5676, %v5667
        %v5678 = vsel %vm5671, %v5674, %v5677
        %v5679 = vsel %vm5668, nan, %v5678
        %v5680 = vand.u32 2147483647, %v890
        %vm5681 = vcmp.le.f32.partialorder %v5680, 0.7853982
        %vm5682 = vcmp.lt.s32.totalorder %v890, 0
        %v5683 = vand.u32 %v890, 2139095040
        %v5684 = vshrl.u32 %v5683, 23
        %v5685 = vsub.s32 %v5684, 127
        %v5686 = vand.u32 2147483647, %v890
        %v5687 = vand.u32 %v5686, 8388607
        %v5688 = vor.u32 %v5687, 8388608
        %v5689 = vsub.s32 0, %v5688
        %v5690 = vadd.s32 %v5685, 1
        %vm5691 = vcmp.gt.s32.totalorder %v5690, 0
        %v5692 = vsel %vm5691, %v5690, 0
        %v5693 = vshrl.u32 %v5692, 5
        %v5694 = vand.u32 %v5692, 31
        %v5695 = vsub.s32 32, %v5694
        %v5696 = vshrl.u32 683565275, %v5695
        %v5697 = vshll.u32 683565275, %v5694
        %v5698 = vshrl.u32 2475754826, %v5695
        %v5699 = vor.u32 %v5697, %v5698
        %v5700 = vshll.u32 2475754826, %v5694
        %v5701 = vshrl.u32 2131351028, %v5695
        %v5702 = vor.u32 %v5700, %v5701
        %v5703 = vshll.u32 2131351028, %v5694
        %v5704 = vshrl.u32 2102212464, %v5695
        %v5705 = vor.u32 %v5703, %v5704
        %v5706 = vshll.u32 2102212464, %v5694
        %v5707 = vshrl.u32 920167782, %v5695
        %v5708 = vor.u32 %v5706, %v5707
        %v5709 = vshll.u32 920167782, %v5694
        %v5710 = vshrl.u32 1326507024, %v5695
        %v5711 = vor.u32 %v5709, %v5710
        %vm5712 = vcmp.lt.s32.totalorder %v5693, 1
        %vm5713 = vcmp.lt.s32.totalorder %v5693, 2
        %vm5714 = vcmp.lt.s32.totalorder %v5693, 3
        %vm5715 = vcmp.lt.s32.totalorder %v5693, 4
        %v5716 = vsel %vm5712, %v5696, %v5699
        %v5717 = vsel %vm5715, %v5705, 2102212464
        %v5718 = vsel %vm5714, %v5702, %v5717
        %v5719 = vsel %vm5713, %v5716, %v5718
        %v5720 = vsel %vm5712, %v5699, %v5702
        %v5721 = vsel %vm5715, %v5708, 920167782
        %v5722 = vsel %vm5714, %v5705, %v5721
        %v5723 = vsel %vm5713, %v5720, %v5722
        %v5724 = vsel %vm5712, %v5702, %v5705
        %v5725 = vsel %vm5715, %v5711, 1326507024
        %v5726 = vsel %vm5714, %v5708, %v5725
        %v5727 = vsel %vm5713, %v5724, %v5726
        %v5728 = vshll.u32 %v5688, 8
        %v5729 = vand.u32 %v5728, 65535
        %v5730 = vshrl.u32 %v5728, 16
        %v5731 = vand.u32 %v5727, 65535
        %v5732 = vshrl.u32 %v5727, 16
        %v5733 = vmul.u32 %v5729, %v5731
        %v5734 = vmul.u32 %v5729, %v5732
        %v5735 = vmul.u32 %v5730, %v5731
        %v5736 = vmul.u32 %v5730, %v5732
        %v5737 = vshll.u32 %v5734, 16
        %v5738 = vshrl.u32 %v5734, 16
        %v5739 = vshll.u32 %v5735, 16
        %v5740 = vshrl.u32 %v5735, 16
        %vm5741 = vc.u32 %v5733, %v5737
        %v5742 = vsel %vm5741, 1, 0
        %v5743 = vadd.s32 %v5733, %v5737
        %v5744 = vadd.s32 %v5736, %v5742
        %vm5745 = vc.u32 %v5743, %v5739
        %v5746 = vsel %vm5745, 1, 0
        %v5747 = vadd.s32 %v5743, %v5739
        %v5748 = vadd.s32 %v5744, %v5746
        %v5749 = vadd.s32 %v5748, %v5738
        %v5750 = vadd.s32 %v5749, %v5740
        %v5751 = vand.u32 %v5728, 65535
        %v5752 = vshrl.u32 %v5728, 16
        %v5753 = vand.u32 %v5723, 65535
        %v5754 = vshrl.u32 %v5723, 16
        %v5755 = vmul.u32 %v5751, %v5753
        %v5756 = vmul.u32 %v5751, %v5754
        %v5757 = vmul.u32 %v5752, %v5753
        %v5758 = vmul.u32 %v5752, %v5754
        %v5759 = vshll.u32 %v5756, 16
        %v5760 = vshrl.u32 %v5756, 16
        %v5761 = vshll.u32 %v5757, 16
        %v5762 = vshrl.u32 %v5757, 16
        %vm5763 = vc.u32 %v5755, %v5759
        %v5764 = vsel %vm5763, 1, 0
        %v5765 = vadd.s32 %v5755, %v5759
        %v5766 = vadd.s32 %v5758, %v5764
        %vm5767 = vc.u32 %v5765, %v5761
        %v5768 = vsel %vm5767, 1, 0
        %v5769 = vadd.s32 %v5765, %v5761
        %v5770 = vadd.s32 %v5766, %v5768
        %v5771 = vadd.s32 %v5770, %v5760
        %v5772 = vadd.s32 %v5771, %v5762
        %v5773 = vmul.u32 %v5728, %v5719
        %v5774 = vadd.s32 %v5750, %v5769
        %vm5775 = vc.u32 %v5750, %v5769
        %v5776 = vadd.s32 %v5772, 1
        %v5777 = vsel %vm5775, %v5776, %v5772
        %v5778 = vadd.s32 %v5773, %v5777
        %v5779 = vadd.s32 %v5778, 536870912
        %v5780 = vshrl.u32 %v5779, 30
        %v5781 = vshll.u32 %v5780, 30
        %v5782 = vsub.s32 %v5778, %v5781
        %vm5783 = vcmp.lt.s32.totalorder %v5782, 0
        %v5784 = vsub.s32 0, %v5782
        %v5785 = vsel %vm5783, %v5784, %v5782
        %v5786 = vclz %v5785
        %v5787 = vsub.s32 %v5786, 2
        %vm5788 = vcmp.gt.s32.totalorder 0, %v5787
        %v5789 = vsel %vm5788, 0, %v5787
        %v5790 = vsub.s32 32, %v5789
        %v5791 = vshll.u32 %v5782, %v5789
        %v5792 = vshrl.u32 %v5774, %v5790
        %v5793 = vor.u32 %v5791, %v5792
        %v5794 = vsub.s32 4294967266, %v5789
        %v5795 = vadd.s32 %v5794, 127
        %v5796 = vshll.u32 %v5795, 23
        %v5797 = vor.u32 4788187, %v5796
        %v5798 = vand.u32 2147483647, %v5797
        %v5800 = vcvt.s32.f32 %v5793
        %v5801 = vmul.f32 %v5800, %v5798
        %v5802 = vxor.u32 %v5801, 2147483648
        %v5803 = vsel %vm5682, %v5802, %v5801
        %v5804 = vsub.s32 4, %v5780
        %v5805 = vsel %vm5682, %v5804, %v5780
        %v5806 = vsel %vm5681, %v890, %v5803
        %v5807 = vsel %vm5681, 0, %v5805
        %v5808 = vmul.f32 %v5806, %v5806
        %v5809 = vmul.f32 %v5808, -0.001358992
        %v5810 = vadd.f32 %v5809, 0.041655596
        %v5811 = vmul.f32 %v5808, %v5810
        %v5812 = vadd.f32 %v5811, -0.4999988
        %v5813 = vmul.f32 %v5808, %v5812
        %v5814 = vadd.f32 1.0, %v5813
        %v5815 = vmul.f32 %v5806, %v5806
        %v5816 = vmul.f32 %v5815, -0.00019511016
        %v5817 = vadd.f32 %v5816, 0.008332121
        %v5818 = vmul.f32 %v5815, %v5817
        %v5819 = vadd.f32 %v5818, -0.16666654
        %v5820 = vmul.f32 %v5815, %v5819
        %v5821 = vadd.f32 %v5820, 1.0
        %v5822 = vmul.f32 %v5821, %v5806
        %vm5823 = vweird.f32 %v890
        %v5824 = vadd.s32 %v5807, 3
        %v5825 = vand.u32 %v5824, 3
        %vm5826 = vcmp.lt.s32.totalorder %v5825, 2
        %vm5827 = vcmp.eq.s32.totalorder %v5825, 0
        %v5828 = vxor.u32 %v5822, 2147483648
        %v5829 = vsel %vm5827, %v5814, %v5828
        %vm5830 = vcmp.eq.s32.totalorder %v5825, 2
        %v5831 = vxor.u32 %v5814, 2147483648
        %v5832 = vsel %vm5830, %v5831, %v5822
        %v5833 = vsel %vm5826, %v5829, %v5832
        %v5834 = vsel %vm5823, nan, %v5833
        %v5835 = vand.u32 2147483647, %v875
        %vm5836 = vcmp.le.f32.partialorder %v5835, 0.7853982
        %vm5837 = vcmp.lt.s32.totalorder %v875, 0
        %v5838 = vand.u32 %v875, 2139095040
        %v5839 = vshrl.u32 %v5838, 23
        %v5840 = vsub.s32 %v5839, 127
        %v5841 = vand.u32 2147483647, %v875
        %v5842 = vand.u32 %v5841, 8388607
        %v5843 = vor.u32 %v5842, 8388608
        %v5844 = vsub.s32 0, %v5843
        %v5845 = vadd.s32 %v5840, 1
        %vm5846 = vcmp.gt.s32.totalorder %v5845, 0
        %v5847 = vsel %vm5846, %v5845, 0
        %v5848 = vshrl.u32 %v5847, 5
        %v5849 = vand.u32 %v5847, 31
        %v5850 = vsub.s32 32, %v5849
        %v5851 = vshrl.u32 683565275, %v5850
        %v5852 = vshll.u32 683565275, %v5849
        %v5853 = vshrl.u32 2475754826, %v5850
        %v5854 = vor.u32 %v5852, %v5853
        %v5855 = vshll.u32 2475754826, %v5849
        %v5856 = vshrl.u32 2131351028, %v5850
        %v5857 = vor.u32 %v5855, %v5856
        %v5858 = vshll.u32 2131351028, %v5849
        %v5859 = vshrl.u32 2102212464, %v5850
        %v5860 = vor.u32 %v5858, %v5859
        %v5861 = vshll.u32 2102212464, %v5849
        %v5862 = vshrl.u32 920167782, %v5850
        %v5863 = vor.u32 %v5861, %v5862
        %v5864 = vshll.u32 920167782, %v5849
        %v5865 = vshrl.u32 1326507024, %v5850
        %v5866 = vor.u32 %v5864, %v5865
        %vm5867 = vcmp.lt.s32.totalorder %v5848, 1
        %vm5868 = vcmp.lt.s32.totalorder %v5848, 2
        %vm5869 = vcmp.lt.s32.totalorder %v5848, 3
        %vm5870 = vcmp.lt.s32.totalorder %v5848, 4
        %v5871 = vsel %vm5867, %v5851, %v5854
        %v5872 = vsel %vm5870, %v5860, 2102212464
        %v5873 = vsel %vm5869, %v5857, %v5872
        %v5874 = vsel %vm5868, %v5871, %v5873
        %v5875 = vsel %vm5867, %v5854, %v5857
        %v5876 = vsel %vm5870, %v5863, 920167782
        %v5877 = vsel %vm5869, %v5860, %v5876
        %v5878 = vsel %vm5868, %v5875, %v5877
        %v5879 = vsel %vm5867, %v5857, %v5860
        %v5880 = vsel %vm5870, %v5866, 1326507024
        %v5881 = vsel %vm5869, %v5863, %v5880
        %v5882 = vsel %vm5868, %v5879, %v5881
        %v5883 = vshll.u32 %v5843, 8
        %v5884 = vand.u32 %v5883, 65535
        %v5885 = vshrl.u32 %v5883, 16
        %v5886 = vand.u32 %v5882, 65535
        %v5887 = vshrl.u32 %v5882, 16
        %v5888 = vmul.u32 %v5884, %v5886
        %v5889 = vmul.u32 %v5884, %v5887
        %v5890 = vmul.u32 %v5885, %v5886
        %v5891 = vmul.u32 %v5885, %v5887
        %v5892 = vshll.u32 %v5889, 16
        %v5893 = vshrl.u32 %v5889, 16
        %v5894 = vshll.u32 %v5890, 16
        %v5895 = vshrl.u32 %v5890, 16
        %vm5896 = vc.u32 %v5888, %v5892
        %v5897 = vsel %vm5896, 1, 0
        %v5898 = vadd.s32 %v5888, %v5892
        %v5899 = vadd.s32 %v5891, %v5897
        %vm5900 = vc.u32 %v5898, %v5894
        %v5901 = vsel %vm5900, 1, 0
        %v5902 = vadd.s32 %v5898, %v5894
        %v5903 = vadd.s32 %v5899, %v5901
        %v5904 = vadd.s32 %v5903, %v5893
        %v5905 = vadd.s32 %v5904, %v5895
        %v5906 = vand.u32 %v5883, 65535
        %v5907 = vshrl.u32 %v5883, 16
        %v5908 = vand.u32 %v5878, 65535
        %v5909 = vshrl.u32 %v5878, 16
        %v5910 = vmul.u32 %v5906, %v5908
        %v5911 = vmul.u32 %v5906, %v5909
        %v5912 = vmul.u32 %v5907, %v5908
        %v5913 = vmul.u32 %v5907, %v5909
        %v5914 = vshll.u32 %v5911, 16
        %v5915 = vshrl.u32 %v5911, 16
        %v5916 = vshll.u32 %v5912, 16
        %v5917 = vshrl.u32 %v5912, 16
        %vm5918 = vc.u32 %v5910, %v5914
        %v5919 = vsel %vm5918, 1, 0
        %v5920 = vadd.s32 %v5910, %v5914
        %v5921 = vadd.s32 %v5913, %v5919
        %vm5922 = vc.u32 %v5920, %v5916
        %v5923 = vsel %vm5922, 1, 0
        %v5924 = vadd.s32 %v5920, %v5916
        %v5925 = vadd.s32 %v5921, %v5923
        %v5926 = vadd.s32 %v5925, %v5915
        %v5927 = vadd.s32 %v5926, %v5917
        %v5928 = vmul.u32 %v5883, %v5874
        %v5929 = vadd.s32 %v5905, %v5924
        %vm5930 = vc.u32 %v5905, %v5924
        %v5931 = vadd.s32 %v5927, 1
        %v5932 = vsel %vm5930, %v5931, %v5927
        %v5933 = vadd.s32 %v5928, %v5932
        %v5934 = vadd.s32 %v5933, 536870912
        %v5935 = vshrl.u32 %v5934, 30
        %v5936 = vshll.u32 %v5935, 30
        %v5937 = vsub.s32 %v5933, %v5936
        %vm5938 = vcmp.lt.s32.totalorder %v5937, 0
        %v5939 = vsub.s32 0, %v5937
        %v5940 = vsel %vm5938, %v5939, %v5937
        %v5941 = vclz %v5940
        %v5942 = vsub.s32 %v5941, 2
        %vm5943 = vcmp.gt.s32.totalorder 0, %v5942
        %v5944 = vsel %vm5943, 0, %v5942
        %v5945 = vsub.s32 32, %v5944
        %v5946 = vshll.u32 %v5937, %v5944
        %v5947 = vshrl.u32 %v5929, %v5945
        %v5948 = vor.u32 %v5946, %v5947
        %v5949 = vsub.s32 4294967266, %v5944
        %v5950 = vadd.s32 %v5949, 127
        %v5951 = vshll.u32 %v5950, 23
        %v5952 = vor.u32 4788187, %v5951
        %v5953 = vand.u32 2147483647, %v5952
        %v5955 = vcvt.s32.f32 %v5948
        %v5956 = vmul.f32 %v5955, %v5953
        %v5957 = vxor.u32 %v5956, 2147483648
        %v5958 = vsel %vm5837, %v5957, %v5956
        %v5959 = vsub.s32 4, %v5935
        %v5960 = vsel %vm5837, %v5959, %v5935
        %v5961 = vsel %vm5836, %v875, %v5958
        %v5962 = vsel %vm5836, 0, %v5960
        %v5963 = vmul.f32 %v5961, %v5961
        %v5964 = vmul.f32 %v5963, -0.001358992
        %v5965 = vadd.f32 %v5964, 0.041655596
        %v5966 = vmul.f32 %v5963, %v5965
        %v5967 = vadd.f32 %v5966, -0.4999988
        %v5968 = vmul.f32 %v5963, %v5967
        %v5969 = vadd.f32 1.0, %v5968
        %v5970 = vmul.f32 %v5961, %v5961
        %v5971 = vmul.f32 %v5970, -0.00019511016
        %v5972 = vadd.f32 %v5971, 0.008332121
        %v5973 = vmul.f32 %v5970, %v5972
        %v5974 = vadd.f32 %v5973, -0.16666654
        %v5975 = vmul.f32 %v5970, %v5974
        %v5976 = vadd.f32 %v5975, 1.0
        %v5977 = vmul.f32 %v5976, %v5961
        %vm5978 = vweird.f32 %v875
        %v5979 = vand.u32 %v5962, 3
        %vm5980 = vcmp.lt.s32.totalorder %v5979, 2
        %vm5981 = vcmp.eq.s32.totalorder %v5979, 0
        %v5982 = vxor.u32 %v5977, 2147483648
        %v5983 = vsel %vm5981, %v5969, %v5982
        %vm5984 = vcmp.eq.s32.totalorder %v5979, 2
        %v5985 = vxor.u32 %v5969, 2147483648
        %v5986 = vsel %vm5984, %v5985, %v5977
        %v5987 = vsel %vm5980, %v5983, %v5986
        %v5988 = vsel %vm5978, nan, %v5987
        %v5989 = vand.u32 2147483647, %v876
        %vm5990 = vcmp.le.f32.partialorder %v5989, 0.7853982
        %vm5991 = vcmp.lt.s32.totalorder %v876, 0
        %v5992 = vand.u32 %v876, 2139095040
        %v5993 = vshrl.u32 %v5992, 23
        %v5994 = vsub.s32 %v5993, 127
        %v5995 = vand.u32 2147483647, %v876
        %v5996 = vand.u32 %v5995, 8388607
        %v5997 = vor.u32 %v5996, 8388608
        %v5998 = vsub.s32 0, %v5997
        %v5999 = vadd.s32 %v5994, 1
        %vm6000 = vcmp.gt.s32.totalorder %v5999, 0
        %v6001 = vsel %vm6000, %v5999, 0
        %v6002 = vshrl.u32 %v6001, 5
        %v6003 = vand.u32 %v6001, 31
        %v6004 = vsub.s32 32, %v6003
        %v6005 = vshrl.u32 683565275, %v6004
        %v6006 = vshll.u32 683565275, %v6003
        %v6007 = vshrl.u32 2475754826, %v6004
        %v6008 = vor.u32 %v6006, %v6007
        %v6009 = vshll.u32 2475754826, %v6003
        %v6010 = vshrl.u32 2131351028, %v6004
        %v6011 = vor.u32 %v6009, %v6010
        %v6012 = vshll.u32 2131351028, %v6003
        %v6013 = vshrl.u32 2102212464, %v6004
        %v6014 = vor.u32 %v6012, %v6013
        %v6015 = vshll.u32 2102212464, %v6003
        %v6016 = vshrl.u32 920167782, %v6004
        %v6017 = vor.u32 %v6015, %v6016
        %v6018 = vshll.u32 920167782, %v6003
        %v6019 = vshrl.u32 1326507024, %v6004
        %v6020 = vor.u32 %v6018, %v6019
        %vm6021 = vcmp.lt.s32.totalorder %v6002, 1
        %vm6022 = vcmp.lt.s32.totalorder %v6002, 2
        %vm6023 = vcmp.lt.s32.totalorder %v6002, 3
        %vm6024 = vcmp.lt.s32.totalorder %v6002, 4
        %v6025 = vsel %vm6021, %v6005, %v6008
        %v6026 = vsel %vm6024, %v6014, 2102212464
        %v6027 = vsel %vm6023, %v6011, %v6026
        %v6028 = vsel %vm6022, %v6025, %v6027
        %v6029 = vsel %vm6021, %v6008, %v6011
        %v6030 = vsel %vm6024, %v6017, 920167782
        %v6031 = vsel %vm6023, %v6014, %v6030
        %v6032 = vsel %vm6022, %v6029, %v6031
        %v6033 = vsel %vm6021, %v6011, %v6014
        %v6034 = vsel %vm6024, %v6020, 1326507024
        %v6035 = vsel %vm6023, %v6017, %v6034
        %v6036 = vsel %vm6022, %v6033, %v6035
        %v6037 = vshll.u32 %v5997, 8
        %v6038 = vand.u32 %v6037, 65535
        %v6039 = vshrl.u32 %v6037, 16
        %v6040 = vand.u32 %v6036, 65535
        %v6041 = vshrl.u32 %v6036, 16
        %v6042 = vmul.u32 %v6038, %v6040
        %v6043 = vmul.u32 %v6038, %v6041
        %v6044 = vmul.u32 %v6039, %v6040
        %v6045 = vmul.u32 %v6039, %v6041
        %v6046 = vshll.u32 %v6043, 16
        %v6047 = vshrl.u32 %v6043, 16
        %v6048 = vshll.u32 %v6044, 16
        %v6049 = vshrl.u32 %v6044, 16
        %vm6050 = vc.u32 %v6042, %v6046
        %v6051 = vsel %vm6050, 1, 0
        %v6052 = vadd.s32 %v6042, %v6046
        %v6053 = vadd.s32 %v6045, %v6051
        %vm6054 = vc.u32 %v6052, %v6048
        %v6055 = vsel %vm6054, 1, 0
        %v6056 = vadd.s32 %v6052, %v6048
        %v6057 = vadd.s32 %v6053, %v6055
        %v6058 = vadd.s32 %v6057, %v6047
        %v6059 = vadd.s32 %v6058, %v6049
        %v6060 = vand.u32 %v6037, 65535
        %v6061 = vshrl.u32 %v6037, 16
        %v6062 = vand.u32 %v6032, 65535
        %v6063 = vshrl.u32 %v6032, 16
        %v6064 = vmul.u32 %v6060, %v6062
        %v6065 = vmul.u32 %v6060, %v6063
        %v6066 = vmul.u32 %v6061, %v6062
        %v6067 = vmul.u32 %v6061, %v6063
        %v6068 = vshll.u32 %v6065, 16
        %v6069 = vshrl.u32 %v6065, 16
        %v6070 = vshll.u32 %v6066, 16
        %v6071 = vshrl.u32 %v6066, 16
        %vm6072 = vc.u32 %v6064, %v6068
        %v6073 = vsel %vm6072, 1, 0
        %v6074 = vadd.s32 %v6064, %v6068
        %v6075 = vadd.s32 %v6067, %v6073
        %vm6076 = vc.u32 %v6074, %v6070
        %v6077 = vsel %vm6076, 1, 0
        %v6078 = vadd.s32 %v6074, %v6070
        %v6079 = vadd.s32 %v6075, %v6077
        %v6080 = vadd.s32 %v6079, %v6069
        %v6081 = vadd.s32 %v6080, %v6071
        %v6082 = vmul.u32 %v6037, %v6028
        %v6083 = vadd.s32 %v6059, %v6078
        %vm6084 = vc.u32 %v6059, %v6078
        %v6085 = vadd.s32 %v6081, 1
        %v6086 = vsel %vm6084, %v6085, %v6081
        %v6087 = vadd.s32 %v6082, %v6086
        %v6088 = vadd.s32 %v6087, 536870912
        %v6089 = vshrl.u32 %v6088, 30
        %v6090 = vshll.u32 %v6089, 30
        %v6091 = vsub.s32 %v6087, %v6090
        %vm6092 = vcmp.lt.s32.totalorder %v6091, 0
        %v6093 = vsub.s32 0, %v6091
        %v6094 = vsel %vm6092, %v6093, %v6091
        %v6095 = vclz %v6094
        %v6096 = vsub.s32 %v6095, 2
        %vm6097 = vcmp.gt.s32.totalorder 0, %v6096
        %v6098 = vsel %vm6097, 0, %v6096
        %v6099 = vsub.s32 32, %v6098
        %v6100 = vshll.u32 %v6091, %v6098
        %v6101 = vshrl.u32 %v6083, %v6099
        %v6102 = vor.u32 %v6100, %v6101
        %v6103 = vsub.s32 4294967266, %v6098
        %v6104 = vadd.s32 %v6103, 127
        %v6105 = vshll.u32 %v6104, 23
        %v6106 = vor.u32 4788187, %v6105
        %v6107 = vand.u32 2147483647, %v6106
        %v6109 = vcvt.s32.f32 %v6102
        %v6110 = vmul.f32 %v6109, %v6107
        %v6111 = vxor.u32 %v6110, 2147483648
        %v6112 = vsel %vm5991, %v6111, %v6110
        %v6113 = vsub.s32 4, %v6089
        %v6114 = vsel %vm5991, %v6113, %v6089
        %v6115 = vsel %vm5990, %v876, %v6112
        %v6116 = vsel %vm5990, 0, %v6114
        %v6117 = vmul.f32 %v6115, %v6115
        %v6118 = vmul.f32 %v6117, -0.001358992
        %v6119 = vadd.f32 %v6118, 0.041655596
        %v6120 = vmul.f32 %v6117, %v6119
        %v6121 = vadd.f32 %v6120, -0.4999988
        %v6122 = vmul.f32 %v6117, %v6121
        %v6123 = vadd.f32 1.0, %v6122
        %v6124 = vmul.f32 %v6115, %v6115
        %v6125 = vmul.f32 %v6124, -0.00019511016
        %v6126 = vadd.f32 %v6125, 0.008332121
        %v6127 = vmul.f32 %v6124, %v6126
        %v6128 = vadd.f32 %v6127, -0.16666654
        %v6129 = vmul.f32 %v6124, %v6128
        %v6130 = vadd.f32 %v6129, 1.0
        %v6131 = vmul.f32 %v6130, %v6115
        %vm6132 = vweird.f32 %v876
        %v6133 = vand.u32 %v6116, 3
        %vm6134 = vcmp.lt.s32.totalorder %v6133, 2
        %vm6135 = vcmp.eq.s32.totalorder %v6133, 0
        %v6136 = vxor.u32 %v6131, 2147483648
        %v6137 = vsel %vm6135, %v6123, %v6136
        %vm6138 = vcmp.eq.s32.totalorder %v6133, 2
        %v6139 = vxor.u32 %v6123, 2147483648
        %v6140 = vsel %vm6138, %v6139, %v6131
        %v6141 = vsel %vm6134, %v6137, %v6140
        %v6142 = vsel %vm6132, nan, %v6141
        %v6143 = vand.u32 2147483647, %v877
        %vm6144 = vcmp.le.f32.partialorder %v6143, 0.7853982
        %vm6145 = vcmp.lt.s32.totalorder %v877, 0
        %v6146 = vand.u32 %v877, 2139095040
        %v6147 = vshrl.u32 %v6146, 23
        %v6148 = vsub.s32 %v6147, 127
        %v6149 = vand.u32 2147483647, %v877
        %v6150 = vand.u32 %v6149, 8388607
        %v6151 = vor.u32 %v6150, 8388608
        %v6152 = vsub.s32 0, %v6151
        %v6153 = vadd.s32 %v6148, 1
        %vm6154 = vcmp.gt.s32.totalorder %v6153, 0
        %v6155 = vsel %vm6154, %v6153, 0
        %v6156 = vshrl.u32 %v6155, 5
        %v6157 = vand.u32 %v6155, 31
        %v6158 = vsub.s32 32, %v6157
        %v6159 = vshrl.u32 683565275, %v6158
        %v6160 = vshll.u32 683565275, %v6157
        %v6161 = vshrl.u32 2475754826, %v6158
        %v6162 = vor.u32 %v6160, %v6161
        %v6163 = vshll.u32 2475754826, %v6157
        %v6164 = vshrl.u32 2131351028, %v6158
        %v6165 = vor.u32 %v6163, %v6164
        %v6166 = vshll.u32 2131351028, %v6157
        %v6167 = vshrl.u32 2102212464, %v6158
        %v6168 = vor.u32 %v6166, %v6167
        %v6169 = vshll.u32 2102212464, %v6157
        %v6170 = vshrl.u32 920167782, %v6158
        %v6171 = vor.u32 %v6169, %v6170
        %v6172 = vshll.u32 920167782, %v6157
        %v6173 = vshrl.u32 1326507024, %v6158
        %v6174 = vor.u32 %v6172, %v6173
        %vm6175 = vcmp.lt.s32.totalorder %v6156, 1
        %vm6176 = vcmp.lt.s32.totalorder %v6156, 2
        %vm6177 = vcmp.lt.s32.totalorder %v6156, 3
        %vm6178 = vcmp.lt.s32.totalorder %v6156, 4
        %v6179 = vsel %vm6175, %v6159, %v6162
        %v6180 = vsel %vm6178, %v6168, 2102212464
        %v6181 = vsel %vm6177, %v6165, %v6180
        %v6182 = vsel %vm6176, %v6179, %v6181
        %v6183 = vsel %vm6175, %v6162, %v6165
        %v6184 = vsel %vm6178, %v6171, 920167782
        %v6185 = vsel %vm6177, %v6168, %v6184
        %v6186 = vsel %vm6176, %v6183, %v6185
        %v6187 = vsel %vm6175, %v6165, %v6168
        %v6188 = vsel %vm6178, %v6174, 1326507024
        %v6189 = vsel %vm6177, %v6171, %v6188
        %v6190 = vsel %vm6176, %v6187, %v6189
        %v6191 = vshll.u32 %v6151, 8
        %v6192 = vand.u32 %v6191, 65535
        %v6193 = vshrl.u32 %v6191, 16
        %v6194 = vand.u32 %v6190, 65535
        %v6195 = vshrl.u32 %v6190, 16
        %v6196 = vmul.u32 %v6192, %v6194
        %v6197 = vmul.u32 %v6192, %v6195
        %v6198 = vmul.u32 %v6193, %v6194
        %v6199 = vmul.u32 %v6193, %v6195
        %v6200 = vshll.u32 %v6197, 16
        %v6201 = vshrl.u32 %v6197, 16
        %v6202 = vshll.u32 %v6198, 16
        %v6203 = vshrl.u32 %v6198, 16
        %vm6204 = vc.u32 %v6196, %v6200
        %v6205 = vsel %vm6204, 1, 0
        %v6206 = vadd.s32 %v6196, %v6200
        %v6207 = vadd.s32 %v6199, %v6205
        %vm6208 = vc.u32 %v6206, %v6202
        %v6209 = vsel %vm6208, 1, 0
        %v6210 = vadd.s32 %v6206, %v6202
        %v6211 = vadd.s32 %v6207, %v6209
        %v6212 = vadd.s32 %v6211, %v6201
        %v6213 = vadd.s32 %v6212, %v6203
        %v6214 = vand.u32 %v6191, 65535
        %v6215 = vshrl.u32 %v6191, 16
        %v6216 = vand.u32 %v6186, 65535
        %v6217 = vshrl.u32 %v6186, 16
        %v6218 = vmul.u32 %v6214, %v6216
        %v6219 = vmul.u32 %v6214, %v6217
        %v6220 = vmul.u32 %v6215, %v6216
        %v6221 = vmul.u32 %v6215, %v6217
        %v6222 = vshll.u32 %v6219, 16
        %v6223 = vshrl.u32 %v6219, 16
        %v6224 = vshll.u32 %v6220, 16
        %v6225 = vshrl.u32 %v6220, 16
        %vm6226 = vc.u32 %v6218, %v6222
        %v6227 = vsel %vm6226, 1, 0
        %v6228 = vadd.s32 %v6218, %v6222
        %v6229 = vadd.s32 %v6221, %v6227
        %vm6230 = vc.u32 %v6228, %v6224
        %v6231 = vsel %vm6230, 1, 0
        %v6232 = vadd.s32 %v6228, %v6224
        %v6233 = vadd.s32 %v6229, %v6231
        %v6234 = vadd.s32 %v6233, %v6223
        %v6235 = vadd.s32 %v6234, %v6225
        %v6236 = vmul.u32 %v6191, %v6182
        %v6237 = vadd.s32 %v6213, %v6232
        %vm6238 = vc.u32 %v6213, %v6232
        %v6239 = vadd.s32 %v6235, 1
        %v6240 = vsel %vm6238, %v6239, %v6235
        %v6241 = vadd.s32 %v6236, %v6240
        %v6242 = vadd.s32 %v6241, 536870912
        %v6243 = vshrl.u32 %v6242, 30
        %v6244 = vshll.u32 %v6243, 30
        %v6245 = vsub.s32 %v6241, %v6244
        %vm6246 = vcmp.lt.s32.totalorder %v6245, 0
        %v6247 = vsub.s32 0, %v6245
        %v6248 = vsel %vm6246, %v6247, %v6245
        %v6249 = vclz %v6248
        %v6250 = vsub.s32 %v6249, 2
        %vm6251 = vcmp.gt.s32.totalorder 0, %v6250
        %v6252 = vsel %vm6251, 0, %v6250
        %v6253 = vsub.s32 32, %v6252
        %v6254 = vshll.u32 %v6245, %v6252
        %v6255 = vshrl.u32 %v6237, %v6253
        %v6256 = vor.u32 %v6254, %v6255
        %v6257 = vsub.s32 4294967266, %v6252
        %v6258 = vadd.s32 %v6257, 127
        %v6259 = vshll.u32 %v6258, 23
        %v6260 = vor.u32 4788187, %v6259
        %v6261 = vand.u32 2147483647, %v6260
        %v6263 = vcvt.s32.f32 %v6256
        %v6264 = vmul.f32 %v6263, %v6261
        %v6265 = vxor.u32 %v6264, 2147483648
        %v6266 = vsel %vm6145, %v6265, %v6264
        %v6267 = vsub.s32 4, %v6243
        %v6268 = vsel %vm6145, %v6267, %v6243
        %v6269 = vsel %vm6144, %v877, %v6266
        %v6270 = vsel %vm6144, 0, %v6268
        %v6271 = vmul.f32 %v6269, %v6269
        %v6272 = vmul.f32 %v6271, -0.001358992
        %v6273 = vadd.f32 %v6272, 0.041655596
        %v6274 = vmul.f32 %v6271, %v6273
        %v6275 = vadd.f32 %v6274, -0.4999988
        %v6276 = vmul.f32 %v6271, %v6275
        %v6277 = vadd.f32 1.0, %v6276
        %v6278 = vmul.f32 %v6269, %v6269
        %v6279 = vmul.f32 %v6278, -0.00019511016
        %v6280 = vadd.f32 %v6279, 0.008332121
        %v6281 = vmul.f32 %v6278, %v6280
        %v6282 = vadd.f32 %v6281, -0.16666654
        %v6283 = vmul.f32 %v6278, %v6282
        %v6284 = vadd.f32 %v6283, 1.0
        %v6285 = vmul.f32 %v6284, %v6269
        %vm6286 = vweird.f32 %v877
        %v6287 = vand.u32 %v6270, 3
        %vm6288 = vcmp.lt.s32.totalorder %v6287, 2
        %vm6289 = vcmp.eq.s32.totalorder %v6287, 0
        %v6290 = vxor.u32 %v6285, 2147483648
        %v6291 = vsel %vm6289, %v6277, %v6290
        %vm6292 = vcmp.eq.s32.totalorder %v6287, 2
        %v6293 = vxor.u32 %v6277, 2147483648
        %v6294 = vsel %vm6292, %v6293, %v6285
        %v6295 = vsel %vm6288, %v6291, %v6294
        %v6296 = vsel %vm6286, nan, %v6295
        %v6297 = vand.u32 2147483647, %v878
        %vm6298 = vcmp.le.f32.partialorder %v6297, 0.7853982
        %vm6299 = vcmp.lt.s32.totalorder %v878, 0
        %v6300 = vand.u32 %v878, 2139095040
        %v6301 = vshrl.u32 %v6300, 23
        %v6302 = vsub.s32 %v6301, 127
        %v6303 = vand.u32 2147483647, %v878
        %v6304 = vand.u32 %v6303, 8388607
        %v6305 = vor.u32 %v6304, 8388608
        %v6306 = vsub.s32 0, %v6305
        %v6307 = vadd.s32 %v6302, 1
        %vm6308 = vcmp.gt.s32.totalorder %v6307, 0
        %v6309 = vsel %vm6308, %v6307, 0
        %v6310 = vshrl.u32 %v6309, 5
        %v6311 = vand.u32 %v6309, 31
        %v6312 = vsub.s32 32, %v6311
        %v6313 = vshrl.u32 683565275, %v6312
        %v6314 = vshll.u32 683565275, %v6311
        %v6315 = vshrl.u32 2475754826, %v6312
        %v6316 = vor.u32 %v6314, %v6315
        %v6317 = vshll.u32 2475754826, %v6311
        %v6318 = vshrl.u32 2131351028, %v6312
        %v6319 = vor.u32 %v6317, %v6318
        %v6320 = vshll.u32 2131351028, %v6311
        %v6321 = vshrl.u32 2102212464, %v6312
        %v6322 = vor.u32 %v6320, %v6321
        %v6323 = vshll.u32 2102212464, %v6311
        %v6324 = vshrl.u32 920167782, %v6312
        %v6325 = vor.u32 %v6323, %v6324
        %v6326 = vshll.u32 920167782, %v6311
        %v6327 = vshrl.u32 1326507024, %v6312
        %v6328 = vor.u32 %v6326, %v6327
        %vm6329 = vcmp.lt.s32.totalorder %v6310, 1
        %vm6330 = vcmp.lt.s32.totalorder %v6310, 2
        %vm6331 = vcmp.lt.s32.totalorder %v6310, 3
        %vm6332 = vcmp.lt.s32.totalorder %v6310, 4
        %v6333 = vsel %vm6329, %v6313, %v6316
        %v6334 = vsel %vm6332, %v6322, 2102212464
        %v6335 = vsel %vm6331, %v6319, %v6334
        %v6336 = vsel %vm6330, %v6333, %v6335
        %v6337 = vsel %vm6329, %v6316, %v6319
        %v6338 = vsel %vm6332, %v6325, 920167782
        %v6339 = vsel %vm6331, %v6322, %v6338
        %v6340 = vsel %vm6330, %v6337, %v6339
        %v6341 = vsel %vm6329, %v6319, %v6322
        %v6342 = vsel %vm6332, %v6328, 1326507024
        %v6343 = vsel %vm6331, %v6325, %v6342
        %v6344 = vsel %vm6330, %v6341, %v6343
        %v6345 = vshll.u32 %v6305, 8
        %v6346 = vand.u32 %v6345, 65535
        %v6347 = vshrl.u32 %v6345, 16
        %v6348 = vand.u32 %v6344, 65535
        %v6349 = vshrl.u32 %v6344, 16
        %v6350 = vmul.u32 %v6346, %v6348
        %v6351 = vmul.u32 %v6346, %v6349
        %v6352 = vmul.u32 %v6347, %v6348
        %v6353 = vmul.u32 %v6347, %v6349
        %v6354 = vshll.u32 %v6351, 16
        %v6355 = vshrl.u32 %v6351, 16
        %v6356 = vshll.u32 %v6352, 16
        %v6357 = vshrl.u32 %v6352, 16
        %vm6358 = vc.u32 %v6350, %v6354
        %v6359 = vsel %vm6358, 1, 0
        %v6360 = vadd.s32 %v6350, %v6354
        %v6361 = vadd.s32 %v6353, %v6359
        %vm6362 = vc.u32 %v6360, %v6356
        %v6363 = vsel %vm6362, 1, 0
        %v6364 = vadd.s32 %v6360, %v6356
        %v6365 = vadd.s32 %v6361, %v6363
        %v6366 = vadd.s32 %v6365, %v6355
        %v6367 = vadd.s32 %v6366, %v6357
        %v6368 = vand.u32 %v6345, 65535
        %v6369 = vshrl.u32 %v6345, 16
        %v6370 = vand.u32 %v6340, 65535
        %v6371 = vshrl.u32 %v6340, 16
        %v6372 = vmul.u32 %v6368, %v6370
        %v6373 = vmul.u32 %v6368, %v6371
        %v6374 = vmul.u32 %v6369, %v6370
        %v6375 = vmul.u32 %v6369, %v6371
        %v6376 = vshll.u32 %v6373, 16
        %v6377 = vshrl.u32 %v6373, 16
        %v6378 = vshll.u32 %v6374, 16
        %v6379 = vshrl.u32 %v6374, 16
        %vm6380 = vc.u32 %v6372, %v6376
        %v6381 = vsel %vm6380, 1, 0
        %v6382 = vadd.s32 %v6372, %v6376
        %v6383 = vadd.s32 %v6375, %v6381
        %vm6384 = vc.u32 %v6382, %v6378
        %v6385 = vsel %vm6384, 1, 0
        %v6386 = vadd.s32 %v6382, %v6378
        %v6387 = vadd.s32 %v6383, %v6385
        %v6388 = vadd.s32 %v6387, %v6377
        %v6389 = vadd.s32 %v6388, %v6379
        %v6390 = vmul.u32 %v6345, %v6336
        %v6391 = vadd.s32 %v6367, %v6386
        %vm6392 = vc.u32 %v6367, %v6386
        %v6393 = vadd.s32 %v6389, 1
        %v6394 = vsel %vm6392, %v6393, %v6389
        %v6395 = vadd.s32 %v6390, %v6394
        %v6396 = vadd.s32 %v6395, 536870912
        %v6397 = vshrl.u32 %v6396, 30
        %v6398 = vshll.u32 %v6397, 30
        %v6399 = vsub.s32 %v6395, %v6398
        %vm6400 = vcmp.lt.s32.totalorder %v6399, 0
        %v6401 = vsub.s32 0, %v6399
        %v6402 = vsel %vm6400, %v6401, %v6399
        %v6403 = vclz %v6402
        %v6404 = vsub.s32 %v6403, 2
        %vm6405 = vcmp.gt.s32.totalorder 0, %v6404
        %v6406 = vsel %vm6405, 0, %v6404
        %v6407 = vsub.s32 32, %v6406
        %v6408 = vshll.u32 %v6399, %v6406
        %v6409 = vshrl.u32 %v6391, %v6407
        %v6410 = vor.u32 %v6408, %v6409
        %v6411 = vsub.s32 4294967266, %v6406
        %v6412 = vadd.s32 %v6411, 127
        %v6413 = vshll.u32 %v6412, 23
        %v6414 = vor.u32 4788187, %v6413
        %v6415 = vand.u32 2147483647, %v6414
        %v6417 = vcvt.s32.f32 %v6410
        %v6418 = vmul.f32 %v6417, %v6415
        %v6419 = vxor.u32 %v6418, 2147483648
        %v6420 = vsel %vm6299, %v6419, %v6418
        %v6421 = vsub.s32 4, %v6397
        %v6422 = vsel %vm6299, %v6421, %v6397
        %v6423 = vsel %vm6298, %v878, %v6420
        %v6424 = vsel %vm6298, 0, %v6422
        %v6425 = vmul.f32 %v6423, %v6423
        %v6426 = vmul.f32 %v6425, -0.001358992
        %v6427 = vadd.f32 %v6426, 0.041655596
        %v6428 = vmul.f32 %v6425, %v6427
        %v6429 = vadd.f32 %v6428, -0.4999988
        %v6430 = vmul.f32 %v6425, %v6429
        %v6431 = vadd.f32 1.0, %v6430
        %v6432 = vmul.f32 %v6423, %v6423
        %v6433 = vmul.f32 %v6432, -0.00019511016
        %v6434 = vadd.f32 %v6433, 0.008332121
        %v6435 = vmul.f32 %v6432, %v6434
        %v6436 = vadd.f32 %v6435, -0.16666654
        %v6437 = vmul.f32 %v6432, %v6436
        %v6438 = vadd.f32 %v6437, 1.0
        %v6439 = vmul.f32 %v6438, %v6423
        %vm6440 = vweird.f32 %v878
        %v6441 = vand.u32 %v6424, 3
        %vm6442 = vcmp.lt.s32.totalorder %v6441, 2
        %vm6443 = vcmp.eq.s32.totalorder %v6441, 0
        %v6444 = vxor.u32 %v6439, 2147483648
        %v6445 = vsel %vm6443, %v6431, %v6444
        %vm6446 = vcmp.eq.s32.totalorder %v6441, 2
        %v6447 = vxor.u32 %v6431, 2147483648
        %v6448 = vsel %vm6446, %v6447, %v6439
        %v6449 = vsel %vm6442, %v6445, %v6448
        %v6450 = vsel %vm6440, nan, %v6449
        %v6451 = vand.u32 2147483647, %v879
        %vm6452 = vcmp.le.f32.partialorder %v6451, 0.7853982
        %vm6453 = vcmp.lt.s32.totalorder %v879, 0
        %v6454 = vand.u32 %v879, 2139095040
        %v6455 = vshrl.u32 %v6454, 23
        %v6456 = vsub.s32 %v6455, 127
        %v6457 = vand.u32 2147483647, %v879
        %v6458 = vand.u32 %v6457, 8388607
        %v6459 = vor.u32 %v6458, 8388608
        %v6460 = vsub.s32 0, %v6459
        %v6461 = vadd.s32 %v6456, 1
        %vm6462 = vcmp.gt.s32.totalorder %v6461, 0
        %v6463 = vsel %vm6462, %v6461, 0
        %v6464 = vshrl.u32 %v6463, 5
        %v6465 = vand.u32 %v6463, 31
        %v6466 = vsub.s32 32, %v6465
        %v6467 = vshrl.u32 683565275, %v6466
        %v6468 = vshll.u32 683565275, %v6465
        %v6469 = vshrl.u32 2475754826, %v6466
        %v6470 = vor.u32 %v6468, %v6469
        %v6471 = vshll.u32 2475754826, %v6465
        %v6472 = vshrl.u32 2131351028, %v6466
        %v6473 = vor.u32 %v6471, %v6472
        %v6474 = vshll.u32 2131351028, %v6465
        %v6475 = vshrl.u32 2102212464, %v6466
        %v6476 = vor.u32 %v6474, %v6475
        %v6477 = vshll.u32 2102212464, %v6465
        %v6478 = vshrl.u32 920167782, %v6466
        %v6479 = vor.u32 %v6477, %v6478
        %v6480 = vshll.u32 920167782, %v6465
        %v6481 = vshrl.u32 1326507024, %v6466
        %v6482 = vor.u32 %v6480, %v6481
        %vm6483 = vcmp.lt.s32.totalorder %v6464, 1
        %vm6484 = vcmp.lt.s32.totalorder %v6464, 2
        %vm6485 = vcmp.lt.s32.totalorder %v6464, 3
        %vm6486 = vcmp.lt.s32.totalorder %v6464, 4
        %v6487 = vsel %vm6483, %v6467, %v6470
        %v6488 = vsel %vm6486, %v6476, 2102212464
        %v6489 = vsel %vm6485, %v6473, %v6488
        %v6490 = vsel %vm6484, %v6487, %v6489
        %v6491 = vsel %vm6483, %v6470, %v6473
        %v6492 = vsel %vm6486, %v6479, 920167782
        %v6493 = vsel %vm6485, %v6476, %v6492
        %v6494 = vsel %vm6484, %v6491, %v6493
        %v6495 = vsel %vm6483, %v6473, %v6476
        %v6496 = vsel %vm6486, %v6482, 1326507024
        %v6497 = vsel %vm6485, %v6479, %v6496
        %v6498 = vsel %vm6484, %v6495, %v6497
        %v6499 = vshll.u32 %v6459, 8
        %v6500 = vand.u32 %v6499, 65535
        %v6501 = vshrl.u32 %v6499, 16
        %v6502 = vand.u32 %v6498, 65535
        %v6503 = vshrl.u32 %v6498, 16
        %v6504 = vmul.u32 %v6500, %v6502
        %v6505 = vmul.u32 %v6500, %v6503
        %v6506 = vmul.u32 %v6501, %v6502
        %v6507 = vmul.u32 %v6501, %v6503
        %v6508 = vshll.u32 %v6505, 16
        %v6509 = vshrl.u32 %v6505, 16
        %v6510 = vshll.u32 %v6506, 16
        %v6511 = vshrl.u32 %v6506, 16
        %vm6512 = vc.u32 %v6504, %v6508
        %v6513 = vsel %vm6512, 1, 0
        %v6514 = vadd.s32 %v6504, %v6508
        %v6515 = vadd.s32 %v6507, %v6513
        %vm6516 = vc.u32 %v6514, %v6510
        %v6517 = vsel %vm6516, 1, 0
        %v6518 = vadd.s32 %v6514, %v6510
        %v6519 = vadd.s32 %v6515, %v6517
        %v6520 = vadd.s32 %v6519, %v6509
        %v6521 = vadd.s32 %v6520, %v6511
        %v6522 = vand.u32 %v6499, 65535
        %v6523 = vshrl.u32 %v6499, 16
        %v6524 = vand.u32 %v6494, 65535
        %v6525 = vshrl.u32 %v6494, 16
        %v6526 = vmul.u32 %v6522, %v6524
        %v6527 = vmul.u32 %v6522, %v6525
        %v6528 = vmul.u32 %v6523, %v6524
        %v6529 = vmul.u32 %v6523, %v6525
        %v6530 = vshll.u32 %v6527, 16
        %v6531 = vshrl.u32 %v6527, 16
        %v6532 = vshll.u32 %v6528, 16
        %v6533 = vshrl.u32 %v6528, 16
        %vm6534 = vc.u32 %v6526, %v6530
        %v6535 = vsel %vm6534, 1, 0
        %v6536 = vadd.s32 %v6526, %v6530
        %v6537 = vadd.s32 %v6529, %v6535
        %vm6538 = vc.u32 %v6536, %v6532
        %v6539 = vsel %vm6538, 1, 0
        %v6540 = vadd.s32 %v6536, %v6532
        %v6541 = vadd.s32 %v6537, %v6539
        %v6542 = vadd.s32 %v6541, %v6531
        %v6543 = vadd.s32 %v6542, %v6533
        %v6544 = vmul.u32 %v6499, %v6490
        %v6545 = vadd.s32 %v6521, %v6540
        %vm6546 = vc.u32 %v6521, %v6540
        %v6547 = vadd.s32 %v6543, 1
        %v6548 = vsel %vm6546, %v6547, %v6543
        %v6549 = vadd.s32 %v6544, %v6548
        %v6550 = vadd.s32 %v6549, 536870912
        %v6551 = vshrl.u32 %v6550, 30
        %v6552 = vshll.u32 %v6551, 30
        %v6553 = vsub.s32 %v6549, %v6552
        %vm6554 = vcmp.lt.s32.totalorder %v6553, 0
        %v6555 = vsub.s32 0, %v6553
        %v6556 = vsel %vm6554, %v6555, %v6553
        %v6557 = vclz %v6556
        %v6558 = vsub.s32 %v6557, 2
        %vm6559 = vcmp.gt.s32.totalorder 0, %v6558
        %v6560 = vsel %vm6559, 0, %v6558
        %v6561 = vsub.s32 32, %v6560
        %v6562 = vshll.u32 %v6553, %v6560
        %v6563 = vshrl.u32 %v6545, %v6561
        %v6564 = vor.u32 %v6562, %v6563
        %v6565 = vsub.s32 4294967266, %v6560
        %v6566 = vadd.s32 %v6565, 127
        %v6567 = vshll.u32 %v6566, 23
        %v6568 = vor.u32 4788187, %v6567
        %v6569 = vand.u32 2147483647, %v6568
        %v6571 = vcvt.s32.f32 %v6564
        %v6572 = vmul.f32 %v6571, %v6569
        %v6573 = vxor.u32 %v6572, 2147483648
        %v6574 = vsel %vm6453, %v6573, %v6572
        %v6575 = vsub.s32 4, %v6551
        %v6576 = vsel %vm6453, %v6575, %v6551
        %v6577 = vsel %vm6452, %v879, %v6574
        %v6578 = vsel %vm6452, 0, %v6576
        %v6579 = vmul.f32 %v6577, %v6577
        %v6580 = vmul.f32 %v6579, -0.001358992
        %v6581 = vadd.f32 %v6580, 0.041655596
        %v6582 = vmul.f32 %v6579, %v6581
        %v6583 = vadd.f32 %v6582, -0.4999988
        %v6584 = vmul.f32 %v6579, %v6583
        %v6585 = vadd.f32 1.0, %v6584
        %v6586 = vmul.f32 %v6577, %v6577
        %v6587 = vmul.f32 %v6586, -0.00019511016
        %v6588 = vadd.f32 %v6587, 0.008332121
        %v6589 = vmul.f32 %v6586, %v6588
        %v6590 = vadd.f32 %v6589, -0.16666654
        %v6591 = vmul.f32 %v6586, %v6590
        %v6592 = vadd.f32 %v6591, 1.0
        %v6593 = vmul.f32 %v6592, %v6577
        %vm6594 = vweird.f32 %v879
        %v6595 = vand.u32 %v6578, 3
        %vm6596 = vcmp.lt.s32.totalorder %v6595, 2
        %vm6597 = vcmp.eq.s32.totalorder %v6595, 0
        %v6598 = vxor.u32 %v6593, 2147483648
        %v6599 = vsel %vm6597, %v6585, %v6598
        %vm6600 = vcmp.eq.s32.totalorder %v6595, 2
        %v6601 = vxor.u32 %v6585, 2147483648
        %v6602 = vsel %vm6600, %v6601, %v6593
        %v6603 = vsel %vm6596, %v6599, %v6602
        %v6604 = vsel %vm6594, nan, %v6603
        %v6605 = vand.u32 2147483647, %v880
        %vm6606 = vcmp.le.f32.partialorder %v6605, 0.7853982
        %vm6607 = vcmp.lt.s32.totalorder %v880, 0
        %v6608 = vand.u32 %v880, 2139095040
        %v6609 = vshrl.u32 %v6608, 23
        %v6610 = vsub.s32 %v6609, 127
        %v6611 = vand.u32 2147483647, %v880
        %v6612 = vand.u32 %v6611, 8388607
        %v6613 = vor.u32 %v6612, 8388608
        %v6614 = vsub.s32 0, %v6613
        %v6615 = vadd.s32 %v6610, 1
        %vm6616 = vcmp.gt.s32.totalorder %v6615, 0
        %v6617 = vsel %vm6616, %v6615, 0
        %v6618 = vshrl.u32 %v6617, 5
        %v6619 = vand.u32 %v6617, 31
        %v6620 = vsub.s32 32, %v6619
        %v6621 = vshrl.u32 683565275, %v6620
        %v6622 = vshll.u32 683565275, %v6619
        %v6623 = vshrl.u32 2475754826, %v6620
        %v6624 = vor.u32 %v6622, %v6623
        %v6625 = vshll.u32 2475754826, %v6619
        %v6626 = vshrl.u32 2131351028, %v6620
        %v6627 = vor.u32 %v6625, %v6626
        %v6628 = vshll.u32 2131351028, %v6619
        %v6629 = vshrl.u32 2102212464, %v6620
        %v6630 = vor.u32 %v6628, %v6629
        %v6631 = vshll.u32 2102212464, %v6619
        %v6632 = vshrl.u32 920167782, %v6620
        %v6633 = vor.u32 %v6631, %v6632
        %v6634 = vshll.u32 920167782, %v6619
        %v6635 = vshrl.u32 1326507024, %v6620
        %v6636 = vor.u32 %v6634, %v6635
        %vm6637 = vcmp.lt.s32.totalorder %v6618, 1
        %vm6638 = vcmp.lt.s32.totalorder %v6618, 2
        %vm6639 = vcmp.lt.s32.totalorder %v6618, 3
        %vm6640 = vcmp.lt.s32.totalorder %v6618, 4
        %v6641 = vsel %vm6637, %v6621, %v6624
        %v6642 = vsel %vm6640, %v6630, 2102212464
        %v6643 = vsel %vm6639, %v6627, %v6642
        %v6644 = vsel %vm6638, %v6641, %v6643
        %v6645 = vsel %vm6637, %v6624, %v6627
        %v6646 = vsel %vm6640, %v6633, 920167782
        %v6647 = vsel %vm6639, %v6630, %v6646
        %v6648 = vsel %vm6638, %v6645, %v6647
        %v6649 = vsel %vm6637, %v6627, %v6630
        %v6650 = vsel %vm6640, %v6636, 1326507024
        %v6651 = vsel %vm6639, %v6633, %v6650
        %v6652 = vsel %vm6638, %v6649, %v6651
        %v6653 = vshll.u32 %v6613, 8
        %v6654 = vand.u32 %v6653, 65535
        %v6655 = vshrl.u32 %v6653, 16
        %v6656 = vand.u32 %v6652, 65535
        %v6657 = vshrl.u32 %v6652, 16
        %v6658 = vmul.u32 %v6654, %v6656
        %v6659 = vmul.u32 %v6654, %v6657
        %v6660 = vmul.u32 %v6655, %v6656
        %v6661 = vmul.u32 %v6655, %v6657
        %v6662 = vshll.u32 %v6659, 16
        %v6663 = vshrl.u32 %v6659, 16
        %v6664 = vshll.u32 %v6660, 16
        %v6665 = vshrl.u32 %v6660, 16
        %vm6666 = vc.u32 %v6658, %v6662
        %v6667 = vsel %vm6666, 1, 0
        %v6668 = vadd.s32 %v6658, %v6662
        %v6669 = vadd.s32 %v6661, %v6667
        %vm6670 = vc.u32 %v6668, %v6664
        %v6671 = vsel %vm6670, 1, 0
        %v6672 = vadd.s32 %v6668, %v6664
        %v6673 = vadd.s32 %v6669, %v6671
        %v6674 = vadd.s32 %v6673, %v6663
        %v6675 = vadd.s32 %v6674, %v6665
        %v6676 = vand.u32 %v6653, 65535
        %v6677 = vshrl.u32 %v6653, 16
        %v6678 = vand.u32 %v6648, 65535
        %v6679 = vshrl.u32 %v6648, 16
        %v6680 = vmul.u32 %v6676, %v6678
        %v6681 = vmul.u32 %v6676, %v6679
        %v6682 = vmul.u32 %v6677, %v6678
        %v6683 = vmul.u32 %v6677, %v6679
        %v6684 = vshll.u32 %v6681, 16
        %v6685 = vshrl.u32 %v6681, 16
        %v6686 = vshll.u32 %v6682, 16
        %v6687 = vshrl.u32 %v6682, 16
        %vm6688 = vc.u32 %v6680, %v6684
        %v6689 = vsel %vm6688, 1, 0
        %v6690 = vadd.s32 %v6680, %v6684
        %v6691 = vadd.s32 %v6683, %v6689
        %vm6692 = vc.u32 %v6690, %v6686
        %v6693 = vsel %vm6692, 1, 0
        %v6694 = vadd.s32 %v6690, %v6686
        %v6695 = vadd.s32 %v6691, %v6693
        %v6696 = vadd.s32 %v6695, %v6685
        %v6697 = vadd.s32 %v6696, %v6687
        %v6698 = vmul.u32 %v6653, %v6644
        %v6699 = vadd.s32 %v6675, %v6694
        %vm6700 = vc.u32 %v6675, %v6694
        %v6701 = vadd.s32 %v6697, 1
        %v6702 = vsel %vm6700, %v6701, %v6697
        %v6703 = vadd.s32 %v6698, %v6702
        %v6704 = vadd.s32 %v6703, 536870912
        %v6705 = vshrl.u32 %v6704, 30
        %v6706 = vshll.u32 %v6705, 30
        %v6707 = vsub.s32 %v6703, %v6706
        %vm6708 = vcmp.lt.s32.totalorder %v6707, 0
        %v6709 = vsub.s32 0, %v6707
        %v6710 = vsel %vm6708, %v6709, %v6707
        %v6711 = vclz %v6710
        %v6712 = vsub.s32 %v6711, 2
        %vm6713 = vcmp.gt.s32.totalorder 0, %v6712
        %v6714 = vsel %vm6713, 0, %v6712
        %v6715 = vsub.s32 32, %v6714
        %v6716 = vshll.u32 %v6707, %v6714
        %v6717 = vshrl.u32 %v6699, %v6715
        %v6718 = vor.u32 %v6716, %v6717
        %v6719 = vsub.s32 4294967266, %v6714
        %v6720 = vadd.s32 %v6719, 127
        %v6721 = vshll.u32 %v6720, 23
        %v6722 = vor.u32 4788187, %v6721
        %v6723 = vand.u32 2147483647, %v6722
        %v6725 = vcvt.s32.f32 %v6718
        %v6726 = vmul.f32 %v6725, %v6723
        %v6727 = vxor.u32 %v6726, 2147483648
        %v6728 = vsel %vm6607, %v6727, %v6726
        %v6729 = vsub.s32 4, %v6705
        %v6730 = vsel %vm6607, %v6729, %v6705
        %v6731 = vsel %vm6606, %v880, %v6728
        %v6732 = vsel %vm6606, 0, %v6730
        %v6733 = vmul.f32 %v6731, %v6731
        %v6734 = vmul.f32 %v6733, -0.001358992
        %v6735 = vadd.f32 %v6734, 0.041655596
        %v6736 = vmul.f32 %v6733, %v6735
        %v6737 = vadd.f32 %v6736, -0.4999988
        %v6738 = vmul.f32 %v6733, %v6737
        %v6739 = vadd.f32 1.0, %v6738
        %v6740 = vmul.f32 %v6731, %v6731
        %v6741 = vmul.f32 %v6740, -0.00019511016
        %v6742 = vadd.f32 %v6741, 0.008332121
        %v6743 = vmul.f32 %v6740, %v6742
        %v6744 = vadd.f32 %v6743, -0.16666654
        %v6745 = vmul.f32 %v6740, %v6744
        %v6746 = vadd.f32 %v6745, 1.0
        %v6747 = vmul.f32 %v6746, %v6731
        %vm6748 = vweird.f32 %v880
        %v6749 = vand.u32 %v6732, 3
        %vm6750 = vcmp.lt.s32.totalorder %v6749, 2
        %vm6751 = vcmp.eq.s32.totalorder %v6749, 0
        %v6752 = vxor.u32 %v6747, 2147483648
        %v6753 = vsel %vm6751, %v6739, %v6752
        %vm6754 = vcmp.eq.s32.totalorder %v6749, 2
        %v6755 = vxor.u32 %v6739, 2147483648
        %v6756 = vsel %vm6754, %v6755, %v6747
        %v6757 = vsel %vm6750, %v6753, %v6756
        %v6758 = vsel %vm6748, nan, %v6757
        %v6759 = vand.u32 2147483647, %v881
        %vm6760 = vcmp.le.f32.partialorder %v6759, 0.7853982
        %vm6761 = vcmp.lt.s32.totalorder %v881, 0
        %v6762 = vand.u32 %v881, 2139095040
        %v6763 = vshrl.u32 %v6762, 23
        %v6764 = vsub.s32 %v6763, 127
        %v6765 = vand.u32 2147483647, %v881
        %v6766 = vand.u32 %v6765, 8388607
        %v6767 = vor.u32 %v6766, 8388608
        %v6768 = vsub.s32 0, %v6767
        %v6769 = vadd.s32 %v6764, 1
        %vm6770 = vcmp.gt.s32.totalorder %v6769, 0
        %v6771 = vsel %vm6770, %v6769, 0
        %v6772 = vshrl.u32 %v6771, 5
        %v6773 = vand.u32 %v6771, 31
        %v6774 = vsub.s32 32, %v6773
        %v6775 = vshrl.u32 683565275, %v6774
        %v6776 = vshll.u32 683565275, %v6773
        %v6777 = vshrl.u32 2475754826, %v6774
        %v6778 = vor.u32 %v6776, %v6777
        %v6779 = vshll.u32 2475754826, %v6773
        %v6780 = vshrl.u32 2131351028, %v6774
        %v6781 = vor.u32 %v6779, %v6780
        %v6782 = vshll.u32 2131351028, %v6773
        %v6783 = vshrl.u32 2102212464, %v6774
        %v6784 = vor.u32 %v6782, %v6783
        %v6785 = vshll.u32 2102212464, %v6773
        %v6786 = vshrl.u32 920167782, %v6774
        %v6787 = vor.u32 %v6785, %v6786
        %v6788 = vshll.u32 920167782, %v6773
        %v6789 = vshrl.u32 1326507024, %v6774
        %v6790 = vor.u32 %v6788, %v6789
        %vm6791 = vcmp.lt.s32.totalorder %v6772, 1
        %vm6792 = vcmp.lt.s32.totalorder %v6772, 2
        %vm6793 = vcmp.lt.s32.totalorder %v6772, 3
        %vm6794 = vcmp.lt.s32.totalorder %v6772, 4
        %v6795 = vsel %vm6791, %v6775, %v6778
        %v6796 = vsel %vm6794, %v6784, 2102212464
        %v6797 = vsel %vm6793, %v6781, %v6796
        %v6798 = vsel %vm6792, %v6795, %v6797
        %v6799 = vsel %vm6791, %v6778, %v6781
        %v6800 = vsel %vm6794, %v6787, 920167782
        %v6801 = vsel %vm6793, %v6784, %v6800
        %v6802 = vsel %vm6792, %v6799, %v6801
        %v6803 = vsel %vm6791, %v6781, %v6784
        %v6804 = vsel %vm6794, %v6790, 1326507024
        %v6805 = vsel %vm6793, %v6787, %v6804
        %v6806 = vsel %vm6792, %v6803, %v6805
        %v6807 = vshll.u32 %v6767, 8
        %v6808 = vand.u32 %v6807, 65535
        %v6809 = vshrl.u32 %v6807, 16
        %v6810 = vand.u32 %v6806, 65535
        %v6811 = vshrl.u32 %v6806, 16
        %v6812 = vmul.u32 %v6808, %v6810
        %v6813 = vmul.u32 %v6808, %v6811
        %v6814 = vmul.u32 %v6809, %v6810
        %v6815 = vmul.u32 %v6809, %v6811
        %v6816 = vshll.u32 %v6813, 16
        %v6817 = vshrl.u32 %v6813, 16
        %v6818 = vshll.u32 %v6814, 16
        %v6819 = vshrl.u32 %v6814, 16
        %vm6820 = vc.u32 %v6812, %v6816
        %v6821 = vsel %vm6820, 1, 0
        %v6822 = vadd.s32 %v6812, %v6816
        %v6823 = vadd.s32 %v6815, %v6821
        %vm6824 = vc.u32 %v6822, %v6818
        %v6825 = vsel %vm6824, 1, 0
        %v6826 = vadd.s32 %v6822, %v6818
        %v6827 = vadd.s32 %v6823, %v6825
        %v6828 = vadd.s32 %v6827, %v6817
        %v6829 = vadd.s32 %v6828, %v6819
        %v6830 = vand.u32 %v6807, 65535
        %v6831 = vshrl.u32 %v6807, 16
        %v6832 = vand.u32 %v6802, 65535
        %v6833 = vshrl.u32 %v6802, 16
        %v6834 = vmul.u32 %v6830, %v6832
        %v6835 = vmul.u32 %v6830, %v6833
        %v6836 = vmul.u32 %v6831, %v6832
        %v6837 = vmul.u32 %v6831, %v6833
        %v6838 = vshll.u32 %v6835, 16
        %v6839 = vshrl.u32 %v6835, 16
        %v6840 = vshll.u32 %v6836, 16
        %v6841 = vshrl.u32 %v6836, 16
        %vm6842 = vc.u32 %v6834, %v6838
        %v6843 = vsel %vm6842, 1, 0
        %v6844 = vadd.s32 %v6834, %v6838
        %v6845 = vadd.s32 %v6837, %v6843
        %vm6846 = vc.u32 %v6844, %v6840
        %v6847 = vsel %vm6846, 1, 0
        %v6848 = vadd.s32 %v6844, %v6840
        %v6849 = vadd.s32 %v6845, %v6847
        %v6850 = vadd.s32 %v6849, %v6839
        %v6851 = vadd.s32 %v6850, %v6841
        %v6852 = vmul.u32 %v6807, %v6798
        %v6853 = vadd.s32 %v6829, %v6848
        %vm6854 = vc.u32 %v6829, %v6848
        %v6855 = vadd.s32 %v6851, 1
        %v6856 = vsel %vm6854, %v6855, %v6851
        %v6857 = vadd.s32 %v6852, %v6856
        %v6858 = vadd.s32 %v6857, 536870912
        %v6859 = vshrl.u32 %v6858, 30
        %v6860 = vshll.u32 %v6859, 30
        %v6861 = vsub.s32 %v6857, %v6860
        %vm6862 = vcmp.lt.s32.totalorder %v6861, 0
        %v6863 = vsub.s32 0, %v6861
        %v6864 = vsel %vm6862, %v6863, %v6861
        %v6865 = vclz %v6864
        %v6866 = vsub.s32 %v6865, 2
        %vm6867 = vcmp.gt.s32.totalorder 0, %v6866
        %v6868 = vsel %vm6867, 0, %v6866
        %v6869 = vsub.s32 32, %v6868
        %v6870 = vshll.u32 %v6861, %v6868
        %v6871 = vshrl.u32 %v6853, %v6869
        %v6872 = vor.u32 %v6870, %v6871
        %v6873 = vsub.s32 4294967266, %v6868
        %v6874 = vadd.s32 %v6873, 127
        %v6875 = vshll.u32 %v6874, 23
        %v6876 = vor.u32 4788187, %v6875
        %v6877 = vand.u32 2147483647, %v6876
        %v6879 = vcvt.s32.f32 %v6872
        %v6880 = vmul.f32 %v6879, %v6877
        %v6881 = vxor.u32 %v6880, 2147483648
        %v6882 = vsel %vm6761, %v6881, %v6880
        %v6883 = vsub.s32 4, %v6859
        %v6884 = vsel %vm6761, %v6883, %v6859
        %v6885 = vsel %vm6760, %v881, %v6882
        %v6886 = vsel %vm6760, 0, %v6884
        %v6887 = vmul.f32 %v6885, %v6885
        %v6888 = vmul.f32 %v6887, -0.001358992
        %v6889 = vadd.f32 %v6888, 0.041655596
        %v6890 = vmul.f32 %v6887, %v6889
        %v6891 = vadd.f32 %v6890, -0.4999988
        %v6892 = vmul.f32 %v6887, %v6891
        %v6893 = vadd.f32 1.0, %v6892
        %v6894 = vmul.f32 %v6885, %v6885
        %v6895 = vmul.f32 %v6894, -0.00019511016
        %v6896 = vadd.f32 %v6895, 0.008332121
        %v6897 = vmul.f32 %v6894, %v6896
        %v6898 = vadd.f32 %v6897, -0.16666654
        %v6899 = vmul.f32 %v6894, %v6898
        %v6900 = vadd.f32 %v6899, 1.0
        %v6901 = vmul.f32 %v6900, %v6885
        %vm6902 = vweird.f32 %v881
        %v6903 = vand.u32 %v6886, 3
        %vm6904 = vcmp.lt.s32.totalorder %v6903, 2
        %vm6905 = vcmp.eq.s32.totalorder %v6903, 0
        %v6906 = vxor.u32 %v6901, 2147483648
        %v6907 = vsel %vm6905, %v6893, %v6906
        %vm6908 = vcmp.eq.s32.totalorder %v6903, 2
        %v6909 = vxor.u32 %v6893, 2147483648
        %v6910 = vsel %vm6908, %v6909, %v6901
        %v6911 = vsel %vm6904, %v6907, %v6910
        %v6912 = vsel %vm6902, nan, %v6911
        %v6913 = vand.u32 2147483647, %v882
        %vm6914 = vcmp.le.f32.partialorder %v6913, 0.7853982
        %vm6915 = vcmp.lt.s32.totalorder %v882, 0
        %v6916 = vand.u32 %v882, 2139095040
        %v6917 = vshrl.u32 %v6916, 23
        %v6918 = vsub.s32 %v6917, 127
        %v6919 = vand.u32 2147483647, %v882
        %v6920 = vand.u32 %v6919, 8388607
        %v6921 = vor.u32 %v6920, 8388608
        %v6922 = vsub.s32 0, %v6921
        %v6923 = vadd.s32 %v6918, 1
        %vm6924 = vcmp.gt.s32.totalorder %v6923, 0
        %v6925 = vsel %vm6924, %v6923, 0
        %v6926 = vshrl.u32 %v6925, 5
        %v6927 = vand.u32 %v6925, 31
        %v6928 = vsub.s32 32, %v6927
        %v6929 = vshrl.u32 683565275, %v6928
        %v6930 = vshll.u32 683565275, %v6927
        %v6931 = vshrl.u32 2475754826, %v6928
        %v6932 = vor.u32 %v6930, %v6931
        %v6933 = vshll.u32 2475754826, %v6927
        %v6934 = vshrl.u32 2131351028, %v6928
        %v6935 = vor.u32 %v6933, %v6934
        %v6936 = vshll.u32 2131351028, %v6927
        %v6937 = vshrl.u32 2102212464, %v6928
        %v6938 = vor.u32 %v6936, %v6937
        %v6939 = vshll.u32 2102212464, %v6927
        %v6940 = vshrl.u32 920167782, %v6928
        %v6941 = vor.u32 %v6939, %v6940
        %v6942 = vshll.u32 920167782, %v6927
        %v6943 = vshrl.u32 1326507024, %v6928
        %v6944 = vor.u32 %v6942, %v6943
        %vm6945 = vcmp.lt.s32.totalorder %v6926, 1
        %vm6946 = vcmp.lt.s32.totalorder %v6926, 2
        %vm6947 = vcmp.lt.s32.totalorder %v6926, 3
        %vm6948 = vcmp.lt.s32.totalorder %v6926, 4
        %v6949 = vsel %vm6945, %v6929, %v6932
        %v6950 = vsel %vm6948, %v6938, 2102212464
        %v6951 = vsel %vm6947, %v6935, %v6950
        %v6952 = vsel %vm6946, %v6949, %v6951
        %v6953 = vsel %vm6945, %v6932, %v6935
        %v6954 = vsel %vm6948, %v6941, 920167782
        %v6955 = vsel %vm6947, %v6938, %v6954
        %v6956 = vsel %vm6946, %v6953, %v6955
        %v6957 = vsel %vm6945, %v6935, %v6938
        %v6958 = vsel %vm6948, %v6944, 1326507024
        %v6959 = vsel %vm6947, %v6941, %v6958
        %v6960 = vsel %vm6946, %v6957, %v6959
        %v6961 = vshll.u32 %v6921, 8
        %v6962 = vand.u32 %v6961, 65535
        %v6963 = vshrl.u32 %v6961, 16
        %v6964 = vand.u32 %v6960, 65535
        %v6965 = vshrl.u32 %v6960, 16
        %v6966 = vmul.u32 %v6962, %v6964
        %v6967 = vmul.u32 %v6962, %v6965
        %v6968 = vmul.u32 %v6963, %v6964
        %v6969 = vmul.u32 %v6963, %v6965
        %v6970 = vshll.u32 %v6967, 16
        %v6971 = vshrl.u32 %v6967, 16
        %v6972 = vshll.u32 %v6968, 16
        %v6973 = vshrl.u32 %v6968, 16
        %vm6974 = vc.u32 %v6966, %v6970
        %v6975 = vsel %vm6974, 1, 0
        %v6976 = vadd.s32 %v6966, %v6970
        %v6977 = vadd.s32 %v6969, %v6975
        %vm6978 = vc.u32 %v6976, %v6972
        %v6979 = vsel %vm6978, 1, 0
        %v6980 = vadd.s32 %v6976, %v6972
        %v6981 = vadd.s32 %v6977, %v6979
        %v6982 = vadd.s32 %v6981, %v6971
        %v6983 = vadd.s32 %v6982, %v6973
        %v6984 = vand.u32 %v6961, 65535
        %v6985 = vshrl.u32 %v6961, 16
        %v6986 = vand.u32 %v6956, 65535
        %v6987 = vshrl.u32 %v6956, 16
        %v6988 = vmul.u32 %v6984, %v6986
        %v6989 = vmul.u32 %v6984, %v6987
        %v6990 = vmul.u32 %v6985, %v6986
        %v6991 = vmul.u32 %v6985, %v6987
        %v6992 = vshll.u32 %v6989, 16
        %v6993 = vshrl.u32 %v6989, 16
        %v6994 = vshll.u32 %v6990, 16
        %v6995 = vshrl.u32 %v6990, 16
        %vm6996 = vc.u32 %v6988, %v6992
        %v6997 = vsel %vm6996, 1, 0
        %v6998 = vadd.s32 %v6988, %v6992
        %v6999 = vadd.s32 %v6991, %v6997
        %vm7000 = vc.u32 %v6998, %v6994
        %v7001 = vsel %vm7000, 1, 0
        %v7002 = vadd.s32 %v6998, %v6994
        %v7003 = vadd.s32 %v6999, %v7001
        %v7004 = vadd.s32 %v7003, %v6993
        %v7005 = vadd.s32 %v7004, %v6995
        %v7006 = vmul.u32 %v6961, %v6952
        %v7007 = vadd.s32 %v6983, %v7002
        %vm7008 = vc.u32 %v6983, %v7002
        %v7009 = vadd.s32 %v7005, 1
        %v7010 = vsel %vm7008, %v7009, %v7005
        %v7011 = vadd.s32 %v7006, %v7010
        %v7012 = vadd.s32 %v7011, 536870912
        %v7013 = vshrl.u32 %v7012, 30
        %v7014 = vshll.u32 %v7013, 30
        %v7015 = vsub.s32 %v7011, %v7014
        %vm7016 = vcmp.lt.s32.totalorder %v7015, 0
        %v7017 = vsub.s32 0, %v7015
        %v7018 = vsel %vm7016, %v7017, %v7015
        %v7019 = vclz %v7018
        %v7020 = vsub.s32 %v7019, 2
        %vm7021 = vcmp.gt.s32.totalorder 0, %v7020
        %v7022 = vsel %vm7021, 0, %v7020
        %v7023 = vsub.s32 32, %v7022
        %v7024 = vshll.u32 %v7015, %v7022
        %v7025 = vshrl.u32 %v7007, %v7023
        %v7026 = vor.u32 %v7024, %v7025
        %v7027 = vsub.s32 4294967266, %v7022
        %v7028 = vadd.s32 %v7027, 127
        %v7029 = vshll.u32 %v7028, 23
        %v7030 = vor.u32 4788187, %v7029
        %v7031 = vand.u32 2147483647, %v7030
        %v7033 = vcvt.s32.f32 %v7026
        %v7034 = vmul.f32 %v7033, %v7031
        %v7035 = vxor.u32 %v7034, 2147483648
        %v7036 = vsel %vm6915, %v7035, %v7034
        %v7037 = vsub.s32 4, %v7013
        %v7038 = vsel %vm6915, %v7037, %v7013
        %v7039 = vsel %vm6914, %v882, %v7036
        %v7040 = vsel %vm6914, 0, %v7038
        %v7041 = vmul.f32 %v7039, %v7039
        %v7042 = vmul.f32 %v7041, -0.001358992
        %v7043 = vadd.f32 %v7042, 0.041655596
        %v7044 = vmul.f32 %v7041, %v7043
        %v7045 = vadd.f32 %v7044, -0.4999988
        %v7046 = vmul.f32 %v7041, %v7045
        %v7047 = vadd.f32 1.0, %v7046
        %v7048 = vmul.f32 %v7039, %v7039
        %v7049 = vmul.f32 %v7048, -0.00019511016
        %v7050 = vadd.f32 %v7049, 0.008332121
        %v7051 = vmul.f32 %v7048, %v7050
        %v7052 = vadd.f32 %v7051, -0.16666654
        %v7053 = vmul.f32 %v7048, %v7052
        %v7054 = vadd.f32 %v7053, 1.0
        %v7055 = vmul.f32 %v7054, %v7039
        %vm7056 = vweird.f32 %v882
        %v7057 = vand.u32 %v7040, 3
        %vm7058 = vcmp.lt.s32.totalorder %v7057, 2
        %vm7059 = vcmp.eq.s32.totalorder %v7057, 0
        %v7060 = vxor.u32 %v7055, 2147483648
        %v7061 = vsel %vm7059, %v7047, %v7060
        %vm7062 = vcmp.eq.s32.totalorder %v7057, 2
        %v7063 = vxor.u32 %v7047, 2147483648
        %v7064 = vsel %vm7062, %v7063, %v7055
        %v7065 = vsel %vm7058, %v7061, %v7064
        %v7066 = vsel %vm7056, nan, %v7065
        %v7067 = vand.u32 2147483647, %v883
        %vm7068 = vcmp.le.f32.partialorder %v7067, 0.7853982
        %vm7069 = vcmp.lt.s32.totalorder %v883, 0
        %v7070 = vand.u32 %v883, 2139095040
        %v7071 = vshrl.u32 %v7070, 23
        %v7072 = vsub.s32 %v7071, 127
        %v7073 = vand.u32 2147483647, %v883
        %v7074 = vand.u32 %v7073, 8388607
        %v7075 = vor.u32 %v7074, 8388608
        %v7076 = vsub.s32 0, %v7075
        %v7077 = vadd.s32 %v7072, 1
        %vm7078 = vcmp.gt.s32.totalorder %v7077, 0
        %v7079 = vsel %vm7078, %v7077, 0
        %v7080 = vshrl.u32 %v7079, 5
        %v7081 = vand.u32 %v7079, 31
        %v7082 = vsub.s32 32, %v7081
        %v7083 = vshrl.u32 683565275, %v7082
        %v7084 = vshll.u32 683565275, %v7081
        %v7085 = vshrl.u32 2475754826, %v7082
        %v7086 = vor.u32 %v7084, %v7085
        %v7087 = vshll.u32 2475754826, %v7081
        %v7088 = vshrl.u32 2131351028, %v7082
        %v7089 = vor.u32 %v7087, %v7088
        %v7090 = vshll.u32 2131351028, %v7081
        %v7091 = vshrl.u32 2102212464, %v7082
        %v7092 = vor.u32 %v7090, %v7091
        %v7093 = vshll.u32 2102212464, %v7081
        %v7094 = vshrl.u32 920167782, %v7082
        %v7095 = vor.u32 %v7093, %v7094
        %v7096 = vshll.u32 920167782, %v7081
        %v7097 = vshrl.u32 1326507024, %v7082
        %v7098 = vor.u32 %v7096, %v7097
        %vm7099 = vcmp.lt.s32.totalorder %v7080, 1
        %vm7100 = vcmp.lt.s32.totalorder %v7080, 2
        %vm7101 = vcmp.lt.s32.totalorder %v7080, 3
        %vm7102 = vcmp.lt.s32.totalorder %v7080, 4
        %v7103 = vsel %vm7099, %v7083, %v7086
        %v7104 = vsel %vm7102, %v7092, 2102212464
        %v7105 = vsel %vm7101, %v7089, %v7104
        %v7106 = vsel %vm7100, %v7103, %v7105
        %v7107 = vsel %vm7099, %v7086, %v7089
        %v7108 = vsel %vm7102, %v7095, 920167782
        %v7109 = vsel %vm7101, %v7092, %v7108
        %v7110 = vsel %vm7100, %v7107, %v7109
        %v7111 = vsel %vm7099, %v7089, %v7092
        %v7112 = vsel %vm7102, %v7098, 1326507024
        %v7113 = vsel %vm7101, %v7095, %v7112
        %v7114 = vsel %vm7100, %v7111, %v7113
        %v7115 = vshll.u32 %v7075, 8
        %v7116 = vand.u32 %v7115, 65535
        %v7117 = vshrl.u32 %v7115, 16
        %v7118 = vand.u32 %v7114, 65535
        %v7119 = vshrl.u32 %v7114, 16
        %v7120 = vmul.u32 %v7116, %v7118
        %v7121 = vmul.u32 %v7116, %v7119
        %v7122 = vmul.u32 %v7117, %v7118
        %v7123 = vmul.u32 %v7117, %v7119
        %v7124 = vshll.u32 %v7121, 16
        %v7125 = vshrl.u32 %v7121, 16
        %v7126 = vshll.u32 %v7122, 16
        %v7127 = vshrl.u32 %v7122, 16
        %vm7128 = vc.u32 %v7120, %v7124
        %v7129 = vsel %vm7128, 1, 0
        %v7130 = vadd.s32 %v7120, %v7124
        %v7131 = vadd.s32 %v7123, %v7129
        %vm7132 = vc.u32 %v7130, %v7126
        %v7133 = vsel %vm7132, 1, 0
        %v7134 = vadd.s32 %v7130, %v7126
        %v7135 = vadd.s32 %v7131, %v7133
        %v7136 = vadd.s32 %v7135, %v7125
        %v7137 = vadd.s32 %v7136, %v7127
        %v7138 = vand.u32 %v7115, 65535
        %v7139 = vshrl.u32 %v7115, 16
        %v7140 = vand.u32 %v7110, 65535
        %v7141 = vshrl.u32 %v7110, 16
        %v7142 = vmul.u32 %v7138, %v7140
        %v7143 = vmul.u32 %v7138, %v7141
        %v7144 = vmul.u32 %v7139, %v7140
        %v7145 = vmul.u32 %v7139, %v7141
        %v7146 = vshll.u32 %v7143, 16
        %v7147 = vshrl.u32 %v7143, 16
        %v7148 = vshll.u32 %v7144, 16
        %v7149 = vshrl.u32 %v7144, 16
        %vm7150 = vc.u32 %v7142, %v7146
        %v7151 = vsel %vm7150, 1, 0
        %v7152 = vadd.s32 %v7142, %v7146
        %v7153 = vadd.s32 %v7145, %v7151
        %vm7154 = vc.u32 %v7152, %v7148
        %v7155 = vsel %vm7154, 1, 0
        %v7156 = vadd.s32 %v7152, %v7148
        %v7157 = vadd.s32 %v7153, %v7155
        %v7158 = vadd.s32 %v7157, %v7147
        %v7159 = vadd.s32 %v7158, %v7149
        %v7160 = vmul.u32 %v7115, %v7106
        %v7161 = vadd.s32 %v7137, %v7156
        %vm7162 = vc.u32 %v7137, %v7156
        %v7163 = vadd.s32 %v7159, 1
        %v7164 = vsel %vm7162, %v7163, %v7159
        %v7165 = vadd.s32 %v7160, %v7164
        %v7166 = vadd.s32 %v7165, 536870912
        %v7167 = vshrl.u32 %v7166, 30
        %v7168 = vshll.u32 %v7167, 30
        %v7169 = vsub.s32 %v7165, %v7168
        %vm7170 = vcmp.lt.s32.totalorder %v7169, 0
        %v7171 = vsub.s32 0, %v7169
        %v7172 = vsel %vm7170, %v7171, %v7169
        %v7173 = vclz %v7172
        %v7174 = vsub.s32 %v7173, 2
        %vm7175 = vcmp.gt.s32.totalorder 0, %v7174
        %v7176 = vsel %vm7175, 0, %v7174
        %v7177 = vsub.s32 32, %v7176
        %v7178 = vshll.u32 %v7169, %v7176
        %v7179 = vshrl.u32 %v7161, %v7177
        %v7180 = vor.u32 %v7178, %v7179
        %v7181 = vsub.s32 4294967266, %v7176
        %v7182 = vadd.s32 %v7181, 127
        %v7183 = vshll.u32 %v7182, 23
        %v7184 = vor.u32 4788187, %v7183
        %v7185 = vand.u32 2147483647, %v7184
        %v7187 = vcvt.s32.f32 %v7180
        %v7188 = vmul.f32 %v7187, %v7185
        %v7189 = vxor.u32 %v7188, 2147483648
        %v7190 = vsel %vm7069, %v7189, %v7188
        %v7191 = vsub.s32 4, %v7167
        %v7192 = vsel %vm7069, %v7191, %v7167
        %v7193 = vsel %vm7068, %v883, %v7190
        %v7194 = vsel %vm7068, 0, %v7192
        %v7195 = vmul.f32 %v7193, %v7193
        %v7196 = vmul.f32 %v7195, -0.001358992
        %v7197 = vadd.f32 %v7196, 0.041655596
        %v7198 = vmul.f32 %v7195, %v7197
        %v7199 = vadd.f32 %v7198, -0.4999988
        %v7200 = vmul.f32 %v7195, %v7199
        %v7201 = vadd.f32 1.0, %v7200
        %v7202 = vmul.f32 %v7193, %v7193
        %v7203 = vmul.f32 %v7202, -0.00019511016
        %v7204 = vadd.f32 %v7203, 0.008332121
        %v7205 = vmul.f32 %v7202, %v7204
        %v7206 = vadd.f32 %v7205, -0.16666654
        %v7207 = vmul.f32 %v7202, %v7206
        %v7208 = vadd.f32 %v7207, 1.0
        %v7209 = vmul.f32 %v7208, %v7193
        %vm7210 = vweird.f32 %v883
        %v7211 = vand.u32 %v7194, 3
        %vm7212 = vcmp.lt.s32.totalorder %v7211, 2
        %vm7213 = vcmp.eq.s32.totalorder %v7211, 0
        %v7214 = vxor.u32 %v7209, 2147483648
        %v7215 = vsel %vm7213, %v7201, %v7214
        %vm7216 = vcmp.eq.s32.totalorder %v7211, 2
        %v7217 = vxor.u32 %v7201, 2147483648
        %v7218 = vsel %vm7216, %v7217, %v7209
        %v7219 = vsel %vm7212, %v7215, %v7218
        %v7220 = vsel %vm7210, nan, %v7219
        %v7221 = vand.u32 2147483647, %v884
        %vm7222 = vcmp.le.f32.partialorder %v7221, 0.7853982
        %vm7223 = vcmp.lt.s32.totalorder %v884, 0
        %v7224 = vand.u32 %v884, 2139095040
        %v7225 = vshrl.u32 %v7224, 23
        %v7226 = vsub.s32 %v7225, 127
        %v7227 = vand.u32 2147483647, %v884
        %v7228 = vand.u32 %v7227, 8388607
        %v7229 = vor.u32 %v7228, 8388608
        %v7230 = vsub.s32 0, %v7229
        %v7231 = vadd.s32 %v7226, 1
        %vm7232 = vcmp.gt.s32.totalorder %v7231, 0
        %v7233 = vsel %vm7232, %v7231, 0
        %v7234 = vshrl.u32 %v7233, 5
        %v7235 = vand.u32 %v7233, 31
        %v7236 = vsub.s32 32, %v7235
        %v7237 = vshrl.u32 683565275, %v7236
        %v7238 = vshll.u32 683565275, %v7235
        %v7239 = vshrl.u32 2475754826, %v7236
        %v7240 = vor.u32 %v7238, %v7239
        %v7241 = vshll.u32 2475754826, %v7235
        %v7242 = vshrl.u32 2131351028, %v7236
        %v7243 = vor.u32 %v7241, %v7242
        %v7244 = vshll.u32 2131351028, %v7235
        %v7245 = vshrl.u32 2102212464, %v7236
        %v7246 = vor.u32 %v7244, %v7245
        %v7247 = vshll.u32 2102212464, %v7235
        %v7248 = vshrl.u32 920167782, %v7236
        %v7249 = vor.u32 %v7247, %v7248
        %v7250 = vshll.u32 920167782, %v7235
        %v7251 = vshrl.u32 1326507024, %v7236
        %v7252 = vor.u32 %v7250, %v7251
        %vm7253 = vcmp.lt.s32.totalorder %v7234, 1
        %vm7254 = vcmp.lt.s32.totalorder %v7234, 2
        %vm7255 = vcmp.lt.s32.totalorder %v7234, 3
        %vm7256 = vcmp.lt.s32.totalorder %v7234, 4
        %v7257 = vsel %vm7253, %v7237, %v7240
        %v7258 = vsel %vm7256, %v7246, 2102212464
        %v7259 = vsel %vm7255, %v7243, %v7258
        %v7260 = vsel %vm7254, %v7257, %v7259
        %v7261 = vsel %vm7253, %v7240, %v7243
        %v7262 = vsel %vm7256, %v7249, 920167782
        %v7263 = vsel %vm7255, %v7246, %v7262
        %v7264 = vsel %vm7254, %v7261, %v7263
        %v7265 = vsel %vm7253, %v7243, %v7246
        %v7266 = vsel %vm7256, %v7252, 1326507024
        %v7267 = vsel %vm7255, %v7249, %v7266
        %v7268 = vsel %vm7254, %v7265, %v7267
        %v7269 = vshll.u32 %v7229, 8
        %v7270 = vand.u32 %v7269, 65535
        %v7271 = vshrl.u32 %v7269, 16
        %v7272 = vand.u32 %v7268, 65535
        %v7273 = vshrl.u32 %v7268, 16
        %v7274 = vmul.u32 %v7270, %v7272
        %v7275 = vmul.u32 %v7270, %v7273
        %v7276 = vmul.u32 %v7271, %v7272
        %v7277 = vmul.u32 %v7271, %v7273
        %v7278 = vshll.u32 %v7275, 16
        %v7279 = vshrl.u32 %v7275, 16
        %v7280 = vshll.u32 %v7276, 16
        %v7281 = vshrl.u32 %v7276, 16
        %vm7282 = vc.u32 %v7274, %v7278
        %v7283 = vsel %vm7282, 1, 0
        %v7284 = vadd.s32 %v7274, %v7278
        %v7285 = vadd.s32 %v7277, %v7283
        %vm7286 = vc.u32 %v7284, %v7280
        %v7287 = vsel %vm7286, 1, 0
        %v7288 = vadd.s32 %v7284, %v7280
        %v7289 = vadd.s32 %v7285, %v7287
        %v7290 = vadd.s32 %v7289, %v7279
        %v7291 = vadd.s32 %v7290, %v7281
        %v7292 = vand.u32 %v7269, 65535
        %v7293 = vshrl.u32 %v7269, 16
        %v7294 = vand.u32 %v7264, 65535
        %v7295 = vshrl.u32 %v7264, 16
        %v7296 = vmul.u32 %v7292, %v7294
        %v7297 = vmul.u32 %v7292, %v7295
        %v7298 = vmul.u32 %v7293, %v7294
        %v7299 = vmul.u32 %v7293, %v7295
        %v7300 = vshll.u32 %v7297, 16
        %v7301 = vshrl.u32 %v7297, 16
        %v7302 = vshll.u32 %v7298, 16
        %v7303 = vshrl.u32 %v7298, 16
        %vm7304 = vc.u32 %v7296, %v7300
        %v7305 = vsel %vm7304, 1, 0
        %v7306 = vadd.s32 %v7296, %v7300
        %v7307 = vadd.s32 %v7299, %v7305
        %vm7308 = vc.u32 %v7306, %v7302
        %v7309 = vsel %vm7308, 1, 0
        %v7310 = vadd.s32 %v7306, %v7302
        %v7311 = vadd.s32 %v7307, %v7309
        %v7312 = vadd.s32 %v7311, %v7301
        %v7313 = vadd.s32 %v7312, %v7303
        %v7314 = vmul.u32 %v7269, %v7260
        %v7315 = vadd.s32 %v7291, %v7310
        %vm7316 = vc.u32 %v7291, %v7310
        %v7317 = vadd.s32 %v7313, 1
        %v7318 = vsel %vm7316, %v7317, %v7313
        %v7319 = vadd.s32 %v7314, %v7318
        %v7320 = vadd.s32 %v7319, 536870912
        %v7321 = vshrl.u32 %v7320, 30
        %v7322 = vshll.u32 %v7321, 30
        %v7323 = vsub.s32 %v7319, %v7322
        %vm7324 = vcmp.lt.s32.totalorder %v7323, 0
        %v7325 = vsub.s32 0, %v7323
        %v7326 = vsel %vm7324, %v7325, %v7323
        %v7327 = vclz %v7326
        %v7328 = vsub.s32 %v7327, 2
        %vm7329 = vcmp.gt.s32.totalorder 0, %v7328
        %v7330 = vsel %vm7329, 0, %v7328
        %v7331 = vsub.s32 32, %v7330
        %v7332 = vshll.u32 %v7323, %v7330
        %v7333 = vshrl.u32 %v7315, %v7331
        %v7334 = vor.u32 %v7332, %v7333
        %v7335 = vsub.s32 4294967266, %v7330
        %v7336 = vadd.s32 %v7335, 127
        %v7337 = vshll.u32 %v7336, 23
        %v7338 = vor.u32 4788187, %v7337
        %v7339 = vand.u32 2147483647, %v7338
        %v7341 = vcvt.s32.f32 %v7334
        %v7342 = vmul.f32 %v7341, %v7339
        %v7343 = vxor.u32 %v7342, 2147483648
        %v7344 = vsel %vm7223, %v7343, %v7342
        %v7345 = vsub.s32 4, %v7321
        %v7346 = vsel %vm7223, %v7345, %v7321
        %v7347 = vsel %vm7222, %v884, %v7344
        %v7348 = vsel %vm7222, 0, %v7346
        %v7349 = vmul.f32 %v7347, %v7347
        %v7350 = vmul.f32 %v7349, -0.001358992
        %v7351 = vadd.f32 %v7350, 0.041655596
        %v7352 = vmul.f32 %v7349, %v7351
        %v7353 = vadd.f32 %v7352, -0.4999988
        %v7354 = vmul.f32 %v7349, %v7353
        %v7355 = vadd.f32 1.0, %v7354
        %v7356 = vmul.f32 %v7347, %v7347
        %v7357 = vmul.f32 %v7356, -0.00019511016
        %v7358 = vadd.f32 %v7357, 0.008332121
        %v7359 = vmul.f32 %v7356, %v7358
        %v7360 = vadd.f32 %v7359, -0.16666654
        %v7361 = vmul.f32 %v7356, %v7360
        %v7362 = vadd.f32 %v7361, 1.0
        %v7363 = vmul.f32 %v7362, %v7347
        %vm7364 = vweird.f32 %v884
        %v7365 = vand.u32 %v7348, 3
        %vm7366 = vcmp.lt.s32.totalorder %v7365, 2
        %vm7367 = vcmp.eq.s32.totalorder %v7365, 0
        %v7368 = vxor.u32 %v7363, 2147483648
        %v7369 = vsel %vm7367, %v7355, %v7368
        %vm7370 = vcmp.eq.s32.totalorder %v7365, 2
        %v7371 = vxor.u32 %v7355, 2147483648
        %v7372 = vsel %vm7370, %v7371, %v7363
        %v7373 = vsel %vm7366, %v7369, %v7372
        %v7374 = vsel %vm7364, nan, %v7373
        %v7375 = vand.u32 2147483647, %v885
        %vm7376 = vcmp.le.f32.partialorder %v7375, 0.7853982
        %vm7377 = vcmp.lt.s32.totalorder %v885, 0
        %v7378 = vand.u32 %v885, 2139095040
        %v7379 = vshrl.u32 %v7378, 23
        %v7380 = vsub.s32 %v7379, 127
        %v7381 = vand.u32 2147483647, %v885
        %v7382 = vand.u32 %v7381, 8388607
        %v7383 = vor.u32 %v7382, 8388608
        %v7384 = vsub.s32 0, %v7383
        %v7385 = vadd.s32 %v7380, 1
        %vm7386 = vcmp.gt.s32.totalorder %v7385, 0
        %v7387 = vsel %vm7386, %v7385, 0
        %v7388 = vshrl.u32 %v7387, 5
        %v7389 = vand.u32 %v7387, 31
        %v7390 = vsub.s32 32, %v7389
        %v7391 = vshrl.u32 683565275, %v7390
        %v7392 = vshll.u32 683565275, %v7389
        %v7393 = vshrl.u32 2475754826, %v7390
        %v7394 = vor.u32 %v7392, %v7393
        %v7395 = vshll.u32 2475754826, %v7389
        %v7396 = vshrl.u32 2131351028, %v7390
        %v7397 = vor.u32 %v7395, %v7396
        %v7398 = vshll.u32 2131351028, %v7389
        %v7399 = vshrl.u32 2102212464, %v7390
        %v7400 = vor.u32 %v7398, %v7399
        %v7401 = vshll.u32 2102212464, %v7389
        %v7402 = vshrl.u32 920167782, %v7390
        %v7403 = vor.u32 %v7401, %v7402
        %v7404 = vshll.u32 920167782, %v7389
        %v7405 = vshrl.u32 1326507024, %v7390
        %v7406 = vor.u32 %v7404, %v7405
        %vm7407 = vcmp.lt.s32.totalorder %v7388, 1
        %vm7408 = vcmp.lt.s32.totalorder %v7388, 2
        %vm7409 = vcmp.lt.s32.totalorder %v7388, 3
        %vm7410 = vcmp.lt.s32.totalorder %v7388, 4
        %v7411 = vsel %vm7407, %v7391, %v7394
        %v7412 = vsel %vm7410, %v7400, 2102212464
        %v7413 = vsel %vm7409, %v7397, %v7412
        %v7414 = vsel %vm7408, %v7411, %v7413
        %v7415 = vsel %vm7407, %v7394, %v7397
        %v7416 = vsel %vm7410, %v7403, 920167782
        %v7417 = vsel %vm7409, %v7400, %v7416
        %v7418 = vsel %vm7408, %v7415, %v7417
        %v7419 = vsel %vm7407, %v7397, %v7400
        %v7420 = vsel %vm7410, %v7406, 1326507024
        %v7421 = vsel %vm7409, %v7403, %v7420
        %v7422 = vsel %vm7408, %v7419, %v7421
        %v7423 = vshll.u32 %v7383, 8
        %v7424 = vand.u32 %v7423, 65535
        %v7425 = vshrl.u32 %v7423, 16
        %v7426 = vand.u32 %v7422, 65535
        %v7427 = vshrl.u32 %v7422, 16
        %v7428 = vmul.u32 %v7424, %v7426
        %v7429 = vmul.u32 %v7424, %v7427
        %v7430 = vmul.u32 %v7425, %v7426
        %v7431 = vmul.u32 %v7425, %v7427
        %v7432 = vshll.u32 %v7429, 16
        %v7433 = vshrl.u32 %v7429, 16
        %v7434 = vshll.u32 %v7430, 16
        %v7435 = vshrl.u32 %v7430, 16
        %vm7436 = vc.u32 %v7428, %v7432
        %v7437 = vsel %vm7436, 1, 0
        %v7438 = vadd.s32 %v7428, %v7432
        %v7439 = vadd.s32 %v7431, %v7437
        %vm7440 = vc.u32 %v7438, %v7434
        %v7441 = vsel %vm7440, 1, 0
        %v7442 = vadd.s32 %v7438, %v7434
        %v7443 = vadd.s32 %v7439, %v7441
        %v7444 = vadd.s32 %v7443, %v7433
        %v7445 = vadd.s32 %v7444, %v7435
        %v7446 = vand.u32 %v7423, 65535
        %v7447 = vshrl.u32 %v7423, 16
        %v7448 = vand.u32 %v7418, 65535
        %v7449 = vshrl.u32 %v7418, 16
        %v7450 = vmul.u32 %v7446, %v7448
        %v7451 = vmul.u32 %v7446, %v7449
        %v7452 = vmul.u32 %v7447, %v7448
        %v7453 = vmul.u32 %v7447, %v7449
        %v7454 = vshll.u32 %v7451, 16
        %v7455 = vshrl.u32 %v7451, 16
        %v7456 = vshll.u32 %v7452, 16
        %v7457 = vshrl.u32 %v7452, 16
        %vm7458 = vc.u32 %v7450, %v7454
        %v7459 = vsel %vm7458, 1, 0
        %v7460 = vadd.s32 %v7450, %v7454
        %v7461 = vadd.s32 %v7453, %v7459
        %vm7462 = vc.u32 %v7460, %v7456
        %v7463 = vsel %vm7462, 1, 0
        %v7464 = vadd.s32 %v7460, %v7456
        %v7465 = vadd.s32 %v7461, %v7463
        %v7466 = vadd.s32 %v7465, %v7455
        %v7467 = vadd.s32 %v7466, %v7457
        %v7468 = vmul.u32 %v7423, %v7414
        %v7469 = vadd.s32 %v7445, %v7464
        %vm7470 = vc.u32 %v7445, %v7464
        %v7471 = vadd.s32 %v7467, 1
        %v7472 = vsel %vm7470, %v7471, %v7467
        %v7473 = vadd.s32 %v7468, %v7472
        %v7474 = vadd.s32 %v7473, 536870912
        %v7475 = vshrl.u32 %v7474, 30
        %v7476 = vshll.u32 %v7475, 30
        %v7477 = vsub.s32 %v7473, %v7476
        %vm7478 = vcmp.lt.s32.totalorder %v7477, 0
        %v7479 = vsub.s32 0, %v7477
        %v7480 = vsel %vm7478, %v7479, %v7477
        %v7481 = vclz %v7480
        %v7482 = vsub.s32 %v7481, 2
        %vm7483 = vcmp.gt.s32.totalorder 0, %v7482
        %v7484 = vsel %vm7483, 0, %v7482
        %v7485 = vsub.s32 32, %v7484
        %v7486 = vshll.u32 %v7477, %v7484
        %v7487 = vshrl.u32 %v7469, %v7485
        %v7488 = vor.u32 %v7486, %v7487
        %v7489 = vsub.s32 4294967266, %v7484
        %v7490 = vadd.s32 %v7489, 127
        %v7491 = vshll.u32 %v7490, 23
        %v7492 = vor.u32 4788187, %v7491
        %v7493 = vand.u32 2147483647, %v7492
        %v7495 = vcvt.s32.f32 %v7488
        %v7496 = vmul.f32 %v7495, %v7493
        %v7497 = vxor.u32 %v7496, 2147483648
        %v7498 = vsel %vm7377, %v7497, %v7496
        %v7499 = vsub.s32 4, %v7475
        %v7500 = vsel %vm7377, %v7499, %v7475
        %v7501 = vsel %vm7376, %v885, %v7498
        %v7502 = vsel %vm7376, 0, %v7500
        %v7503 = vmul.f32 %v7501, %v7501
        %v7504 = vmul.f32 %v7503, -0.001358992
        %v7505 = vadd.f32 %v7504, 0.041655596
        %v7506 = vmul.f32 %v7503, %v7505
        %v7507 = vadd.f32 %v7506, -0.4999988
        %v7508 = vmul.f32 %v7503, %v7507
        %v7509 = vadd.f32 1.0, %v7508
        %v7510 = vmul.f32 %v7501, %v7501
        %v7511 = vmul.f32 %v7510, -0.00019511016
        %v7512 = vadd.f32 %v7511, 0.008332121
        %v7513 = vmul.f32 %v7510, %v7512
        %v7514 = vadd.f32 %v7513, -0.16666654
        %v7515 = vmul.f32 %v7510, %v7514
        %v7516 = vadd.f32 %v7515, 1.0
        %v7517 = vmul.f32 %v7516, %v7501
        %vm7518 = vweird.f32 %v885
        %v7519 = vand.u32 %v7502, 3
        %vm7520 = vcmp.lt.s32.totalorder %v7519, 2
        %vm7521 = vcmp.eq.s32.totalorder %v7519, 0
        %v7522 = vxor.u32 %v7517, 2147483648
        %v7523 = vsel %vm7521, %v7509, %v7522
        %vm7524 = vcmp.eq.s32.totalorder %v7519, 2
        %v7525 = vxor.u32 %v7509, 2147483648
        %v7526 = vsel %vm7524, %v7525, %v7517
        %v7527 = vsel %vm7520, %v7523, %v7526
        %v7528 = vsel %vm7518, nan, %v7527
        %v7529 = vand.u32 2147483647, %v886
        %vm7530 = vcmp.le.f32.partialorder %v7529, 0.7853982
        %vm7531 = vcmp.lt.s32.totalorder %v886, 0
        %v7532 = vand.u32 %v886, 2139095040
        %v7533 = vshrl.u32 %v7532, 23
        %v7534 = vsub.s32 %v7533, 127
        %v7535 = vand.u32 2147483647, %v886
        %v7536 = vand.u32 %v7535, 8388607
        %v7537 = vor.u32 %v7536, 8388608
        %v7538 = vsub.s32 0, %v7537
        %v7539 = vadd.s32 %v7534, 1
        %vm7540 = vcmp.gt.s32.totalorder %v7539, 0
        %v7541 = vsel %vm7540, %v7539, 0
        %v7542 = vshrl.u32 %v7541, 5
        %v7543 = vand.u32 %v7541, 31
        %v7544 = vsub.s32 32, %v7543
        %v7545 = vshrl.u32 683565275, %v7544
        %v7546 = vshll.u32 683565275, %v7543
        %v7547 = vshrl.u32 2475754826, %v7544
        %v7548 = vor.u32 %v7546, %v7547
        %v7549 = vshll.u32 2475754826, %v7543
        %v7550 = vshrl.u32 2131351028, %v7544
        %v7551 = vor.u32 %v7549, %v7550
        %v7552 = vshll.u32 2131351028, %v7543
        %v7553 = vshrl.u32 2102212464, %v7544
        %v7554 = vor.u32 %v7552, %v7553
        %v7555 = vshll.u32 2102212464, %v7543
        %v7556 = vshrl.u32 920167782, %v7544
        %v7557 = vor.u32 %v7555, %v7556
        %v7558 = vshll.u32 920167782, %v7543
        %v7559 = vshrl.u32 1326507024, %v7544
        %v7560 = vor.u32 %v7558, %v7559
        %vm7561 = vcmp.lt.s32.totalorder %v7542, 1
        %vm7562 = vcmp.lt.s32.totalorder %v7542, 2
        %vm7563 = vcmp.lt.s32.totalorder %v7542, 3
        %vm7564 = vcmp.lt.s32.totalorder %v7542, 4
        %v7565 = vsel %vm7561, %v7545, %v7548
        %v7566 = vsel %vm7564, %v7554, 2102212464
        %v7567 = vsel %vm7563, %v7551, %v7566
        %v7568 = vsel %vm7562, %v7565, %v7567
        %v7569 = vsel %vm7561, %v7548, %v7551
        %v7570 = vsel %vm7564, %v7557, 920167782
        %v7571 = vsel %vm7563, %v7554, %v7570
        %v7572 = vsel %vm7562, %v7569, %v7571
        %v7573 = vsel %vm7561, %v7551, %v7554
        %v7574 = vsel %vm7564, %v7560, 1326507024
        %v7575 = vsel %vm7563, %v7557, %v7574
        %v7576 = vsel %vm7562, %v7573, %v7575
        %v7577 = vshll.u32 %v7537, 8
        %v7578 = vand.u32 %v7577, 65535
        %v7579 = vshrl.u32 %v7577, 16
        %v7580 = vand.u32 %v7576, 65535
        %v7581 = vshrl.u32 %v7576, 16
        %v7582 = vmul.u32 %v7578, %v7580
        %v7583 = vmul.u32 %v7578, %v7581
        %v7584 = vmul.u32 %v7579, %v7580
        %v7585 = vmul.u32 %v7579, %v7581
        %v7586 = vshll.u32 %v7583, 16
        %v7587 = vshrl.u32 %v7583, 16
        %v7588 = vshll.u32 %v7584, 16
        %v7589 = vshrl.u32 %v7584, 16
        %vm7590 = vc.u32 %v7582, %v7586
        %v7591 = vsel %vm7590, 1, 0
        %v7592 = vadd.s32 %v7582, %v7586
        %v7593 = vadd.s32 %v7585, %v7591
        %vm7594 = vc.u32 %v7592, %v7588
        %v7595 = vsel %vm7594, 1, 0
        %v7596 = vadd.s32 %v7592, %v7588
        %v7597 = vadd.s32 %v7593, %v7595
        %v7598 = vadd.s32 %v7597, %v7587
        %v7599 = vadd.s32 %v7598, %v7589
        %v7600 = vand.u32 %v7577, 65535
        %v7601 = vshrl.u32 %v7577, 16
        %v7602 = vand.u32 %v7572, 65535
        %v7603 = vshrl.u32 %v7572, 16
        %v7604 = vmul.u32 %v7600, %v7602
        %v7605 = vmul.u32 %v7600, %v7603
        %v7606 = vmul.u32 %v7601, %v7602
        %v7607 = vmul.u32 %v7601, %v7603
        %v7608 = vshll.u32 %v7605, 16
        %v7609 = vshrl.u32 %v7605, 16
        %v7610 = vshll.u32 %v7606, 16
        %v7611 = vshrl.u32 %v7606, 16
        %vm7612 = vc.u32 %v7604, %v7608
        %v7613 = vsel %vm7612, 1, 0
        %v7614 = vadd.s32 %v7604, %v7608
        %v7615 = vadd.s32 %v7607, %v7613
        %vm7616 = vc.u32 %v7614, %v7610
        %v7617 = vsel %vm7616, 1, 0
        %v7618 = vadd.s32 %v7614, %v7610
        %v7619 = vadd.s32 %v7615, %v7617
        %v7620 = vadd.s32 %v7619, %v7609
        %v7621 = vadd.s32 %v7620, %v7611
        %v7622 = vmul.u32 %v7577, %v7568
        %v7623 = vadd.s32 %v7599, %v7618
        %vm7624 = vc.u32 %v7599, %v7618
        %v7625 = vadd.s32 %v7621, 1
        %v7626 = vsel %vm7624, %v7625, %v7621
        %v7627 = vadd.s32 %v7622, %v7626
        %v7628 = vadd.s32 %v7627, 536870912
        %v7629 = vshrl.u32 %v7628, 30
        %v7630 = vshll.u32 %v7629, 30
        %v7631 = vsub.s32 %v7627, %v7630
        %vm7632 = vcmp.lt.s32.totalorder %v7631, 0
        %v7633 = vsub.s32 0, %v7631
        %v7634 = vsel %vm7632, %v7633, %v7631
        %v7635 = vclz %v7634
        %v7636 = vsub.s32 %v7635, 2
        %vm7637 = vcmp.gt.s32.totalorder 0, %v7636
        %v7638 = vsel %vm7637, 0, %v7636
        %v7639 = vsub.s32 32, %v7638
        %v7640 = vshll.u32 %v7631, %v7638
        %v7641 = vshrl.u32 %v7623, %v7639
        %v7642 = vor.u32 %v7640, %v7641
        %v7643 = vsub.s32 4294967266, %v7638
        %v7644 = vadd.s32 %v7643, 127
        %v7645 = vshll.u32 %v7644, 23
        %v7646 = vor.u32 4788187, %v7645
        %v7647 = vand.u32 2147483647, %v7646
        %v7649 = vcvt.s32.f32 %v7642
        %v7650 = vmul.f32 %v7649, %v7647
        %v7651 = vxor.u32 %v7650, 2147483648
        %v7652 = vsel %vm7531, %v7651, %v7650
        %v7653 = vsub.s32 4, %v7629
        %v7654 = vsel %vm7531, %v7653, %v7629
        %v7655 = vsel %vm7530, %v886, %v7652
        %v7656 = vsel %vm7530, 0, %v7654
        %v7657 = vmul.f32 %v7655, %v7655
        %v7658 = vmul.f32 %v7657, -0.001358992
        %v7659 = vadd.f32 %v7658, 0.041655596
        %v7660 = vmul.f32 %v7657, %v7659
        %v7661 = vadd.f32 %v7660, -0.4999988
        %v7662 = vmul.f32 %v7657, %v7661
        %v7663 = vadd.f32 1.0, %v7662
        %v7664 = vmul.f32 %v7655, %v7655
        %v7665 = vmul.f32 %v7664, -0.00019511016
        %v7666 = vadd.f32 %v7665, 0.008332121
        %v7667 = vmul.f32 %v7664, %v7666
        %v7668 = vadd.f32 %v7667, -0.16666654
        %v7669 = vmul.f32 %v7664, %v7668
        %v7670 = vadd.f32 %v7669, 1.0
        %v7671 = vmul.f32 %v7670, %v7655
        %vm7672 = vweird.f32 %v886
        %v7673 = vand.u32 %v7656, 3
        %vm7674 = vcmp.lt.s32.totalorder %v7673, 2
        %vm7675 = vcmp.eq.s32.totalorder %v7673, 0
        %v7676 = vxor.u32 %v7671, 2147483648
        %v7677 = vsel %vm7675, %v7663, %v7676
        %vm7678 = vcmp.eq.s32.totalorder %v7673, 2
        %v7679 = vxor.u32 %v7663, 2147483648
        %v7680 = vsel %vm7678, %v7679, %v7671
        %v7681 = vsel %vm7674, %v7677, %v7680
        %v7682 = vsel %vm7672, nan, %v7681
        %v7683 = vand.u32 2147483647, %v887
        %vm7684 = vcmp.le.f32.partialorder %v7683, 0.7853982
        %vm7685 = vcmp.lt.s32.totalorder %v887, 0
        %v7686 = vand.u32 %v887, 2139095040
        %v7687 = vshrl.u32 %v7686, 23
        %v7688 = vsub.s32 %v7687, 127
        %v7689 = vand.u32 2147483647, %v887
        %v7690 = vand.u32 %v7689, 8388607
        %v7691 = vor.u32 %v7690, 8388608
        %v7692 = vsub.s32 0, %v7691
        %v7693 = vadd.s32 %v7688, 1
        %vm7694 = vcmp.gt.s32.totalorder %v7693, 0
        %v7695 = vsel %vm7694, %v7693, 0
        %v7696 = vshrl.u32 %v7695, 5
        %v7697 = vand.u32 %v7695, 31
        %v7698 = vsub.s32 32, %v7697
        %v7699 = vshrl.u32 683565275, %v7698
        %v7700 = vshll.u32 683565275, %v7697
        %v7701 = vshrl.u32 2475754826, %v7698
        %v7702 = vor.u32 %v7700, %v7701
        %v7703 = vshll.u32 2475754826, %v7697
        %v7704 = vshrl.u32 2131351028, %v7698
        %v7705 = vor.u32 %v7703, %v7704
        %v7706 = vshll.u32 2131351028, %v7697
        %v7707 = vshrl.u32 2102212464, %v7698
        %v7708 = vor.u32 %v7706, %v7707
        %v7709 = vshll.u32 2102212464, %v7697
        %v7710 = vshrl.u32 920167782, %v7698
        %v7711 = vor.u32 %v7709, %v7710
        %v7712 = vshll.u32 920167782, %v7697
        %v7713 = vshrl.u32 1326507024, %v7698
        %v7714 = vor.u32 %v7712, %v7713
        %vm7715 = vcmp.lt.s32.totalorder %v7696, 1
        %vm7716 = vcmp.lt.s32.totalorder %v7696, 2
        %vm7717 = vcmp.lt.s32.totalorder %v7696, 3
        %vm7718 = vcmp.lt.s32.totalorder %v7696, 4
        %v7719 = vsel %vm7715, %v7699, %v7702
        %v7720 = vsel %vm7718, %v7708, 2102212464
        %v7721 = vsel %vm7717, %v7705, %v7720
        %v7722 = vsel %vm7716, %v7719, %v7721
        %v7723 = vsel %vm7715, %v7702, %v7705
        %v7724 = vsel %vm7718, %v7711, 920167782
        %v7725 = vsel %vm7717, %v7708, %v7724
        %v7726 = vsel %vm7716, %v7723, %v7725
        %v7727 = vsel %vm7715, %v7705, %v7708
        %v7728 = vsel %vm7718, %v7714, 1326507024
        %v7729 = vsel %vm7717, %v7711, %v7728
        %v7730 = vsel %vm7716, %v7727, %v7729
        %v7731 = vshll.u32 %v7691, 8
        %v7732 = vand.u32 %v7731, 65535
        %v7733 = vshrl.u32 %v7731, 16
        %v7734 = vand.u32 %v7730, 65535
        %v7735 = vshrl.u32 %v7730, 16
        %v7736 = vmul.u32 %v7732, %v7734
        %v7737 = vmul.u32 %v7732, %v7735
        %v7738 = vmul.u32 %v7733, %v7734
        %v7739 = vmul.u32 %v7733, %v7735
        %v7740 = vshll.u32 %v7737, 16
        %v7741 = vshrl.u32 %v7737, 16
        %v7742 = vshll.u32 %v7738, 16
        %v7743 = vshrl.u32 %v7738, 16
        %vm7744 = vc.u32 %v7736, %v7740
        %v7745 = vsel %vm7744, 1, 0
        %v7746 = vadd.s32 %v7736, %v7740
        %v7747 = vadd.s32 %v7739, %v7745
        %vm7748 = vc.u32 %v7746, %v7742
        %v7749 = vsel %vm7748, 1, 0
        %v7750 = vadd.s32 %v7746, %v7742
        %v7751 = vadd.s32 %v7747, %v7749
        %v7752 = vadd.s32 %v7751, %v7741
        %v7753 = vadd.s32 %v7752, %v7743
        %v7754 = vand.u32 %v7731, 65535
        %v7755 = vshrl.u32 %v7731, 16
        %v7756 = vand.u32 %v7726, 65535
        %v7757 = vshrl.u32 %v7726, 16
        %v7758 = vmul.u32 %v7754, %v7756
        %v7759 = vmul.u32 %v7754, %v7757
        %v7760 = vmul.u32 %v7755, %v7756
        %v7761 = vmul.u32 %v7755, %v7757
        %v7762 = vshll.u32 %v7759, 16
        %v7763 = vshrl.u32 %v7759, 16
        %v7764 = vshll.u32 %v7760, 16
        %v7765 = vshrl.u32 %v7760, 16
        %vm7766 = vc.u32 %v7758, %v7762
        %v7767 = vsel %vm7766, 1, 0
        %v7768 = vadd.s32 %v7758, %v7762
        %v7769 = vadd.s32 %v7761, %v7767
        %vm7770 = vc.u32 %v7768, %v7764
        %v7771 = vsel %vm7770, 1, 0
        %v7772 = vadd.s32 %v7768, %v7764
        %v7773 = vadd.s32 %v7769, %v7771
        %v7774 = vadd.s32 %v7773, %v7763
        %v7775 = vadd.s32 %v7774, %v7765
        %v7776 = vmul.u32 %v7731, %v7722
        %v7777 = vadd.s32 %v7753, %v7772
        %vm7778 = vc.u32 %v7753, %v7772
        %v7779 = vadd.s32 %v7775, 1
        %v7780 = vsel %vm7778, %v7779, %v7775
        %v7781 = vadd.s32 %v7776, %v7780
        %v7782 = vadd.s32 %v7781, 536870912
        %v7783 = vshrl.u32 %v7782, 30
        %v7784 = vshll.u32 %v7783, 30
        %v7785 = vsub.s32 %v7781, %v7784
        %vm7786 = vcmp.lt.s32.totalorder %v7785, 0
        %v7787 = vsub.s32 0, %v7785
        %v7788 = vsel %vm7786, %v7787, %v7785
        %v7789 = vclz %v7788
        %v7790 = vsub.s32 %v7789, 2
        %vm7791 = vcmp.gt.s32.totalorder 0, %v7790
        %v7792 = vsel %vm7791, 0, %v7790
        %v7793 = vsub.s32 32, %v7792
        %v7794 = vshll.u32 %v7785, %v7792
        %v7795 = vshrl.u32 %v7777, %v7793
        %v7796 = vor.u32 %v7794, %v7795
        %v7797 = vsub.s32 4294967266, %v7792
        %v7798 = vadd.s32 %v7797, 127
        %v7799 = vshll.u32 %v7798, 23
        %v7800 = vor.u32 4788187, %v7799
        %v7801 = vand.u32 2147483647, %v7800
        %v7803 = vcvt.s32.f32 %v7796
        %v7804 = vmul.f32 %v7803, %v7801
        %v7805 = vxor.u32 %v7804, 2147483648
        %v7806 = vsel %vm7685, %v7805, %v7804
        %v7807 = vsub.s32 4, %v7783
        %v7808 = vsel %vm7685, %v7807, %v7783
        %v7809 = vsel %vm7684, %v887, %v7806
        %v7810 = vsel %vm7684, 0, %v7808
        %v7811 = vmul.f32 %v7809, %v7809
        %v7812 = vmul.f32 %v7811, -0.001358992
        %v7813 = vadd.f32 %v7812, 0.041655596
        %v7814 = vmul.f32 %v7811, %v7813
        %v7815 = vadd.f32 %v7814, -0.4999988
        %v7816 = vmul.f32 %v7811, %v7815
        %v7817 = vadd.f32 1.0, %v7816
        %v7818 = vmul.f32 %v7809, %v7809
        %v7819 = vmul.f32 %v7818, -0.00019511016
        %v7820 = vadd.f32 %v7819, 0.008332121
        %v7821 = vmul.f32 %v7818, %v7820
        %v7822 = vadd.f32 %v7821, -0.16666654
        %v7823 = vmul.f32 %v7818, %v7822
        %v7824 = vadd.f32 %v7823, 1.0
        %v7825 = vmul.f32 %v7824, %v7809
        %vm7826 = vweird.f32 %v887
        %v7827 = vand.u32 %v7810, 3
        %vm7828 = vcmp.lt.s32.totalorder %v7827, 2
        %vm7829 = vcmp.eq.s32.totalorder %v7827, 0
        %v7830 = vxor.u32 %v7825, 2147483648
        %v7831 = vsel %vm7829, %v7817, %v7830
        %vm7832 = vcmp.eq.s32.totalorder %v7827, 2
        %v7833 = vxor.u32 %v7817, 2147483648
        %v7834 = vsel %vm7832, %v7833, %v7825
        %v7835 = vsel %vm7828, %v7831, %v7834
        %v7836 = vsel %vm7826, nan, %v7835
        %v7837 = vand.u32 2147483647, %v888
        %vm7838 = vcmp.le.f32.partialorder %v7837, 0.7853982
        %vm7839 = vcmp.lt.s32.totalorder %v888, 0
        %v7840 = vand.u32 %v888, 2139095040
        %v7841 = vshrl.u32 %v7840, 23
        %v7842 = vsub.s32 %v7841, 127
        %v7843 = vand.u32 2147483647, %v888
        %v7844 = vand.u32 %v7843, 8388607
        %v7845 = vor.u32 %v7844, 8388608
        %v7846 = vsub.s32 0, %v7845
        %v7847 = vadd.s32 %v7842, 1
        %vm7848 = vcmp.gt.s32.totalorder %v7847, 0
        %v7849 = vsel %vm7848, %v7847, 0
        %v7850 = vshrl.u32 %v7849, 5
        %v7851 = vand.u32 %v7849, 31
        %v7852 = vsub.s32 32, %v7851
        %v7853 = vshrl.u32 683565275, %v7852
        %v7854 = vshll.u32 683565275, %v7851
        %v7855 = vshrl.u32 2475754826, %v7852
        %v7856 = vor.u32 %v7854, %v7855
        %v7857 = vshll.u32 2475754826, %v7851
        %v7858 = vshrl.u32 2131351028, %v7852
        %v7859 = vor.u32 %v7857, %v7858
        %v7860 = vshll.u32 2131351028, %v7851
        %v7861 = vshrl.u32 2102212464, %v7852
        %v7862 = vor.u32 %v7860, %v7861
        %v7863 = vshll.u32 2102212464, %v7851
        %v7864 = vshrl.u32 920167782, %v7852
        %v7865 = vor.u32 %v7863, %v7864
        %v7866 = vshll.u32 920167782, %v7851
        %v7867 = vshrl.u32 1326507024, %v7852
        %v7868 = vor.u32 %v7866, %v7867
        %vm7869 = vcmp.lt.s32.totalorder %v7850, 1
        %vm7870 = vcmp.lt.s32.totalorder %v7850, 2
        %vm7871 = vcmp.lt.s32.totalorder %v7850, 3
        %vm7872 = vcmp.lt.s32.totalorder %v7850, 4
        %v7873 = vsel %vm7869, %v7853, %v7856
        %v7874 = vsel %vm7872, %v7862, 2102212464
        %v7875 = vsel %vm7871, %v7859, %v7874
        %v7876 = vsel %vm7870, %v7873, %v7875
        %v7877 = vsel %vm7869, %v7856, %v7859
        %v7878 = vsel %vm7872, %v7865, 920167782
        %v7879 = vsel %vm7871, %v7862, %v7878
        %v7880 = vsel %vm7870, %v7877, %v7879
        %v7881 = vsel %vm7869, %v7859, %v7862
        %v7882 = vsel %vm7872, %v7868, 1326507024
        %v7883 = vsel %vm7871, %v7865, %v7882
        %v7884 = vsel %vm7870, %v7881, %v7883
        %v7885 = vshll.u32 %v7845, 8
        %v7886 = vand.u32 %v7885, 65535
        %v7887 = vshrl.u32 %v7885, 16
        %v7888 = vand.u32 %v7884, 65535
        %v7889 = vshrl.u32 %v7884, 16
        %v7890 = vmul.u32 %v7886, %v7888
        %v7891 = vmul.u32 %v7886, %v7889
        %v7892 = vmul.u32 %v7887, %v7888
        %v7893 = vmul.u32 %v7887, %v7889
        %v7894 = vshll.u32 %v7891, 16
        %v7895 = vshrl.u32 %v7891, 16
        %v7896 = vshll.u32 %v7892, 16
        %v7897 = vshrl.u32 %v7892, 16
        %vm7898 = vc.u32 %v7890, %v7894
        %v7899 = vsel %vm7898, 1, 0
        %v7900 = vadd.s32 %v7890, %v7894
        %v7901 = vadd.s32 %v7893, %v7899
        %vm7902 = vc.u32 %v7900, %v7896
        %v7903 = vsel %vm7902, 1, 0
        %v7904 = vadd.s32 %v7900, %v7896
        %v7905 = vadd.s32 %v7901, %v7903
        %v7906 = vadd.s32 %v7905, %v7895
        %v7907 = vadd.s32 %v7906, %v7897
        %v7908 = vand.u32 %v7885, 65535
        %v7909 = vshrl.u32 %v7885, 16
        %v7910 = vand.u32 %v7880, 65535
        %v7911 = vshrl.u32 %v7880, 16
        %v7912 = vmul.u32 %v7908, %v7910
        %v7913 = vmul.u32 %v7908, %v7911
        %v7914 = vmul.u32 %v7909, %v7910
        %v7915 = vmul.u32 %v7909, %v7911
        %v7916 = vshll.u32 %v7913, 16
        %v7917 = vshrl.u32 %v7913, 16
        %v7918 = vshll.u32 %v7914, 16
        %v7919 = vshrl.u32 %v7914, 16
        %vm7920 = vc.u32 %v7912, %v7916
        %v7921 = vsel %vm7920, 1, 0
        %v7922 = vadd.s32 %v7912, %v7916
        %v7923 = vadd.s32 %v7915, %v7921
        %vm7924 = vc.u32 %v7922, %v7918
        %v7925 = vsel %vm7924, 1, 0
        %v7926 = vadd.s32 %v7922, %v7918
        %v7927 = vadd.s32 %v7923, %v7925
        %v7928 = vadd.s32 %v7927, %v7917
        %v7929 = vadd.s32 %v7928, %v7919
        %v7930 = vmul.u32 %v7885, %v7876
        %v7931 = vadd.s32 %v7907, %v7926
        %vm7932 = vc.u32 %v7907, %v7926
        %v7933 = vadd.s32 %v7929, 1
        %v7934 = vsel %vm7932, %v7933, %v7929
        %v7935 = vadd.s32 %v7930, %v7934
        %v7936 = vadd.s32 %v7935, 536870912
        %v7937 = vshrl.u32 %v7936, 30
        %v7938 = vshll.u32 %v7937, 30
        %v7939 = vsub.s32 %v7935, %v7938
        %vm7940 = vcmp.lt.s32.totalorder %v7939, 0
        %v7941 = vsub.s32 0, %v7939
        %v7942 = vsel %vm7940, %v7941, %v7939
        %v7943 = vclz %v7942
        %v7944 = vsub.s32 %v7943, 2
        %vm7945 = vcmp.gt.s32.totalorder 0, %v7944
        %v7946 = vsel %vm7945, 0, %v7944
        %v7947 = vsub.s32 32, %v7946
        %v7948 = vshll.u32 %v7939, %v7946
        %v7949 = vshrl.u32 %v7931, %v7947
        %v7950 = vor.u32 %v7948, %v7949
        %v7951 = vsub.s32 4294967266, %v7946
        %v7952 = vadd.s32 %v7951, 127
        %v7953 = vshll.u32 %v7952, 23
        %v7954 = vor.u32 4788187, %v7953
        %v7955 = vand.u32 2147483647, %v7954
        %v7957 = vcvt.s32.f32 %v7950
        %v7958 = vmul.f32 %v7957, %v7955
        %v7959 = vxor.u32 %v7958, 2147483648
        %v7960 = vsel %vm7839, %v7959, %v7958
        %v7961 = vsub.s32 4, %v7937
        %v7962 = vsel %vm7839, %v7961, %v7937
        %v7963 = vsel %vm7838, %v888, %v7960
        %v7964 = vsel %vm7838, 0, %v7962
        %v7965 = vmul.f32 %v7963, %v7963
        %v7966 = vmul.f32 %v7965, -0.001358992
        %v7967 = vadd.f32 %v7966, 0.041655596
        %v7968 = vmul.f32 %v7965, %v7967
        %v7969 = vadd.f32 %v7968, -0.4999988
        %v7970 = vmul.f32 %v7965, %v7969
        %v7971 = vadd.f32 1.0, %v7970
        %v7972 = vmul.f32 %v7963, %v7963
        %v7973 = vmul.f32 %v7972, -0.00019511016
        %v7974 = vadd.f32 %v7973, 0.008332121
        %v7975 = vmul.f32 %v7972, %v7974
        %v7976 = vadd.f32 %v7975, -0.16666654
        %v7977 = vmul.f32 %v7972, %v7976
        %v7978 = vadd.f32 %v7977, 1.0
        %v7979 = vmul.f32 %v7978, %v7963
        %vm7980 = vweird.f32 %v888
        %v7981 = vand.u32 %v7964, 3
        %vm7982 = vcmp.lt.s32.totalorder %v7981, 2
        %vm7983 = vcmp.eq.s32.totalorder %v7981, 0
        %v7984 = vxor.u32 %v7979, 2147483648
        %v7985 = vsel %vm7983, %v7971, %v7984
        %vm7986 = vcmp.eq.s32.totalorder %v7981, 2
        %v7987 = vxor.u32 %v7971, 2147483648
        %v7988 = vsel %vm7986, %v7987, %v7979
        %v7989 = vsel %vm7982, %v7985, %v7988
        %v7990 = vsel %vm7980, nan, %v7989
        %v7991 = vand.u32 2147483647, %v889
        %vm7992 = vcmp.le.f32.partialorder %v7991, 0.7853982
        %vm7993 = vcmp.lt.s32.totalorder %v889, 0
        %v7994 = vand.u32 %v889, 2139095040
        %v7995 = vshrl.u32 %v7994, 23
        %v7996 = vsub.s32 %v7995, 127
        %v7997 = vand.u32 2147483647, %v889
        %v7998 = vand.u32 %v7997, 8388607
        %v7999 = vor.u32 %v7998, 8388608
        %v8000 = vsub.s32 0, %v7999
        %v8001 = vadd.s32 %v7996, 1
        %vm8002 = vcmp.gt.s32.totalorder %v8001, 0
        %v8003 = vsel %vm8002, %v8001, 0
        %v8004 = vshrl.u32 %v8003, 5
        %v8005 = vand.u32 %v8003, 31
        %v8006 = vsub.s32 32, %v8005
        %v8007 = vshrl.u32 683565275, %v8006
        %v8008 = vshll.u32 683565275, %v8005
        %v8009 = vshrl.u32 2475754826, %v8006
        %v8010 = vor.u32 %v8008, %v8009
        %v8011 = vshll.u32 2475754826, %v8005
        %v8012 = vshrl.u32 2131351028, %v8006
        %v8013 = vor.u32 %v8011, %v8012
        %v8014 = vshll.u32 2131351028, %v8005
        %v8015 = vshrl.u32 2102212464, %v8006
        %v8016 = vor.u32 %v8014, %v8015
        %v8017 = vshll.u32 2102212464, %v8005
        %v8018 = vshrl.u32 920167782, %v8006
        %v8019 = vor.u32 %v8017, %v8018
        %v8020 = vshll.u32 920167782, %v8005
        %v8021 = vshrl.u32 1326507024, %v8006
        %v8022 = vor.u32 %v8020, %v8021
        %vm8023 = vcmp.lt.s32.totalorder %v8004, 1
        %vm8024 = vcmp.lt.s32.totalorder %v8004, 2
        %vm8025 = vcmp.lt.s32.totalorder %v8004, 3
        %vm8026 = vcmp.lt.s32.totalorder %v8004, 4
        %v8027 = vsel %vm8023, %v8007, %v8010
        %v8028 = vsel %vm8026, %v8016, 2102212464
        %v8029 = vsel %vm8025, %v8013, %v8028
        %v8030 = vsel %vm8024, %v8027, %v8029
        %v8031 = vsel %vm8023, %v8010, %v8013
        %v8032 = vsel %vm8026, %v8019, 920167782
        %v8033 = vsel %vm8025, %v8016, %v8032
        %v8034 = vsel %vm8024, %v8031, %v8033
        %v8035 = vsel %vm8023, %v8013, %v8016
        %v8036 = vsel %vm8026, %v8022, 1326507024
        %v8037 = vsel %vm8025, %v8019, %v8036
        %v8038 = vsel %vm8024, %v8035, %v8037
        %v8039 = vshll.u32 %v7999, 8
        %v8040 = vand.u32 %v8039, 65535
        %v8041 = vshrl.u32 %v8039, 16
        %v8042 = vand.u32 %v8038, 65535
        %v8043 = vshrl.u32 %v8038, 16
        %v8044 = vmul.u32 %v8040, %v8042
        %v8045 = vmul.u32 %v8040, %v8043
        %v8046 = vmul.u32 %v8041, %v8042
        %v8047 = vmul.u32 %v8041, %v8043
        %v8048 = vshll.u32 %v8045, 16
        %v8049 = vshrl.u32 %v8045, 16
        %v8050 = vshll.u32 %v8046, 16
        %v8051 = vshrl.u32 %v8046, 16
        %vm8052 = vc.u32 %v8044, %v8048
        %v8053 = vsel %vm8052, 1, 0
        %v8054 = vadd.s32 %v8044, %v8048
        %v8055 = vadd.s32 %v8047, %v8053
        %vm8056 = vc.u32 %v8054, %v8050
        %v8057 = vsel %vm8056, 1, 0
        %v8058 = vadd.s32 %v8054, %v8050
        %v8059 = vadd.s32 %v8055, %v8057
        %v8060 = vadd.s32 %v8059, %v8049
        %v8061 = vadd.s32 %v8060, %v8051
        %v8062 = vand.u32 %v8039, 65535
        %v8063 = vshrl.u32 %v8039, 16
        %v8064 = vand.u32 %v8034, 65535
        %v8065 = vshrl.u32 %v8034, 16
        %v8066 = vmul.u32 %v8062, %v8064
        %v8067 = vmul.u32 %v8062, %v8065
        %v8068 = vmul.u32 %v8063, %v8064
        %v8069 = vmul.u32 %v8063, %v8065
        %v8070 = vshll.u32 %v8067, 16
        %v8071 = vshrl.u32 %v8067, 16
        %v8072 = vshll.u32 %v8068, 16
        %v8073 = vshrl.u32 %v8068, 16
        %vm8074 = vc.u32 %v8066, %v8070
        %v8075 = vsel %vm8074, 1, 0
        %v8076 = vadd.s32 %v8066, %v8070
        %v8077 = vadd.s32 %v8069, %v8075
        %vm8078 = vc.u32 %v8076, %v8072
        %v8079 = vsel %vm8078, 1, 0
        %v8080 = vadd.s32 %v8076, %v8072
        %v8081 = vadd.s32 %v8077, %v8079
        %v8082 = vadd.s32 %v8081, %v8071
        %v8083 = vadd.s32 %v8082, %v8073
        %v8084 = vmul.u32 %v8039, %v8030
        %v8085 = vadd.s32 %v8061, %v8080
        %vm8086 = vc.u32 %v8061, %v8080
        %v8087 = vadd.s32 %v8083, 1
        %v8088 = vsel %vm8086, %v8087, %v8083
        %v8089 = vadd.s32 %v8084, %v8088
        %v8090 = vadd.s32 %v8089, 536870912
        %v8091 = vshrl.u32 %v8090, 30
        %v8092 = vshll.u32 %v8091, 30
        %v8093 = vsub.s32 %v8089, %v8092
        %vm8094 = vcmp.lt.s32.totalorder %v8093, 0
        %v8095 = vsub.s32 0, %v8093
        %v8096 = vsel %vm8094, %v8095, %v8093
        %v8097 = vclz %v8096
        %v8098 = vsub.s32 %v8097, 2
        %vm8099 = vcmp.gt.s32.totalorder 0, %v8098
        %v8100 = vsel %vm8099, 0, %v8098
        %v8101 = vsub.s32 32, %v8100
        %v8102 = vshll.u32 %v8093, %v8100
        %v8103 = vshrl.u32 %v8085, %v8101
        %v8104 = vor.u32 %v8102, %v8103
        %v8105 = vsub.s32 4294967266, %v8100
        %v8106 = vadd.s32 %v8105, 127
        %v8107 = vshll.u32 %v8106, 23
        %v8108 = vor.u32 4788187, %v8107
        %v8109 = vand.u32 2147483647, %v8108
        %v8111 = vcvt.s32.f32 %v8104
        %v8112 = vmul.f32 %v8111, %v8109
        %v8113 = vxor.u32 %v8112, 2147483648
        %v8114 = vsel %vm7993, %v8113, %v8112
        %v8115 = vsub.s32 4, %v8091
        %v8116 = vsel %vm7993, %v8115, %v8091
        %v8117 = vsel %vm7992, %v889, %v8114
        %v8118 = vsel %vm7992, 0, %v8116
        %v8119 = vmul.f32 %v8117, %v8117
        %v8120 = vmul.f32 %v8119, -0.001358992
        %v8121 = vadd.f32 %v8120, 0.041655596
        %v8122 = vmul.f32 %v8119, %v8121
        %v8123 = vadd.f32 %v8122, -0.4999988
        %v8124 = vmul.f32 %v8119, %v8123
        %v8125 = vadd.f32 1.0, %v8124
        %v8126 = vmul.f32 %v8117, %v8117
        %v8127 = vmul.f32 %v8126, -0.00019511016
        %v8128 = vadd.f32 %v8127, 0.008332121
        %v8129 = vmul.f32 %v8126, %v8128
        %v8130 = vadd.f32 %v8129, -0.16666654
        %v8131 = vmul.f32 %v8126, %v8130
        %v8132 = vadd.f32 %v8131, 1.0
        %v8133 = vmul.f32 %v8132, %v8117
        %vm8134 = vweird.f32 %v889
        %v8135 = vand.u32 %v8118, 3
        %vm8136 = vcmp.lt.s32.totalorder %v8135, 2
        %vm8137 = vcmp.eq.s32.totalorder %v8135, 0
        %v8138 = vxor.u32 %v8133, 2147483648
        %v8139 = vsel %vm8137, %v8125, %v8138
        %vm8140 = vcmp.eq.s32.totalorder %v8135, 2
        %v8141 = vxor.u32 %v8125, 2147483648
        %v8142 = vsel %vm8140, %v8141, %v8133
        %v8143 = vsel %vm8136, %v8139, %v8142
        %v8144 = vsel %vm8134, nan, %v8143
        %v8145 = vand.u32 2147483647, %v890
        %vm8146 = vcmp.le.f32.partialorder %v8145, 0.7853982
        %vm8147 = vcmp.lt.s32.totalorder %v890, 0
        %v8148 = vand.u32 %v890, 2139095040
        %v8149 = vshrl.u32 %v8148, 23
        %v8150 = vsub.s32 %v8149, 127
        %v8151 = vand.u32 2147483647, %v890
        %v8152 = vand.u32 %v8151, 8388607
        %v8153 = vor.u32 %v8152, 8388608
        %v8154 = vsub.s32 0, %v8153
        %v8155 = vadd.s32 %v8150, 1
        %vm8156 = vcmp.gt.s32.totalorder %v8155, 0
        %v8157 = vsel %vm8156, %v8155, 0
        %v8158 = vshrl.u32 %v8157, 5
        %v8159 = vand.u32 %v8157, 31
        %v8160 = vsub.s32 32, %v8159
        %v8161 = vshrl.u32 683565275, %v8160
        %v8162 = vshll.u32 683565275, %v8159
        %v8163 = vshrl.u32 2475754826, %v8160
        %v8164 = vor.u32 %v8162, %v8163
        %v8165 = vshll.u32 2475754826, %v8159
        %v8166 = vshrl.u32 2131351028, %v8160
        %v8167 = vor.u32 %v8165, %v8166
        %v8168 = vshll.u32 2131351028, %v8159
        %v8169 = vshrl.u32 2102212464, %v8160
        %v8170 = vor.u32 %v8168, %v8169
        %v8171 = vshll.u32 2102212464, %v8159
        %v8172 = vshrl.u32 920167782, %v8160
        %v8173 = vor.u32 %v8171, %v8172
        %v8174 = vshll.u32 920167782, %v8159
        %v8175 = vshrl.u32 1326507024, %v8160
        %v8176 = vor.u32 %v8174, %v8175
        %vm8177 = vcmp.lt.s32.totalorder %v8158, 1
        %vm8178 = vcmp.lt.s32.totalorder %v8158, 2
        %vm8179 = vcmp.lt.s32.totalorder %v8158, 3
        %vm8180 = vcmp.lt.s32.totalorder %v8158, 4
        %v8181 = vsel %vm8177, %v8161, %v8164
        %v8182 = vsel %vm8180, %v8170, 2102212464
        %v8183 = vsel %vm8179, %v8167, %v8182
        %v8184 = vsel %vm8178, %v8181, %v8183
        %v8185 = vsel %vm8177, %v8164, %v8167
        %v8186 = vsel %vm8180, %v8173, 920167782
        %v8187 = vsel %vm8179, %v8170, %v8186
        %v8188 = vsel %vm8178, %v8185, %v8187
        %v8189 = vsel %vm8177, %v8167, %v8170
        %v8190 = vsel %vm8180, %v8176, 1326507024
        %v8191 = vsel %vm8179, %v8173, %v8190
        %v8192 = vsel %vm8178, %v8189, %v8191
        %v8193 = vshll.u32 %v8153, 8
        %v8194 = vand.u32 %v8193, 65535
        %v8195 = vshrl.u32 %v8193, 16
        %v8196 = vand.u32 %v8192, 65535
        %v8197 = vshrl.u32 %v8192, 16
        %v8198 = vmul.u32 %v8194, %v8196
        %v8199 = vmul.u32 %v8194, %v8197
        %v8200 = vmul.u32 %v8195, %v8196
        %v8201 = vmul.u32 %v8195, %v8197
        %v8202 = vshll.u32 %v8199, 16
        %v8203 = vshrl.u32 %v8199, 16
        %v8204 = vshll.u32 %v8200, 16
        %v8205 = vshrl.u32 %v8200, 16
        %vm8206 = vc.u32 %v8198, %v8202
        %v8207 = vsel %vm8206, 1, 0
        %v8208 = vadd.s32 %v8198, %v8202
        %v8209 = vadd.s32 %v8201, %v8207
        %vm8210 = vc.u32 %v8208, %v8204
        %v8211 = vsel %vm8210, 1, 0
        %v8212 = vadd.s32 %v8208, %v8204
        %v8213 = vadd.s32 %v8209, %v8211
        %v8214 = vadd.s32 %v8213, %v8203
        %v8215 = vadd.s32 %v8214, %v8205
        %v8216 = vand.u32 %v8193, 65535
        %v8217 = vshrl.u32 %v8193, 16
        %v8218 = vand.u32 %v8188, 65535
        %v8219 = vshrl.u32 %v8188, 16
        %v8220 = vmul.u32 %v8216, %v8218
        %v8221 = vmul.u32 %v8216, %v8219
        %v8222 = vmul.u32 %v8217, %v8218
        %v8223 = vmul.u32 %v8217, %v8219
        %v8224 = vshll.u32 %v8221, 16
        %v8225 = vshrl.u32 %v8221, 16
        %v8226 = vshll.u32 %v8222, 16
        %v8227 = vshrl.u32 %v8222, 16
        %vm8228 = vc.u32 %v8220, %v8224
        %v8229 = vsel %vm8228, 1, 0
        %v8230 = vadd.s32 %v8220, %v8224
        %v8231 = vadd.s32 %v8223, %v8229
        %vm8232 = vc.u32 %v8230, %v8226
        %v8233 = vsel %vm8232, 1, 0
        %v8234 = vadd.s32 %v8230, %v8226
        %v8235 = vadd.s32 %v8231, %v8233
        %v8236 = vadd.s32 %v8235, %v8225
        %v8237 = vadd.s32 %v8236, %v8227
        %v8238 = vmul.u32 %v8193, %v8184
        %v8239 = vadd.s32 %v8215, %v8234
        %vm8240 = vc.u32 %v8215, %v8234
        %v8241 = vadd.s32 %v8237, 1
        %v8242 = vsel %vm8240, %v8241, %v8237
        %v8243 = vadd.s32 %v8238, %v8242
        %v8244 = vadd.s32 %v8243, 536870912
        %v8245 = vshrl.u32 %v8244, 30
        %v8246 = vshll.u32 %v8245, 30
        %v8247 = vsub.s32 %v8243, %v8246
        %vm8248 = vcmp.lt.s32.totalorder %v8247, 0
        %v8249 = vsub.s32 0, %v8247
        %v8250 = vsel %vm8248, %v8249, %v8247
        %v8251 = vclz %v8250
        %v8252 = vsub.s32 %v8251, 2
        %vm8253 = vcmp.gt.s32.totalorder 0, %v8252
        %v8254 = vsel %vm8253, 0, %v8252
        %v8255 = vsub.s32 32, %v8254
        %v8256 = vshll.u32 %v8247, %v8254
        %v8257 = vshrl.u32 %v8239, %v8255
        %v8258 = vor.u32 %v8256, %v8257
        %v8259 = vsub.s32 4294967266, %v8254
        %v8260 = vadd.s32 %v8259, 127
        %v8261 = vshll.u32 %v8260, 23
        %v8262 = vor.u32 4788187, %v8261
        %v8263 = vand.u32 2147483647, %v8262
        %v8265 = vcvt.s32.f32 %v8258
        %v8266 = vmul.f32 %v8265, %v8263
        %v8267 = vxor.u32 %v8266, 2147483648
        %v8268 = vsel %vm8147, %v8267, %v8266
        %v8269 = vsub.s32 4, %v8245
        %v8270 = vsel %vm8147, %v8269, %v8245
        %v8271 = vsel %vm8146, %v890, %v8268
        %v8272 = vsel %vm8146, 0, %v8270
        %v8273 = vmul.f32 %v8271, %v8271
        %v8274 = vmul.f32 %v8273, -0.001358992
        %v8275 = vadd.f32 %v8274, 0.041655596
        %v8276 = vmul.f32 %v8273, %v8275
        %v8277 = vadd.f32 %v8276, -0.4999988
        %v8278 = vmul.f32 %v8273, %v8277
        %v8279 = vadd.f32 1.0, %v8278
        %v8280 = vmul.f32 %v8271, %v8271
        %v8281 = vmul.f32 %v8280, -0.00019511016
        %v8282 = vadd.f32 %v8281, 0.008332121
        %v8283 = vmul.f32 %v8280, %v8282
        %v8284 = vadd.f32 %v8283, -0.16666654
        %v8285 = vmul.f32 %v8280, %v8284
        %v8286 = vadd.f32 %v8285, 1.0
        %v8287 = vmul.f32 %v8286, %v8271
        %vm8288 = vweird.f32 %v890
        %v8289 = vand.u32 %v8272, 3
        %vm8290 = vcmp.lt.s32.totalorder %v8289, 2
        %vm8291 = vcmp.eq.s32.totalorder %v8289, 0
        %v8292 = vxor.u32 %v8287, 2147483648
        %v8293 = vsel %vm8291, %v8279, %v8292
        %vm8294 = vcmp.eq.s32.totalorder %v8289, 2
        %v8295 = vxor.u32 %v8279, 2147483648
        %v8296 = vsel %vm8294, %v8295, %v8287
        %v8297 = vsel %vm8290, %v8293, %v8296
        %v8298 = vsel %vm8288, nan, %v8297
        %8315 = vrot.lane.b32.xlu0 %v5988, 127
        %v8316 = vpop.permute.xlu0 %8315
        %8317 = vrot.lane.b32.xlu0 %v6142, 127
        %v8318 = vpop.permute.xlu0 %8317
        %8319 = vrot.lane.b32.xlu0 %v6296, 127
        %v8320 = vpop.permute.xlu0 %8319
        %8321 = vrot.lane.b32.xlu0 %v6450, 127
        %v8322 = vpop.permute.xlu0 %8321
        %8323 = vrot.lane.b32.xlu0 %v6604, 127
        %v8324 = vpop.permute.xlu0 %8323
        %8325 = vrot.lane.b32.xlu0 %v6758, 127
        %v8326 = vpop.permute.xlu0 %8325
        %8327 = vrot.lane.b32.xlu0 %v6912, 127
        %v8328 = vpop.permute.xlu0 %8327
        %8329 = vrot.lane.b32.xlu0 %v7066, 127
        %v8330 = vpop.permute.xlu0 %8329
        %8331 = vrot.lane.b32.xlu0 %v7220, 127
        %v8332 = vpop.permute.xlu0 %8331
        %8333 = vrot.lane.b32.xlu0 %v7374, 127
        %v8334 = vpop.permute.xlu0 %8333
        %8335 = vrot.lane.b32.xlu0 %v7528, 127
        %v8336 = vpop.permute.xlu0 %8335
        %8337 = vrot.lane.b32.xlu0 %v7682, 127
        %v8338 = vpop.permute.xlu0 %8337
        %8339 = vrot.lane.b32.xlu0 %v7836, 127
        %v8340 = vpop.permute.xlu0 %8339
        %8341 = vrot.lane.b32.xlu0 %v7990, 127
        %v8342 = vpop.permute.xlu0 %8341
        %8343 = vrot.lane.b32.xlu0 %v8144, 127
        %v8344 = vpop.permute.xlu0 %8343
        %8345 = vrot.lane.b32.xlu0 %v8298, 127
        %v8346 = vpop.permute.xlu0 %8345
        %v8363 = vmul.f32 %v1044, %v8316
        %v8364 = vmul.f32 %v1198, %v8318
        %v8365 = vmul.f32 %v1352, %v8320
        %v8366 = vmul.f32 %v1506, %v8322
        %v8367 = vmul.f32 %v1660, %v8324
        %v8368 = vmul.f32 %v1814, %v8326
        %v8369 = vmul.f32 %v1968, %v8328
        %v8370 = vmul.f32 %v2122, %v8330
        %v8371 = vmul.f32 %v2276, %v8332
        %v8372 = vmul.f32 %v2430, %v8334
        %v8373 = vmul.f32 %v2584, %v8336
        %v8374 = vmul.f32 %v2738, %v8338
        %v8375 = vmul.f32 %v2892, %v8340
        %v8376 = vmul.f32 %v3046, %v8342
        %v8377 = vmul.f32 %v3200, %v8344
        %v8378 = vmul.f32 %v3354, %v8346
        %8395 = vrot.lane.b32.xlu0 %v8363, 1
        %v8396 = vpop.permute.xlu0 %8395
        %8397 = vrot.lane.b32.xlu0 %v8364, 1
        %v8398 = vpop.permute.xlu0 %8397
        %8399 = vrot.lane.b32.xlu0 %v8365, 1
        %v8400 = vpop.permute.xlu0 %8399
        %8401 = vrot.lane.b32.xlu0 %v8366, 1
        %v8402 = vpop.permute.xlu0 %8401
        %8403 = vrot.lane.b32.xlu0 %v8367, 1
        %v8404 = vpop.permute.xlu0 %8403
        %8405 = vrot.lane.b32.xlu0 %v8368, 1
        %v8406 = vpop.permute.xlu0 %8405
        %8407 = vrot.lane.b32.xlu0 %v8369, 1
        %v8408 = vpop.permute.xlu0 %8407
        %8409 = vrot.lane.b32.xlu0 %v8370, 1
        %v8410 = vpop.permute.xlu0 %8409
        %8411 = vrot.lane.b32.xlu0 %v8371, 1
        %v8412 = vpop.permute.xlu0 %8411
        %8413 = vrot.lane.b32.xlu0 %v8372, 1
        %v8414 = vpop.permute.xlu0 %8413
        %8415 = vrot.lane.b32.xlu0 %v8373, 1
        %v8416 = vpop.permute.xlu0 %8415
        %8417 = vrot.lane.b32.xlu0 %v8374, 1
        %v8418 = vpop.permute.xlu0 %8417
        %8419 = vrot.lane.b32.xlu0 %v8375, 1
        %v8420 = vpop.permute.xlu0 %8419
        %8421 = vrot.lane.b32.xlu0 %v8376, 1
        %v8422 = vpop.permute.xlu0 %8421
        %8423 = vrot.lane.b32.xlu0 %v8377, 1
        %v8424 = vpop.permute.xlu0 %8423
        %8425 = vrot.lane.b32.xlu0 %v8378, 1
        %v8426 = vpop.permute.xlu0 %8425
        %v8443 = vadd.f32 %v3509, %v8396
        %v8444 = vadd.f32 %v3664, %v8398
        %v8445 = vadd.f32 %v3819, %v8400
        %v8446 = vadd.f32 %v3974, %v8402
        %v8447 = vadd.f32 %v4129, %v8404
        %v8448 = vadd.f32 %v4284, %v8406
        %v8449 = vadd.f32 %v4439, %v8408
        %v8450 = vadd.f32 %v4594, %v8410
        %v8451 = vadd.f32 %v4749, %v8412
        %v8452 = vadd.f32 %v4904, %v8414
        %v8453 = vadd.f32 %v5059, %v8416
        %v8454 = vadd.f32 %v5214, %v8418
        %v8455 = vadd.f32 %v5369, %v8420
        %v8456 = vadd.f32 %v5524, %v8422
        %v8457 = vadd.f32 %v5679, %v8424
        %v8458 = vadd.f32 %v5834, %v8426
        %v8459 = vmul.f32 %v8443, 0.70710677
        %v8460 = vmul.f32 %v8444, 0.70710677
        %v8461 = vmul.f32 %v8445, 0.70710677
        %v8462 = vmul.f32 %v8446, 0.70710677
        %v8463 = vmul.f32 %v8447, 0.70710677
        %v8464 = vmul.f32 %v8448, 0.70710677
        %v8465 = vmul.f32 %v8449, 0.70710677
        %v8466 = vmul.f32 %v8450, 0.70710677
        %v8467 = vmul.f32 %v8451, 0.70710677
        %v8468 = vmul.f32 %v8452, 0.70710677
        %v8469 = vmul.f32 %v8453, 0.70710677
        %v8470 = vmul.f32 %v8454, 0.70710677
        %v8471 = vmul.f32 %v8455, 0.70710677
        %v8472 = vmul.f32 %v8456, 0.70710677
        %v8473 = vmul.f32 %v8457, 0.70710677
        %v8474 = vmul.f32 %v8458, 0.70710677
        %v8475 = vld [vmem:[%s7] sm:$0x1]
        %8477 = vset.pattern.permute.xlu0 0
        %8478 = vperm.xlu0 %8477, %v1044
        %v8479 = vpop.permute.xlu0 %8478
        %8482 = vset.pattern.permute.xlu0 0
        %8483 = vperm.xlu0 %8482, %v1198
        %v8484 = vpop.permute.xlu0 %8483
        %8487 = vset.pattern.permute.xlu0 0
        %8488 = vperm.xlu0 %8487, %v1352
        %v8489 = vpop.permute.xlu0 %8488
        %8492 = vset.pattern.permute.xlu0 0
        %8493 = vperm.xlu0 %8492, %v1506
        %v8494 = vpop.permute.xlu0 %8493
        %8497 = vset.pattern.permute.xlu0 0
        %8498 = vperm.xlu0 %8497, %v1660
        %v8499 = vpop.permute.xlu0 %8498
        %8502 = vset.pattern.permute.xlu0 0
        %8503 = vperm.xlu0 %8502, %v1814
        %v8504 = vpop.permute.xlu0 %8503
        %8507 = vset.pattern.permute.xlu0 0
        %8508 = vperm.xlu0 %8507, %v1968
        %v8509 = vpop.permute.xlu0 %8508
        %8512 = vset.pattern.permute.xlu0 0
        %8513 = vperm.xlu0 %8512, %v2122
        %v8514 = vpop.permute.xlu0 %8513
        %8517 = vset.pattern.permute.xlu0 0
        %8518 = vperm.xlu0 %8517, %v2276
        %v8519 = vpop.permute.xlu0 %8518
        %8522 = vset.pattern.permute.xlu0 0
        %8523 = vperm.xlu0 %8522, %v2430
        %v8524 = vpop.permute.xlu0 %8523
        %8527 = vset.pattern.permute.xlu0 0
        %8528 = vperm.xlu0 %8527, %v2584
        %v8529 = vpop.permute.xlu0 %8528
        %8532 = vset.pattern.permute.xlu0 0
        %8533 = vperm.xlu0 %8532, %v2738
        %v8534 = vpop.permute.xlu0 %8533
        %8537 = vset.pattern.permute.xlu0 0
        %8538 = vperm.xlu0 %8537, %v2892
        %v8539 = vpop.permute.xlu0 %8538
        %8542 = vset.pattern.permute.xlu0 0
        %8543 = vperm.xlu0 %8542, %v3046
        %v8544 = vpop.permute.xlu0 %8543
        %8547 = vset.pattern.permute.xlu0 0
        %8548 = vperm.xlu0 %8547, %v3200
        %v8549 = vpop.permute.xlu0 %8548
        %8552 = vset.pattern.permute.xlu0 0
        %8553 = vperm.xlu0 %8552, %v3354
        %v8554 = vpop.permute.xlu0 %8553
        %v8556 = vperm.slane %v8475, 0
        %v8557 = vmul.f32 %v8479, %v8556
        %v8558 = vmul.f32 %v8484, %v8556
        %v8559 = vmul.f32 %v8489, %v8556
        %v8560 = vmul.f32 %v8494, %v8556
        %v8561 = vmul.f32 %v8499, %v8556
        %v8562 = vmul.f32 %v8504, %v8556
        %v8563 = vmul.f32 %v8509, %v8556
        %v8564 = vmul.f32 %v8514, %v8556
        %v8565 = vmul.f32 %v8519, %v8556
        %v8566 = vmul.f32 %v8524, %v8556
        %v8567 = vmul.f32 %v8529, %v8556
        %v8568 = vmul.f32 %v8534, %v8556
        %v8569 = vmul.f32 %v8539, %v8556
        %v8570 = vmul.f32 %v8544, %v8556
        %v8571 = vmul.f32 %v8549, %v8556
        %v8572 = vmul.f32 %v8554, %v8556
        %v8573 = vld [vmem:[%s7 + $0x1] sm:$0x1]
        %8575 = vset.pattern.permute.xlu0 1
        %8576 = vperm.xlu0 %8575, %v8459
        %v8577 = vpop.permute.xlu0 %8576
        %8580 = vset.pattern.permute.xlu0 1
        %8581 = vperm.xlu0 %8580, %v8460
        %v8582 = vpop.permute.xlu0 %8581
        %8585 = vset.pattern.permute.xlu0 1
        %8586 = vperm.xlu0 %8585, %v8461
        %v8587 = vpop.permute.xlu0 %8586
        %8590 = vset.pattern.permute.xlu0 1
        %8591 = vperm.xlu0 %8590, %v8462
        %v8592 = vpop.permute.xlu0 %8591
        %8595 = vset.pattern.permute.xlu0 1
        %8596 = vperm.xlu0 %8595, %v8463
        %v8597 = vpop.permute.xlu0 %8596
        %8600 = vset.pattern.permute.xlu0 1
        %8601 = vperm.xlu0 %8600, %v8464
        %v8602 = vpop.permute.xlu0 %8601
        %8605 = vset.pattern.permute.xlu0 1
        %8606 = vperm.xlu0 %8605, %v8465
        %v8607 = vpop.permute.xlu0 %8606
        %8610 = vset.pattern.permute.xlu0 1
        %8611 = vperm.xlu0 %8610, %v8466
        %v8612 = vpop.permute.xlu0 %8611
        %8615 = vset.pattern.permute.xlu0 1
        %8616 = vperm.xlu0 %8615, %v8467
        %v8617 = vpop.permute.xlu0 %8616
        %8620 = vset.pattern.permute.xlu0 1
        %8621 = vperm.xlu0 %8620, %v8468
        %v8622 = vpop.permute.xlu0 %8621
        %8625 = vset.pattern.permute.xlu0 1
        %8626 = vperm.xlu0 %8625, %v8469
        %v8627 = vpop.permute.xlu0 %8626
        %8630 = vset.pattern.permute.xlu0 1
        %8631 = vperm.xlu0 %8630, %v8470
        %v8632 = vpop.permute.xlu0 %8631
        %8635 = vset.pattern.permute.xlu0 1
        %8636 = vperm.xlu0 %8635, %v8471
        %v8637 = vpop.permute.xlu0 %8636
        %8640 = vset.pattern.permute.xlu0 1
        %8641 = vperm.xlu0 %8640, %v8472
        %v8642 = vpop.permute.xlu0 %8641
        %8645 = vset.pattern.permute.xlu0 1
        %8646 = vperm.xlu0 %8645, %v8473
        %v8647 = vpop.permute.xlu0 %8646
        %8650 = vset.pattern.permute.xlu0 1
        %8651 = vperm.xlu0 %8650, %v8474
        %v8652 = vpop.permute.xlu0 %8651
        %v8654 = vperm.slane %v8573, 0
        %v8655 = vmul.f32 %v8577, %v8654
        %v8656 = vmul.f32 %v8582, %v8654
        %v8657 = vmul.f32 %v8587, %v8654
        %v8658 = vmul.f32 %v8592, %v8654
        %v8659 = vmul.f32 %v8597, %v8654
        %v8660 = vmul.f32 %v8602, %v8654
        %v8661 = vmul.f32 %v8607, %v8654
        %v8662 = vmul.f32 %v8612, %v8654
        %v8663 = vmul.f32 %v8617, %v8654
        %v8664 = vmul.f32 %v8622, %v8654
        %v8665 = vmul.f32 %v8627, %v8654
        %v8666 = vmul.f32 %v8632, %v8654
        %v8667 = vmul.f32 %v8637, %v8654
        %v8668 = vmul.f32 %v8642, %v8654
        %v8669 = vmul.f32 %v8647, %v8654
        %v8670 = vmul.f32 %v8652, %v8654
        %v8671 = vadd.f32 %v8557, %v8655
        %v8672 = vadd.f32 %v8558, %v8656
        %v8673 = vadd.f32 %v8559, %v8657
        %v8674 = vadd.f32 %v8560, %v8658
        %v8675 = vadd.f32 %v8561, %v8659
        %v8676 = vadd.f32 %v8562, %v8660
        %v8677 = vadd.f32 %v8563, %v8661
        %v8678 = vadd.f32 %v8564, %v8662
        %v8679 = vadd.f32 %v8565, %v8663
        %v8680 = vadd.f32 %v8566, %v8664
        %v8681 = vadd.f32 %v8567, %v8665
        %v8682 = vadd.f32 %v8568, %v8666
        %v8683 = vadd.f32 %v8569, %v8667
        %v8684 = vadd.f32 %v8570, %v8668
        %v8685 = vadd.f32 %v8571, %v8669
        %v8686 = vadd.f32 %v8572, %v8670
        %v8687 = vld [vmem:[%s8] sm:$0x1]
        %v8689 = vperm.slane %v8687, 0
        %v8691 = vadd.f32 %v8671, %v8689
        %v8692 = vadd.f32 %v8672, %v8689
        %v8693 = vadd.f32 %v8673, %v8689
        %v8694 = vadd.f32 %v8674, %v8689
        %v8695 = vadd.f32 %v8675, %v8689
        %v8696 = vadd.f32 %v8676, %v8689
        %v8697 = vadd.f32 %v8677, %v8689
        %v8698 = vadd.f32 %v8678, %v8689
        %v8699 = vadd.f32 %v8679, %v8689
        %v8700 = vadd.f32 %v8680, %v8689
        %v8701 = vadd.f32 %v8681, %v8689
        %v8702 = vadd.f32 %v8682, %v8689
        %v8703 = vadd.f32 %v8683, %v8689
        %v8704 = vadd.f32 %v8684, %v8689
        %v8705 = vadd.f32 %v8685, %v8689
        %v8706 = vadd.f32 %v8686, %v8689
        %v8707 = vmax.f32 %v8691, 0.0
        %v8708 = vmax.f32 %v8692, 0.0
        %v8709 = vmax.f32 %v8693, 0.0
        %v8710 = vmax.f32 %v8694, 0.0
        %v8711 = vmax.f32 %v8695, 0.0
        %v8712 = vmax.f32 %v8696, 0.0
        %v8713 = vmax.f32 %v8697, 0.0
        %v8714 = vmax.f32 %v8698, 0.0
        %v8715 = vmax.f32 %v8699, 0.0
        %v8716 = vmax.f32 %v8700, 0.0
        %v8717 = vmax.f32 %v8701, 0.0
        %v8718 = vmax.f32 %v8702, 0.0
        %v8719 = vmax.f32 %v8703, 0.0
        %v8720 = vmax.f32 %v8704, 0.0
        %v8721 = vmax.f32 %v8705, 0.0
        %v8722 = vmax.f32 %v8706, 0.0
        %v8723 = vld [vmem:[%s9] sm:$0xff]
        %v8724 = vld [vmem:[%s9 + $0x8] sm:$0xff]
        %v8725 = vld [vmem:[%s9 + $0x10] sm:$0xff]
        %v8726 = vld [vmem:[%s9 + $0x18] sm:$0xff]
        %v8727 = vld [vmem:[%s10] sm:$0x1]
        %v8729 = vperm.slane %v8727, 0
        %v8732 = vsel %vm740, %v8707, 0
        %v8735 = vsel %vm740, %v8708, 0
        %v8738 = vsel %vm740, %v8709, 0
        %v8741 = vsel %vm740, %v8710, 0
        %v8744 = vsel %vm740, %v8711, 0
        %v8747 = vsel %vm740, %v8712, 0
        %v8750 = vsel %vm740, %v8713, 0
        %v8753 = vsel %vm740, %v8714, 0
        %v8756 = vsel %vm740, %v8715, 0
        %v8759 = vsel %vm740, %v8716, 0
        %v8762 = vsel %vm740, %v8717, 0
        %v8765 = vsel %vm740, %v8718, 0
        %v8768 = vsel %vm740, %v8719, 0
        %v8771 = vsel %vm740, %v8720, 0
        %v8774 = vsel %vm740, %v8721, 0
        %v8777 = vsel %vm740, %v8722, 0
        %8779 = vmatpush.msra.mxu0 0.0
        %8780 = vmatpush.msra.mxu0 0.0
        %8781 = vmatpush.msra.mxu0 0.0
        %8782 = vmatpush.msra.mxu0 0.0
        %8783 = vmatpush.msra.mxu0 0.0
        %8784 = vmatpush.msra.mxu0 0.0
        %8785 = vmatpush.msra.mxu0 0.0
        %8786 = vmatpush.msra.mxu0 0.0
        %8787 = vmatpush.msra.mxu0 0.0
        %8788 = vmatpush.msra.mxu0 0.0
        %8789 = vmatpush.msra.mxu0 0.0
        %8790 = vmatpush.msra.mxu0 0.0
        %8791 = vmatpush.msra.mxu0 %v8726
        %8792 = vmatpush.msra.mxu0 %v8725
        %8793 = vmatpush.msra.mxu0 %v8724
        %8794 = vmatpush.msra.mxu0 %v8723
        %8795 = vmatmul.f32.gmra.mxu0 %v8732
        %v8796 = vpop.f32.mrf.mxu0
        %v8797 = vadd.f32 %v8729, %v8796
        %8798 = vmatmul.f32.gmra.mxu0 %v8735
        %v8799 = vpop.f32.mrf.mxu0
        %v8800 = vadd.f32 %v8729, %v8799
        %8801 = vmatmul.f32.gmra.mxu0 %v8738
        %v8802 = vpop.f32.mrf.mxu0
        %v8803 = vadd.f32 %v8729, %v8802
        %8804 = vmatmul.f32.gmra.mxu0 %v8741
        %v8805 = vpop.f32.mrf.mxu0
        %v8806 = vadd.f32 %v8729, %v8805
        %8807 = vmatmul.f32.gmra.mxu0 %v8744
        %v8808 = vpop.f32.mrf.mxu0
        %v8809 = vadd.f32 %v8729, %v8808
        %8810 = vmatmul.f32.gmra.mxu0 %v8747
        %v8811 = vpop.f32.mrf.mxu0
        %v8812 = vadd.f32 %v8729, %v8811
        %8813 = vmatmul.f32.gmra.mxu0 %v8750
        %v8814 = vpop.f32.mrf.mxu0
        %v8815 = vadd.f32 %v8729, %v8814
        %8816 = vmatmul.f32.gmra.mxu0 %v8753
        %v8817 = vpop.f32.mrf.mxu0
        %v8818 = vadd.f32 %v8729, %v8817
        %8819 = vmatmul.f32.gmra.mxu0 %v8756
        %v8820 = vpop.f32.mrf.mxu0
        %v8821 = vadd.f32 %v8729, %v8820
        %8822 = vmatmul.f32.gmra.mxu0 %v8759
        %v8823 = vpop.f32.mrf.mxu0
        %v8824 = vadd.f32 %v8729, %v8823
        %8825 = vmatmul.f32.gmra.mxu0 %v8762
        %v8826 = vpop.f32.mrf.mxu0
        %v8827 = vadd.f32 %v8729, %v8826
        %8828 = vmatmul.f32.gmra.mxu0 %v8765
        %v8829 = vpop.f32.mrf.mxu0
        %v8830 = vadd.f32 %v8729, %v8829
        %8831 = vmatmul.f32.gmra.mxu0 %v8768
        %v8832 = vpop.f32.mrf.mxu0
        %v8833 = vadd.f32 %v8729, %v8832
        %8834 = vmatmul.f32.gmra.mxu0 %v8771
        %v8835 = vpop.f32.mrf.mxu0
        %v8836 = vadd.f32 %v8729, %v8835
        %8837 = vmatmul.f32.gmra.mxu0 %v8774
        %v8838 = vpop.f32.mrf.mxu0
        %v8839 = vadd.f32 %v8729, %v8838
        %8840 = vmatmul.f32.gmra.mxu0 %v8777
        %v8841 = vpop.f32.mrf.mxu0
        %v8842 = vadd.f32 %v8729, %v8841
        %8843 = vdwg.mxu0
        %v8844 = vmax.f32 %v8797, 0.0
        %v8845 = vmax.f32 %v8800, 0.0
        %v8846 = vmax.f32 %v8803, 0.0
        %v8847 = vmax.f32 %v8806, 0.0
        %v8848 = vmax.f32 %v8809, 0.0
        %v8849 = vmax.f32 %v8812, 0.0
        %v8850 = vmax.f32 %v8815, 0.0
        %v8851 = vmax.f32 %v8818, 0.0
        %v8852 = vmax.f32 %v8821, 0.0
        %v8853 = vmax.f32 %v8824, 0.0
        %v8854 = vmax.f32 %v8827, 0.0
        %v8855 = vmax.f32 %v8830, 0.0
        %v8856 = vmax.f32 %v8833, 0.0
        %v8857 = vmax.f32 %v8836, 0.0
        %v8858 = vmax.f32 %v8839, 0.0
        %v8859 = vmax.f32 %v8842, 0.0
        %v8860 = vld [vmem:[%s11] sm:$0xff]
        %v8861 = vld [vmem:[%s11 + $0x8] sm:$0xff]
        %v8862 = vld [vmem:[%s11 + $0x10] sm:$0xff]
        %v8863 = vld [vmem:[%s11 + $0x18] sm:$0xff]
        %v8864 = vld [vmem:[%s11 + $0x20] sm:$0xff]
        %v8865 = vld [vmem:[%s11 + $0x28] sm:$0xff]
        %v8866 = vld [vmem:[%s11 + $0x30] sm:$0xff]
        %v8867 = vld [vmem:[%s11 + $0x38] sm:$0xff]
        %v8868 = vld [vmem:[%s12] sm:$0x1]
        %v8870 = vperm.slane %v8868, 0
        %v8873 = vsel %vm592, %v8844, 0
        %v8876 = vsel %vm592, %v8845, 0
        %v8879 = vsel %vm592, %v8846, 0
        %v8882 = vsel %vm592, %v8847, 0
        %v8885 = vsel %vm592, %v8848, 0
        %v8888 = vsel %vm592, %v8849, 0
        %v8891 = vsel %vm592, %v8850, 0
        %v8894 = vsel %vm592, %v8851, 0
        %v8897 = vsel %vm592, %v8852, 0
        %v8900 = vsel %vm592, %v8853, 0
        %v8903 = vsel %vm592, %v8854, 0
        %v8906 = vsel %vm592, %v8855, 0
        %v8909 = vsel %vm592, %v8856, 0
        %v8912 = vsel %vm592, %v8857, 0
        %v8915 = vsel %vm592, %v8858, 0
        %v8918 = vsel %vm592, %v8859, 0
        %8920 = vmatpush.msra.mxu0 0.0
        %8921 = vmatpush.msra.mxu0 0.0
        %8922 = vmatpush.msra.mxu0 0.0
        %8923 = vmatpush.msra.mxu0 0.0
        %8924 = vmatpush.msra.mxu0 0.0
        %8925 = vmatpush.msra.mxu0 0.0
        %8926 = vmatpush.msra.mxu0 0.0
        %8927 = vmatpush.msra.mxu0 0.0
        %8928 = vmatpush.msra.mxu0 %v8867
        %8929 = vmatpush.msra.mxu0 %v8866
        %8930 = vmatpush.msra.mxu0 %v8865
        %8931 = vmatpush.msra.mxu0 %v8864
        %8932 = vmatpush.msra.mxu0 %v8863
        %8933 = vmatpush.msra.mxu0 %v8862
        %8934 = vmatpush.msra.mxu0 %v8861
        %8935 = vmatpush.msra.mxu0 %v8860
        %8936 = vmatmul.f32.gmra.mxu0 %v8873
        %v8937 = vpop.f32.mrf.mxu0
        %v8938 = vadd.f32 %v8870, %v8937
        %8939 = vmatmul.f32.gmra.mxu0 %v8876
        %v8940 = vpop.f32.mrf.mxu0
        %v8941 = vadd.f32 %v8870, %v8940
        %8942 = vmatmul.f32.gmra.mxu0 %v8879
        %v8943 = vpop.f32.mrf.mxu0
        %v8944 = vadd.f32 %v8870, %v8943
        %8945 = vmatmul.f32.gmra.mxu0 %v8882
        %v8946 = vpop.f32.mrf.mxu0
        %v8947 = vadd.f32 %v8870, %v8946
        %8948 = vmatmul.f32.gmra.mxu0 %v8885
        %v8949 = vpop.f32.mrf.mxu0
        %v8950 = vadd.f32 %v8870, %v8949
        %8951 = vmatmul.f32.gmra.mxu0 %v8888
        %v8952 = vpop.f32.mrf.mxu0
        %v8953 = vadd.f32 %v8870, %v8952
        %8954 = vmatmul.f32.gmra.mxu0 %v8891
        %v8955 = vpop.f32.mrf.mxu0
        %v8956 = vadd.f32 %v8870, %v8955
        %8957 = vmatmul.f32.gmra.mxu0 %v8894
        %v8958 = vpop.f32.mrf.mxu0
        %v8959 = vadd.f32 %v8870, %v8958
        %8960 = vmatmul.f32.gmra.mxu0 %v8897
        %v8961 = vpop.f32.mrf.mxu0
        %v8962 = vadd.f32 %v8870, %v8961
        %8963 = vmatmul.f32.gmra.mxu0 %v8900
        %v8964 = vpop.f32.mrf.mxu0
        %v8965 = vadd.f32 %v8870, %v8964
        %8966 = vmatmul.f32.gmra.mxu0 %v8903
        %v8967 = vpop.f32.mrf.mxu0
        %v8968 = vadd.f32 %v8870, %v8967
        %8969 = vmatmul.f32.gmra.mxu0 %v8906
        %v8970 = vpop.f32.mrf.mxu0
        %v8971 = vadd.f32 %v8870, %v8970
        %8972 = vmatmul.f32.gmra.mxu0 %v8909
        %v8973 = vpop.f32.mrf.mxu0
        %v8974 = vadd.f32 %v8870, %v8973
        %8975 = vmatmul.f32.gmra.mxu0 %v8912
        %v8976 = vpop.f32.mrf.mxu0
        %v8977 = vadd.f32 %v8870, %v8976
        %8978 = vmatmul.f32.gmra.mxu0 %v8915
        %v8979 = vpop.f32.mrf.mxu0
        %v8980 = vadd.f32 %v8870, %v8979
        %8981 = vmatmul.f32.gmra.mxu0 %v8918
        %v8982 = vpop.f32.mrf.mxu0
        %v8983 = vadd.f32 %v8870, %v8982
        %8984 = vdwg.mxu0
        %8985 = vst [vmem:[%s460] sm:$0xff] %v8938
        %8986 = vst [vmem:[%s460 + $0x8] sm:$0xff] %v8941
        %8987 = vst [vmem:[%s460 + $0x10] sm:$0xff] %v8944
        %8988 = vst [vmem:[%s460 + $0x18] sm:$0xff] %v8947
        %8989 = vst [vmem:[%s460 + $0x20] sm:$0xff] %v8950
        %8990 = vst [vmem:[%s460 + $0x28] sm:$0xff] %v8953
        %8991 = vst [vmem:[%s460 + $0x30] sm:$0xff] %v8956
        %8992 = vst [vmem:[%s460 + $0x38] sm:$0xff] %v8959
        %8993 = vst [vmem:[%s460 + $0x40] sm:$0xff] %v8962
        %8994 = vst [vmem:[%s460 + $0x48] sm:$0xff] %v8965
        %8995 = vst [vmem:[%s460 + $0x50] sm:$0xff] %v8968
        %8996 = vst [vmem:[%s460 + $0x58] sm:$0xff] %v8971
        %8997 = vst [vmem:[%s460 + $0x60] sm:$0xff] %v8974
        %8998 = vst [vmem:[%s460 + $0x68] sm:$0xff] %v8977
        %8999 = vst [vmem:[%s460 + $0x70] sm:$0xff] %v8980
        %9000 = vst [vmem:[%s460 + $0x78] sm:$0xff] %v8983
        %s9001 = sand.u32 %s316, 1
        %s9002 = scalar_lea.sflag [#allocation4], %s9001
        %s9003 = sand.u32 %s316, 1
        %s9004 = smul.addr %s9003, 128
        %s9005 = scalar_lea.vmem [#allocation5], %s9004
        // Predicated region
        $region77: #{tpu_custom_call.1} parent=71 // pred_check
          %p9006 = pneg %p326
        $region78: #{tpu_custom_call.1} parent=71 // pred_check_branch
          %9008 = sbr.rel (%p9006) target = $region80
        $region79: #{tpu_custom_call.1} parent=71 // pred_region
          %s9009 = smul.u32 16, %s30
          %9011 = vsyncadd %s9002, 0
          %s9012 = smul.addr %s9009, 8
          %s9013 = scalar_lea.hbm %s13, %s9012
          %s9014 = sshll.u32 %s9005, 4
          %s9015 = int_to_ptr.vmem [resolvable:$true] %s9014
          %s9016 = sshll.u32 %s9013, 4
          %s9017 = int_to_ptr.hbm [resolvable:$true] %s9016
          %9022 = dma.vmem_to_hbm [thread:$0]  %s9015, 2048, %s9017, %s9002, 128, 128, 8
        $region80: #{tpu_custom_call.1} parent=71 // pred_fallthru
          _
      $region72: #{tpu_custom_call.1} parent=5 // pred_fallthru
        _
      %p9023 = scmp.le.s32.totalorder 2, %s25
      // Predicated region
      $region81: #{tpu_custom_call.1} parent=5 // pred_check
        %p9024 = pneg %p9023
      $region82: #{tpu_custom_call.1} parent=5 // pred_check_branch
        %9026 = sbr.rel (%p9024) target = $region84
      $region83: #{tpu_custom_call.1} parent=5 // pred_region
        %s9027 = ssub.s32 %s25, 2
        // Predicated region
        $region85: #{tpu_custom_call.1} parent=83 // pred_check
          %p9028 = pneg %p332
        $region86: #{tpu_custom_call.1} parent=83 // pred_check_branch
          %9030 = sbr.rel (%p9028) target = $region88
        $region87: #{tpu_custom_call.1} parent=83 // pred_region
          %s9031 = sand.u32 %s317, 1
          %s9032 = scalar_lea.sflag [#allocation4], %s9031
          %s9033 = sand.u32 %s317, 1
          %s9034 = smul.addr %s9033, 128
          %s9035 = scalar_lea.vmem [#allocation5], %s9034
          %9037 = dma.done %s9032, 2048
        $region88: #{tpu_custom_call.1} parent=83 // pred_fallthru
          _
      $region84: #{tpu_custom_call.1} parent=5 // pred_fallthru
        _
    $region6: #{tpu_custom_call.1} parent=1 // loop_footer
      %s29 = sadd.s32 1, %s25
    $region7: #{tpu_custom_call.1} parent=1 // loop_footer_branch
      %24 = sbr.rel target = $region3
    $region8: #{tpu_custom_call.1} parent=1 // loop_exit
      _
    %9038 = vsyncpa [#allocation3], 1
    %s9039 = scalar_lea.sflag [#allocation3], 1
    %9040 = vsyncpa %s9039, 1
    %9041 = vsyncpa [#allocation4], 1
    %s9042 = scalar_lea.sflag [#allocation4], 1
    %9043 = vsyncpa %s9042, 1

</llo_original>
